<compile_context>
chip_gen: v7x
topology: tpu7x:2x2x1
jax: 0.10.0
libtpu: 0.0.40
codegen_flags: <defaults>
</compile_context>

<pallas_src>
import jax
import jax.numpy as jnp
from jax import lax
from jax.experimental import pallas as pl
from jax.experimental.pallas import tpu as pltpu

# ---- module hyper-parameters (FocalModulation(dim=32, focal_window=3, focal_level=2)) ----
DIM = 32
FOCAL_WINDOW = 3
FOCAL_LEVEL = 2
FOCAL_FACTOR = 2
KERNEL_SIZES = tuple(FOCAL_FACTOR * k + FOCAL_WINDOW for k in range(FOCAL_LEVEL))  # (3, 5)
PMAX = max(k // 2 for k in KERNEL_SIZES)   # max spatial halo needed (2)
LANES = 128
GROUP = LANES // DIM                       # images packed into the lane dim (4)


def _gelu(x):
    # tanh-approximate GELU: tanh goes to the (otherwise idle) EUP slot instead of
    # ~12 VALU ops + a divide per element for the erf rational poly.
    # max |gelu_tanh - gelu_erf| ~ 3e-4, well inside the 1e-2 validation tolerance.
    c = 0.7978845608028654  # sqrt(2/pi)
    return 0.5 * x * (1.0 + jnp.tanh(c * (x + 0.044715 * x * x * x)))


def focal_modulation_kernel(x_ref, wf_ref, bf_ref, wk0_ref, wk1_ref,
                            wh_ref, bh_ref, wp_ref, bp_ref,
                            out_ref, pad0_ref, pad1_ref, ctx_all_ref):
    # x_ref block: (1, H, W, GC) with GC = GROUP*DIM = 128 (4 images packed in lanes)
    _, H, W, GC = x_ref.shape
    HW = H * W
    L = FOCAL_LEVEL

    x2d = x_ref[0].reshape(HW, GC)

    # Fused f projection: one MXU push producing
    #   [ q (GC) | ctx (GC) | gate_0 (GC) | gate_1 (GC) | gate_global (GC) ]
    # (gates are already broadcast to each packed image's DIM lanes by the wrapper-built
    #  weight, so applying them is a plain elementwise multiply on 128-aligned slices).
    f_out = jnp.dot(x2d, wf_ref[...], preferred_element_type=jnp.float32) + bf_ref[...]
    q = f_out[:, :GC]                                        # (HW, GC)
    ctx0 = f_out[:, GC:2 * GC].reshape(H, W, GC)             # (H, W, GC)
    gates = f_out[:, 2 * GC:].reshape(H, W, (L + 1) * GC)    # (H, W, (L+1)*GC)

    # Zero only the PMAX-wide borders of the two padded ping-pong buffers; their
    # interiors are fully overwritten every level.
    zr = jnp.zeros((PMAX, W + 2 * PMAX, GC), jnp.float32)
    zc = jnp.zeros((H + 2 * PMAX, PMAX, GC), jnp.float32)
    for buf in (pad0_ref, pad1_ref):
        buf[0:PMAX, :, :] = zr
        buf[PMAX + H:, :, :] = zr
        buf[:, 0:PMAX, :] = zc
        buf[:, PMAX + W:, :] = zc

    # Level-0 input (ctx from f) goes into pad0's interior.
    pad0_ref[PMAX:PMAX + H, PMAX:PMAX + W, :] = ctx0

    bufs = (pad0_ref, pad1_ref)
    wk_refs = (wk0_ref, wk1_ref)

    # Strip-mine the depthwise conv over output-row chunks so the live f32 accumulator
    # stays at RCH * (W/8) <= 16 vregs while the 9/25 unrolled taps stream from VMEM.
    RCH = 8 if H % 8 == 0 else H

    for l in range(L):
        k = KERNEL_SIZES[l]
        p = k // 2
        src = bufs[l % 2]          # padded output of level l-1 (or ctx0)
        dst = bufs[(l + 1) % 2]    # padded output of level l (input of level l+1)
        wk = wk_refs[l]
        for r in range(0, H, RCH):
            acc = jnp.zeros((RCH, W, GC), jnp.float32)
            for di in range(k):
                oi = r + PMAX - p + di
                for dj in range(k):
                    oj = PMAX - p + dj
                    w = wk[di, dj:dj + 1, :]                       # (1, GC)
                    acc = acc + src[oi:oi + RCH, oj:oj + W, :] * w
            chunk = _gelu(acc)                                     # (RCH, W, GC)
            dst[PMAX + r:PMAX + r + RCH, PMAX:PMAX + W, :] = chunk
            gate_chunk = gates[r:r + RCH, :, l * GC:(l + 1) * GC]  # (RCH, W, GC)
            if l == 0:
                ctx_all_ref[r:r + RCH, :, :] = chunk * gate_chunk
            else:
                ctx_all_ref[r:r + RCH, :, :] = (ctx_all_ref[r:r + RCH, :, :]
                                                + chunk * gate_chunk)

    # Global context branch: per-image per-channel spatial mean (lanes stay separated
    # per packed image, so a plain spatial mean is the per-image mean).
    ctx_last = bufs[L % 2][PMAX:PMAX + H, PMAX:PMAX + W, :]         # (H, W, GC)
    ctx_global = _gelu(jnp.mean(ctx_last.reshape(HW, GC), axis=0, keepdims=True))  # (1, GC)
    gate_glob = gates[:, :, L * GC:].reshape(HW, GC)
    ctx_all = ctx_all_ref[...].reshape(HW, GC) + ctx_global * gate_glob

    # h = Conv2d(C, C, 1)  ==  per-pixel matmul (block-diagonal across packed images)
    mod = jnp.dot(ctx_all, wh_ref[...], preferred_element_type=jnp.float32) + bh_ref[...]

    # focal modulation + output projection
    x_out = q * mod
    x_out = jnp.dot(x_out, wp_ref[...], preferred_element_type=jnp.float32) + bp_ref[...]
    out_ref[0] = x_out.reshape(H, W, GC).astype(out_ref.dtype)


@jax.jit
def focal_modulation_pallas(x, params):
    B0, H, W, C = x.shape
    assert C == DIM
    G = GROUP
    GC = G * C
    L = FOCAL_LEVEL
    k0, k1 = KERNEL_SIZES

    # Pad the batch up to a multiple of the packing factor (dropped at the end).
    pad_b = (-B0) % G
    if pad_b:
        x = jnp.concatenate([x, jnp.zeros((pad_b, H, W, C), x.dtype)], axis=0)
    B = B0 + pad_b
    Bp = B // G

    # ---- wrapper-side layout plumbing: pack G images into the 128-lane dim ----
    x_p = jnp.transpose(x.reshape(Bp, G, H, W, C), (0, 2, 3, 1, 4)).reshape(Bp, H, W, GC)

    eye = jnp.eye(G, dtype=jnp.float32)
    bdiag = lambda w: jnp.kron(eye, w)                    # (C,C) -> (GC,GC) block-diagonal
    wq_p, wc_p = bdiag(params["wq"]), bdiag(params["wc"])
    wh_p, wp_p = bdiag(params["wh"]), bdiag(params["wp"])
    bh_p = jnp.tile(params["bh"], (1, G))
    bp_p = jnp.tile(params["bp"], (1, G))

    # Gate weights broadcast to each packed image's C lanes:
    #   (x_packed @ WG)[:, l*GC + g*C + c] == gate of image g at level l  (same for all c)
    wg, bg = params["wg"], params["bg"]
    gate_blocks = [jnp.kron(eye, jnp.broadcast_to(wg[:, l:l + 1], (C, C)))
                   for l in range(L + 1)]
    WG = jnp.concatenate(gate_blocks, axis=1)                             # (GC, (L+1)*GC)
    bG = jnp.concatenate([jnp.broadcast_to(bg[:, l:l + 1], (1, GC))
                          for l in range(L + 1)], axis=1)

    # Fused f weight: [ q | ctx | gates ] -> one (GC, (L+3)*GC) = (128, 640) matmul.
    w_f = jnp.concatenate([wq_p, wc_p, WG], axis=1)
    b_f = jnp.concatenate([jnp.tile(params["bq"], (1, G)),
                           jnp.tile(params["bc"], (1, G)), bG], axis=1)
    NF = (L + 3) * GC

    # Depthwise kernels tiled across the packed images (depthwise => no channel mixing).
    wk0_p = jnp.tile(params["wk0"], (1, 1, G))
    wk1_p = jnp.tile(params["wk1"], (1, 1, G))

    grid_spec = pltpu.PrefetchScalarGridSpec(
        num_scalar_prefetch=0,
        grid=(Bp,),
        in_specs=[
            pl.BlockSpec((1, H, W, GC), lambda b: (b, 0, 0, 0)),   # packed x
            pl.BlockSpec((GC, NF), lambda b: (0, 0)),              # fused f weight
            pl.BlockSpec((1, NF), lambda b: (0, 0)),               # fused f bias
            pl.BlockSpec((k0, k0, GC), lambda b: (0, 0, 0)),       # depthwise kernel lvl 0
            pl.BlockSpec((k1, k1, GC), lambda b: (0, 0, 0)),       # depthwise kernel lvl 1
            pl.BlockSpec((GC, GC), lambda b: (0, 0)),              # wh (1x1 conv), block-diag
            pl.BlockSpec((1, GC), lambda b: (0, 0)),               # bh
            pl.BlockSpec((GC, GC), lambda b: (0, 0)),              # wp (proj), block-diag
            pl.BlockSpec((1, GC), lambda b: (0, 0)),               # bp
        ],
        out_specs=pl.BlockSpec((1, H, W, GC), lambda b: (b, 0, 0, 0)),
        scratch_shapes=[
            pltpu.VMEM((H + 2 * PMAX, W + 2 * PMAX, GC), jnp.float32),  # pad ping
            pltpu.VMEM((H + 2 * PMAX, W + 2 * PMAX, GC), jnp.float32),  # pad pong
            pltpu.VMEM((H, W, GC), jnp.float32),                        # ctx_all accumulator
        ],
    )
    out_p = pl.pallas_call(
        focal_modulation_kernel,
        out_shape=jax.ShapeDtypeStruct((Bp, H, W, GC), x.dtype),
        grid_spec=grid_spec,
        compiler_params=pltpu.CompilerParams(dimension_semantics=("parallel",)),
    )(x_p, w_f, b_f, wk0_p, wk1_p, wh_p, bh_p, wp_p, bp_p)

    # Unpack lanes -> images and drop batch padding.
    out = jnp.transpose(out_p.reshape(Bp, H, W, G, C), (0, 3, 1, 2, 4)).reshape(B, H, W, C)
    return out[:B0]


def focal_modulation_ref(x, params):
    """Pure-JAX reference matching the PyTorch forward (channels-last, exact GELU)."""
    B, H, W, C = x.shape
    L = FOCAL_LEVEL
    gelu = lambda v: jax.nn.gelu(v, approximate=False)
    x2d = x.reshape(B, H * W, C)
    q = x2d @ params["wq"] + params["bq"]
    ctx = (x2d @ params["wc"] + params["bc"]).reshape(B, H, W, C)
    gates = (x2d @ params["wg"] + params["bg"]).reshape(B, H, W, L + 1)
    ctx_all = jnp.zeros((B, H, W, C), jnp.float32)
    for l in range(L):
        k = KERNEL_SIZES[l]
        wk = params["wk%d" % l].reshape(k, k, 1, C)
        ctx = lax.conv_general_dilated(
            ctx, wk, window_strides=(1, 1), padding="SAME",
            dimension_numbers=("NHWC", "HWIO", "NHWC"), feature_group_count=C)
        ctx = gelu(ctx)
        ctx_all = ctx_all + ctx * gates[..., l:l + 1]
    ctx_global = gelu(jnp.mean(ctx, axis=(1, 2), keepdims=True))
    ctx_all = ctx_all + ctx_global * gates[..., L:L + 1]
    mod = ctx_all.reshape(B, H * W, C) @ params["wh"] + params["bh"]
    x_out = q * mod
    x_out = x_out @ params["wp"] + params["bp"]
    return x_out.reshape(B, H, W, C)


if __name__ == "__main__":
    B, H, W, C = 8, 16, 16, DIM
    key = jax.random.PRNGKey(0)
    ks = jax.random.split(key, 13)
    s = 0.1
    params = {
        "wq": jax.random.normal(ks[1], (C, C), jnp.float32) * s,
        "bq": jax.random.normal(ks[2], (1, C), jnp.float32) * s,
        "wc": jax.random.normal(ks[3], (C, C), jnp.float32) * s,
        "bc": jax.random.normal(ks[4], (1, C), jnp.float32) * s,
        "wg": jax.random.normal(ks[5], (C, FOCAL_LEVEL + 1), jnp.float32) * s,
        "bg": jax.random.normal(ks[6], (1, FOCAL_LEVEL + 1), jnp.float32) * s,
        "wk0": jax.random.normal(ks[7], (KERNEL_SIZES[0], KERNEL_SIZES[0], C), jnp.float32) * s,
        "wk1": jax.random.normal(ks[8], (KERNEL_SIZES[1], KERNEL_SIZES[1], C), jnp.float32) * s,
        "wh": jax.random.normal(ks[9], (C, C), jnp.float32) * s,
        "bh": jax.random.normal(ks[10], (1, C), jnp.float32) * s,
        "wp": jax.random.normal(ks[11], (C, C), jnp.float32) * s,
        "bp": jax.random.normal(ks[12], (1, C), jnp.float32) * s,
    }
    x = jax.random.normal(ks[0], (B, H, W, C), jnp.float32)

    out = focal_modulation_pallas(x, params)
    out = jax.block_until_ready(out)

    ref = focal_modulation_ref(x, params)
    err = float(jnp.max(jnp.abs(out - ref)))
    assert err < 1e-2, f"max abs error vs reference: {err}"
    print("KERNEL_OK")
</pallas_src>

<mosaic_0001>
module attributes {stable_mosaic.version = 11 : i64} {
  func.func @focal_modulation_kernel(%arg0: i32, %arg1: memref<1x16x16x128xf32, #tpu.memory_space<vmem>>, %arg2: memref<128x640xf32, #tpu.memory_space<vmem>>, %arg3: memref<1x640xf32, #tpu.memory_space<vmem>>, %arg4: memref<3x3x128xf32, #tpu.memory_space<vmem>>, %arg5: memref<5x5x128xf32, #tpu.memory_space<vmem>>, %arg6: memref<128x128xf32, #tpu.memory_space<vmem>>, %arg7: memref<1x128xf32, #tpu.memory_space<vmem>>, %arg8: memref<128x128xf32, #tpu.memory_space<vmem>>, %arg9: memref<1x128xf32, #tpu.memory_space<vmem>>, %arg10: memref<1x16x16x128xf32, #tpu.memory_space<vmem>>, %arg11: memref<20x20x128xf32, #tpu.memory_space<vmem>>, %arg12: memref<20x20x128xf32, #tpu.memory_space<vmem>>, %arg13: memref<16x16x128xf32, #tpu.memory_space<vmem>>) attributes {dimension_semantics = [#tpu.dimension_semantics<parallel>], iteration_bounds = array<i64: 2>, scalar_prefetch = 0 : i64, scratch_operands = 3 : i64, tpu.core_type = #tpu.core_type<tc>, window_params = [{transform_indices = @transform_0, window_bounds = array<i64: 1, 16, 16, 128>}, {pipeline_mode = #tpu.pipeline_mode<synchronous>, transform_indices = @transform_1, window_bounds = array<i64: 128, 640>}, {pipeline_mode = #tpu.pipeline_mode<synchronous>, transform_indices = @transform_2, window_bounds = array<i64: 1, 640>}, {pipeline_mode = #tpu.pipeline_mode<synchronous>, transform_indices = @transform_3, window_bounds = array<i64: 3, 3, 128>}, {pipeline_mode = #tpu.pipeline_mode<synchronous>, transform_indices = @transform_4, window_bounds = array<i64: 5, 5, 128>}, {pipeline_mode = #tpu.pipeline_mode<synchronous>, transform_indices = @transform_5, window_bounds = array<i64: 128, 128>}, {pipeline_mode = #tpu.pipeline_mode<synchronous>, transform_indices = @transform_6, window_bounds = array<i64: 1, 128>}, {pipeline_mode = #tpu.pipeline_mode<synchronous>, transform_indices = @transform_7, window_bounds = array<i64: 128, 128>}, {pipeline_mode = #tpu.pipeline_mode<synchronous>, transform_indices = @transform_8, window_bounds = array<i64: 1, 128>}, {transform_indices = @transform_9, window_bounds = array<i64: 1, 16, 16, 128>}]} {
    %c0 = arith.constant 0 : index
    %c0_0 = arith.constant 0 : index
    %c0_1 = arith.constant 0 : index
    %c0_2 = arith.constant 0 : index
    %0 = vector.load %arg1[%c0, %c0_0, %c0_1, %c0_2] : memref<1x16x16x128xf32, #tpu.memory_space<vmem>>, vector<1x16x16x128xf32>
    %1 = vector.shape_cast %0 : vector<1x16x16x128xf32> to vector<16x16x128xf32>
    %2 = vector.shape_cast %1 : vector<16x16x128xf32> to vector<256x128xf32>
    %c0_3 = arith.constant 0 : index
    %c0_4 = arith.constant 0 : index
    %3 = vector.load %arg2[%c0_3, %c0_4] : memref<128x640xf32, #tpu.memory_space<vmem>>, vector<128x640xf32>
    %cst = arith.constant dense<0.000000e+00> : vector<256x640xf32>
    %4 = tpu.matmul %2, %3, %cst {dimension_numbers = #tpu.dot_dimension_numbers<[1], [0], [0], [1], [0, 0, 1, 1], [], []>} : vector<256x128xf32>, vector<128x640xf32>, vector<256x640xf32> -> vector<256x640xf32>
    %c0_5 = arith.constant 0 : index
    %c0_6 = arith.constant 0 : index
    %5 = vector.load %arg3[%c0_5, %c0_6] : memref<1x640xf32, #tpu.memory_space<vmem>>, vector<1x640xf32>
    %6 = vector.broadcast %5 : vector<1x640xf32> to vector<256x640xf32>
    %7 = arith.addf %4, %6 : vector<256x640xf32>
    %8 = vector.extract_strided_slice %7 {offsets = [0, 0], sizes = [256, 128], strides = [1, 1]} : vector<256x640xf32> to vector<256x128xf32>
    %9 = vector.extract_strided_slice %7 {offsets = [0, 128], sizes = [256, 128], strides = [1, 1]} : vector<256x640xf32> to vector<256x128xf32>
    %10 = vector.shape_cast %9 : vector<256x128xf32> to vector<16x16x128xf32>
    %11 = vector.extract_strided_slice %7 {offsets = [0, 256], sizes = [256, 384], strides = [1, 1]} : vector<256x640xf32> to vector<256x384xf32>
    %12 = vector.shape_cast %11 : vector<256x384xf32> to vector<16x16x384xf32>
    %cst_7 = arith.constant 0.000000e+00 : f32
    %13 = vector.broadcast %cst_7 : f32 to vector<2x20x128xf32>
    %cst_8 = arith.constant 0.000000e+00 : f32
    %14 = vector.broadcast %cst_8 : f32 to vector<20x2x128xf32>
    %c0_9 = arith.constant 0 : index
    %c0_10 = arith.constant 0 : index
    %c0_11 = arith.constant 0 : index
    %15 = vector.load %arg11[%c0_9, %c0_10, %c0_11] : memref<20x20x128xf32, #tpu.memory_space<vmem>>, vector<2x20x128xf32>
    tpu.vector_store %arg11[%c0_9, %c0_10, %c0_11], %13 {strides = array<i32>} : memref<20x20x128xf32, #tpu.memory_space<vmem>>, vector<2x20x128xf32>,
    %c18 = arith.constant 18 : index
    %c0_12 = arith.constant 0 : index
    %c0_13 = arith.constant 0 : index
    %16 = vector.load %arg11[%c18, %c0_12, %c0_13] : memref<20x20x128xf32, #tpu.memory_space<vmem>>, vector<2x20x128xf32>
    tpu.vector_store %arg11[%c18, %c0_12, %c0_13], %13 {strides = array<i32>} : memref<20x20x128xf32, #tpu.memory_space<vmem>>, vector<2x20x128xf32>,
    %c0_14 = arith.constant 0 : index
    %c0_15 = arith.constant 0 : index
    %c0_16 = arith.constant 0 : index
    %17 = vector.load %arg11[%c0_14, %c0_15, %c0_16] : memref<20x20x128xf32, #tpu.memory_space<vmem>>, vector<20x2x128xf32>
    tpu.vector_store %arg11[%c0_14, %c0_15, %c0_16], %14 {strides = array<i32>} : memref<20x20x128xf32, #tpu.memory_space<vmem>>, vector<20x2x128xf32>,
    %c0_17 = arith.constant 0 : index
    %c18_18 = arith.constant 18 : index
    %c0_19 = arith.constant 0 : index
    %18 = vector.load %arg11[%c0_17, %c18_18, %c0_19] : memref<20x20x128xf32, #tpu.memory_space<vmem>>, vector<20x2x128xf32>
    tpu.vector_store %arg11[%c0_17, %c18_18, %c0_19], %14 {strides = array<i32>} : memref<20x20x128xf32, #tpu.memory_space<vmem>>, vector<20x2x128xf32>,
    %c0_20 = arith.constant 0 : index
    %c0_21 = arith.constant 0 : index
    %c0_22 = arith.constant 0 : index
    %19 = vector.load %arg12[%c0_20, %c0_21, %c0_22] : memref<20x20x128xf32, #tpu.memory_space<vmem>>, vector<2x20x128xf32>
    tpu.vector_store %arg12[%c0_20, %c0_21, %c0_22], %13 {strides = array<i32>} : memref<20x20x128xf32, #tpu.memory_space<vmem>>, vector<2x20x128xf32>,
    %c18_23 = arith.constant 18 : index
    %c0_24 = arith.constant 0 : index
    %c0_25 = arith.constant 0 : index
    %20 = vector.load %arg12[%c18_23, %c0_24, %c0_25] : memref<20x20x128xf32, #tpu.memory_space<vmem>>, vector<2x20x128xf32>
    tpu.vector_store %arg12[%c18_23, %c0_24, %c0_25], %13 {strides = array<i32>} : memref<20x20x128xf32, #tpu.memory_space<vmem>>, vector<2x20x128xf32>,
    %c0_26 = arith.constant 0 : index
    %c0_27 = arith.constant 0 : index
    %c0_28 = arith.constant 0 : index
    %21 = vector.load %arg12[%c0_26, %c0_27, %c0_28] : memref<20x20x128xf32, #tpu.memory_space<vmem>>, vector<20x2x128xf32>
    tpu.vector_store %arg12[%c0_26, %c0_27, %c0_28], %14 {strides = array<i32>} : memref<20x20x128xf32, #tpu.memory_space<vmem>>, vector<20x2x128xf32>,
    %c0_29 = arith.constant 0 : index
    %c18_30 = arith.constant 18 : index
    %c0_31 = arith.constant 0 : index
    %22 = vector.load %arg12[%c0_29, %c18_30, %c0_31] : memref<20x20x128xf32, #tpu.memory_space<vmem>>, vector<20x2x128xf32>
    tpu.vector_store %arg12[%c0_29, %c18_30, %c0_31], %14 {strides = array<i32>} : memref<20x20x128xf32, #tpu.memory_space<vmem>>, vector<20x2x128xf32>,
    %c2 = arith.constant 2 : index
    %c2_32 = arith.constant 2 : index
    %c0_33 = arith.constant 0 : index
    %23 = vector.load %arg11[%c2, %c2_32, %c0_33] : memref<20x20x128xf32, #tpu.memory_space<vmem>>, vector<16x16x128xf32>
    tpu.vector_store %arg11[%c2, %c2_32, %c0_33], %10 {strides = array<i32>} : memref<20x20x128xf32, #tpu.memory_space<vmem>>, vector<16x16x128xf32>,
    %cst_34 = arith.constant 0.000000e+00 : f32
    %24 = vector.broadcast %cst_34 : f32 to vector<8x16x128xf32>
    %c0_35 = arith.constant 0 : index
    %c0_36 = arith.constant 0 : index
    %c0_37 = arith.constant 0 : index
    %25 = vector.load %arg4[%c0_35, %c0_36, %c0_37] : memref<3x3x128xf32, #tpu.memory_space<vmem>>, vector<1x1x128xf32>
    %26 = vector.shape_cast %25 : vector<1x1x128xf32> to vector<1x128xf32>
    %c1 = arith.constant 1 : index
    %c1_38 = arith.constant 1 : index
    %c0_39 = arith.constant 0 : index
    %27 = vector.load %arg11[%c1, %c1_38, %c0_39] : memref<20x20x128xf32, #tpu.memory_space<vmem>>, vector<8x16x128xf32>
    %28 = vector.shape_cast %26 : vector<1x128xf32> to vector<1x1x128xf32>
    %29 = vector.broadcast %28 : vector<1x1x128xf32> to vector<8x16x128xf32>
    %30 = arith.mulf %27, %29 : vector<8x16x128xf32>
    %31 = arith.addf %24, %30 : vector<8x16x128xf32>
    %c0_40 = arith.constant 0 : index
    %c1_41 = arith.constant 1 : index
    %c0_42 = arith.constant 0 : index
    %32 = vector.load %arg4[%c0_40, %c1_41, %c0_42] : memref<3x3x128xf32, #tpu.memory_space<vmem>>, vector<1x1x128xf32>
    %33 = vector.shape_cast %32 : vector<1x1x128xf32> to vector<1x128xf32>
    %c1_43 = arith.constant 1 : index
    %c2_44 = arith.constant 2 : index
    %c0_45 = arith.constant 0 : index
    %34 = vector.load %arg11[%c1_43, %c2_44, %c0_45] : memref<20x20x128xf32, #tpu.memory_space<vmem>>, vector<8x16x128xf32>
    %35 = vector.shape_cast %33 : vector<1x128xf32> to vector<1x1x128xf32>
    %36 = vector.broadcast %35 : vector<1x1x128xf32> to vector<8x16x128xf32>
    %37 = arith.mulf %34, %36 : vector<8x16x128xf32>
    %38 = arith.addf %31, %37 : vector<8x16x128xf32>
    %c0_46 = arith.constant 0 : index
    %c2_47 = arith.constant 2 : index
    %c0_48 = arith.constant 0 : index
    %39 = vector.load %arg4[%c0_46, %c2_47, %c0_48] : memref<3x3x128xf32, #tpu.memory_space<vmem>>, vector<1x1x128xf32>
    %40 = vector.shape_cast %39 : vector<1x1x128xf32> to vector<1x128xf32>
    %c1_49 = arith.constant 1 : index
    %c3 = arith.constant 3 : index
    %c0_50 = arith.constant 0 : index
    %41 = vector.load %arg11[%c1_49, %c3, %c0_50] : memref<20x20x128xf32, #tpu.memory_space<vmem>>, vector<8x16x128xf32>
    %42 = vector.shape_cast %40 : vector<1x128xf32> to vector<1x1x128xf32>
    %43 = vector.broadcast %42 : vector<1x1x128xf32> to vector<8x16x128xf32>
    %44 = arith.mulf %41, %43 : vector<8x16x128xf32>
    %45 = arith.addf %38, %44 : vector<8x16x128xf32>
    %c1_51 = arith.constant 1 : index
    %c0_52 = arith.constant 0 : index
    %c0_53 = arith.constant 0 : index
    %46 = vector.load %arg4[%c1_51, %c0_52, %c0_53] : memref<3x3x128xf32, #tpu.memory_space<vmem>>, vector<1x1x128xf32>
    %47 = vector.shape_cast %46 : vector<1x1x128xf32> to vector<1x128xf32>
    %c2_54 = arith.constant 2 : index
    %c1_55 = arith.constant 1 : index
    %c0_56 = arith.constant 0 : index
    %48 = vector.load %arg11[%c2_54, %c1_55, %c0_56] : memref<20x20x128xf32, #tpu.memory_space<vmem>>, vector<8x16x128xf32>
    %49 = vector.shape_cast %47 : vector<1x128xf32> to vector<1x1x128xf32>
    %50 = vector.broadcast %49 : vector<1x1x128xf32> to vector<8x16x128xf32>
    %51 = arith.mulf %48, %50 : vector<8x16x128xf32>
    %52 = arith.addf %45, %51 : vector<8x16x128xf32>
    %c1_57 = arith.constant 1 : index
    %c1_58 = arith.constant 1 : index
    %c0_59 = arith.constant 0 : index
    %53 = vector.load %arg4[%c1_57, %c1_58, %c0_59] : memref<3x3x128xf32, #tpu.memory_space<vmem>>, vector<1x1x128xf32>
    %54 = vector.shape_cast %53 : vector<1x1x128xf32> to vector<1x128xf32>
    %c2_60 = arith.constant 2 : index
    %c2_61 = arith.constant 2 : index
    %c0_62 = arith.constant 0 : index
    %55 = vector.load %arg11[%c2_60, %c2_61, %c0_62] : memref<20x20x128xf32, #tpu.memory_space<vmem>>, vector<8x16x128xf32>
    %56 = vector.shape_cast %54 : vector<1x128xf32> to vector<1x1x128xf32>
    %57 = vector.broadcast %56 : vector<1x1x128xf32> to vector<8x16x128xf32>
    %58 = arith.mulf %55, %57 : vector<8x16x128xf32>
    %59 = arith.addf %52, %58 : vector<8x16x128xf32>
    %c1_63 = arith.constant 1 : index
    %c2_64 = arith.constant 2 : index
    %c0_65 = arith.constant 0 : index
    %60 = vector.load %arg4[%c1_63, %c2_64, %c0_65] : memref<3x3x128xf32, #tpu.memory_space<vmem>>, vector<1x1x128xf32>
    %61 = vector.shape_cast %60 : vector<1x1x128xf32> to vector<1x128xf32>
    %c2_66 = arith.constant 2 : index
    %c3_67 = arith.constant 3 : index
    %c0_68 = arith.constant 0 : index
    %62 = vector.load %arg11[%c2_66, %c3_67, %c0_68] : memref<20x20x128xf32, #tpu.memory_space<vmem>>, vector<8x16x128xf32>
    %63 = vector.shape_cast %61 : vector<1x128xf32> to vector<1x1x128xf32>
    %64 = vector.broadcast %63 : vector<1x1x128xf32> to vector<8x16x128xf32>
    %65 = arith.mulf %62, %64 : vector<8x16x128xf32>
    %66 = arith.addf %59, %65 : vector<8x16x128xf32>
    %c2_69 = arith.constant 2 : index
    %c0_70 = arith.constant 0 : index
    %c0_71 = arith.constant 0 : index
    %67 = vector.load %arg4[%c2_69, %c0_70, %c0_71] : memref<3x3x128xf32, #tpu.memory_space<vmem>>, vector<1x1x128xf32>
    %68 = vector.shape_cast %67 : vector<1x1x128xf32> to vector<1x128xf32>
    %c3_72 = arith.constant 3 : index
    %c1_73 = arith.constant 1 : index
    %c0_74 = arith.constant 0 : index
    %69 = vector.load %arg11[%c3_72, %c1_73, %c0_74] : memref<20x20x128xf32, #tpu.memory_space<vmem>>, vector<8x16x128xf32>
    %70 = vector.shape_cast %68 : vector<1x128xf32> to vector<1x1x128xf32>
    %71 = vector.broadcast %70 : vector<1x1x128xf32> to vector<8x16x128xf32>
    %72 = arith.mulf %69, %71 : vector<8x16x128xf32>
    %73 = arith.addf %66, %72 : vector<8x16x128xf32>
    %c2_75 = arith.constant 2 : index
    %c1_76 = arith.constant 1 : index
    %c0_77 = arith.constant 0 : index
    %74 = vector.load %arg4[%c2_75, %c1_76, %c0_77] : memref<3x3x128xf32, #tpu.memory_space<vmem>>, vector<1x1x128xf32>
    %75 = vector.shape_cast %74 : vector<1x1x128xf32> to vector<1x128xf32>
    %c3_78 = arith.constant 3 : index
    %c2_79 = arith.constant 2 : index
    %c0_80 = arith.constant 0 : index
    %76 = vector.load %arg11[%c3_78, %c2_79, %c0_80] : memref<20x20x128xf32, #tpu.memory_space<vmem>>, vector<8x16x128xf32>
    %77 = vector.shape_cast %75 : vector<1x128xf32> to vector<1x1x128xf32>
    %78 = vector.broadcast %77 : vector<1x1x128xf32> to vector<8x16x128xf32>
    %79 = arith.mulf %76, %78 : vector<8x16x128xf32>
    %80 = arith.addf %73, %79 : vector<8x16x128xf32>
    %c2_81 = arith.constant 2 : index
    %c2_82 = arith.constant 2 : index
    %c0_83 = arith.constant 0 : index
    %81 = vector.load %arg4[%c2_81, %c2_82, %c0_83] : memref<3x3x128xf32, #tpu.memory_space<vmem>>, vector<1x1x128xf32>
    %82 = vector.shape_cast %81 : vector<1x1x128xf32> to vector<1x128xf32>
    %c3_84 = arith.constant 3 : index
    %c3_85 = arith.constant 3 : index
    %c0_86 = arith.constant 0 : index
    %83 = vector.load %arg11[%c3_84, %c3_85, %c0_86] : memref<20x20x128xf32, #tpu.memory_space<vmem>>, vector<8x16x128xf32>
    %84 = vector.shape_cast %82 : vector<1x128xf32> to vector<1x1x128xf32>
    %85 = vector.broadcast %84 : vector<1x1x128xf32> to vector<8x16x128xf32>
    %86 = arith.mulf %83, %85 : vector<8x16x128xf32>
    %87 = arith.addf %80, %86 : vector<8x16x128xf32>
    %cst_87 = arith.constant 5.000000e-01 : f32
    %88 = vector.broadcast %cst_87 : f32 to vector<8x16x128xf32>
    %89 = arith.mulf %88, %87 : vector<8x16x128xf32>
    %cst_88 = arith.constant 4.471500e-02 : f32
    %90 = vector.broadcast %cst_88 : f32 to vector<8x16x128xf32>
    %91 = arith.mulf %90, %87 : vector<8x16x128xf32>
    %92 = arith.mulf %91, %87 : vector<8x16x128xf32>
    %93 = arith.mulf %92, %87 : vector<8x16x128xf32>
    %94 = arith.addf %87, %93 : vector<8x16x128xf32>
    %cst_89 = arith.constant 0.797884583 : f32
    %95 = vector.broadcast %cst_89 : f32 to vector<8x16x128xf32>
    %96 = arith.mulf %95, %94 : vector<8x16x128xf32>
    %97 = math.tanh %96 : vector<8x16x128xf32>
    %cst_90 = arith.constant 1.000000e+00 : f32
    %98 = vector.broadcast %cst_90 : f32 to vector<8x16x128xf32>
    %99 = arith.addf %98, %97 : vector<8x16x128xf32>
    %100 = arith.mulf %89, %99 : vector<8x16x128xf32>
    %c2_91 = arith.constant 2 : index
    %c2_92 = arith.constant 2 : index
    %c0_93 = arith.constant 0 : index
    %101 = vector.load %arg12[%c2_91, %c2_92, %c0_93] : memref<20x20x128xf32, #tpu.memory_space<vmem>>, vector<8x16x128xf32>
    tpu.vector_store %arg12[%c2_91, %c2_92, %c0_93], %100 {strides = array<i32>} : memref<20x20x128xf32, #tpu.memory_space<vmem>>, vector<8x16x128xf32>,
    %102 = vector.extract_strided_slice %12 {offsets = [0, 0, 0], sizes = [8, 16, 128], strides = [1, 1, 1]} : vector<16x16x384xf32> to vector<8x16x128xf32>
    %103 = arith.mulf %100, %102 : vector<8x16x128xf32>
    %c0_94 = arith.constant 0 : index
    %c0_95 = arith.constant 0 : index
    %c0_96 = arith.constant 0 : index
    %104 = vector.load %arg13[%c0_94, %c0_95, %c0_96] : memref<16x16x128xf32, #tpu.memory_space<vmem>>, vector<8x16x128xf32>
    tpu.vector_store %arg13[%c0_94, %c0_95, %c0_96], %103 {strides = array<i32>} : memref<16x16x128xf32, #tpu.memory_space<vmem>>, vector<8x16x128xf32>,
    %cst_97 = arith.constant 0.000000e+00 : f32
    %105 = vector.broadcast %cst_97 : f32 to vector<8x16x128xf32>
    %c0_98 = arith.constant 0 : index
    %c0_99 = arith.constant 0 : index
    %c0_100 = arith.constant 0 : index
    %106 = vector.load %arg4[%c0_98, %c0_99, %c0_100] : memref<3x3x128xf32, #tpu.memory_space<vmem>>, vector<1x1x128xf32>
    %107 = vector.shape_cast %106 : vector<1x1x128xf32> to vector<1x128xf32>
    %c9 = arith.constant 9 : index
    %c1_101 = arith.constant 1 : index
    %c0_102 = arith.constant 0 : index
    %108 = vector.load %arg11[%c9, %c1_101, %c0_102] : memref<20x20x128xf32, #tpu.memory_space<vmem>>, vector<8x16x128xf32>
    %109 = vector.shape_cast %107 : vector<1x128xf32> to vector<1x1x128xf32>
    %110 = vector.broadcast %109 : vector<1x1x128xf32> to vector<8x16x128xf32>
    %111 = arith.mulf %108, %110 : vector<8x16x128xf32>
    %112 = arith.addf %105, %111 : vector<8x16x128xf32>
    %c0_103 = arith.constant 0 : index
    %c1_104 = arith.constant 1 : index
    %c0_105 = arith.constant 0 : index
    %113 = vector.load %arg4[%c0_103, %c1_104, %c0_105] : memref<3x3x128xf32, #tpu.memory_space<vmem>>, vector<1x1x128xf32>
    %114 = vector.shape_cast %113 : vector<1x1x128xf32> to vector<1x128xf32>
    %c9_106 = arith.constant 9 : index
    %c2_107 = arith.constant 2 : index
    %c0_108 = arith.constant 0 : index
    %115 = vector.load %arg11[%c9_106, %c2_107, %c0_108] : memref<20x20x128xf32, #tpu.memory_space<vmem>>, vector<8x16x128xf32>
    %116 = vector.shape_cast %114 : vector<1x128xf32> to vector<1x1x128xf32>
    %117 = vector.broadcast %116 : vector<1x1x128xf32> to vector<8x16x128xf32>
    %118 = arith.mulf %115, %117 : vector<8x16x128xf32>
    %119 = arith.addf %112, %118 : vector<8x16x128xf32>
    %c0_109 = arith.constant 0 : index
    %c2_110 = arith.constant 2 : index
    %c0_111 = arith.constant 0 : index
    %120 = vector.load %arg4[%c0_109, %c2_110, %c0_111] : memref<3x3x128xf32, #tpu.memory_space<vmem>>, vector<1x1x128xf32>
    %121 = vector.shape_cast %120 : vector<1x1x128xf32> to vector<1x128xf32>
    %c9_112 = arith.constant 9 : index
    %c3_113 = arith.constant 3 : index
    %c0_114 = arith.constant 0 : index
    %122 = vector.load %arg11[%c9_112, %c3_113, %c0_114] : memref<20x20x128xf32, #tpu.memory_space<vmem>>, vector<8x16x128xf32>
    %123 = vector.shape_cast %121 : vector<1x128xf32> to vector<1x1x128xf32>
    %124 = vector.broadcast %123 : vector<1x1x128xf32> to vector<8x16x128xf32>
    %125 = arith.mulf %122, %124 : vector<8x16x128xf32>
    %126 = arith.addf %119, %125 : vector<8x16x128xf32>
    %c1_115 = arith.constant 1 : index
    %c0_116 = arith.constant 0 : index
    %c0_117 = arith.constant 0 : index
    %127 = vector.load %arg4[%c1_115, %c0_116, %c0_117] : memref<3x3x128xf32, #tpu.memory_space<vmem>>, vector<1x1x128xf32>
    %128 = vector.shape_cast %127 : vector<1x1x128xf32> to vector<1x128xf32>
    %c10 = arith.constant 10 : index
    %c1_118 = arith.constant 1 : index
    %c0_119 = arith.constant 0 : index
    %129 = vector.load %arg11[%c10, %c1_118, %c0_119] : memref<20x20x128xf32, #tpu.memory_space<vmem>>, vector<8x16x128xf32>
    %130 = vector.shape_cast %128 : vector<1x128xf32> to vector<1x1x128xf32>
    %131 = vector.broadcast %130 : vector<1x1x128xf32> to vector<8x16x128xf32>
    %132 = arith.mulf %129, %131 : vector<8x16x128xf32>
    %133 = arith.addf %126, %132 : vector<8x16x128xf32>
    %c1_120 = arith.constant 1 : index
    %c1_121 = arith.constant 1 : index
    %c0_122 = arith.constant 0 : index
    %134 = vector.load %arg4[%c1_120, %c1_121, %c0_122] : memref<3x3x128xf32, #tpu.memory_space<vmem>>, vector<1x1x128xf32>
    %135 = vector.shape_cast %134 : vector<1x1x128xf32> to vector<1x128xf32>
    %c10_123 = arith.constant 10 : index
    %c2_124 = arith.constant 2 : index
    %c0_125 = arith.constant 0 : index
    %136 = vector.load %arg11[%c10_123, %c2_124, %c0_125] : memref<20x20x128xf32, #tpu.memory_space<vmem>>, vector<8x16x128xf32>
    %137 = vector.shape_cast %135 : vector<1x128xf32> to vector<1x1x128xf32>
    %138 = vector.broadcast %137 : vector<1x1x128xf32> to vector<8x16x128xf32>
    %139 = arith.mulf %136, %138 : vector<8x16x128xf32>
    %140 = arith.addf %133, %139 : vector<8x16x128xf32>
    %c1_126 = arith.constant 1 : index
    %c2_127 = arith.constant 2 : index
    %c0_128 = arith.constant 0 : index
    %141 = vector.load %arg4[%c1_126, %c2_127, %c0_128] : memref<3x3x128xf32, #tpu.memory_space<vmem>>, vector<1x1x128xf32>
    %142 = vector.shape_cast %141 : vector<1x1x128xf32> to vector<1x128xf32>
    %c10_129 = arith.constant 10 : index
    %c3_130 = arith.constant 3 : index
    %c0_131 = arith.constant 0 : index
    %143 = vector.load %arg11[%c10_129, %c3_130, %c0_131] : memref<20x20x128xf32, #tpu.memory_space<vmem>>, vector<8x16x128xf32>
    %144 = vector.shape_cast %142 : vector<1x128xf32> to vector<1x1x128xf32>
    %145 = vector.broadcast %144 : vector<1x1x128xf32> to vector<8x16x128xf32>
    %146 = arith.mulf %143, %145 : vector<8x16x128xf32>
    %147 = arith.addf %140, %146 : vector<8x16x128xf32>
    %c2_132 = arith.constant 2 : index
    %c0_133 = arith.constant 0 : index
    %c0_134 = arith.constant 0 : index
    %148 = vector.load %arg4[%c2_132, %c0_133, %c0_134] : memref<3x3x128xf32, #tpu.memory_space<vmem>>, vector<1x1x128xf32>
    %149 = vector.shape_cast %148 : vector<1x1x128xf32> to vector<1x128xf32>
    %c11 = arith.constant 11 : index
    %c1_135 = arith.constant 1 : index
    %c0_136 = arith.constant 0 : index
    %150 = vector.load %arg11[%c11, %c1_135, %c0_136] : memref<20x20x128xf32, #tpu.memory_space<vmem>>, vector<8x16x128xf32>
    %151 = vector.shape_cast %149 : vector<1x128xf32> to vector<1x1x128xf32>
    %152 = vector.broadcast %151 : vector<1x1x128xf32> to vector<8x16x128xf32>
    %153 = arith.mulf %150, %152 : vector<8x16x128xf32>
    %154 = arith.addf %147, %153 : vector<8x16x128xf32>
    %c2_137 = arith.constant 2 : index
    %c1_138 = arith.constant 1 : index
    %c0_139 = arith.constant 0 : index
    %155 = vector.load %arg4[%c2_137, %c1_138, %c0_139] : memref<3x3x128xf32, #tpu.memory_space<vmem>>, vector<1x1x128xf32>
    %156 = vector.shape_cast %155 : vector<1x1x128xf32> to vector<1x128xf32>
    %c11_140 = arith.constant 11 : index
    %c2_141 = arith.constant 2 : index
    %c0_142 = arith.constant 0 : index
    %157 = vector.load %arg11[%c11_140, %c2_141, %c0_142] : memref<20x20x128xf32, #tpu.memory_space<vmem>>, vector<8x16x128xf32>
    %158 = vector.shape_cast %156 : vector<1x128xf32> to vector<1x1x128xf32>
    %159 = vector.broadcast %158 : vector<1x1x128xf32> to vector<8x16x128xf32>
    %160 = arith.mulf %157, %159 : vector<8x16x128xf32>
    %161 = arith.addf %154, %160 : vector<8x16x128xf32>
    %c2_143 = arith.constant 2 : index
    %c2_144 = arith.constant 2 : index
    %c0_145 = arith.constant 0 : index
    %162 = vector.load %arg4[%c2_143, %c2_144, %c0_145] : memref<3x3x128xf32, #tpu.memory_space<vmem>>, vector<1x1x128xf32>
    %163 = vector.shape_cast %162 : vector<1x1x128xf32> to vector<1x128xf32>
    %c11_146 = arith.constant 11 : index
    %c3_147 = arith.constant 3 : index
    %c0_148 = arith.constant 0 : index
    %164 = vector.load %arg11[%c11_146, %c3_147, %c0_148] : memref<20x20x128xf32, #tpu.memory_space<vmem>>, vector<8x16x128xf32>
    %165 = vector.shape_cast %163 : vector<1x128xf32> to vector<1x1x128xf32>
    %166 = vector.broadcast %165 : vector<1x1x128xf32> to vector<8x16x128xf32>
    %167 = arith.mulf %164, %166 : vector<8x16x128xf32>
    %168 = arith.addf %161, %167 : vector<8x16x128xf32>
    %cst_149 = arith.constant 5.000000e-01 : f32
    %169 = vector.broadcast %cst_149 : f32 to vector<8x16x128xf32>
    %170 = arith.mulf %169, %168 : vector<8x16x128xf32>
    %cst_150 = arith.constant 4.471500e-02 : f32
    %171 = vector.broadcast %cst_150 : f32 to vector<8x16x128xf32>
    %172 = arith.mulf %171, %168 : vector<8x16x128xf32>
    %173 = arith.mulf %172, %168 : vector<8x16x128xf32>
    %174 = arith.mulf %173, %168 : vector<8x16x128xf32>
    %175 = arith.addf %168, %174 : vector<8x16x128xf32>
    %cst_151 = arith.constant 0.797884583 : f32
    %176 = vector.broadcast %cst_151 : f32 to vector<8x16x128xf32>
    %177 = arith.mulf %176, %175 : vector<8x16x128xf32>
    %178 = math.tanh %177 : vector<8x16x128xf32>
    %cst_152 = arith.constant 1.000000e+00 : f32
    %179 = vector.broadcast %cst_152 : f32 to vector<8x16x128xf32>
    %180 = arith.addf %179, %178 : vector<8x16x128xf32>
    %181 = arith.mulf %170, %180 : vector<8x16x128xf32>
    %c10_153 = arith.constant 10 : index
    %c2_154 = arith.constant 2 : index
    %c0_155 = arith.constant 0 : index
    %182 = vector.load %arg12[%c10_153, %c2_154, %c0_155] : memref<20x20x128xf32, #tpu.memory_space<vmem>>, vector<8x16x128xf32>
    tpu.vector_store %arg12[%c10_153, %c2_154, %c0_155], %181 {strides = array<i32>} : memref<20x20x128xf32, #tpu.memory_space<vmem>>, vector<8x16x128xf32>,
    %183 = vector.extract_strided_slice %12 {offsets = [8, 0, 0], sizes = [8, 16, 128], strides = [1, 1, 1]} : vector<16x16x384xf32> to vector<8x16x128xf32>
    %184 = arith.mulf %181, %183 : vector<8x16x128xf32>
    %c8 = arith.constant 8 : index
    %c0_156 = arith.constant 0 : index
    %c0_157 = arith.constant 0 : index
    %185 = vector.load %arg13[%c8, %c0_156, %c0_157] : memref<16x16x128xf32, #tpu.memory_space<vmem>>, vector<8x16x128xf32>
    tpu.vector_store %arg13[%c8, %c0_156, %c0_157], %184 {strides = array<i32>} : memref<16x16x128xf32, #tpu.memory_space<vmem>>, vector<8x16x128xf32>,
    %cst_158 = arith.constant 0.000000e+00 : f32
    %186 = vector.broadcast %cst_158 : f32 to vector<8x16x128xf32>
    %c0_159 = arith.constant 0 : index
    %c0_160 = arith.constant 0 : index
    %c0_161 = arith.constant 0 : index
    %187 = vector.load %arg5[%c0_159, %c0_160, %c0_161] : memref<5x5x128xf32, #tpu.memory_space<vmem>>, vector<1x1x128xf32>
    %188 = vector.shape_cast %187 : vector<1x1x128xf32> to vector<1x128xf32>
    %c0_162 = arith.constant 0 : index
    %c0_163 = arith.constant 0 : index
    %c0_164 = arith.constant 0 : index
    %189 = vector.load %arg12[%c0_162, %c0_163, %c0_164] : memref<20x20x128xf32, #tpu.memory_space<vmem>>, vector<8x16x128xf32>
    %190 = vector.shape_cast %188 : vector<1x128xf32> to vector<1x1x128xf32>
    %191 = vector.broadcast %190 : vector<1x1x128xf32> to vector<8x16x128xf32>
    %192 = arith.mulf %189, %191 : vector<8x16x128xf32>
    %193 = arith.addf %186, %192 : vector<8x16x128xf32>
    %c0_165 = arith.constant 0 : index
    %c1_166 = arith.constant 1 : index
    %c0_167 = arith.constant 0 : index
    %194 = vector.load %arg5[%c0_165, %c1_166, %c0_167] : memref<5x5x128xf32, #tpu.memory_space<vmem>>, vector<1x1x128xf32>
    %195 = vector.shape_cast %194 : vector<1x1x128xf32> to vector<1x128xf32>
    %c0_168 = arith.constant 0 : index
    %c1_169 = arith.constant 1 : index
    %c0_170 = arith.constant 0 : index
    %196 = vector.load %arg12[%c0_168, %c1_169, %c0_170] : memref<20x20x128xf32, #tpu.memory_space<vmem>>, vector<8x16x128xf32>
    %197 = vector.shape_cast %195 : vector<1x128xf32> to vector<1x1x128xf32>
    %198 = vector.broadcast %197 : vector<1x1x128xf32> to vector<8x16x128xf32>
    %199 = arith.mulf %196, %198 : vector<8x16x128xf32>
    %200 = arith.addf %193, %199 : vector<8x16x128xf32>
    %c0_171 = arith.constant 0 : index
    %c2_172 = arith.constant 2 : index
    %c0_173 = arith.constant 0 : index
    %201 = vector.load %arg5[%c0_171, %c2_172, %c0_173] : memref<5x5x128xf32, #tpu.memory_space<vmem>>, vector<1x1x128xf32>
    %202 = vector.shape_cast %201 : vector<1x1x128xf32> to vector<1x128xf32>
    %c0_174 = arith.constant 0 : index
    %c2_175 = arith.constant 2 : index
    %c0_176 = arith.constant 0 : index
    %203 = vector.load %arg12[%c0_174, %c2_175, %c0_176] : memref<20x20x128xf32, #tpu.memory_space<vmem>>, vector<8x16x128xf32>
    %204 = vector.shape_cast %202 : vector<1x128xf32> to vector<1x1x128xf32>
    %205 = vector.broadcast %204 : vector<1x1x128xf32> to vector<8x16x128xf32>
    %206 = arith.mulf %203, %205 : vector<8x16x128xf32>
    %207 = arith.addf %200, %206 : vector<8x16x128xf32>
    %c0_177 = arith.constant 0 : index
    %c3_178 = arith.constant 3 : index
    %c0_179 = arith.constant 0 : index
    %208 = vector.load %arg5[%c0_177, %c3_178, %c0_179] : memref<5x5x128xf32, #tpu.memory_space<vmem>>, vector<1x1x128xf32>
    %209 = vector.shape_cast %208 : vector<1x1x128xf32> to vector<1x128xf32>
    %c0_180 = arith.constant 0 : index
    %c3_181 = arith.constant 3 : index
    %c0_182 = arith.constant 0 : index
    %210 = vector.load %arg12[%c0_180, %c3_181, %c0_182] : memref<20x20x128xf32, #tpu.memory_space<vmem>>, vector<8x16x128xf32>
    %211 = vector.shape_cast %209 : vector<1x128xf32> to vector<1x1x128xf32>
    %212 = vector.broadcast %211 : vector<1x1x128xf32> to vector<8x16x128xf32>
    %213 = arith.mulf %210, %212 : vector<8x16x128xf32>
    %214 = arith.addf %207, %213 : vector<8x16x128xf32>
    %c0_183 = arith.constant 0 : index
    %c4 = arith.constant 4 : index
    %c0_184 = arith.constant 0 : index
    %215 = vector.load %arg5[%c0_183, %c4, %c0_184] : memref<5x5x128xf32, #tpu.memory_space<vmem>>, vector<1x1x128xf32>
    %216 = vector.shape_cast %215 : vector<1x1x128xf32> to vector<1x128xf32>
    %c0_185 = arith.constant 0 : index
    %c4_186 = arith.constant 4 : index
    %c0_187 = arith.constant 0 : index
    %217 = vector.load %arg12[%c0_185, %c4_186, %c0_187] : memref<20x20x128xf32, #tpu.memory_space<vmem>>, vector<8x16x128xf32>
    %218 = vector.shape_cast %216 : vector<1x128xf32> to vector<1x1x128xf32>
    %219 = vector.broadcast %218 : vector<1x1x128xf32> to vector<8x16x128xf32>
    %220 = arith.mulf %217, %219 : vector<8x16x128xf32>
    %221 = arith.addf %214, %220 : vector<8x16x128xf32>
    %c1_188 = arith.constant 1 : index
    %c0_189 = arith.constant 0 : index
    %c0_190 = arith.constant 0 : index
    %222 = vector.load %arg5[%c1_188, %c0_189, %c0_190] : memref<5x5x128xf32, #tpu.memory_space<vmem>>, vector<1x1x128xf32>
    %223 = vector.shape_cast %222 : vector<1x1x128xf32> to vector<1x128xf32>
    %c1_191 = arith.constant 1 : index
    %c0_192 = arith.constant 0 : index
    %c0_193 = arith.constant 0 : index
    %224 = vector.load %arg12[%c1_191, %c0_192, %c0_193] : memref<20x20x128xf32, #tpu.memory_space<vmem>>, vector<8x16x128xf32>
    %225 = vector.shape_cast %223 : vector<1x128xf32> to vector<1x1x128xf32>
    %226 = vector.broadcast %225 : vector<1x1x128xf32> to vector<8x16x128xf32>
    %227 = arith.mulf %224, %226 : vector<8x16x128xf32>
    %228 = arith.addf %221, %227 : vector<8x16x128xf32>
    %c1_194 = arith.constant 1 : index
    %c1_195 = arith.constant 1 : index
    %c0_196 = arith.constant 0 : index
    %229 = vector.load %arg5[%c1_194, %c1_195, %c0_196] : memref<5x5x128xf32, #tpu.memory_space<vmem>>, vector<1x1x128xf32>
    %230 = vector.shape_cast %229 : vector<1x1x128xf32> to vector<1x128xf32>
    %c1_197 = arith.constant 1 : index
    %c1_198 = arith.constant 1 : index
    %c0_199 = arith.constant 0 : index
    %231 = vector.load %arg12[%c1_197, %c1_198, %c0_199] : memref<20x20x128xf32, #tpu.memory_space<vmem>>, vector<8x16x128xf32>
    %232 = vector.shape_cast %230 : vector<1x128xf32> to vector<1x1x128xf32>
    %233 = vector.broadcast %232 : vector<1x1x128xf32> to vector<8x16x128xf32>
    %234 = arith.mulf %231, %233 : vector<8x16x128xf32>
    %235 = arith.addf %228, %234 : vector<8x16x128xf32>
    %c1_200 = arith.constant 1 : index
    %c2_201 = arith.constant 2 : index
    %c0_202 = arith.constant 0 : index
    %236 = vector.load %arg5[%c1_200, %c2_201, %c0_202] : memref<5x5x128xf32, #tpu.memory_space<vmem>>, vector<1x1x128xf32>
    %237 = vector.shape_cast %236 : vector<1x1x128xf32> to vector<1x128xf32>
    %c1_203 = arith.constant 1 : index
    %c2_204 = arith.constant 2 : index
    %c0_205 = arith.constant 0 : index
    %238 = vector.load %arg12[%c1_203, %c2_204, %c0_205] : memref<20x20x128xf32, #tpu.memory_space<vmem>>, vector<8x16x128xf32>
    %239 = vector.shape_cast %237 : vector<1x128xf32> to vector<1x1x128xf32>
    %240 = vector.broadcast %239 : vector<1x1x128xf32> to vector<8x16x128xf32>
    %241 = arith.mulf %238, %240 : vector<8x16x128xf32>
    %242 = arith.addf %235, %241 : vector<8x16x128xf32>
    %c1_206 = arith.constant 1 : index
    %c3_207 = arith.constant 3 : index
    %c0_208 = arith.constant 0 : index
    %243 = vector.load %arg5[%c1_206, %c3_207, %c0_208] : memref<5x5x128xf32, #tpu.memory_space<vmem>>, vector<1x1x128xf32>
    %244 = vector.shape_cast %243 : vector<1x1x128xf32> to vector<1x128xf32>
    %c1_209 = arith.constant 1 : index
    %c3_210 = arith.constant 3 : index
    %c0_211 = arith.constant 0 : index
    %245 = vector.load %arg12[%c1_209, %c3_210, %c0_211] : memref<20x20x128xf32, #tpu.memory_space<vmem>>, vector<8x16x128xf32>
    %246 = vector.shape_cast %244 : vector<1x128xf32> to vector<1x1x128xf32>
    %247 = vector.broadcast %246 : vector<1x1x128xf32> to vector<8x16x128xf32>
    %248 = arith.mulf %245, %247 : vector<8x16x128xf32>
    %249 = arith.addf %242, %248 : vector<8x16x128xf32>
    %c1_212 = arith.constant 1 : index
    %c4_213 = arith.constant 4 : index
    %c0_214 = arith.constant 0 : index
    %250 = vector.load %arg5[%c1_212, %c4_213, %c0_214] : memref<5x5x128xf32, #tpu.memory_space<vmem>>, vector<1x1x128xf32>
    %251 = vector.shape_cast %250 : vector<1x1x128xf32> to vector<1x128xf32>
    %c1_215 = arith.constant 1 : index
    %c4_216 = arith.constant 4 : index
    %c0_217 = arith.constant 0 : index
    %252 = vector.load %arg12[%c1_215, %c4_216, %c0_217] : memref<20x20x128xf32, #tpu.memory_space<vmem>>, vector<8x16x128xf32>
    %253 = vector.shape_cast %251 : vector<1x128xf32> to vector<1x1x128xf32>
    %254 = vector.broadcast %253 : vector<1x1x128xf32> to vector<8x16x128xf32>
    %255 = arith.mulf %252, %254 : vector<8x16x128xf32>
    %256 = arith.addf %249, %255 : vector<8x16x128xf32>
    %c2_218 = arith.constant 2 : index
    %c0_219 = arith.constant 0 : index
    %c0_220 = arith.constant 0 : index
    %257 = vector.load %arg5[%c2_218, %c0_219, %c0_220] : memref<5x5x128xf32, #tpu.memory_space<vmem>>, vector<1x1x128xf32>
    %258 = vector.shape_cast %257 : vector<1x1x128xf32> to vector<1x128xf32>
    %c2_221 = arith.constant 2 : index
    %c0_222 = arith.constant 0 : index
    %c0_223 = arith.constant 0 : index
    %259 = vector.load %arg12[%c2_221, %c0_222, %c0_223] : memref<20x20x128xf32, #tpu.memory_space<vmem>>, vector<8x16x128xf32>
    %260 = vector.shape_cast %258 : vector<1x128xf32> to vector<1x1x128xf32>
    %261 = vector.broadcast %260 : vector<1x1x128xf32> to vector<8x16x128xf32>
    %262 = arith.mulf %259, %261 : vector<8x16x128xf32>
    %263 = arith.addf %256, %262 : vector<8x16x128xf32>
    %c2_224 = arith.constant 2 : index
    %c1_225 = arith.constant 1 : index
    %c0_226 = arith.constant 0 : index
    %264 = vector.load %arg5[%c2_224, %c1_225, %c0_226] : memref<5x5x128xf32, #tpu.memory_space<vmem>>, vector<1x1x128xf32>
    %265 = vector.shape_cast %264 : vector<1x1x128xf32> to vector<1x128xf32>
    %c2_227 = arith.constant 2 : index
    %c1_228 = arith.constant 1 : index
    %c0_229 = arith.constant 0 : index
    %266 = vector.load %arg12[%c2_227, %c1_228, %c0_229] : memref<20x20x128xf32, #tpu.memory_space<vmem>>, vector<8x16x128xf32>
    %267 = vector.shape_cast %265 : vector<1x128xf32> to vector<1x1x128xf32>
    %268 = vector.broadcast %267 : vector<1x1x128xf32> to vector<8x16x128xf32>
    %269 = arith.mulf %266, %268 : vector<8x16x128xf32>
    %270 = arith.addf %263, %269 : vector<8x16x128xf32>
    %c2_230 = arith.constant 2 : index
    %c2_231 = arith.constant 2 : index
    %c0_232 = arith.constant 0 : index
    %271 = vector.load %arg5[%c2_230, %c2_231, %c0_232] : memref<5x5x128xf32, #tpu.memory_space<vmem>>, vector<1x1x128xf32>
    %272 = vector.shape_cast %271 : vector<1x1x128xf32> to vector<1x128xf32>
    %c2_233 = arith.constant 2 : index
    %c2_234 = arith.constant 2 : index
    %c0_235 = arith.constant 0 : index
    %273 = vector.load %arg12[%c2_233, %c2_234, %c0_235] : memref<20x20x128xf32, #tpu.memory_space<vmem>>, vector<8x16x128xf32>
    %274 = vector.shape_cast %272 : vector<1x128xf32> to vector<1x1x128xf32>
    %275 = vector.broadcast %274 : vector<1x1x128xf32> to vector<8x16x128xf32>
    %276 = arith.mulf %273, %275 : vector<8x16x128xf32>
    %277 = arith.addf %270, %276 : vector<8x16x128xf32>
    %c2_236 = arith.constant 2 : index
    %c3_237 = arith.constant 3 : index
    %c0_238 = arith.constant 0 : index
    %278 = vector.load %arg5[%c2_236, %c3_237, %c0_238] : memref<5x5x128xf32, #tpu.memory_space<vmem>>, vector<1x1x128xf32>
    %279 = vector.shape_cast %278 : vector<1x1x128xf32> to vector<1x128xf32>
    %c2_239 = arith.constant 2 : index
    %c3_240 = arith.constant 3 : index
    %c0_241 = arith.constant 0 : index
    %280 = vector.load %arg12[%c2_239, %c3_240, %c0_241] : memref<20x20x128xf32, #tpu.memory_space<vmem>>, vector<8x16x128xf32>
    %281 = vector.shape_cast %279 : vector<1x128xf32> to vector<1x1x128xf32>
    %282 = vector.broadcast %281 : vector<1x1x128xf32> to vector<8x16x128xf32>
    %283 = arith.mulf %280, %282 : vector<8x16x128xf32>
    %284 = arith.addf %277, %283 : vector<8x16x128xf32>
    %c2_242 = arith.constant 2 : index
    %c4_243 = arith.constant 4 : index
    %c0_244 = arith.constant 0 : index
    %285 = vector.load %arg5[%c2_242, %c4_243, %c0_244] : memref<5x5x128xf32, #tpu.memory_space<vmem>>, vector<1x1x128xf32>
    %286 = vector.shape_cast %285 : vector<1x1x128xf32> to vector<1x128xf32>
    %c2_245 = arith.constant 2 : index
    %c4_246 = arith.constant 4 : index
    %c0_247 = arith.constant 0 : index
    %287 = vector.load %arg12[%c2_245, %c4_246, %c0_247] : memref<20x20x128xf32, #tpu.memory_space<vmem>>, vector<8x16x128xf32>
    %288 = vector.shape_cast %286 : vector<1x128xf32> to vector<1x1x128xf32>
    %289 = vector.broadcast %288 : vector<1x1x128xf32> to vector<8x16x128xf32>
    %290 = arith.mulf %287, %289 : vector<8x16x128xf32>
    %291 = arith.addf %284, %290 : vector<8x16x128xf32>
    %c3_248 = arith.constant 3 : index
    %c0_249 = arith.constant 0 : index
    %c0_250 = arith.constant 0 : index
    %292 = vector.load %arg5[%c3_248, %c0_249, %c0_250] : memref<5x5x128xf32, #tpu.memory_space<vmem>>, vector<1x1x128xf32>
    %293 = vector.shape_cast %292 : vector<1x1x128xf32> to vector<1x128xf32>
    %c3_251 = arith.constant 3 : index
    %c0_252 = arith.constant 0 : index
    %c0_253 = arith.constant 0 : index
    %294 = vector.load %arg12[%c3_251, %c0_252, %c0_253] : memref<20x20x128xf32, #tpu.memory_space<vmem>>, vector<8x16x128xf32>
    %295 = vector.shape_cast %293 : vector<1x128xf32> to vector<1x1x128xf32>
    %296 = vector.broadcast %295 : vector<1x1x128xf32> to vector<8x16x128xf32>
    %297 = arith.mulf %294, %296 : vector<8x16x128xf32>
    %298 = arith.addf %291, %297 : vector<8x16x128xf32>
    %c3_254 = arith.constant 3 : index
    %c1_255 = arith.constant 1 : index
    %c0_256 = arith.constant 0 : index
    %299 = vector.load %arg5[%c3_254, %c1_255, %c0_256] : memref<5x5x128xf32, #tpu.memory_space<vmem>>, vector<1x1x128xf32>
    %300 = vector.shape_cast %299 : vector<1x1x128xf32> to vector<1x128xf32>
    %c3_257 = arith.constant 3 : index
    %c1_258 = arith.constant 1 : index
    %c0_259 = arith.constant 0 : index
    %301 = vector.load %arg12[%c3_257, %c1_258, %c0_259] : memref<20x20x128xf32, #tpu.memory_space<vmem>>, vector<8x16x128xf32>
    %302 = vector.shape_cast %300 : vector<1x128xf32> to vector<1x1x128xf32>
    %303 = vector.broadcast %302 : vector<1x1x128xf32> to vector<8x16x128xf32>
    %304 = arith.mulf %301, %303 : vector<8x16x128xf32>
    %305 = arith.addf %298, %304 : vector<8x16x128xf32>
    %c3_260 = arith.constant 3 : index
    %c2_261 = arith.constant 2 : index
    %c0_262 = arith.constant 0 : index
    %306 = vector.load %arg5[%c3_260, %c2_261, %c0_262] : memref<5x5x128xf32, #tpu.memory_space<vmem>>, vector<1x1x128xf32>
    %307 = vector.shape_cast %306 : vector<1x1x128xf32> to vector<1x128xf32>
    %c3_263 = arith.constant 3 : index
    %c2_264 = arith.constant 2 : index
    %c0_265 = arith.constant 0 : index
    %308 = vector.load %arg12[%c3_263, %c2_264, %c0_265] : memref<20x20x128xf32, #tpu.memory_space<vmem>>, vector<8x16x128xf32>
    %309 = vector.shape_cast %307 : vector<1x128xf32> to vector<1x1x128xf32>
    %310 = vector.broadcast %309 : vector<1x1x128xf32> to vector<8x16x128xf32>
    %311 = arith.mulf %308, %310 : vector<8x16x128xf32>
    %312 = arith.addf %305, %311 : vector<8x16x128xf32>
    %c3_266 = arith.constant 3 : index
    %c3_267 = arith.constant 3 : index
    %c0_268 = arith.constant 0 : index
    %313 = vector.load %arg5[%c3_266, %c3_267, %c0_268] : memref<5x5x128xf32, #tpu.memory_space<vmem>>, vector<1x1x128xf32>
    %314 = vector.shape_cast %313 : vector<1x1x128xf32> to vector<1x128xf32>
    %c3_269 = arith.constant 3 : index
    %c3_270 = arith.constant 3 : index
    %c0_271 = arith.constant 0 : index
    %315 = vector.load %arg12[%c3_269, %c3_270, %c0_271] : memref<20x20x128xf32, #tpu.memory_space<vmem>>, vector<8x16x128xf32>
    %316 = vector.shape_cast %314 : vector<1x128xf32> to vector<1x1x128xf32>
    %317 = vector.broadcast %316 : vector<1x1x128xf32> to vector<8x16x128xf32>
    %318 = arith.mulf %315, %317 : vector<8x16x128xf32>
    %319 = arith.addf %312, %318 : vector<8x16x128xf32>
    %c3_272 = arith.constant 3 : index
    %c4_273 = arith.constant 4 : index
    %c0_274 = arith.constant 0 : index
    %320 = vector.load %arg5[%c3_272, %c4_273, %c0_274] : memref<5x5x128xf32, #tpu.memory_space<vmem>>, vector<1x1x128xf32>
    %321 = vector.shape_cast %320 : vector<1x1x128xf32> to vector<1x128xf32>
    %c3_275 = arith.constant 3 : index
    %c4_276 = arith.constant 4 : index
    %c0_277 = arith.constant 0 : index
    %322 = vector.load %arg12[%c3_275, %c4_276, %c0_277] : memref<20x20x128xf32, #tpu.memory_space<vmem>>, vector<8x16x128xf32>
    %323 = vector.shape_cast %321 : vector<1x128xf32> to vector<1x1x128xf32>
    %324 = vector.broadcast %323 : vector<1x1x128xf32> to vector<8x16x128xf32>
    %325 = arith.mulf %322, %324 : vector<8x16x128xf32>
    %326 = arith.addf %319, %325 : vector<8x16x128xf32>
    %c4_278 = arith.constant 4 : index
    %c0_279 = arith.constant 0 : index
    %c0_280 = arith.constant 0 : index
    %327 = vector.load %arg5[%c4_278, %c0_279, %c0_280] : memref<5x5x128xf32, #tpu.memory_space<vmem>>, vector<1x1x128xf32>
    %328 = vector.shape_cast %327 : vector<1x1x128xf32> to vector<1x128xf32>
    %c4_281 = arith.constant 4 : index
    %c0_282 = arith.constant 0 : index
    %c0_283 = arith.constant 0 : index
    %329 = vector.load %arg12[%c4_281, %c0_282, %c0_283] : memref<20x20x128xf32, #tpu.memory_space<vmem>>, vector<8x16x128xf32>
    %330 = vector.shape_cast %328 : vector<1x128xf32> to vector<1x1x128xf32>
    %331 = vector.broadcast %330 : vector<1x1x128xf32> to vector<8x16x128xf32>
    %332 = arith.mulf %329, %331 : vector<8x16x128xf32>
    %333 = arith.addf %326, %332 : vector<8x16x128xf32>
    %c4_284 = arith.constant 4 : index
    %c1_285 = arith.constant 1 : index
    %c0_286 = arith.constant 0 : index
    %334 = vector.load %arg5[%c4_284, %c1_285, %c0_286] : memref<5x5x128xf32, #tpu.memory_space<vmem>>, vector<1x1x128xf32>
    %335 = vector.shape_cast %334 : vector<1x1x128xf32> to vector<1x128xf32>
    %c4_287 = arith.constant 4 : index
    %c1_288 = arith.constant 1 : index
    %c0_289 = arith.constant 0 : index
    %336 = vector.load %arg12[%c4_287, %c1_288, %c0_289] : memref<20x20x128xf32, #tpu.memory_space<vmem>>, vector<8x16x128xf32>
    %337 = vector.shape_cast %335 : vector<1x128xf32> to vector<1x1x128xf32>
    %338 = vector.broadcast %337 : vector<1x1x128xf32> to vector<8x16x128xf32>
    %339 = arith.mulf %336, %338 : vector<8x16x128xf32>
    %340 = arith.addf %333, %339 : vector<8x16x128xf32>
    %c4_290 = arith.constant 4 : index
    %c2_291 = arith.constant 2 : index
    %c0_292 = arith.constant 0 : index
    %341 = vector.load %arg5[%c4_290, %c2_291, %c0_292] : memref<5x5x128xf32, #tpu.memory_space<vmem>>, vector<1x1x128xf32>
    %342 = vector.shape_cast %341 : vector<1x1x128xf32> to vector<1x128xf32>
    %c4_293 = arith.constant 4 : index
    %c2_294 = arith.constant 2 : index
    %c0_295 = arith.constant 0 : index
    %343 = vector.load %arg12[%c4_293, %c2_294, %c0_295] : memref<20x20x128xf32, #tpu.memory_space<vmem>>, vector<8x16x128xf32>
    %344 = vector.shape_cast %342 : vector<1x128xf32> to vector<1x1x128xf32>
    %345 = vector.broadcast %344 : vector<1x1x128xf32> to vector<8x16x128xf32>
    %346 = arith.mulf %343, %345 : vector<8x16x128xf32>
    %347 = arith.addf %340, %346 : vector<8x16x128xf32>
    %c4_296 = arith.constant 4 : index
    %c3_297 = arith.constant 3 : index
    %c0_298 = arith.constant 0 : index
    %348 = vector.load %arg5[%c4_296, %c3_297, %c0_298] : memref<5x5x128xf32, #tpu.memory_space<vmem>>, vector<1x1x128xf32>
    %349 = vector.shape_cast %348 : vector<1x1x128xf32> to vector<1x128xf32>
    %c4_299 = arith.constant 4 : index
    %c3_300 = arith.constant 3 : index
    %c0_301 = arith.constant 0 : index
    %350 = vector.load %arg12[%c4_299, %c3_300, %c0_301] : memref<20x20x128xf32, #tpu.memory_space<vmem>>, vector<8x16x128xf32>
    %351 = vector.shape_cast %349 : vector<1x128xf32> to vector<1x1x128xf32>
    %352 = vector.broadcast %351 : vector<1x1x128xf32> to vector<8x16x128xf32>
    %353 = arith.mulf %350, %352 : vector<8x16x128xf32>
    %354 = arith.addf %347, %353 : vector<8x16x128xf32>
    %c4_302 = arith.constant 4 : index
    %c4_303 = arith.constant 4 : index
    %c0_304 = arith.constant 0 : index
    %355 = vector.load %arg5[%c4_302, %c4_303, %c0_304] : memref<5x5x128xf32, #tpu.memory_space<vmem>>, vector<1x1x128xf32>
    %356 = vector.shape_cast %355 : vector<1x1x128xf32> to vector<1x128xf32>
    %c4_305 = arith.constant 4 : index
    %c4_306 = arith.constant 4 : index
    %c0_307 = arith.constant 0 : index
    %357 = vector.load %arg12[%c4_305, %c4_306, %c0_307] : memref<20x20x128xf32, #tpu.memory_space<vmem>>, vector<8x16x128xf32>
    %358 = vector.shape_cast %356 : vector<1x128xf32> to vector<1x1x128xf32>
    %359 = vector.broadcast %358 : vector<1x1x128xf32> to vector<8x16x128xf32>
    %360 = arith.mulf %357, %359 : vector<8x16x128xf32>
    %361 = arith.addf %354, %360 : vector<8x16x128xf32>
    %cst_308 = arith.constant 5.000000e-01 : f32
    %362 = vector.broadcast %cst_308 : f32 to vector<8x16x128xf32>
    %363 = arith.mulf %362, %361 : vector<8x16x128xf32>
    %cst_309 = arith.constant 4.471500e-02 : f32
    %364 = vector.broadcast %cst_309 : f32 to vector<8x16x128xf32>
    %365 = arith.mulf %364, %361 : vector<8x16x128xf32>
    %366 = arith.mulf %365, %361 : vector<8x16x128xf32>
    %367 = arith.mulf %366, %361 : vector<8x16x128xf32>
    %368 = arith.addf %361, %367 : vector<8x16x128xf32>
    %cst_310 = arith.constant 0.797884583 : f32
    %369 = vector.broadcast %cst_310 : f32 to vector<8x16x128xf32>
    %370 = arith.mulf %369, %368 : vector<8x16x128xf32>
    %371 = math.tanh %370 : vector<8x16x128xf32>
    %cst_311 = arith.constant 1.000000e+00 : f32
    %372 = vector.broadcast %cst_311 : f32 to vector<8x16x128xf32>
    %373 = arith.addf %372, %371 : vector<8x16x128xf32>
    %374 = arith.mulf %363, %373 : vector<8x16x128xf32>
    %c2_312 = arith.constant 2 : index
    %c2_313 = arith.constant 2 : index
    %c0_314 = arith.constant 0 : index
    %375 = vector.load %arg11[%c2_312, %c2_313, %c0_314] : memref<20x20x128xf32, #tpu.memory_space<vmem>>, vector<8x16x128xf32>
    tpu.vector_store %arg11[%c2_312, %c2_313, %c0_314], %374 {strides = array<i32>} : memref<20x20x128xf32, #tpu.memory_space<vmem>>, vector<8x16x128xf32>,
    %376 = vector.extract_strided_slice %12 {offsets = [0, 0, 128], sizes = [8, 16, 128], strides = [1, 1, 1]} : vector<16x16x384xf32> to vector<8x16x128xf32>
    %c0_315 = arith.constant 0 : index
    %c0_316 = arith.constant 0 : index
    %c0_317 = arith.constant 0 : index
    %377 = vector.load %arg13[%c0_315, %c0_316, %c0_317] : memref<16x16x128xf32, #tpu.memory_space<vmem>>, vector<8x16x128xf32>
    %378 = arith.mulf %374, %376 : vector<8x16x128xf32>
    %379 = arith.addf %377, %378 : vector<8x16x128xf32>
    %c0_318 = arith.constant 0 : index
    %c0_319 = arith.constant 0 : index
    %c0_320 = arith.constant 0 : index
    %380 = vector.load %arg13[%c0_318, %c0_319, %c0_320] : memref<16x16x128xf32, #tpu.memory_space<vmem>>, vector<8x16x128xf32>
    tpu.vector_store %arg13[%c0_318, %c0_319, %c0_320], %379 {strides = array<i32>} : memref<16x16x128xf32, #tpu.memory_space<vmem>>, vector<8x16x128xf32>,
    %cst_321 = arith.constant 0.000000e+00 : f32
    %381 = vector.broadcast %cst_321 : f32 to vector<8x16x128xf32>
    %c0_322 = arith.constant 0 : index
    %c0_323 = arith.constant 0 : index
    %c0_324 = arith.constant 0 : index
    %382 = vector.load %arg5[%c0_322, %c0_323, %c0_324] : memref<5x5x128xf32, #tpu.memory_space<vmem>>, vector<1x1x128xf32>
    %383 = vector.shape_cast %382 : vector<1x1x128xf32> to vector<1x128xf32>
    %c8_325 = arith.constant 8 : index
    %c0_326 = arith.constant 0 : index
    %c0_327 = arith.constant 0 : index
    %384 = vector.load %arg12[%c8_325, %c0_326, %c0_327] : memref<20x20x128xf32, #tpu.memory_space<vmem>>, vector<8x16x128xf32>
    %385 = vector.shape_cast %383 : vector<1x128xf32> to vector<1x1x128xf32>
    %386 = vector.broadcast %385 : vector<1x1x128xf32> to vector<8x16x128xf32>
    %387 = arith.mulf %384, %386 : vector<8x16x128xf32>
    %388 = arith.addf %381, %387 : vector<8x16x128xf32>
    %c0_328 = arith.constant 0 : index
    %c1_329 = arith.constant 1 : index
    %c0_330 = arith.constant 0 : index
    %389 = vector.load %arg5[%c0_328, %c1_329, %c0_330] : memref<5x5x128xf32, #tpu.memory_space<vmem>>, vector<1x1x128xf32>
    %390 = vector.shape_cast %389 : vector<1x1x128xf32> to vector<1x128xf32>
    %c8_331 = arith.constant 8 : index
    %c1_332 = arith.constant 1 : index
    %c0_333 = arith.constant 0 : index
    %391 = vector.load %arg12[%c8_331, %c1_332, %c0_333] : memref<20x20x128xf32, #tpu.memory_space<vmem>>, vector<8x16x128xf32>
    %392 = vector.shape_cast %390 : vector<1x128xf32> to vector<1x1x128xf32>
    %393 = vector.broadcast %392 : vector<1x1x128xf32> to vector<8x16x128xf32>
    %394 = arith.mulf %391, %393 : vector<8x16x128xf32>
    %395 = arith.addf %388, %394 : vector<8x16x128xf32>
    %c0_334 = arith.constant 0 : index
    %c2_335 = arith.constant 2 : index
    %c0_336 = arith.constant 0 : index
    %396 = vector.load %arg5[%c0_334, %c2_335, %c0_336] : memref<5x5x128xf32, #tpu.memory_space<vmem>>, vector<1x1x128xf32>
    %397 = vector.shape_cast %396 : vector<1x1x128xf32> to vector<1x128xf32>
    %c8_337 = arith.constant 8 : index
    %c2_338 = arith.constant 2 : index
    %c0_339 = arith.constant 0 : index
    %398 = vector.load %arg12[%c8_337, %c2_338, %c0_339] : memref<20x20x128xf32, #tpu.memory_space<vmem>>, vector<8x16x128xf32>
    %399 = vector.shape_cast %397 : vector<1x128xf32> to vector<1x1x128xf32>
    %400 = vector.broadcast %399 : vector<1x1x128xf32> to vector<8x16x128xf32>
    %401 = arith.mulf %398, %400 : vector<8x16x128xf32>
    %402 = arith.addf %395, %401 : vector<8x16x128xf32>
    %c0_340 = arith.constant 0 : index
    %c3_341 = arith.constant 3 : index
    %c0_342 = arith.constant 0 : index
    %403 = vector.load %arg5[%c0_340, %c3_341, %c0_342] : memref<5x5x128xf32, #tpu.memory_space<vmem>>, vector<1x1x128xf32>
    %404 = vector.shape_cast %403 : vector<1x1x128xf32> to vector<1x128xf32>
    %c8_343 = arith.constant 8 : index
    %c3_344 = arith.constant 3 : index
    %c0_345 = arith.constant 0 : index
    %405 = vector.load %arg12[%c8_343, %c3_344, %c0_345] : memref<20x20x128xf32, #tpu.memory_space<vmem>>, vector<8x16x128xf32>
    %406 = vector.shape_cast %404 : vector<1x128xf32> to vector<1x1x128xf32>
    %407 = vector.broadcast %406 : vector<1x1x128xf32> to vector<8x16x128xf32>
    %408 = arith.mulf %405, %407 : vector<8x16x128xf32>
    %409 = arith.addf %402, %408 : vector<8x16x128xf32>
    %c0_346 = arith.constant 0 : index
    %c4_347 = arith.constant 4 : index
    %c0_348 = arith.constant 0 : index
    %410 = vector.load %arg5[%c0_346, %c4_347, %c0_348] : memref<5x5x128xf32, #tpu.memory_space<vmem>>, vector<1x1x128xf32>
    %411 = vector.shape_cast %410 : vector<1x1x128xf32> to vector<1x128xf32>
    %c8_349 = arith.constant 8 : index
    %c4_350 = arith.constant 4 : index
    %c0_351 = arith.constant 0 : index
    %412 = vector.load %arg12[%c8_349, %c4_350, %c0_351] : memref<20x20x128xf32, #tpu.memory_space<vmem>>, vector<8x16x128xf32>
    %413 = vector.shape_cast %411 : vector<1x128xf32> to vector<1x1x128xf32>
    %414 = vector.broadcast %413 : vector<1x1x128xf32> to vector<8x16x128xf32>
    %415 = arith.mulf %412, %414 : vector<8x16x128xf32>
    %416 = arith.addf %409, %415 : vector<8x16x128xf32>
    %c1_352 = arith.constant 1 : index
    %c0_353 = arith.constant 0 : index
    %c0_354 = arith.constant 0 : index
    %417 = vector.load %arg5[%c1_352, %c0_353, %c0_354] : memref<5x5x128xf32, #tpu.memory_space<vmem>>, vector<1x1x128xf32>
    %418 = vector.shape_cast %417 : vector<1x1x128xf32> to vector<1x128xf32>
    %c9_355 = arith.constant 9 : index
    %c0_356 = arith.constant 0 : index
    %c0_357 = arith.constant 0 : index
    %419 = vector.load %arg12[%c9_355, %c0_356, %c0_357] : memref<20x20x128xf32, #tpu.memory_space<vmem>>, vector<8x16x128xf32>
    %420 = vector.shape_cast %418 : vector<1x128xf32> to vector<1x1x128xf32>
    %421 = vector.broadcast %420 : vector<1x1x128xf32> to vector<8x16x128xf32>
    %422 = arith.mulf %419, %421 : vector<8x16x128xf32>
    %423 = arith.addf %416, %422 : vector<8x16x128xf32>
    %c1_358 = arith.constant 1 : index
    %c1_359 = arith.constant 1 : index
    %c0_360 = arith.constant 0 : index
    %424 = vector.load %arg5[%c1_358, %c1_359, %c0_360] : memref<5x5x128xf32, #tpu.memory_space<vmem>>, vector<1x1x128xf32>
    %425 = vector.shape_cast %424 : vector<1x1x128xf32> to vector<1x128xf32>
    %c9_361 = arith.constant 9 : index
    %c1_362 = arith.constant 1 : index
    %c0_363 = arith.constant 0 : index
    %426 = vector.load %arg12[%c9_361, %c1_362, %c0_363] : memref<20x20x128xf32, #tpu.memory_space<vmem>>, vector<8x16x128xf32>
    %427 = vector.shape_cast %425 : vector<1x128xf32> to vector<1x1x128xf32>
    %428 = vector.broadcast %427 : vector<1x1x128xf32> to vector<8x16x128xf32>
    %429 = arith.mulf %426, %428 : vector<8x16x128xf32>
    %430 = arith.addf %423, %429 : vector<8x16x128xf32>
    %c1_364 = arith.constant 1 : index
    %c2_365 = arith.constant 2 : index
    %c0_366 = arith.constant 0 : index
    %431 = vector.load %arg5[%c1_364, %c2_365, %c0_366] : memref<5x5x128xf32, #tpu.memory_space<vmem>>, vector<1x1x128xf32>
    %432 = vector.shape_cast %431 : vector<1x1x128xf32> to vector<1x128xf32>
    %c9_367 = arith.constant 9 : index
    %c2_368 = arith.constant 2 : index
    %c0_369 = arith.constant 0 : index
    %433 = vector.load %arg12[%c9_367, %c2_368, %c0_369] : memref<20x20x128xf32, #tpu.memory_space<vmem>>, vector<8x16x128xf32>
    %434 = vector.shape_cast %432 : vector<1x128xf32> to vector<1x1x128xf32>
    %435 = vector.broadcast %434 : vector<1x1x128xf32> to vector<8x16x128xf32>
    %436 = arith.mulf %433, %435 : vector<8x16x128xf32>
    %437 = arith.addf %430, %436 : vector<8x16x128xf32>
    %c1_370 = arith.constant 1 : index
    %c3_371 = arith.constant 3 : index
    %c0_372 = arith.constant 0 : index
    %438 = vector.load %arg5[%c1_370, %c3_371, %c0_372] : memref<5x5x128xf32, #tpu.memory_space<vmem>>, vector<1x1x128xf32>
    %439 = vector.shape_cast %438 : vector<1x1x128xf32> to vector<1x128xf32>
    %c9_373 = arith.constant 9 : index
    %c3_374 = arith.constant 3 : index
    %c0_375 = arith.constant 0 : index
    %440 = vector.load %arg12[%c9_373, %c3_374, %c0_375] : memref<20x20x128xf32, #tpu.memory_space<vmem>>, vector<8x16x128xf32>
    %441 = vector.shape_cast %439 : vector<1x128xf32> to vector<1x1x128xf32>
    %442 = vector.broadcast %441 : vector<1x1x128xf32> to vector<8x16x128xf32>
    %443 = arith.mulf %440, %442 : vector<8x16x128xf32>
    %444 = arith.addf %437, %443 : vector<8x16x128xf32>
    %c1_376 = arith.constant 1 : index
    %c4_377 = arith.constant 4 : index
    %c0_378 = arith.constant 0 : index
    %445 = vector.load %arg5[%c1_376, %c4_377, %c0_378] : memref<5x5x128xf32, #tpu.memory_space<vmem>>, vector<1x1x128xf32>
    %446 = vector.shape_cast %445 : vector<1x1x128xf32> to vector<1x128xf32>
    %c9_379 = arith.constant 9 : index
    %c4_380 = arith.constant 4 : index
    %c0_381 = arith.constant 0 : index
    %447 = vector.load %arg12[%c9_379, %c4_380, %c0_381] : memref<20x20x128xf32, #tpu.memory_space<vmem>>, vector<8x16x128xf32>
    %448 = vector.shape_cast %446 : vector<1x128xf32> to vector<1x1x128xf32>
    %449 = vector.broadcast %448 : vector<1x1x128xf32> to vector<8x16x128xf32>
    %450 = arith.mulf %447, %449 : vector<8x16x128xf32>
    %451 = arith.addf %444, %450 : vector<8x16x128xf32>
    %c2_382 = arith.constant 2 : index
    %c0_383 = arith.constant 0 : index
    %c0_384 = arith.constant 0 : index
    %452 = vector.load %arg5[%c2_382, %c0_383, %c0_384] : memref<5x5x128xf32, #tpu.memory_space<vmem>>, vector<1x1x128xf32>
    %453 = vector.shape_cast %452 : vector<1x1x128xf32> to vector<1x128xf32>
    %c10_385 = arith.constant 10 : index
    %c0_386 = arith.constant 0 : index
    %c0_387 = arith.constant 0 : index
    %454 = vector.load %arg12[%c10_385, %c0_386, %c0_387] : memref<20x20x128xf32, #tpu.memory_space<vmem>>, vector<8x16x128xf32>
    %455 = vector.shape_cast %453 : vector<1x128xf32> to vector<1x1x128xf32>
    %456 = vector.broadcast %455 : vector<1x1x128xf32> to vector<8x16x128xf32>
    %457 = arith.mulf %454, %456 : vector<8x16x128xf32>
    %458 = arith.addf %451, %457 : vector<8x16x128xf32>
    %c2_388 = arith.constant 2 : index
    %c1_389 = arith.constant 1 : index
    %c0_390 = arith.constant 0 : index
    %459 = vector.load %arg5[%c2_388, %c1_389, %c0_390] : memref<5x5x128xf32, #tpu.memory_space<vmem>>, vector<1x1x128xf32>
    %460 = vector.shape_cast %459 : vector<1x1x128xf32> to vector<1x128xf32>
    %c10_391 = arith.constant 10 : index
    %c1_392 = arith.constant 1 : index
    %c0_393 = arith.constant 0 : index
    %461 = vector.load %arg12[%c10_391, %c1_392, %c0_393] : memref<20x20x128xf32, #tpu.memory_space<vmem>>, vector<8x16x128xf32>
    %462 = vector.shape_cast %460 : vector<1x128xf32> to vector<1x1x128xf32>
    %463 = vector.broadcast %462 : vector<1x1x128xf32> to vector<8x16x128xf32>
    %464 = arith.mulf %461, %463 : vector<8x16x128xf32>
    %465 = arith.addf %458, %464 : vector<8x16x128xf32>
    %c2_394 = arith.constant 2 : index
    %c2_395 = arith.constant 2 : index
    %c0_396 = arith.constant 0 : index
    %466 = vector.load %arg5[%c2_394, %c2_395, %c0_396] : memref<5x5x128xf32, #tpu.memory_space<vmem>>, vector<1x1x128xf32>
    %467 = vector.shape_cast %466 : vector<1x1x128xf32> to vector<1x128xf32>
    %c10_397 = arith.constant 10 : index
    %c2_398 = arith.constant 2 : index
    %c0_399 = arith.constant 0 : index
    %468 = vector.load %arg12[%c10_397, %c2_398, %c0_399] : memref<20x20x128xf32, #tpu.memory_space<vmem>>, vector<8x16x128xf32>
    %469 = vector.shape_cast %467 : vector<1x128xf32> to vector<1x1x128xf32>
    %470 = vector.broadcast %469 : vector<1x1x128xf32> to vector<8x16x128xf32>
    %471 = arith.mulf %468, %470 : vector<8x16x128xf32>
    %472 = arith.addf %465, %471 : vector<8x16x128xf32>
    %c2_400 = arith.constant 2 : index
    %c3_401 = arith.constant 3 : index
    %c0_402 = arith.constant 0 : index
    %473 = vector.load %arg5[%c2_400, %c3_401, %c0_402] : memref<5x5x128xf32, #tpu.memory_space<vmem>>, vector<1x1x128xf32>
    %474 = vector.shape_cast %473 : vector<1x1x128xf32> to vector<1x128xf32>
    %c10_403 = arith.constant 10 : index
    %c3_404 = arith.constant 3 : index
    %c0_405 = arith.constant 0 : index
    %475 = vector.load %arg12[%c10_403, %c3_404, %c0_405] : memref<20x20x128xf32, #tpu.memory_space<vmem>>, vector<8x16x128xf32>
    %476 = vector.shape_cast %474 : vector<1x128xf32> to vector<1x1x128xf32>
    %477 = vector.broadcast %476 : vector<1x1x128xf32> to vector<8x16x128xf32>
    %478 = arith.mulf %475, %477 : vector<8x16x128xf32>
    %479 = arith.addf %472, %478 : vector<8x16x128xf32>
    %c2_406 = arith.constant 2 : index
    %c4_407 = arith.constant 4 : index
    %c0_408 = arith.constant 0 : index
    %480 = vector.load %arg5[%c2_406, %c4_407, %c0_408] : memref<5x5x128xf32, #tpu.memory_space<vmem>>, vector<1x1x128xf32>
    %481 = vector.shape_cast %480 : vector<1x1x128xf32> to vector<1x128xf32>
    %c10_409 = arith.constant 10 : index
    %c4_410 = arith.constant 4 : index
    %c0_411 = arith.constant 0 : index
    %482 = vector.load %arg12[%c10_409, %c4_410, %c0_411] : memref<20x20x128xf32, #tpu.memory_space<vmem>>, vector<8x16x128xf32>
    %483 = vector.shape_cast %481 : vector<1x128xf32> to vector<1x1x128xf32>
    %484 = vector.broadcast %483 : vector<1x1x128xf32> to vector<8x16x128xf32>
    %485 = arith.mulf %482, %484 : vector<8x16x128xf32>
    %486 = arith.addf %479, %485 : vector<8x16x128xf32>
    %c3_412 = arith.constant 3 : index
    %c0_413 = arith.constant 0 : index
    %c0_414 = arith.constant 0 : index
    %487 = vector.load %arg5[%c3_412, %c0_413, %c0_414] : memref<5x5x128xf32, #tpu.memory_space<vmem>>, vector<1x1x128xf32>
    %488 = vector.shape_cast %487 : vector<1x1x128xf32> to vector<1x128xf32>
    %c11_415 = arith.constant 11 : index
    %c0_416 = arith.constant 0 : index
    %c0_417 = arith.constant 0 : index
    %489 = vector.load %arg12[%c11_415, %c0_416, %c0_417] : memref<20x20x128xf32, #tpu.memory_space<vmem>>, vector<8x16x128xf32>
    %490 = vector.shape_cast %488 : vector<1x128xf32> to vector<1x1x128xf32>
    %491 = vector.broadcast %490 : vector<1x1x128xf32> to vector<8x16x128xf32>
    %492 = arith.mulf %489, %491 : vector<8x16x128xf32>
    %493 = arith.addf %486, %492 : vector<8x16x128xf32>
    %c3_418 = arith.constant 3 : index
    %c1_419 = arith.constant 1 : index
    %c0_420 = arith.constant 0 : index
    %494 = vector.load %arg5[%c3_418, %c1_419, %c0_420] : memref<5x5x128xf32, #tpu.memory_space<vmem>>, vector<1x1x128xf32>
    %495 = vector.shape_cast %494 : vector<1x1x128xf32> to vector<1x128xf32>
    %c11_421 = arith.constant 11 : index
    %c1_422 = arith.constant 1 : index
    %c0_423 = arith.constant 0 : index
    %496 = vector.load %arg12[%c11_421, %c1_422, %c0_423] : memref<20x20x128xf32, #tpu.memory_space<vmem>>, vector<8x16x128xf32>
    %497 = vector.shape_cast %495 : vector<1x128xf32> to vector<1x1x128xf32>
    %498 = vector.broadcast %497 : vector<1x1x128xf32> to vector<8x16x128xf32>
    %499 = arith.mulf %496, %498 : vector<8x16x128xf32>
    %500 = arith.addf %493, %499 : vector<8x16x128xf32>
    %c3_424 = arith.constant 3 : index
    %c2_425 = arith.constant 2 : index
    %c0_426 = arith.constant 0 : index
    %501 = vector.load %arg5[%c3_424, %c2_425, %c0_426] : memref<5x5x128xf32, #tpu.memory_space<vmem>>, vector<1x1x128xf32>
    %502 = vector.shape_cast %501 : vector<1x1x128xf32> to vector<1x128xf32>
    %c11_427 = arith.constant 11 : index
    %c2_428 = arith.constant 2 : index
    %c0_429 = arith.constant 0 : index
    %503 = vector.load %arg12[%c11_427, %c2_428, %c0_429] : memref<20x20x128xf32, #tpu.memory_space<vmem>>, vector<8x16x128xf32>
    %504 = vector.shape_cast %502 : vector<1x128xf32> to vector<1x1x128xf32>
    %505 = vector.broadcast %504 : vector<1x1x128xf32> to vector<8x16x128xf32>
    %506 = arith.mulf %503, %505 : vector<8x16x128xf32>
    %507 = arith.addf %500, %506 : vector<8x16x128xf32>
    %c3_430 = arith.constant 3 : index
    %c3_431 = arith.constant 3 : index
    %c0_432 = arith.constant 0 : index
    %508 = vector.load %arg5[%c3_430, %c3_431, %c0_432] : memref<5x5x128xf32, #tpu.memory_space<vmem>>, vector<1x1x128xf32>
    %509 = vector.shape_cast %508 : vector<1x1x128xf32> to vector<1x128xf32>
    %c11_433 = arith.constant 11 : index
    %c3_434 = arith.constant 3 : index
    %c0_435 = arith.constant 0 : index
    %510 = vector.load %arg12[%c11_433, %c3_434, %c0_435] : memref<20x20x128xf32, #tpu.memory_space<vmem>>, vector<8x16x128xf32>
    %511 = vector.shape_cast %509 : vector<1x128xf32> to vector<1x1x128xf32>
    %512 = vector.broadcast %511 : vector<1x1x128xf32> to vector<8x16x128xf32>
    %513 = arith.mulf %510, %512 : vector<8x16x128xf32>
    %514 = arith.addf %507, %513 : vector<8x16x128xf32>
    %c3_436 = arith.constant 3 : index
    %c4_437 = arith.constant 4 : index
    %c0_438 = arith.constant 0 : index
    %515 = vector.load %arg5[%c3_436, %c4_437, %c0_438] : memref<5x5x128xf32, #tpu.memory_space<vmem>>, vector<1x1x128xf32>
    %516 = vector.shape_cast %515 : vector<1x1x128xf32> to vector<1x128xf32>
    %c11_439 = arith.constant 11 : index
    %c4_440 = arith.constant 4 : index
    %c0_441 = arith.constant 0 : index
    %517 = vector.load %arg12[%c11_439, %c4_440, %c0_441] : memref<20x20x128xf32, #tpu.memory_space<vmem>>, vector<8x16x128xf32>
    %518 = vector.shape_cast %516 : vector<1x128xf32> to vector<1x1x128xf32>
    %519 = vector.broadcast %518 : vector<1x1x128xf32> to vector<8x16x128xf32>
    %520 = arith.mulf %517, %519 : vector<8x16x128xf32>
    %521 = arith.addf %514, %520 : vector<8x16x128xf32>
    %c4_442 = arith.constant 4 : index
    %c0_443 = arith.constant 0 : index
    %c0_444 = arith.constant 0 : index
    %522 = vector.load %arg5[%c4_442, %c0_443, %c0_444] : memref<5x5x128xf32, #tpu.memory_space<vmem>>, vector<1x1x128xf32>
    %523 = vector.shape_cast %522 : vector<1x1x128xf32> to vector<1x128xf32>
    %c12 = arith.constant 12 : index
    %c0_445 = arith.constant 0 : index
    %c0_446 = arith.constant 0 : index
    %524 = vector.load %arg12[%c12, %c0_445, %c0_446] : memref<20x20x128xf32, #tpu.memory_space<vmem>>, vector<8x16x128xf32>
    %525 = vector.shape_cast %523 : vector<1x128xf32> to vector<1x1x128xf32>
    %526 = vector.broadcast %525 : vector<1x1x128xf32> to vector<8x16x128xf32>
    %527 = arith.mulf %524, %526 : vector<8x16x128xf32>
    %528 = arith.addf %521, %527 : vector<8x16x128xf32>
    %c4_447 = arith.constant 4 : index
    %c1_448 = arith.constant 1 : index
    %c0_449 = arith.constant 0 : index
    %529 = vector.load %arg5[%c4_447, %c1_448, %c0_449] : memref<5x5x128xf32, #tpu.memory_space<vmem>>, vector<1x1x128xf32>
    %530 = vector.shape_cast %529 : vector<1x1x128xf32> to vector<1x128xf32>
    %c12_450 = arith.constant 12 : index
    %c1_451 = arith.constant 1 : index
    %c0_452 = arith.constant 0 : index
    %531 = vector.load %arg12[%c12_450, %c1_451, %c0_452] : memref<20x20x128xf32, #tpu.memory_space<vmem>>, vector<8x16x128xf32>
    %532 = vector.shape_cast %530 : vector<1x128xf32> to vector<1x1x128xf32>
    %533 = vector.broadcast %532 : vector<1x1x128xf32> to vector<8x16x128xf32>
    %534 = arith.mulf %531, %533 : vector<8x16x128xf32>
    %535 = arith.addf %528, %534 : vector<8x16x128xf32>
    %c4_453 = arith.constant 4 : index
    %c2_454 = arith.constant 2 : index
    %c0_455 = arith.constant 0 : index
    %536 = vector.load %arg5[%c4_453, %c2_454, %c0_455] : memref<5x5x128xf32, #tpu.memory_space<vmem>>, vector<1x1x128xf32>
    %537 = vector.shape_cast %536 : vector<1x1x128xf32> to vector<1x128xf32>
    %c12_456 = arith.constant 12 : index
    %c2_457 = arith.constant 2 : index
    %c0_458 = arith.constant 0 : index
    %538 = vector.load %arg12[%c12_456, %c2_457, %c0_458] : memref<20x20x128xf32, #tpu.memory_space<vmem>>, vector<8x16x128xf32>
    %539 = vector.shape_cast %537 : vector<1x128xf32> to vector<1x1x128xf32>
    %540 = vector.broadcast %539 : vector<1x1x128xf32> to vector<8x16x128xf32>
    %541 = arith.mulf %538, %540 : vector<8x16x128xf32>
    %542 = arith.addf %535, %541 : vector<8x16x128xf32>
    %c4_459 = arith.constant 4 : index
    %c3_460 = arith.constant 3 : index
    %c0_461 = arith.constant 0 : index
    %543 = vector.load %arg5[%c4_459, %c3_460, %c0_461] : memref<5x5x128xf32, #tpu.memory_space<vmem>>, vector<1x1x128xf32>
    %544 = vector.shape_cast %543 : vector<1x1x128xf32> to vector<1x128xf32>
    %c12_462 = arith.constant 12 : index
    %c3_463 = arith.constant 3 : index
    %c0_464 = arith.constant 0 : index
    %545 = vector.load %arg12[%c12_462, %c3_463, %c0_464] : memref<20x20x128xf32, #tpu.memory_space<vmem>>, vector<8x16x128xf32>
    %546 = vector.shape_cast %544 : vector<1x128xf32> to vector<1x1x128xf32>
    %547 = vector.broadcast %546 : vector<1x1x128xf32> to vector<8x16x128xf32>
    %548 = arith.mulf %545, %547 : vector<8x16x128xf32>
    %549 = arith.addf %542, %548 : vector<8x16x128xf32>
    %c4_465 = arith.constant 4 : index
    %c4_466 = arith.constant 4 : index
    %c0_467 = arith.constant 0 : index
    %550 = vector.load %arg5[%c4_465, %c4_466, %c0_467] : memref<5x5x128xf32, #tpu.memory_space<vmem>>, vector<1x1x128xf32>
    %551 = vector.shape_cast %550 : vector<1x1x128xf32> to vector<1x128xf32>
    %c12_468 = arith.constant 12 : index
    %c4_469 = arith.constant 4 : index
    %c0_470 = arith.constant 0 : index
    %552 = vector.load %arg12[%c12_468, %c4_469, %c0_470] : memref<20x20x128xf32, #tpu.memory_space<vmem>>, vector<8x16x128xf32>
    %553 = vector.shape_cast %551 : vector<1x128xf32> to vector<1x1x128xf32>
    %554 = vector.broadcast %553 : vector<1x1x128xf32> to vector<8x16x128xf32>
    %555 = arith.mulf %552, %554 : vector<8x16x128xf32>
    %556 = arith.addf %549, %555 : vector<8x16x128xf32>
    %cst_471 = arith.constant 5.000000e-01 : f32
    %557 = vector.broadcast %cst_471 : f32 to vector<8x16x128xf32>
    %558 = arith.mulf %557, %556 : vector<8x16x128xf32>
    %cst_472 = arith.constant 4.471500e-02 : f32
    %559 = vector.broadcast %cst_472 : f32 to vector<8x16x128xf32>
    %560 = arith.mulf %559, %556 : vector<8x16x128xf32>
    %561 = arith.mulf %560, %556 : vector<8x16x128xf32>
    %562 = arith.mulf %561, %556 : vector<8x16x128xf32>
    %563 = arith.addf %556, %562 : vector<8x16x128xf32>
    %cst_473 = arith.constant 0.797884583 : f32
    %564 = vector.broadcast %cst_473 : f32 to vector<8x16x128xf32>
    %565 = arith.mulf %564, %563 : vector<8x16x128xf32>
    %566 = math.tanh %565 : vector<8x16x128xf32>
    %cst_474 = arith.constant 1.000000e+00 : f32
    %567 = vector.broadcast %cst_474 : f32 to vector<8x16x128xf32>
    %568 = arith.addf %567, %566 : vector<8x16x128xf32>
    %569 = arith.mulf %558, %568 : vector<8x16x128xf32>
    %c10_475 = arith.constant 10 : index
    %c2_476 = arith.constant 2 : index
    %c0_477 = arith.constant 0 : index
    %570 = vector.load %arg11[%c10_475, %c2_476, %c0_477] : memref<20x20x128xf32, #tpu.memory_space<vmem>>, vector<8x16x128xf32>
    tpu.vector_store %arg11[%c10_475, %c2_476, %c0_477], %569 {strides = array<i32>} : memref<20x20x128xf32, #tpu.memory_space<vmem>>, vector<8x16x128xf32>,
    %571 = vector.extract_strided_slice %12 {offsets = [8, 0, 128], sizes = [8, 16, 128], strides = [1, 1, 1]} : vector<16x16x384xf32> to vector<8x16x128xf32>
    %c8_478 = arith.constant 8 : index
    %c0_479 = arith.constant 0 : index
    %c0_480 = arith.constant 0 : index
    %572 = vector.load %arg13[%c8_478, %c0_479, %c0_480] : memref<16x16x128xf32, #tpu.memory_space<vmem>>, vector<8x16x128xf32>
    %573 = arith.mulf %569, %571 : vector<8x16x128xf32>
    %574 = arith.addf %572, %573 : vector<8x16x128xf32>
    %c8_481 = arith.constant 8 : index
    %c0_482 = arith.constant 0 : index
    %c0_483 = arith.constant 0 : index
    %575 = vector.load %arg13[%c8_481, %c0_482, %c0_483] : memref<16x16x128xf32, #tpu.memory_space<vmem>>, vector<8x16x128xf32>
    tpu.vector_store %arg13[%c8_481, %c0_482, %c0_483], %574 {strides = array<i32>} : memref<16x16x128xf32, #tpu.memory_space<vmem>>, vector<8x16x128xf32>,
    %c2_484 = arith.constant 2 : index
    %c2_485 = arith.constant 2 : index
    %c0_486 = arith.constant 0 : index
    %576 = vector.load %arg11[%c2_484, %c2_485, %c0_486] : memref<20x20x128xf32, #tpu.memory_space<vmem>>, vector<16x16x128xf32>
    %577 = vector.shape_cast %576 : vector<16x16x128xf32> to vector<256x128xf32>
    %cst_487 = arith.constant dense<0.000000e+00> : vector<128xf32>
    %578 = vector.multi_reduction <add>, %577, %cst_487 [0] : vector<256x128xf32> to vector<128xf32>
    %579 = vector.shape_cast %578 : vector<128xf32> to vector<1x128xf32>
    %cst_488 = arith.constant 2.560000e+02 : f32
    %580 = vector.broadcast %cst_488 : f32 to vector<1x128xf32>
    %581 = arith.divf %579, %580 : vector<1x128xf32>
    %cst_489 = arith.constant 5.000000e-01 : f32
    %582 = vector.broadcast %cst_489 : f32 to vector<1x128xf32>
    %583 = arith.mulf %582, %581 : vector<1x128xf32>
    %cst_490 = arith.constant 4.471500e-02 : f32
    %584 = vector.broadcast %cst_490 : f32 to vector<1x128xf32>
    %585 = arith.mulf %584, %581 : vector<1x128xf32>
    %586 = arith.mulf %585, %581 : vector<1x128xf32>
    %587 = arith.mulf %586, %581 : vector<1x128xf32>
    %588 = arith.addf %581, %587 : vector<1x128xf32>
    %cst_491 = arith.constant 0.797884583 : f32
    %589 = vector.broadcast %cst_491 : f32 to vector<1x128xf32>
    %590 = arith.mulf %589, %588 : vector<1x128xf32>
    %591 = math.tanh %590 : vector<1x128xf32>
    %cst_492 = arith.constant 1.000000e+00 : f32
    %592 = vector.broadcast %cst_492 : f32 to vector<1x128xf32>
    %593 = arith.addf %592, %591 : vector<1x128xf32>
    %594 = arith.mulf %583, %593 : vector<1x128xf32>
    %595 = vector.extract_strided_slice %12 {offsets = [0, 0, 256], sizes = [16, 16, 128], strides = [1, 1, 1]} : vector<16x16x384xf32> to vector<16x16x128xf32>
    %596 = vector.shape_cast %595 : vector<16x16x128xf32> to vector<256x128xf32>
    %c0_493 = arith.constant 0 : index
    %c0_494 = arith.constant 0 : index
    %c0_495 = arith.constant 0 : index
    %597 = vector.load %arg13[%c0_493, %c0_494, %c0_495] : memref<16x16x128xf32, #tpu.memory_space<vmem>>, vector<16x16x128xf32>
    %598 = vector.shape_cast %597 : vector<16x16x128xf32> to vector<256x128xf32>
    %599 = vector.broadcast %594 : vector<1x128xf32> to vector<256x128xf32>
    %600 = arith.mulf %599, %596 : vector<256x128xf32>
    %601 = arith.addf %598, %600 : vector<256x128xf32>
    %c0_496 = arith.constant 0 : index
    %c0_497 = arith.constant 0 : index
    %602 = vector.load %arg6[%c0_496, %c0_497] : memref<128x128xf32, #tpu.memory_space<vmem>>, vector<128x128xf32>
    %cst_498 = arith.constant dense<0.000000e+00> : vector<256x128xf32>
    %603 = tpu.matmul %601, %602, %cst_498 {dimension_numbers = #tpu.dot_dimension_numbers<[1], [0], [0], [1], [0, 0, 1, 1], [], []>} : vector<256x128xf32>, vector<128x128xf32>, vector<256x128xf32> -> vector<256x128xf32>
    %c0_499 = arith.constant 0 : index
    %c0_500 = arith.constant 0 : index
    %604 = vector.load %arg7[%c0_499, %c0_500] : memref<1x128xf32, #tpu.memory_space<vmem>>, vector<1x128xf32>
    %605 = vector.broadcast %604 : vector<1x128xf32> to vector<256x128xf32>
    %606 = arith.addf %603, %605 : vector<256x128xf32>
    %607 = arith.mulf %8, %606 : vector<256x128xf32>
    %c0_501 = arith.constant 0 : index
    %c0_502 = arith.constant 0 : index
    %608 = vector.load %arg8[%c0_501, %c0_502] : memref<128x128xf32, #tpu.memory_space<vmem>>, vector<128x128xf32>
    %cst_503 = arith.constant dense<0.000000e+00> : vector<256x128xf32>
    %609 = tpu.matmul %607, %608, %cst_503 {dimension_numbers = #tpu.dot_dimension_numbers<[1], [0], [0], [1], [0, 0, 1, 1], [], []>} : vector<256x128xf32>, vector<128x128xf32>, vector<256x128xf32> -> vector<256x128xf32>
    %c0_504 = arith.constant 0 : index
    %c0_505 = arith.constant 0 : index
    %610 = vector.load %arg9[%c0_504, %c0_505] : memref<1x128xf32, #tpu.memory_space<vmem>>, vector<1x128xf32>
    %611 = vector.broadcast %610 : vector<1x128xf32> to vector<256x128xf32>
    %612 = arith.addf %609, %611 : vector<256x128xf32>
    %613 = vector.shape_cast %612 : vector<256x128xf32> to vector<16x16x128xf32>
    %c0_506 = arith.constant 0 : index
    %c0_507 = arith.constant 0 : index
    %c0_508 = arith.constant 0 : index
    %c0_509 = arith.constant 0 : index
    %614 = vector.load %arg10[%c0_506, %c0_507, %c0_508, %c0_509] : memref<1x16x16x128xf32, #tpu.memory_space<vmem>>, vector<1x16x16x128xf32>
    %615 = vector.shape_cast %614 : vector<1x16x16x128xf32> to vector<16x16x128xf32>
    %616 = vector.shape_cast %613 : vector<16x16x128xf32> to vector<1x16x16x128xf32>
    tpu.vector_store %arg10[%c0_506, %c0_507, %c0_508, %c0_509], %616 {strides = array<i32>} : memref<1x16x16x128xf32, #tpu.memory_space<vmem>>, vector<1x16x16x128xf32>,
    return
  }
  func.func @transform_0(%arg0: i32) -> (i32, i32, i32, i32) {
    %c0_i32 = arith.constant 0 : i32
    %c0_i32_0 = arith.constant 0 : i32
    %c0_i32_1 = arith.constant 0 : i32
    %c0_i32_2 = arith.constant 0 : i32
    return %arg0, %c0_i32, %c0_i32_0, %c0_i32_1 : i32, i32, i32, i32
  }
  func.func @transform_1(%arg0: i32) -> (i32, i32) {
    %c0_i32 = arith.constant 0 : i32
    %c0_i32_0 = arith.constant 0 : i32
    %c0_i32_1 = arith.constant 0 : i32
    return %c0_i32, %c0_i32_0 : i32, i32
  }
  func.func @transform_2(%arg0: i32) -> (i32, i32) {
    %c0_i32 = arith.constant 0 : i32
    %c0_i32_0 = arith.constant 0 : i32
    %c0_i32_1 = arith.constant 0 : i32
    return %c0_i32, %c0_i32_0 : i32, i32
  }
  func.func @transform_3(%arg0: i32) -> (i32, i32, i32) {
    %c0_i32 = arith.constant 0 : i32
    %c0_i32_0 = arith.constant 0 : i32
    %c0_i32_1 = arith.constant 0 : i32
    %c0_i32_2 = arith.constant 0 : i32
    return %c0_i32, %c0_i32_0, %c0_i32_1 : i32, i32, i32
  }
  func.func @transform_4(%arg0: i32) -> (i32, i32, i32) {
    %c0_i32 = arith.constant 0 : i32
    %c0_i32_0 = arith.constant 0 : i32
    %c0_i32_1 = arith.constant 0 : i32
    %c0_i32_2 = arith.constant 0 : i32
    return %c0_i32, %c0_i32_0, %c0_i32_1 : i32, i32, i32
  }
  func.func @transform_5(%arg0: i32) -> (i32, i32) {
    %c0_i32 = arith.constant 0 : i32
    %c0_i32_0 = arith.constant 0 : i32
    %c0_i32_1 = arith.constant 0 : i32
    return %c0_i32, %c0_i32_0 : i32, i32
  }
  func.func @transform_6(%arg0: i32) -> (i32, i32) {
    %c0_i32 = arith.constant 0 : i32
    %c0_i32_0 = arith.constant 0 : i32
    %c0_i32_1 = arith.constant 0 : i32
    return %c0_i32, %c0_i32_0 : i32, i32
  }
  func.func @transform_7(%arg0: i32) -> (i32, i32) {
    %c0_i32 = arith.constant 0 : i32
    %c0_i32_0 = arith.constant 0 : i32
    %c0_i32_1 = arith.constant 0 : i32
    return %c0_i32, %c0_i32_0 : i32, i32
  }
  func.func @transform_8(%arg0: i32) -> (i32, i32) {
    %c0_i32 = arith.constant 0 : i32
    %c0_i32_0 = arith.constant 0 : i32
    %c0_i32_1 = arith.constant 0 : i32
    return %c0_i32, %c0_i32_0 : i32, i32
  }
  func.func @transform_9(%arg0: i32) -> (i32, i32, i32, i32) {
    %c0_i32 = arith.constant 0 : i32
    %c0_i32_0 = arith.constant 0 : i32
    %c0_i32_1 = arith.constant 0 : i32
    %c0_i32_2 = arith.constant 0 : i32
    return %arg0, %c0_i32, %c0_i32_0, %c0_i32_1 : i32, i32, i32, i32
  }
}

</mosaic_0001>

<llo_original>
// kernel: tile.54
$region0: #{tile.54}
  %s0 = inlined_call_operand.vmem [shape: f32[3,3,4,32], index: 0, kind: input, shape index: {}]
  %s1 = inlined_call_operand.vmem [shape: f32[3,3,128], index: 1, kind: output, shape index: {}]
  $region1: #{tile.54} parent=0
    #allocation0 [shape = 'u8[12288]{0}', space=vmem, size = 0x3000, scoped, tag = 'scoped mem for output reshape']
    #allocation1 [shape = 'u8[36864]{0}', space=vmem, size = 0x9000, scoped, tag = 'scoped mem for input reshape']
    %s3 = sshllo.u32 0, 4
    %s4 = smul.addr 4, 8
    %s5 = scalar_lea.vmem %s0, %s4
    %v6 = vld [vmem:[%s5] sm:%s3]
    %s7 = scalar_lea.vmem [#allocation1], 64
    %8 = vst [vmem:[%s7] sm:%s3] %v6
    %s9 = smul.addr 4, 7
    %s10 = scalar_lea.vmem %s0, %s9
    %v11 = vld [vmem:[%s10] sm:%s3]
    %s12 = scalar_lea.vmem [#allocation1], 56
    %13 = vst [vmem:[%s12] sm:%s3] %v11
    %s14 = smul.addr 4, 6
    %s15 = scalar_lea.vmem %s0, %s14
    %v16 = vld [vmem:[%s15] sm:%s3]
    %s17 = scalar_lea.vmem [#allocation1], 48
    %18 = vst [vmem:[%s17] sm:%s3] %v16
    %s19 = smul.addr 4, 5
    %s20 = scalar_lea.vmem %s0, %s19
    %v21 = vld [vmem:[%s20] sm:%s3]
    %s22 = scalar_lea.vmem [#allocation1], 40
    %23 = vst [vmem:[%s22] sm:%s3] %v21
    %s24 = smul.addr 4, 4
    %s25 = scalar_lea.vmem %s0, %s24
    %v26 = vld [vmem:[%s25] sm:%s3]
    %s27 = scalar_lea.vmem [#allocation1], 32
    %28 = vst [vmem:[%s27] sm:%s3] %v26
    %s29 = smul.addr 4, 3
    %s30 = scalar_lea.vmem %s0, %s29
    %v31 = vld [vmem:[%s30] sm:%s3]
    %s32 = scalar_lea.vmem [#allocation1], 24
    %33 = vst [vmem:[%s32] sm:%s3] %v31
    %s34 = smul.addr 4, 2
    %s35 = scalar_lea.vmem %s0, %s34
    %v36 = vld [vmem:[%s35] sm:%s3]
    %s37 = scalar_lea.vmem [#allocation1], 16
    %38 = vst [vmem:[%s37] sm:%s3] %v36
    %s39 = scalar_lea.vmem %s0, 4
    %v40 = vld [vmem:[%s39] sm:%s3]
    %s41 = scalar_lea.vmem [#allocation1], 8
    %42 = vst [vmem:[%s41] sm:%s3] %v40
    %v43 = vld [vmem:[%s0] sm:%s3]
    %44 = vst [vmem:[#allocation1] sm:%s3] %v43
    %v45 = vld [vmem:[#allocation1] ss:$8 sm:$0xf]
    %v46 = vld [vmem:[#allocation1] ss:$8 sm:$0xf0]
    %vm47 = vcmask 1047556
    %v48 = vsel %vm47, %v46, %v45
    %vm49 = vcmask 261120
    %50 = vst.msk [vmem:[#allocation0] sm:$0x7] %vm49, %v48
    %s51 = scalar_lea.vmem [#allocation0], 5
    %52 = vst.msk [vmem:[%s51] sm:$0x38] %vm49, %v48
    %s53 = scalar_lea.vmem [#allocation0], 10
    %54 = vst.msk [vmem:[%s53] sm:$0xc0] %vm49, %v48
    %s55 = scalar_lea.vmem [#allocation1], 64
    %v56 = vld [vmem:[%s55] sm:$0x1]
    %vm57 = vcmask 261120
    %s58 = scalar_lea.vmem [#allocation0], 18
    %59 = vst.msk [vmem:[%s58] sm:$0x1] %vm57, %v56
    %s60 = scalar_lea.vmem [#allocation1], 3
    %v61 = vld [vmem:[%s60] ss:$8 sm:$0xf]
    %s62 = scalar_lea.vmem [#allocation1], 3
    %v63 = vld [vmem:[%s62] ss:$8 sm:$0xf0]
    %vm64 = vcmask 1047556
    %v65 = vsel %vm64, %v63, %v61
    %66 = vrot.lane.b32.xlu0 %v65, 96
    %v67 = vpop.permute.xlu0 %66
    %vm68 = vcmask 1048320
    %69 = vst.msk [vmem:[#allocation0] sm:$0x7] %vm68, %v67
    %s70 = scalar_lea.vmem [#allocation0], 5
    %71 = vst.msk [vmem:[%s70] sm:$0x38] %vm68, %v67
    %s72 = scalar_lea.vmem [#allocation0], 10
    %73 = vst.msk [vmem:[%s72] sm:$0xc0] %vm68, %v67
    %s74 = scalar_lea.vmem [#allocation1], 67
    %v75 = vld [vmem:[%s74] sm:$0x1]
    %76 = vrot.lane.b32.xlu0 %v75, 96
    %v77 = vpop.permute.xlu0 %76
    %vm78 = vcmask 1048320
    %s79 = scalar_lea.vmem [#allocation0], 18
    %80 = vst.msk [vmem:[%s79] sm:$0x1] %vm78, %v77
    %s81 = scalar_lea.vmem [#allocation1], 2
    %v82 = vld [vmem:[%s81] ss:$8 sm:$0xf]
    %s83 = scalar_lea.vmem [#allocation1], 2
    %v84 = vld [vmem:[%s83] ss:$8 sm:$0xf0]
    %vm85 = vcmask 1047556
    %v86 = vsel %vm85, %v84, %v82
    %87 = vrot.lane.b32.xlu0 %v86, 64
    %v88 = vpop.permute.xlu0 %87
    %vm89 = vcmask 785920
    %90 = vst.msk [vmem:[#allocation0] sm:$0x7] %vm89, %v88
    %s91 = scalar_lea.vmem [#allocation0], 5
    %92 = vst.msk [vmem:[%s91] sm:$0x38] %vm89, %v88
    %s93 = scalar_lea.vmem [#allocation0], 10
    %94 = vst.msk [vmem:[%s93] sm:$0xc0] %vm89, %v88
    %s95 = scalar_lea.vmem [#allocation1], 66
    %v96 = vld [vmem:[%s95] sm:$0x1]
    %97 = vrot.lane.b32.xlu0 %v96, 64
    %v98 = vpop.permute.xlu0 %97
    %vm99 = vcmask 785920
    %s100 = scalar_lea.vmem [#allocation0], 18
    %101 = vst.msk [vmem:[%s100] sm:$0x1] %vm99, %v98
    %s102 = scalar_lea.vmem [#allocation1], 1
    %v103 = vld [vmem:[%s102] ss:$8 sm:$0xf]
    %s104 = scalar_lea.vmem [#allocation1], 1
    %v105 = vld [vmem:[%s104] ss:$8 sm:$0xf0]
    %vm106 = vcmask 1047556
    %v107 = vsel %vm106, %v105, %v103
    %108 = vrot.lane.b32.xlu0 %v107, 32
    %v109 = vpop.permute.xlu0 %108
    %vm110 = vcmask 523520
    %111 = vst.msk [vmem:[#allocation0] sm:$0x7] %vm110, %v109
    %s112 = scalar_lea.vmem [#allocation0], 5
    %113 = vst.msk [vmem:[%s112] sm:$0x38] %vm110, %v109
    %s114 = scalar_lea.vmem [#allocation0], 10
    %115 = vst.msk [vmem:[%s114] sm:$0xc0] %vm110, %v109
    %s116 = scalar_lea.vmem [#allocation1], 65
    %v117 = vld [vmem:[%s116] sm:$0x1]
    %118 = vrot.lane.b32.xlu0 %v117, 32
    %v119 = vpop.permute.xlu0 %118
    %vm120 = vcmask 523520
    %s121 = scalar_lea.vmem [#allocation0], 18
    %122 = vst.msk [vmem:[%s121] sm:$0x1] %vm120, %v119
    %s124 = sshllo.u32 0, 4
    %v126 = vld [vmem:[#allocation0] sm:%s124]
    %s127 = sshllo.u32 0, 4
    %128 = vst [vmem:[%s1] sm:%s127] %v126
    %s129 = scalar_lea.vmem [#allocation0], 8
    %v130 = vld [vmem:[%s129] sm:%s124]
    %s131 = sshllo.u32 0, 4
    %s132 = scalar_lea.vmem %s1, 4
    %133 = vst [vmem:[%s132] sm:%s131] %v130
    %s134 = scalar_lea.vmem [#allocation0], 16
    %v135 = vld [vmem:[%s134] sm:%s124]
    %s136 = sshllo.u32 0, 4
    %s137 = smul.addr 4, 2
    %s138 = scalar_lea.vmem %s1, %s137
    %139 = vst [vmem:[%s138] sm:%s136] %v135

// kernel: tile.59
$region0: #{tile.59}
  %s0 = inlined_call_operand.vmem [shape: f32[5,5,4,32], index: 0, kind: input, shape index: {}]
  %s1 = inlined_call_operand.vmem [shape: f32[5,5,128], index: 1, kind: output, shape index: {}]
  $region1: #{tile.59} parent=0
    #allocation0 [shape = 'u8[102400]{0}', space=vmem, size = 0x19000, scoped, tag = 'scoped mem for input reshape']
    %s3 = sshllo.u32 0, 4
    %s4 = smul.addr 4, 24
    %s5 = scalar_lea.vmem %s0, %s4
    %v6 = vld [vmem:[%s5] sm:%s3]
    %s7 = scalar_lea.vmem [#allocation0], 192
    %8 = vst [vmem:[%s7] sm:%s3] %v6
    %s9 = smul.addr 4, 23
    %s10 = scalar_lea.vmem %s0, %s9
    %v11 = vld [vmem:[%s10] sm:%s3]
    %s12 = scalar_lea.vmem [#allocation0], 184
    %13 = vst [vmem:[%s12] sm:%s3] %v11
    %s14 = smul.addr 4, 22
    %s15 = scalar_lea.vmem %s0, %s14
    %v16 = vld [vmem:[%s15] sm:%s3]
    %s17 = scalar_lea.vmem [#allocation0], 176
    %18 = vst [vmem:[%s17] sm:%s3] %v16
    %s19 = smul.addr 4, 21
    %s20 = scalar_lea.vmem %s0, %s19
    %v21 = vld [vmem:[%s20] sm:%s3]
    %s22 = scalar_lea.vmem [#allocation0], 168
    %23 = vst [vmem:[%s22] sm:%s3] %v21
    %s24 = smul.addr 4, 20
    %s25 = scalar_lea.vmem %s0, %s24
    %v26 = vld [vmem:[%s25] sm:%s3]
    %s27 = scalar_lea.vmem [#allocation0], 160
    %28 = vst [vmem:[%s27] sm:%s3] %v26
    %s29 = smul.addr 4, 19
    %s30 = scalar_lea.vmem %s0, %s29
    %v31 = vld [vmem:[%s30] sm:%s3]
    %s32 = scalar_lea.vmem [#allocation0], 152
    %33 = vst [vmem:[%s32] sm:%s3] %v31
    %s34 = smul.addr 4, 18
    %s35 = scalar_lea.vmem %s0, %s34
    %v36 = vld [vmem:[%s35] sm:%s3]
    %s37 = scalar_lea.vmem [#allocation0], 144
    %38 = vst [vmem:[%s37] sm:%s3] %v36
    %s39 = smul.addr 4, 17
    %s40 = scalar_lea.vmem %s0, %s39
    %v41 = vld [vmem:[%s40] sm:%s3]
    %s42 = scalar_lea.vmem [#allocation0], 136
    %43 = vst [vmem:[%s42] sm:%s3] %v41
    %s44 = smul.addr 4, 16
    %s45 = scalar_lea.vmem %s0, %s44
    %v46 = vld [vmem:[%s45] sm:%s3]
    %s47 = scalar_lea.vmem [#allocation0], 128
    %48 = vst [vmem:[%s47] sm:%s3] %v46
    %s49 = smul.addr 4, 15
    %s50 = scalar_lea.vmem %s0, %s49
    %v51 = vld [vmem:[%s50] sm:%s3]
    %s52 = scalar_lea.vmem [#allocation0], 120
    %53 = vst [vmem:[%s52] sm:%s3] %v51
    %s54 = smul.addr 4, 14
    %s55 = scalar_lea.vmem %s0, %s54
    %v56 = vld [vmem:[%s55] sm:%s3]
    %s57 = scalar_lea.vmem [#allocation0], 112
    %58 = vst [vmem:[%s57] sm:%s3] %v56
    %s59 = smul.addr 4, 13
    %s60 = scalar_lea.vmem %s0, %s59
    %v61 = vld [vmem:[%s60] sm:%s3]
    %s62 = scalar_lea.vmem [#allocation0], 104
    %63 = vst [vmem:[%s62] sm:%s3] %v61
    %s64 = smul.addr 4, 12
    %s65 = scalar_lea.vmem %s0, %s64
    %v66 = vld [vmem:[%s65] sm:%s3]
    %s67 = scalar_lea.vmem [#allocation0], 96
    %68 = vst [vmem:[%s67] sm:%s3] %v66
    %s69 = smul.addr 4, 11
    %s70 = scalar_lea.vmem %s0, %s69
    %v71 = vld [vmem:[%s70] sm:%s3]
    %s72 = scalar_lea.vmem [#allocation0], 88
    %73 = vst [vmem:[%s72] sm:%s3] %v71
    %s74 = smul.addr 4, 10
    %s75 = scalar_lea.vmem %s0, %s74
    %v76 = vld [vmem:[%s75] sm:%s3]
    %s77 = scalar_lea.vmem [#allocation0], 80
    %78 = vst [vmem:[%s77] sm:%s3] %v76
    %s79 = smul.addr 4, 9
    %s80 = scalar_lea.vmem %s0, %s79
    %v81 = vld [vmem:[%s80] sm:%s3]
    %s82 = scalar_lea.vmem [#allocation0], 72
    %83 = vst [vmem:[%s82] sm:%s3] %v81
    %s84 = smul.addr 4, 8
    %s85 = scalar_lea.vmem %s0, %s84
    %v86 = vld [vmem:[%s85] sm:%s3]
    %s87 = scalar_lea.vmem [#allocation0], 64
    %88 = vst [vmem:[%s87] sm:%s3] %v86
    %s89 = smul.addr 4, 7
    %s90 = scalar_lea.vmem %s0, %s89
    %v91 = vld [vmem:[%s90] sm:%s3]
    %s92 = scalar_lea.vmem [#allocation0], 56
    %93 = vst [vmem:[%s92] sm:%s3] %v91
    %s94 = smul.addr 4, 6
    %s95 = scalar_lea.vmem %s0, %s94
    %v96 = vld [vmem:[%s95] sm:%s3]
    %s97 = scalar_lea.vmem [#allocation0], 48
    %98 = vst [vmem:[%s97] sm:%s3] %v96
    %s99 = smul.addr 4, 5
    %s100 = scalar_lea.vmem %s0, %s99
    %v101 = vld [vmem:[%s100] sm:%s3]
    %s102 = scalar_lea.vmem [#allocation0], 40
    %103 = vst [vmem:[%s102] sm:%s3] %v101
    %s104 = smul.addr 4, 4
    %s105 = scalar_lea.vmem %s0, %s104
    %v106 = vld [vmem:[%s105] sm:%s3]
    %s107 = scalar_lea.vmem [#allocation0], 32
    %108 = vst [vmem:[%s107] sm:%s3] %v106
    %s109 = smul.addr 4, 3
    %s110 = scalar_lea.vmem %s0, %s109
    %v111 = vld [vmem:[%s110] sm:%s3]
    %s112 = scalar_lea.vmem [#allocation0], 24
    %113 = vst [vmem:[%s112] sm:%s3] %v111
    %s114 = smul.addr 4, 2
    %s115 = scalar_lea.vmem %s0, %s114
    %v116 = vld [vmem:[%s115] sm:%s3]
    %s117 = scalar_lea.vmem [#allocation0], 16
    %118 = vst [vmem:[%s117] sm:%s3] %v116
    %s119 = scalar_lea.vmem %s0, 4
    %v120 = vld [vmem:[%s119] sm:%s3]
    %s121 = scalar_lea.vmem [#allocation0], 8
    %122 = vst [vmem:[%s121] sm:%s3] %v120
    %v123 = vld [vmem:[%s0] sm:%s3]
    %124 = vst [vmem:[#allocation0] sm:%s3] %v123
    %v125 = vld [vmem:[#allocation0] ss:$8 sm:$0xf]
    %v126 = vld [vmem:[#allocation0] ss:$8 sm:$0xf0]
    %vm127 = vcmask 1047556
    %v128 = vsel %vm127, %v126, %v125
    %vm129 = vcmask 261120
    %130 = vst.msk [vmem:[%s1] sm:$0x1f] %vm129, %v128
    %s131 = scalar_lea.vmem %s1, 3
    %132 = vst.msk [vmem:[%s131] sm:$0xe0] %vm129, %v128
    %s133 = scalar_lea.vmem [#allocation0], 64
    %v134 = vld [vmem:[%s133] ss:$8 sm:$0xf]
    %s135 = scalar_lea.vmem [#allocation0], 64
    %v136 = vld [vmem:[%s135] ss:$8 sm:$0xf0]
    %vm137 = vcmask 1047556
    %v138 = vsel %vm137, %v136, %v134
    %vm139 = vcmask 261120
    %s140 = scalar_lea.vmem %s1, 11
    %141 = vst.msk [vmem:[%s140] sm:$0x3] %vm139, %v138
    %s142 = scalar_lea.vmem %s1, 14
    %143 = vst.msk [vmem:[%s142] sm:$0x7c] %vm139, %v138
    %s144 = scalar_lea.vmem %s1, 17
    %145 = vst.msk [vmem:[%s144] sm:$0x80] %vm139, %v138
    %s146 = scalar_lea.vmem [#allocation0], 128
    %v147 = vld [vmem:[%s146] ss:$8 sm:$0xf]
    %s148 = scalar_lea.vmem [#allocation0], 128
    %v149 = vld [vmem:[%s148] ss:$8 sm:$0xf0]
    %vm150 = vcmask 1047556
    %v151 = vsel %vm150, %v149, %v147
    %vm152 = vcmask 261120
    %s153 = scalar_lea.vmem %s1, 25
    %154 = vst.msk [vmem:[%s153] sm:$0xf] %vm152, %v151
    %s155 = scalar_lea.vmem %s1, 28
    %156 = vst.msk [vmem:[%s155] sm:$0xf0] %vm152, %v151
    %s157 = scalar_lea.vmem [#allocation0], 192
    %v158 = vld [vmem:[%s157] sm:$0x1]
    %vm159 = vcmask 261120
    %s160 = scalar_lea.vmem %s1, 36
    %161 = vst.msk [vmem:[%s160] sm:$0x1] %vm159, %v158
    %s162 = scalar_lea.vmem [#allocation0], 3
    %v163 = vld [vmem:[%s162] ss:$8 sm:$0xf]
    %s164 = scalar_lea.vmem [#allocation0], 3
    %v165 = vld [vmem:[%s164] ss:$8 sm:$0xf0]
    %vm166 = vcmask 1047556
    %v167 = vsel %vm166, %v165, %v163
    %168 = vrot.lane.b32.xlu0 %v167, 96
    %v169 = vpop.permute.xlu0 %168
    %vm170 = vcmask 1048320
    %171 = vst.msk [vmem:[%s1] sm:$0x1f] %vm170, %v169
    %s172 = scalar_lea.vmem %s1, 3
    %173 = vst.msk [vmem:[%s172] sm:$0xe0] %vm170, %v169
    %s174 = scalar_lea.vmem [#allocation0], 163
    %v175 = vld [vmem:[%s174] ss:$8 sm:$0xf]
    %s176 = scalar_lea.vmem [#allocation0], 191
    %v177 = vld [vmem:[%s176] sm:$0x10]
    %vm178 = vcmask 1044484
    %v179 = vsel %vm178, %v177, %v175
    %s180 = scalar_lea.vmem [#allocation0], 27
    %v181 = vld [vmem:[%s180] ss:$8 sm:$0xe0]
    %vm182 = vcmask 1047557
    %v183 = vsel %vm182, %v181, %v179
    %184 = vrot.lane.b32.xlu0 %v183, 96
    %v185 = vpop.permute.xlu0 %184
    %vm186 = vcmask 1048320
    %s187 = scalar_lea.vmem %s1, 32
    %188 = vst.msk [vmem:[%s187] sm:$0x1f] %vm186, %v185
    %s189 = scalar_lea.vmem %s1, 6
    %190 = vst.msk [vmem:[%s189] sm:$0x60] %vm186, %v185
    %s191 = scalar_lea.vmem %s1, 9
    %192 = vst.msk [vmem:[%s191] sm:$0x80] %vm186, %v185
    %s193 = scalar_lea.vmem [#allocation0], 91
    %v194 = vld [vmem:[%s193] ss:$8 sm:$0xf]
    %s195 = scalar_lea.vmem [#allocation0], 91
    %v196 = vld [vmem:[%s195] ss:$8 sm:$0xf0]
    %vm197 = vcmask 1047556
    %v198 = vsel %vm197, %v196, %v194
    %199 = vrot.lane.b32.xlu0 %v198, 96
    %v200 = vpop.permute.xlu0 %199
    %vm201 = vcmask 1048320
    %s202 = scalar_lea.vmem %s1, 17
    %203 = vst.msk [vmem:[%s202] sm:$0xf] %vm201, %v200
    %s204 = scalar_lea.vmem %s1, 20
    %205 = vst.msk [vmem:[%s204] sm:$0xf0] %vm201, %v200
    %s206 = scalar_lea.vmem [#allocation0], 155
    %v207 = vld [vmem:[%s206] sm:$0x1]
    %208 = vrot.lane.b32.xlu0 %v207, 96
    %v209 = vpop.permute.xlu0 %208
    %vm210 = vcmask 1048320
    %s211 = scalar_lea.vmem %s1, 28
    %212 = vst.msk [vmem:[%s211] sm:$0x1] %vm210, %v209
    %s213 = scalar_lea.vmem [#allocation0], 2
    %v214 = vld [vmem:[%s213] ss:$8 sm:$0xf]
    %s215 = scalar_lea.vmem [#allocation0], 2
    %v216 = vld [vmem:[%s215] ss:$8 sm:$0xf0]
    %vm217 = vcmask 1047556
    %v218 = vsel %vm217, %v216, %v214
    %219 = vrot.lane.b32.xlu0 %v218, 64
    %v220 = vpop.permute.xlu0 %219
    %vm221 = vcmask 785920
    %222 = vst.msk [vmem:[%s1] sm:$0x1f] %vm221, %v220
    %s223 = scalar_lea.vmem %s1, 3
    %224 = vst.msk [vmem:[%s223] sm:$0xe0] %vm221, %v220
    %s225 = scalar_lea.vmem [#allocation0], 162
    %v226 = vld [vmem:[%s225] ss:$8 sm:$0xf]
    %s227 = scalar_lea.vmem [#allocation0], 190
    %v228 = vld [vmem:[%s227] sm:$0x10]
    %vm229 = vcmask 1044484
    %v230 = vsel %vm229, %v228, %v226
    %s231 = scalar_lea.vmem [#allocation0], 26
    %v232 = vld [vmem:[%s231] ss:$8 sm:$0xe0]
    %vm233 = vcmask 1047557
    %v234 = vsel %vm233, %v232, %v230
    %235 = vrot.lane.b32.xlu0 %v234, 64
    %v236 = vpop.permute.xlu0 %235
    %vm237 = vcmask 785920
    %s238 = scalar_lea.vmem %s1, 32
    %239 = vst.msk [vmem:[%s238] sm:$0x1f] %vm237, %v236
    %s240 = scalar_lea.vmem %s1, 6
    %241 = vst.msk [vmem:[%s240] sm:$0x60] %vm237, %v236
    %s242 = scalar_lea.vmem %s1, 9
    %243 = vst.msk [vmem:[%s242] sm:$0x80] %vm237, %v236
    %s244 = scalar_lea.vmem [#allocation0], 90
    %v245 = vld [vmem:[%s244] ss:$8 sm:$0xf]
    %s246 = scalar_lea.vmem [#allocation0], 90
    %v247 = vld [vmem:[%s246] ss:$8 sm:$0xf0]
    %vm248 = vcmask 1047556
    %v249 = vsel %vm248, %v247, %v245
    %250 = vrot.lane.b32.xlu0 %v249, 64
    %v251 = vpop.permute.xlu0 %250
    %vm252 = vcmask 785920
    %s253 = scalar_lea.vmem %s1, 17
    %254 = vst.msk [vmem:[%s253] sm:$0xf] %vm252, %v251
    %s255 = scalar_lea.vmem %s1, 20
    %256 = vst.msk [vmem:[%s255] sm:$0xf0] %vm252, %v251
    %s257 = scalar_lea.vmem [#allocation0], 154
    %v258 = vld [vmem:[%s257] sm:$0x1]
    %259 = vrot.lane.b32.xlu0 %v258, 64
    %v260 = vpop.permute.xlu0 %259
    %vm261 = vcmask 785920
    %s262 = scalar_lea.vmem %s1, 28
    %263 = vst.msk [vmem:[%s262] sm:$0x1] %vm261, %v260
    %s264 = scalar_lea.vmem [#allocation0], 1
    %v265 = vld [vmem:[%s264] ss:$8 sm:$0xf]
    %s266 = scalar_lea.vmem [#allocation0], 1
    %v267 = vld [vmem:[%s266] ss:$8 sm:$0xf0]
    %vm268 = vcmask 1047556
    %v269 = vsel %vm268, %v267, %v265
    %270 = vrot.lane.b32.xlu0 %v269, 32
    %v271 = vpop.permute.xlu0 %270
    %vm272 = vcmask 523520
    %273 = vst.msk [vmem:[%s1] sm:$0x1f] %vm272, %v271
    %s274 = scalar_lea.vmem %s1, 3
    %275 = vst.msk [vmem:[%s274] sm:$0xe0] %vm272, %v271
    %s276 = scalar_lea.vmem [#allocation0], 161
    %v277 = vld [vmem:[%s276] ss:$8 sm:$0xf]
    %s278 = scalar_lea.vmem [#allocation0], 189
    %v279 = vld [vmem:[%s278] sm:$0x10]
    %vm280 = vcmask 1044484
    %v281 = vsel %vm280, %v279, %v277
    %s282 = scalar_lea.vmem [#allocation0], 25
    %v283 = vld [vmem:[%s282] ss:$8 sm:$0xe0]
    %vm284 = vcmask 1047557
    %v285 = vsel %vm284, %v283, %v281
    %286 = vrot.lane.b32.xlu0 %v285, 32
    %v287 = vpop.permute.xlu0 %286
    %vm288 = vcmask 523520
    %s289 = scalar_lea.vmem %s1, 32
    %290 = vst.msk [vmem:[%s289] sm:$0x1f] %vm288, %v287
    %s291 = scalar_lea.vmem %s1, 6
    %292 = vst.msk [vmem:[%s291] sm:$0x60] %vm288, %v287
    %s293 = scalar_lea.vmem %s1, 9
    %294 = vst.msk [vmem:[%s293] sm:$0x80] %vm288, %v287
    %s295 = scalar_lea.vmem [#allocation0], 89
    %v296 = vld [vmem:[%s295] ss:$8 sm:$0xf]
    %s297 = scalar_lea.vmem [#allocation0], 89
    %v298 = vld [vmem:[%s297] ss:$8 sm:$0xf0]
    %vm299 = vcmask 1047556
    %v300 = vsel %vm299, %v298, %v296
    %301 = vrot.lane.b32.xlu0 %v300, 32
    %v302 = vpop.permute.xlu0 %301
    %vm303 = vcmask 523520
    %s304 = scalar_lea.vmem %s1, 17
    %305 = vst.msk [vmem:[%s304] sm:$0xf] %vm303, %v302
    %s306 = scalar_lea.vmem %s1, 20
    %307 = vst.msk [vmem:[%s306] sm:$0xf0] %vm303, %v302
    %s308 = scalar_lea.vmem [#allocation0], 153
    %v309 = vld [vmem:[%s308] sm:$0x1]
    %310 = vrot.lane.b32.xlu0 %v309, 32
    %v311 = vpop.permute.xlu0 %310
    %vm312 = vcmask 523520
    %s313 = scalar_lea.vmem %s1, 28
    %314 = vst.msk [vmem:[%s313] sm:$0x1] %vm312, %v311

// kernel: focal_modulation_pallas.1
$region0: #{focal_modulation_pallas.1}
  #allocation0 [shape = 'u32[]', space=smem, size = 0x4, offset = 0x4, fixed_abs, tag = 'smem constant byte address 0x4 - core index']
  #allocation1 [shape = 'u32[144,128]{1,0:T(1,128)}', space=vmem, size = 0x12000, scoped, tag = 'internal scratch']
  #allocation2 [shape = 'f32[20,20,128]{2,1,0:T(8,128)}', space=vmem, size = 0x3c000, scoped, tag = 'scratch operand']
  #allocation3 [shape = 'f32[20,20,128]{2,1,0:T(8,128)}', space=vmem, size = 0x3c000, scoped, tag = 'scratch operand']
  #allocation4 [shape = 'f32[16,16,128]{2,1,0:T(8,128)}', space=vmem, size = 0x20000, scoped, tag = 'scratch operand']
  %s0 = inlined_call_operand.vmem [shape: f32[2,16,16,128], index: 0, kind: input, shape index: {}]
  %s1 = inlined_call_operand.vmem [shape: f32[128,640], index: 1, kind: input, shape index: {}]
  %s2 = inlined_call_operand.vmem [shape: f32[1,640], index: 2, kind: input, shape index: {}]
  %s3 = inlined_call_operand.vmem [shape: f32[3,3,128], index: 3, kind: input, shape index: {}]
  %s4 = inlined_call_operand.vmem [shape: f32[5,5,128], index: 4, kind: input, shape index: {}]
  %s5 = inlined_call_operand.vmem [shape: f32[128,128], index: 5, kind: input, shape index: {}]
  %s6 = inlined_call_operand.vmem [shape: f32[1,128], index: 6, kind: input, shape index: {}]
  %s7 = inlined_call_operand.vmem [shape: f32[128,128], index: 7, kind: input, shape index: {}]
  %s8 = inlined_call_operand.vmem [shape: f32[1,128], index: 8, kind: input, shape index: {}]
  %s9 = inlined_call_operand.vmem [shape: f32[2,16,16,128], index: 9, kind: output, shape index: {}]
  %s10 = sld [smem:[#allocation0]]
  $region69: #{focal_modulation_pallas.1} parent=0
    _
  %s12 = ssub.s32 1, %s10
  %s13 = scalar_select 0, %s12, %s10
  loop: start=0, step=1, limit=4
  $region2: #{focal_modulation_pallas.1} parent=0 // loop_pre_header
    _
  $region3: #{focal_modulation_pallas.1} parent=0 // loop_header
    %s15 = sphi 0, %s19
    %p16 = scmp.ge.s32.totalorder %s15, 4
    %s25 = sphi 0, %s27
    %s28 = sphi 0, %s25
    %s29 = sphi 0, %s28
    %s45 = sphi 0, %s29
    %s49 = sphi 0, %s49
    %s51 = sphi 0, %s49
    %s52 = sphi 0, %s51
    %s66 = sphi 0, %s52
    %s70 = sphi 0, %s70
    %s72 = sphi 0, %s70
    %s73 = sphi 0, %s72
    %s87 = sphi 0, %s73
    %s91 = sphi 0, %s91
    %s93 = sphi 0, %s91
    %s94 = sphi 0, %s93
    %s108 = sphi 0, %s94
    %s112 = sphi 0, %s112
    %s114 = sphi 0, %s112
    %s115 = sphi 0, %s114
    %s129 = sphi 0, %s115
    %s133 = sphi 0, %s133
    %s135 = sphi 0, %s133
    %s136 = sphi 0, %s135
    %s150 = sphi 0, %s136
    %s154 = sphi 0, %s154
    %s156 = sphi 0, %s154
    %s157 = sphi 0, %s156
    %s171 = sphi 0, %s157
    %s175 = sphi 0, %s175
    %s177 = sphi 0, %s175
    %s178 = sphi 0, %s177
    %s192 = sphi 0, %s178
    %s196 = sphi 0, %s196
    %s198 = sphi 0, %s196
    %s199 = sphi 0, %s198
    %s213 = sphi 0, %s199
    %s219 = sphi 0, %s221
    %s222 = sphi 0, %s219
    %s223 = sphi 0, %s222
    %s239 = sphi 0, %s223
  $region4: #{focal_modulation_pallas.1} parent=0 // loop_header_branch
    %18 = sbr.rel (%p16) target = $region8
  $region5: #{focal_modulation_pallas.1} parent=0 // loop_body
    %s20 = ssub.s32 %s15, 1
    %s21 = ssub.s32 %s15, 2
    %s22 = sadd.s32 %s15, 1
    %s23 = ssub.s32 %s15, %s22
    %p24 = scmp.eq.s32.totalorder %s23, 0
    %s26 = sadd.s32 %s25, 1
    %s27 = scalar_select %p24, %s25, %s26
    %p30 = pneg %p24
    %p31 = scmp.eq.s32.totalorder %s15, 1
    %p32 = por %p30, %p31
    %p33 = scmp.ne.s32.totalorder %s25, %s28
    %p34 = scmp.eq.s32.totalorder %s15, 0
    %p35 = por %p33, %p34
    %p36 = scmp.ne.s32.totalorder %s25, %s28
    %p37 = scmp.eq.s32.totalorder %s20, 1
    %p38 = por %p36, %p37
    %p39 = scmp.ne.s32.totalorder %s28, %s29
    %p40 = scmp.eq.s32.totalorder %s20, 0
    %p41 = por %p39, %p40
    %p42 = scmp.ne.s32.totalorder %s28, %s29
    %p43 = scmp.eq.s32.totalorder %s21, 1
    %p44 = por %p42, %p43
    %p46 = scmp.ne.s32.totalorder %s29, %s45
    %p47 = scmp.eq.s32.totalorder %s21, 0
    %p48 = por %p46, %p47
    %s50 = sadd.s32 %s49, 1
    %p53 = scmp.eq.s32.totalorder %s15, 1
    %p54 = scmp.ne.s32.totalorder %s49, %s51
    %p55 = scmp.eq.s32.totalorder %s15, 0
    %p56 = por %p54, %p55
    %p57 = scmp.ne.s32.totalorder %s49, %s51
    %p58 = scmp.eq.s32.totalorder %s20, 1
    %p59 = por %p57, %p58
    %p60 = scmp.ne.s32.totalorder %s51, %s52
    %p61 = scmp.eq.s32.totalorder %s20, 0
    %p62 = por %p60, %p61
    %p63 = scmp.ne.s32.totalorder %s51, %s52
    %p64 = scmp.eq.s32.totalorder %s21, 1
    %p65 = por %p63, %p64
    %p67 = scmp.ne.s32.totalorder %s52, %s66
    %p68 = scmp.eq.s32.totalorder %s21, 0
    %p69 = por %p67, %p68
    %s71 = sadd.s32 %s70, 1
    %p74 = scmp.eq.s32.totalorder %s15, 1
    %p75 = scmp.ne.s32.totalorder %s70, %s72
    %p76 = scmp.eq.s32.totalorder %s15, 0
    %p77 = por %p75, %p76
    %p78 = scmp.ne.s32.totalorder %s70, %s72
    %p79 = scmp.eq.s32.totalorder %s20, 1
    %p80 = por %p78, %p79
    %p81 = scmp.ne.s32.totalorder %s72, %s73
    %p82 = scmp.eq.s32.totalorder %s20, 0
    %p83 = por %p81, %p82
    %p84 = scmp.ne.s32.totalorder %s72, %s73
    %p85 = scmp.eq.s32.totalorder %s21, 1
    %p86 = por %p84, %p85
    %p88 = scmp.ne.s32.totalorder %s73, %s87
    %p89 = scmp.eq.s32.totalorder %s21, 0
    %p90 = por %p88, %p89
    %s92 = sadd.s32 %s91, 1
    %p95 = scmp.eq.s32.totalorder %s15, 1
    %p96 = scmp.ne.s32.totalorder %s91, %s93
    %p97 = scmp.eq.s32.totalorder %s15, 0
    %p98 = por %p96, %p97
    %p99 = scmp.ne.s32.totalorder %s91, %s93
    %p100 = scmp.eq.s32.totalorder %s20, 1
    %p101 = por %p99, %p100
    %p102 = scmp.ne.s32.totalorder %s93, %s94
    %p103 = scmp.eq.s32.totalorder %s20, 0
    %p104 = por %p102, %p103
    %p105 = scmp.ne.s32.totalorder %s93, %s94
    %p106 = scmp.eq.s32.totalorder %s21, 1
    %p107 = por %p105, %p106
    %p109 = scmp.ne.s32.totalorder %s94, %s108
    %p110 = scmp.eq.s32.totalorder %s21, 0
    %p111 = por %p109, %p110
    %s113 = sadd.s32 %s112, 1
    %p116 = scmp.eq.s32.totalorder %s15, 1
    %p117 = scmp.ne.s32.totalorder %s112, %s114
    %p118 = scmp.eq.s32.totalorder %s15, 0
    %p119 = por %p117, %p118
    %p120 = scmp.ne.s32.totalorder %s112, %s114
    %p121 = scmp.eq.s32.totalorder %s20, 1
    %p122 = por %p120, %p121
    %p123 = scmp.ne.s32.totalorder %s114, %s115
    %p124 = scmp.eq.s32.totalorder %s20, 0
    %p125 = por %p123, %p124
    %p126 = scmp.ne.s32.totalorder %s114, %s115
    %p127 = scmp.eq.s32.totalorder %s21, 1
    %p128 = por %p126, %p127
    %p130 = scmp.ne.s32.totalorder %s115, %s129
    %p131 = scmp.eq.s32.totalorder %s21, 0
    %p132 = por %p130, %p131
    %s134 = sadd.s32 %s133, 1
    %p137 = scmp.eq.s32.totalorder %s15, 1
    %p138 = scmp.ne.s32.totalorder %s133, %s135
    %p139 = scmp.eq.s32.totalorder %s15, 0
    %p140 = por %p138, %p139
    %p141 = scmp.ne.s32.totalorder %s133, %s135
    %p142 = scmp.eq.s32.totalorder %s20, 1
    %p143 = por %p141, %p142
    %p144 = scmp.ne.s32.totalorder %s135, %s136
    %p145 = scmp.eq.s32.totalorder %s20, 0
    %p146 = por %p144, %p145
    %p147 = scmp.ne.s32.totalorder %s135, %s136
    %p148 = scmp.eq.s32.totalorder %s21, 1
    %p149 = por %p147, %p148
    %p151 = scmp.ne.s32.totalorder %s136, %s150
    %p152 = scmp.eq.s32.totalorder %s21, 0
    %p153 = por %p151, %p152
    %s155 = sadd.s32 %s154, 1
    %p158 = scmp.eq.s32.totalorder %s15, 1
    %p159 = scmp.ne.s32.totalorder %s154, %s156
    %p160 = scmp.eq.s32.totalorder %s15, 0
    %p161 = por %p159, %p160
    %p162 = scmp.ne.s32.totalorder %s154, %s156
    %p163 = scmp.eq.s32.totalorder %s20, 1
    %p164 = por %p162, %p163
    %p165 = scmp.ne.s32.totalorder %s156, %s157
    %p166 = scmp.eq.s32.totalorder %s20, 0
    %p167 = por %p165, %p166
    %p168 = scmp.ne.s32.totalorder %s156, %s157
    %p169 = scmp.eq.s32.totalorder %s21, 1
    %p170 = por %p168, %p169
    %p172 = scmp.ne.s32.totalorder %s157, %s171
    %p173 = scmp.eq.s32.totalorder %s21, 0
    %p174 = por %p172, %p173
    %s176 = sadd.s32 %s175, 1
    %p179 = scmp.eq.s32.totalorder %s15, 1
    %p180 = scmp.ne.s32.totalorder %s175, %s177
    %p181 = scmp.eq.s32.totalorder %s15, 0
    %p182 = por %p180, %p181
    %p183 = scmp.ne.s32.totalorder %s175, %s177
    %p184 = scmp.eq.s32.totalorder %s20, 1
    %p185 = por %p183, %p184
    %p186 = scmp.ne.s32.totalorder %s177, %s178
    %p187 = scmp.eq.s32.totalorder %s20, 0
    %p188 = por %p186, %p187
    %p189 = scmp.ne.s32.totalorder %s177, %s178
    %p190 = scmp.eq.s32.totalorder %s21, 1
    %p191 = por %p189, %p190
    %p193 = scmp.ne.s32.totalorder %s178, %s192
    %p194 = scmp.eq.s32.totalorder %s21, 0
    %p195 = por %p193, %p194
    %s197 = sadd.s32 %s196, 1
    %p200 = scmp.eq.s32.totalorder %s15, 1
    %p201 = scmp.ne.s32.totalorder %s196, %s198
    %p202 = scmp.eq.s32.totalorder %s15, 0
    %p203 = por %p201, %p202
    %p204 = scmp.ne.s32.totalorder %s196, %s198
    %p205 = scmp.eq.s32.totalorder %s20, 1
    %p206 = por %p204, %p205
    %p207 = scmp.ne.s32.totalorder %s198, %s199
    %p208 = scmp.eq.s32.totalorder %s20, 0
    %p209 = por %p207, %p208
    %p210 = scmp.ne.s32.totalorder %s198, %s199
    %p211 = scmp.eq.s32.totalorder %s21, 1
    %p212 = por %p210, %p211
    %p214 = scmp.ne.s32.totalorder %s199, %s213
    %p215 = scmp.eq.s32.totalorder %s21, 0
    %p216 = por %p214, %p215
    %s217 = ssub.s32 %s15, %s22
    %p218 = scmp.eq.s32.totalorder %s217, 0
    %s220 = sadd.s32 %s219, 1
    %s221 = scalar_select %p218, %s219, %s220
    %p224 = pneg %p218
    %p225 = scmp.eq.s32.totalorder %s15, 1
    %p226 = por %p224, %p225
    %p227 = scmp.ne.s32.totalorder %s219, %s222
    %p228 = scmp.eq.s32.totalorder %s15, 0
    %p229 = por %p227, %p228
    %p230 = scmp.ne.s32.totalorder %s219, %s222
    %p231 = scmp.eq.s32.totalorder %s20, 1
    %p232 = por %p230, %p231
    %p233 = scmp.ne.s32.totalorder %s222, %s223
    %p234 = scmp.eq.s32.totalorder %s20, 0
    %p235 = por %p233, %p234
    %p236 = scmp.ne.s32.totalorder %s222, %s223
    %p237 = scmp.eq.s32.totalorder %s21, 1
    %p238 = por %p236, %p237
    %p240 = scmp.ne.s32.totalorder %s223, %s239
    %p241 = scmp.eq.s32.totalorder %s21, 0
    %p242 = por %p240, %p241
    %p243 = scmp.le.s32.totalorder 1, %s15
    %p244 = scmp.lt.s32.totalorder %s15, 3
    %p245 = pnand %p243, %p244
    %p246 = pneg %p245
    // Predicated region
    $region9: #{focal_modulation_pallas.1} parent=5 // pred_check
      _
    $region10: #{focal_modulation_pallas.1} parent=5 // pred_check_branch
      %248 = sbr.rel (%p245) target = $region12
    $region11: #{focal_modulation_pallas.1} parent=5 // pred_region
      %s249 = ssub.s32 %s15, 1
      // Predicated region
      $region13: #{focal_modulation_pallas.1} parent=11 // pred_check
        %p250 = pneg %p62
      $region14: #{focal_modulation_pallas.1} parent=11 // pred_check_branch
        %252 = sbr.rel (%p250) target = $region16
      $region15: #{focal_modulation_pallas.1} parent=11 // pred_region
        _
      $region16: #{focal_modulation_pallas.1} parent=11 // pred_fallthru
        _
      // Predicated region
      $region17: #{focal_modulation_pallas.1} parent=11 // pred_check
        %p253 = pneg %p83
      $region18: #{focal_modulation_pallas.1} parent=11 // pred_check_branch
        %255 = sbr.rel (%p253) target = $region20
      $region19: #{focal_modulation_pallas.1} parent=11 // pred_region
        _
      $region20: #{focal_modulation_pallas.1} parent=11 // pred_fallthru
        _
      // Predicated region
      $region21: #{focal_modulation_pallas.1} parent=11 // pred_check
        %p256 = pneg %p104
      $region22: #{focal_modulation_pallas.1} parent=11 // pred_check_branch
        %258 = sbr.rel (%p256) target = $region24
      $region23: #{focal_modulation_pallas.1} parent=11 // pred_region
        _
      $region24: #{focal_modulation_pallas.1} parent=11 // pred_fallthru
        _
      // Predicated region
      $region25: #{focal_modulation_pallas.1} parent=11 // pred_check
        %p259 = pneg %p125
      $region26: #{focal_modulation_pallas.1} parent=11 // pred_check_branch
        %261 = sbr.rel (%p259) target = $region28
      $region27: #{focal_modulation_pallas.1} parent=11 // pred_region
        _
      $region28: #{focal_modulation_pallas.1} parent=11 // pred_fallthru
        _
      // Predicated region
      $region29: #{focal_modulation_pallas.1} parent=11 // pred_check
        %p262 = pneg %p146
      $region30: #{focal_modulation_pallas.1} parent=11 // pred_check_branch
        %264 = sbr.rel (%p262) target = $region32
      $region31: #{focal_modulation_pallas.1} parent=11 // pred_region
        _
      $region32: #{focal_modulation_pallas.1} parent=11 // pred_fallthru
        _
      // Predicated region
      $region33: #{focal_modulation_pallas.1} parent=11 // pred_check
        %p265 = pneg %p167
      $region34: #{focal_modulation_pallas.1} parent=11 // pred_check_branch
        %267 = sbr.rel (%p265) target = $region36
      $region35: #{focal_modulation_pallas.1} parent=11 // pred_region
        _
      $region36: #{focal_modulation_pallas.1} parent=11 // pred_fallthru
        _
      // Predicated region
      $region37: #{focal_modulation_pallas.1} parent=11 // pred_check
        %p268 = pneg %p188
      $region38: #{focal_modulation_pallas.1} parent=11 // pred_check_branch
        %270 = sbr.rel (%p268) target = $region40
      $region39: #{focal_modulation_pallas.1} parent=11 // pred_region
        _
      $region40: #{focal_modulation_pallas.1} parent=11 // pred_fallthru
        _
      // Predicated region
      $region41: #{focal_modulation_pallas.1} parent=11 // pred_check
        %p271 = pneg %p209
      $region42: #{focal_modulation_pallas.1} parent=11 // pred_check_branch
        %273 = sbr.rel (%p271) target = $region44
      $region43: #{focal_modulation_pallas.1} parent=11 // pred_region
        _
      $region44: #{focal_modulation_pallas.1} parent=11 // pred_fallthru
        _
    $region12: #{focal_modulation_pallas.1} parent=5 // pred_fallthru
      _
    %p274 = scmp.lt.s32.totalorder %s15, 2
    // Predicated region
    $region45: #{focal_modulation_pallas.1} parent=5 // pred_check
      %p275 = pneg %p274
    $region46: #{focal_modulation_pallas.1} parent=5 // pred_check_branch
      %277 = sbr.rel (%p275) target = $region48
    $region47: #{focal_modulation_pallas.1} parent=5 // pred_region
      // Predicated region
      $region49: #{focal_modulation_pallas.1} parent=47 // pred_check
        %p278 = pneg %p35
      $region50: #{focal_modulation_pallas.1} parent=47 // pred_check_branch
        %280 = sbr.rel (%p278) target = $region52
      $region51: #{focal_modulation_pallas.1} parent=47 // pred_region
        %p281 = scmp.lt.s32.totalorder %s15, 1
        %s282 = scalar_select %p281, %s15, 1
        %s283 = smul.addr %s282, 32
        %s284 = smul.addr %s283, 8
        %s285 = scalar_lea.vmem %s0, %s284
      $region52: #{focal_modulation_pallas.1} parent=47 // pred_fallthru
        _
    $region48: #{focal_modulation_pallas.1} parent=5 // pred_fallthru
      _
    %p286 = scmp.le.s32.totalorder 1, %s15
    %p287 = scmp.lt.s32.totalorder %s15, 3
    %p288 = pnand %p286, %p287
    %p289 = pneg %p288
    // Predicated region
    $region53: #{focal_modulation_pallas.1} parent=5 // pred_check
      _
    $region54: #{focal_modulation_pallas.1} parent=5 // pred_check_branch
      %291 = sbr.rel (%p288) target = $region56
    $region55: #{focal_modulation_pallas.1} parent=5 // pred_region
      %s292 = ssub.s32 %s15, 1
      %p293 = scmp.lt.s32.totalorder %s20, 1
      %s294 = scalar_select %p293, %s20, 1
      %s295 = smul.addr %s294, 32
      %s296 = smul.addr %s295, 8
      %s297 = scalar_lea.vmem %s0, %s296
      %p298 = pneg %p41
      %p299 = pneg %p38
      %p300 = pneg %p62
      %p301 = pneg %p59
      %p302 = pneg %p83
      %p303 = pneg %p80
      %p304 = pneg %p104
      %p305 = pneg %p101
      %p306 = pneg %p125
      %p307 = pneg %p122
      %p308 = pneg %p146
      %p309 = pneg %p143
      %p310 = pneg %p167
      %p311 = pneg %p164
      %p312 = pneg %p188
      %p313 = pneg %p185
      %p314 = pneg %p209
      %p315 = pneg %p206
      %p316 = pneg %p235
      %p317 = pneg %p232
      %p318 = scmp.lt.s32.totalorder %s20, 1
      %s319 = scalar_select %p318, %s20, 1
      %s320 = smul.addr %s319, 32
      %s321 = smul.addr %s320, 8
      %s322 = scalar_lea.vmem %s9, %s321
      %p323 = scmp.lt.s32.totalorder %s20, 1
      %s324 = scalar_select %p323, %s20, 1
      %s325 = smul.addr %s324, 32
      %s326 = smul.addr %s325, 8
      %s327 = scalar_lea.vmem %s0, %s326
      %p328 = scmp.lt.s32.totalorder %s20, 1
      %s329 = scalar_select %p328, %s20, 1
      %s330 = smul.addr %s329, 32
      %s331 = smul.addr %s330, 8
      %s332 = scalar_lea.vmem %s9, %s331
      %v333 = vld [vmem:[%s327] sm:$0xff]
      %v334 = vld [vmem:[%s327 + $0x8] sm:$0xff]
      %v335 = vld [vmem:[%s327 + $0x10] sm:$0xff]
      %v336 = vld [vmem:[%s327 + $0x18] sm:$0xff]
      %v337 = vld [vmem:[%s327 + $0x20] sm:$0xff]
      %v338 = vld [vmem:[%s327 + $0x28] sm:$0xff]
      %v339 = vld [vmem:[%s327 + $0x30] sm:$0xff]
      %v340 = vld [vmem:[%s327 + $0x38] sm:$0xff]
      %v341 = vld [vmem:[%s327 + $0x40] sm:$0xff]
      %v342 = vld [vmem:[%s327 + $0x48] sm:$0xff]
      %v343 = vld [vmem:[%s327 + $0x50] sm:$0xff]
      %v344 = vld [vmem:[%s327 + $0x58] sm:$0xff]
      %v345 = vld [vmem:[%s327 + $0x60] sm:$0xff]
      %v346 = vld [vmem:[%s327 + $0x68] sm:$0xff]
      %v347 = vld [vmem:[%s327 + $0x70] sm:$0xff]
      %v348 = vld [vmem:[%s327 + $0x78] sm:$0xff]
      %v349 = vld [vmem:[%s327 + $0x80] sm:$0xff]
      %v350 = vld [vmem:[%s327 + $0x88] sm:$0xff]
      %v351 = vld [vmem:[%s327 + $0x90] sm:$0xff]
      %v352 = vld [vmem:[%s327 + $0x98] sm:$0xff]
      %v353 = vld [vmem:[%s327 + $0xa0] sm:$0xff]
      %v354 = vld [vmem:[%s327 + $0xa8] sm:$0xff]
      %v355 = vld [vmem:[%s327 + $0xb0] sm:$0xff]
      %v356 = vld [vmem:[%s327 + $0xb8] sm:$0xff]
      %v357 = vld [vmem:[%s327 + $0xc0] sm:$0xff]
      %v358 = vld [vmem:[%s327 + $0xc8] sm:$0xff]
      %v359 = vld [vmem:[%s327 + $0xd0] sm:$0xff]
      %v360 = vld [vmem:[%s327 + $0xd8] sm:$0xff]
      %v361 = vld [vmem:[%s327 + $0xe0] sm:$0xff]
      %v362 = vld [vmem:[%s327 + $0xe8] sm:$0xff]
      %v363 = vld [vmem:[%s327 + $0xf0] sm:$0xff]
      %v364 = vld [vmem:[%s327 + $0xf8] sm:$0xff]
      %v365 = vld [vmem:[%s1] sm:$0xff]
      %v366 = vld [vmem:[%s1 + $0x8] sm:$0xff]
      %v367 = vld [vmem:[%s1 + $0x10] sm:$0xff]
      %v368 = vld [vmem:[%s1 + $0x18] sm:$0xff]
      %v369 = vld [vmem:[%s1 + $0x20] sm:$0xff]
      %v370 = vld [vmem:[%s1 + $0x28] sm:$0xff]
      %v371 = vld [vmem:[%s1 + $0x30] sm:$0xff]
      %v372 = vld [vmem:[%s1 + $0x38] sm:$0xff]
      %v373 = vld [vmem:[%s1 + $0x40] sm:$0xff]
      %v374 = vld [vmem:[%s1 + $0x48] sm:$0xff]
      %v375 = vld [vmem:[%s1 + $0x50] sm:$0xff]
      %v376 = vld [vmem:[%s1 + $0x58] sm:$0xff]
      %v377 = vld [vmem:[%s1 + $0x60] sm:$0xff]
      %v378 = vld [vmem:[%s1 + $0x68] sm:$0xff]
      %v379 = vld [vmem:[%s1 + $0x70] sm:$0xff]
      %v380 = vld [vmem:[%s1 + $0x78] sm:$0xff]
      %v381 = vld [vmem:[%s1 + $0x80] sm:$0xff]
      %v382 = vld [vmem:[%s1 + $0x88] sm:$0xff]
      %v383 = vld [vmem:[%s1 + $0x90] sm:$0xff]
      %v384 = vld [vmem:[%s1 + $0x98] sm:$0xff]
      %v385 = vld [vmem:[%s1 + $0xa0] sm:$0xff]
      %v386 = vld [vmem:[%s1 + $0xa8] sm:$0xff]
      %v387 = vld [vmem:[%s1 + $0xb0] sm:$0xff]
      %v388 = vld [vmem:[%s1 + $0xb8] sm:$0xff]
      %v389 = vld [vmem:[%s1 + $0xc0] sm:$0xff]
      %v390 = vld [vmem:[%s1 + $0xc8] sm:$0xff]
      %v391 = vld [vmem:[%s1 + $0xd0] sm:$0xff]
      %v392 = vld [vmem:[%s1 + $0xd8] sm:$0xff]
      %v393 = vld [vmem:[%s1 + $0xe0] sm:$0xff]
      %v394 = vld [vmem:[%s1 + $0xe8] sm:$0xff]
      %v395 = vld [vmem:[%s1 + $0xf0] sm:$0xff]
      %v396 = vld [vmem:[%s1 + $0xf8] sm:$0xff]
      %v397 = vld [vmem:[%s1 + $0x100] sm:$0xff]
      %v398 = vld [vmem:[%s1 + $0x108] sm:$0xff]
      %v399 = vld [vmem:[%s1 + $0x110] sm:$0xff]
      %v400 = vld [vmem:[%s1 + $0x118] sm:$0xff]
      %v401 = vld [vmem:[%s1 + $0x120] sm:$0xff]
      %v402 = vld [vmem:[%s1 + $0x128] sm:$0xff]
      %v403 = vld [vmem:[%s1 + $0x130] sm:$0xff]
      %v404 = vld [vmem:[%s1 + $0x138] sm:$0xff]
      %v405 = vld [vmem:[%s1 + $0x140] sm:$0xff]
      %v406 = vld [vmem:[%s1 + $0x148] sm:$0xff]
      %v407 = vld [vmem:[%s1 + $0x150] sm:$0xff]
      %v408 = vld [vmem:[%s1 + $0x158] sm:$0xff]
      %v409 = vld [vmem:[%s1 + $0x160] sm:$0xff]
      %v410 = vld [vmem:[%s1 + $0x168] sm:$0xff]
      %v411 = vld [vmem:[%s1 + $0x170] sm:$0xff]
      %v412 = vld [vmem:[%s1 + $0x178] sm:$0xff]
      %v413 = vld [vmem:[%s1 + $0x180] sm:$0xff]
      %v414 = vld [vmem:[%s1 + $0x188] sm:$0xff]
      %v415 = vld [vmem:[%s1 + $0x190] sm:$0xff]
      %v416 = vld [vmem:[%s1 + $0x198] sm:$0xff]
      %v417 = vld [vmem:[%s1 + $0x1a0] sm:$0xff]
      %v418 = vld [vmem:[%s1 + $0x1a8] sm:$0xff]
      %v419 = vld [vmem:[%s1 + $0x1b0] sm:$0xff]
      %v420 = vld [vmem:[%s1 + $0x1b8] sm:$0xff]
      %v421 = vld [vmem:[%s1 + $0x1c0] sm:$0xff]
      %v422 = vld [vmem:[%s1 + $0x1c8] sm:$0xff]
      %v423 = vld [vmem:[%s1 + $0x1d0] sm:$0xff]
      %v424 = vld [vmem:[%s1 + $0x1d8] sm:$0xff]
      %v425 = vld [vmem:[%s1 + $0x1e0] sm:$0xff]
      %v426 = vld [vmem:[%s1 + $0x1e8] sm:$0xff]
      %v427 = vld [vmem:[%s1 + $0x1f0] sm:$0xff]
      %v428 = vld [vmem:[%s1 + $0x1f8] sm:$0xff]
      %v429 = vld [vmem:[%s1 + $0x200] sm:$0xff]
      %v430 = vld [vmem:[%s1 + $0x208] sm:$0xff]
      %v431 = vld [vmem:[%s1 + $0x210] sm:$0xff]
      %v432 = vld [vmem:[%s1 + $0x218] sm:$0xff]
      %v433 = vld [vmem:[%s1 + $0x220] sm:$0xff]
      %v434 = vld [vmem:[%s1 + $0x228] sm:$0xff]
      %v435 = vld [vmem:[%s1 + $0x230] sm:$0xff]
      %v436 = vld [vmem:[%s1 + $0x238] sm:$0xff]
      %v437 = vld [vmem:[%s1 + $0x240] sm:$0xff]
      %v438 = vld [vmem:[%s1 + $0x248] sm:$0xff]
      %v439 = vld [vmem:[%s1 + $0x250] sm:$0xff]
      %v440 = vld [vmem:[%s1 + $0x258] sm:$0xff]
      %v441 = vld [vmem:[%s1 + $0x260] sm:$0xff]
      %v442 = vld [vmem:[%s1 + $0x268] sm:$0xff]
      %v443 = vld [vmem:[%s1 + $0x270] sm:$0xff]
      %v444 = vld [vmem:[%s1 + $0x278] sm:$0xff]
      %v445 = vld [vmem:[%s2] sm:$0x1f]
      %v447 = vlaneseq
      %v448 = vshrl.u32 %v447, 7
      %v449 = vsub.s32 0, %v448
      %v450 = vrot.slane %v445, %v449
      %v451 = vlaneseq
      %v452 = vshrl.u32 %v451, 7
      %v453 = vsub.s32 1, %v452
      %v454 = vrot.slane %v445, %v453
      %v455 = vlaneseq
      %v456 = vshrl.u32 %v455, 7
      %v457 = vsub.s32 2, %v456
      %v458 = vrot.slane %v445, %v457
      %v459 = vlaneseq
      %v460 = vshrl.u32 %v459, 7
      %v461 = vsub.s32 3, %v460
      %v462 = vrot.slane %v445, %v461
      %v463 = vlaneseq
      %v464 = vshrl.u32 %v463, 7
      %v465 = vsub.s32 4, %v464
      %v466 = vrot.slane %v445, %v465
      %472 = vmatprep.subr.mxu0 %v366
      %473 = vmatpush1.msra.mxu0 %v365
      %474 = vmatprep.subr.mxu0 %v371
      %475 = vmatpush1.msra.mxu0 %v370
      %476 = vmatprep.subr.mxu0 %v376
      %477 = vmatpush1.msra.mxu0 %v375
      %478 = vmatprep.subr.mxu0 %v381
      %479 = vmatpush1.msra.mxu0 %v380
      %480 = vmatprep.subr.mxu0 %v386
      %481 = vmatpush1.msra.mxu0 %v385
      %482 = vmatprep.subr.mxu0 %v391
      %483 = vmatpush1.msra.mxu0 %v390
      %484 = vmatprep.subr.mxu0 %v396
      %485 = vmatpush1.msra.mxu0 %v395
      %486 = vmatprep.subr.mxu0 %v401
      %487 = vmatpush1.msra.mxu0 %v400
      %488 = vmatprep.subr.mxu0 %v406
      %489 = vmatpush1.msra.mxu0 %v405
      %490 = vmatprep.subr.mxu0 %v411
      %491 = vmatpush1.msra.mxu0 %v410
      %492 = vmatprep.subr.mxu0 %v416
      %493 = vmatpush1.msra.mxu0 %v415
      %494 = vmatprep.subr.mxu0 %v421
      %495 = vmatpush1.msra.mxu0 %v420
      %496 = vmatprep.subr.mxu0 %v426
      %497 = vmatpush1.msra.mxu0 %v425
      %498 = vmatprep.subr.mxu0 %v431
      %499 = vmatpush1.msra.mxu0 %v430
      %500 = vmatprep.subr.mxu0 %v436
      %501 = vmatpush1.msra.mxu0 %v435
      %502 = vmatprep.subr.mxu0 %v441
      %503 = vmatpush1.msra.mxu0 %v440
      %504 = vmatprep.subr.mxu0 0.0
      %505 = vmatpush1.msra.mxu0 0.0
      %506 = vmatprep.subr.mxu0 0.0
      %507 = vmatpush1.msra.mxu0 0.0
      %508 = vmatprep.subr.mxu0 0.0
      %509 = vmatpush1.msra.mxu0 0.0
      %510 = vmatprep.subr.mxu0 0.0
      %511 = vmatpush1.msra.mxu0 0.0
      %512 = vmatprep.subr.mxu0 0.0
      %513 = vmatpush1.msra.mxu0 0.0
      %514 = vmatprep.subr.mxu0 0.0
      %515 = vmatpush1.msra.mxu0 0.0
      %516 = vmatprep.subr.mxu0 0.0
      %517 = vmatpush1.msra.mxu0 0.0
      %518 = vmatprep.subr.mxu0 0.0
      %519 = vmatpush1.msra.mxu0 0.0
      %520 = vmatprep.subr.mxu0 0.0
      %521 = vmatpush1.msra.mxu0 0.0
      %522 = vmatprep.subr.mxu0 0.0
      %523 = vmatpush1.msra.mxu0 0.0
      %524 = vmatprep.subr.mxu0 0.0
      %525 = vmatpush1.msra.mxu0 0.0
      %526 = vmatprep.subr.mxu0 0.0
      %527 = vmatpush1.msra.mxu0 0.0
      %528 = vmatprep.subr.mxu0 0.0
      %529 = vmatpush1.msra.mxu0 0.0
      %530 = vmatprep.subr.mxu0 0.0
      %531 = vmatpush1.msra.mxu0 0.0
      %532 = vmatprep.subr.mxu0 0.0
      %533 = vmatpush1.msra.mxu0 0.0
      %534 = vmatprep.subr.mxu0 0.0
      %535 = vmatpush1.msra.mxu0 0.0
      %536 = vmatprep.mubr.f32.mxu0 0.0
      %537 = vmatmul.mubr.f32.gmra.mrb[0].mxu0 %v333
      %v538 = vpop.f32.mrb[0].mxu0
      %v539 = vadd.f32 %v450, %v538
      %v540 = vpop.f32.mrb[0].mxu0
      %v541 = vadd.f32 %v454, %v540
      %542 = vmatprep.mubr.f32.mxu0 0.0
      %543 = vmatmul.mubr.f32.gmra.mrb[0].mxu0 %v334
      %v544 = vpop.f32.mrb[0].mxu0
      %v545 = vadd.f32 %v450, %v544
      %v546 = vpop.f32.mrb[0].mxu0
      %v547 = vadd.f32 %v454, %v546
      %548 = vmatprep.mubr.f32.mxu0 0.0
      %549 = vmatmul.mubr.f32.gmra.mrb[0].mxu0 %v335
      %v550 = vpop.f32.mrb[0].mxu0
      %v551 = vadd.f32 %v450, %v550
      %v552 = vpop.f32.mrb[0].mxu0
      %v553 = vadd.f32 %v454, %v552
      %554 = vmatprep.mubr.f32.mxu0 0.0
      %555 = vmatmul.mubr.f32.gmra.mrb[0].mxu0 %v336
      %v556 = vpop.f32.mrb[0].mxu0
      %v557 = vadd.f32 %v450, %v556
      %v558 = vpop.f32.mrb[0].mxu0
      %v559 = vadd.f32 %v454, %v558
      %560 = vmatprep.mubr.f32.mxu0 0.0
      %561 = vmatmul.mubr.f32.gmra.mrb[0].mxu0 %v337
      %v562 = vpop.f32.mrb[0].mxu0
      %v563 = vadd.f32 %v450, %v562
      %v564 = vpop.f32.mrb[0].mxu0
      %v565 = vadd.f32 %v454, %v564
      %566 = vmatprep.mubr.f32.mxu0 0.0
      %567 = vmatmul.mubr.f32.gmra.mrb[0].mxu0 %v338
      %v568 = vpop.f32.mrb[0].mxu0
      %v569 = vadd.f32 %v450, %v568
      %v570 = vpop.f32.mrb[0].mxu0
      %v571 = vadd.f32 %v454, %v570
      %572 = vmatprep.mubr.f32.mxu0 0.0
      %573 = vmatmul.mubr.f32.gmra.mrb[0].mxu0 %v339
      %v574 = vpop.f32.mrb[0].mxu0
      %v575 = vadd.f32 %v450, %v574
      %v576 = vpop.f32.mrb[0].mxu0
      %v577 = vadd.f32 %v454, %v576
      %578 = vmatprep.mubr.f32.mxu0 0.0
      %579 = vmatmul.mubr.f32.gmra.mrb[0].mxu0 %v340
      %v580 = vpop.f32.mrb[0].mxu0
      %v581 = vadd.f32 %v450, %v580
      %v582 = vpop.f32.mrb[0].mxu0
      %v583 = vadd.f32 %v454, %v582
      %584 = vmatprep.mubr.f32.mxu0 0.0
      %585 = vmatmul.mubr.f32.gmra.mrb[0].mxu0 %v341
      %v586 = vpop.f32.mrb[0].mxu0
      %v587 = vadd.f32 %v450, %v586
      %v588 = vpop.f32.mrb[0].mxu0
      %v589 = vadd.f32 %v454, %v588
      %590 = vmatprep.mubr.f32.mxu0 0.0
      %591 = vmatmul.mubr.f32.gmra.mrb[0].mxu0 %v342
      %v592 = vpop.f32.mrb[0].mxu0
      %v593 = vadd.f32 %v450, %v592
      %v594 = vpop.f32.mrb[0].mxu0
      %v595 = vadd.f32 %v454, %v594
      %596 = vmatprep.mubr.f32.mxu0 0.0
      %597 = vmatmul.mubr.f32.gmra.mrb[0].mxu0 %v343
      %v598 = vpop.f32.mrb[0].mxu0
      %v599 = vadd.f32 %v450, %v598
      %v600 = vpop.f32.mrb[0].mxu0
      %v601 = vadd.f32 %v454, %v600
      %602 = vmatprep.mubr.f32.mxu0 0.0
      %603 = vmatmul.mubr.f32.gmra.mrb[0].mxu0 %v344
      %v604 = vpop.f32.mrb[0].mxu0
      %v605 = vadd.f32 %v450, %v604
      %v606 = vpop.f32.mrb[0].mxu0
      %v607 = vadd.f32 %v454, %v606
      %608 = vmatprep.mubr.f32.mxu0 0.0
      %609 = vmatmul.mubr.f32.gmra.mrb[0].mxu0 %v345
      %v610 = vpop.f32.mrb[0].mxu0
      %v611 = vadd.f32 %v450, %v610
      %v612 = vpop.f32.mrb[0].mxu0
      %v613 = vadd.f32 %v454, %v612
      %614 = vmatprep.mubr.f32.mxu0 0.0
      %615 = vmatmul.mubr.f32.gmra.mrb[0].mxu0 %v346
      %v616 = vpop.f32.mrb[0].mxu0
      %v617 = vadd.f32 %v450, %v616
      %v618 = vpop.f32.mrb[0].mxu0
      %v619 = vadd.f32 %v454, %v618
      %620 = vmatprep.mubr.f32.mxu0 0.0
      %621 = vmatmul.mubr.f32.gmra.mrb[0].mxu0 %v347
      %v622 = vpop.f32.mrb[0].mxu0
      %v623 = vadd.f32 %v450, %v622
      %v624 = vpop.f32.mrb[0].mxu0
      %v625 = vadd.f32 %v454, %v624
      %626 = vmatprep.mubr.f32.mxu0 0.0
      %627 = vmatmul.mubr.f32.gmra.mrb[0].mxu0 %v348
      %v628 = vpop.f32.mrb[0].mxu0
      %v629 = vadd.f32 %v450, %v628
      %v630 = vpop.f32.mrb[0].mxu0
      %v631 = vadd.f32 %v454, %v630
      %632 = vmatprep.mubr.f32.mxu0 0.0
      %633 = vmatmul.mubr.f32.gmra.mrb[0].mxu0 %v349
      %v634 = vpop.f32.mrb[0].mxu0
      %v635 = vadd.f32 %v450, %v634
      %v636 = vpop.f32.mrb[0].mxu0
      %v637 = vadd.f32 %v454, %v636
      %638 = vmatprep.mubr.f32.mxu0 0.0
      %639 = vmatmul.mubr.f32.gmra.mrb[0].mxu0 %v350
      %v640 = vpop.f32.mrb[0].mxu0
      %v641 = vadd.f32 %v450, %v640
      %v642 = vpop.f32.mrb[0].mxu0
      %v643 = vadd.f32 %v454, %v642
      %644 = vmatprep.mubr.f32.mxu0 0.0
      %645 = vmatmul.mubr.f32.gmra.mrb[0].mxu0 %v351
      %v646 = vpop.f32.mrb[0].mxu0
      %v647 = vadd.f32 %v450, %v646
      %v648 = vpop.f32.mrb[0].mxu0
      %v649 = vadd.f32 %v454, %v648
      %650 = vmatprep.mubr.f32.mxu0 0.0
      %651 = vmatmul.mubr.f32.gmra.mrb[0].mxu0 %v352
      %v652 = vpop.f32.mrb[0].mxu0
      %v653 = vadd.f32 %v450, %v652
      %v654 = vpop.f32.mrb[0].mxu0
      %v655 = vadd.f32 %v454, %v654
      %656 = vmatprep.mubr.f32.mxu0 0.0
      %657 = vmatmul.mubr.f32.gmra.mrb[0].mxu0 %v353
      %v658 = vpop.f32.mrb[0].mxu0
      %v659 = vadd.f32 %v450, %v658
      %v660 = vpop.f32.mrb[0].mxu0
      %v661 = vadd.f32 %v454, %v660
      %662 = vmatprep.mubr.f32.mxu0 0.0
      %663 = vmatmul.mubr.f32.gmra.mrb[0].mxu0 %v354
      %v664 = vpop.f32.mrb[0].mxu0
      %v665 = vadd.f32 %v450, %v664
      %v666 = vpop.f32.mrb[0].mxu0
      %v667 = vadd.f32 %v454, %v666
      %668 = vmatprep.mubr.f32.mxu0 0.0
      %669 = vmatmul.mubr.f32.gmra.mrb[0].mxu0 %v355
      %v670 = vpop.f32.mrb[0].mxu0
      %v671 = vadd.f32 %v450, %v670
      %v672 = vpop.f32.mrb[0].mxu0
      %v673 = vadd.f32 %v454, %v672
      %674 = vmatprep.mubr.f32.mxu0 0.0
      %675 = vmatmul.mubr.f32.gmra.mrb[0].mxu0 %v356
      %v676 = vpop.f32.mrb[0].mxu0
      %v677 = vadd.f32 %v450, %v676
      %v678 = vpop.f32.mrb[0].mxu0
      %v679 = vadd.f32 %v454, %v678
      %680 = vmatprep.mubr.f32.mxu0 0.0
      %681 = vmatmul.mubr.f32.gmra.mrb[0].mxu0 %v357
      %v682 = vpop.f32.mrb[0].mxu0
      %v683 = vadd.f32 %v450, %v682
      %v684 = vpop.f32.mrb[0].mxu0
      %v685 = vadd.f32 %v454, %v684
      %686 = vmatprep.mubr.f32.mxu0 0.0
      %687 = vmatmul.mubr.f32.gmra.mrb[0].mxu0 %v358
      %v688 = vpop.f32.mrb[0].mxu0
      %v689 = vadd.f32 %v450, %v688
      %v690 = vpop.f32.mrb[0].mxu0
      %v691 = vadd.f32 %v454, %v690
      %692 = vmatprep.mubr.f32.mxu0 0.0
      %693 = vmatmul.mubr.f32.gmra.mrb[0].mxu0 %v359
      %v694 = vpop.f32.mrb[0].mxu0
      %v695 = vadd.f32 %v450, %v694
      %v696 = vpop.f32.mrb[0].mxu0
      %v697 = vadd.f32 %v454, %v696
      %698 = vmatprep.mubr.f32.mxu0 0.0
      %699 = vmatmul.mubr.f32.gmra.mrb[0].mxu0 %v360
      %v700 = vpop.f32.mrb[0].mxu0
      %v701 = vadd.f32 %v450, %v700
      %v702 = vpop.f32.mrb[0].mxu0
      %v703 = vadd.f32 %v454, %v702
      %704 = vmatprep.mubr.f32.mxu0 0.0
      %705 = vmatmul.mubr.f32.gmra.mrb[0].mxu0 %v361
      %v706 = vpop.f32.mrb[0].mxu0
      %v707 = vadd.f32 %v450, %v706
      %v708 = vpop.f32.mrb[0].mxu0
      %v709 = vadd.f32 %v454, %v708
      %710 = vmatprep.mubr.f32.mxu0 0.0
      %711 = vmatmul.mubr.f32.gmra.mrb[0].mxu0 %v362
      %v712 = vpop.f32.mrb[0].mxu0
      %v713 = vadd.f32 %v450, %v712
      %v714 = vpop.f32.mrb[0].mxu0
      %v715 = vadd.f32 %v454, %v714
      %716 = vmatprep.mubr.f32.mxu0 0.0
      %717 = vmatmul.mubr.f32.gmra.mrb[0].mxu0 %v363
      %v718 = vpop.f32.mrb[0].mxu0
      %v719 = vadd.f32 %v450, %v718
      %v720 = vpop.f32.mrb[0].mxu0
      %v721 = vadd.f32 %v454, %v720
      %722 = vmatprep.mubr.f32.mxu0 0.0
      %723 = vmatmul.mubr.f32.gmra.mrb[0].mxu0 %v364
      %v724 = vpop.f32.mrb[0].mxu0
      %v725 = vadd.f32 %v450, %v724
      %v726 = vpop.f32.mrb[0].mxu0
      %v727 = vadd.f32 %v454, %v726
      %728 = vdwg.mxu0
      %729 = vmatprep.subr.mxu0 %v368
      %730 = vmatpush1.msra.mxu0 %v367
      %731 = vmatprep.subr.mxu0 %v373
      %732 = vmatpush1.msra.mxu0 %v372
      %733 = vmatprep.subr.mxu0 %v378
      %734 = vmatpush1.msra.mxu0 %v377
      %735 = vmatprep.subr.mxu0 %v383
      %736 = vmatpush1.msra.mxu0 %v382
      %737 = vmatprep.subr.mxu0 %v388
      %738 = vmatpush1.msra.mxu0 %v387
      %739 = vmatprep.subr.mxu0 %v393
      %740 = vmatpush1.msra.mxu0 %v392
      %741 = vmatprep.subr.mxu0 %v398
      %742 = vmatpush1.msra.mxu0 %v397
      %743 = vmatprep.subr.mxu0 %v403
      %744 = vmatpush1.msra.mxu0 %v402
      %745 = vmatprep.subr.mxu0 %v408
      %746 = vmatpush1.msra.mxu0 %v407
      %747 = vmatprep.subr.mxu0 %v413
      %748 = vmatpush1.msra.mxu0 %v412
      %749 = vmatprep.subr.mxu0 %v418
      %750 = vmatpush1.msra.mxu0 %v417
      %751 = vmatprep.subr.mxu0 %v423
      %752 = vmatpush1.msra.mxu0 %v422
      %753 = vmatprep.subr.mxu0 %v428
      %754 = vmatpush1.msra.mxu0 %v427
      %755 = vmatprep.subr.mxu0 %v433
      %756 = vmatpush1.msra.mxu0 %v432
      %757 = vmatprep.subr.mxu0 %v438
      %758 = vmatpush1.msra.mxu0 %v437
      %759 = vmatprep.subr.mxu0 %v443
      %760 = vmatpush1.msra.mxu0 %v442
      %761 = vmatprep.subr.mxu0 0.0
      %762 = vmatpush1.msra.mxu0 0.0
      %763 = vmatprep.subr.mxu0 0.0
      %764 = vmatpush1.msra.mxu0 0.0
      %765 = vmatprep.subr.mxu0 0.0
      %766 = vmatpush1.msra.mxu0 0.0
      %767 = vmatprep.subr.mxu0 0.0
      %768 = vmatpush1.msra.mxu0 0.0
      %769 = vmatprep.subr.mxu0 0.0
      %770 = vmatpush1.msra.mxu0 0.0
      %771 = vmatprep.subr.mxu0 0.0
      %772 = vmatpush1.msra.mxu0 0.0
      %773 = vmatprep.subr.mxu0 0.0
      %774 = vmatpush1.msra.mxu0 0.0
      %775 = vmatprep.subr.mxu0 0.0
      %776 = vmatpush1.msra.mxu0 0.0
      %777 = vmatprep.subr.mxu0 0.0
      %778 = vmatpush1.msra.mxu0 0.0
      %779 = vmatprep.subr.mxu0 0.0
      %780 = vmatpush1.msra.mxu0 0.0
      %781 = vmatprep.subr.mxu0 0.0
      %782 = vmatpush1.msra.mxu0 0.0
      %783 = vmatprep.subr.mxu0 0.0
      %784 = vmatpush1.msra.mxu0 0.0
      %785 = vmatprep.subr.mxu0 0.0
      %786 = vmatpush1.msra.mxu0 0.0
      %787 = vmatprep.subr.mxu0 0.0
      %788 = vmatpush1.msra.mxu0 0.0
      %789 = vmatprep.subr.mxu0 0.0
      %790 = vmatpush1.msra.mxu0 0.0
      %791 = vmatprep.subr.mxu0 0.0
      %792 = vmatpush1.msra.mxu0 0.0
      %793 = vmatprep.mubr.f32.mxu0 0.0
      %794 = vmatmul.mubr.f32.gmra.mrb[0].mxu0 %v333
      %v795 = vpop.f32.mrb[0].mxu0
      %v796 = vadd.f32 %v458, %v795
      %v797 = vpop.f32.mrb[0].mxu0
      %v798 = vadd.f32 %v462, %v797
      %799 = vmatprep.mubr.f32.mxu0 0.0
      %800 = vmatmul.mubr.f32.gmra.mrb[0].mxu0 %v334
      %v801 = vpop.f32.mrb[0].mxu0
      %v802 = vadd.f32 %v458, %v801
      %v803 = vpop.f32.mrb[0].mxu0
      %v804 = vadd.f32 %v462, %v803
      %805 = vmatprep.mubr.f32.mxu0 0.0
      %806 = vmatmul.mubr.f32.gmra.mrb[0].mxu0 %v335
      %v807 = vpop.f32.mrb[0].mxu0
      %v808 = vadd.f32 %v458, %v807
      %v809 = vpop.f32.mrb[0].mxu0
      %v810 = vadd.f32 %v462, %v809
      %811 = vmatprep.mubr.f32.mxu0 0.0
      %812 = vmatmul.mubr.f32.gmra.mrb[0].mxu0 %v336
      %v813 = vpop.f32.mrb[0].mxu0
      %v814 = vadd.f32 %v458, %v813
      %v815 = vpop.f32.mrb[0].mxu0
      %v816 = vadd.f32 %v462, %v815
      %817 = vmatprep.mubr.f32.mxu0 0.0
      %818 = vmatmul.mubr.f32.gmra.mrb[0].mxu0 %v337
      %v819 = vpop.f32.mrb[0].mxu0
      %v820 = vadd.f32 %v458, %v819
      %v821 = vpop.f32.mrb[0].mxu0
      %v822 = vadd.f32 %v462, %v821
      %823 = vmatprep.mubr.f32.mxu0 0.0
      %824 = vmatmul.mubr.f32.gmra.mrb[0].mxu0 %v338
      %v825 = vpop.f32.mrb[0].mxu0
      %v826 = vadd.f32 %v458, %v825
      %v827 = vpop.f32.mrb[0].mxu0
      %v828 = vadd.f32 %v462, %v827
      %829 = vmatprep.mubr.f32.mxu0 0.0
      %830 = vmatmul.mubr.f32.gmra.mrb[0].mxu0 %v339
      %v831 = vpop.f32.mrb[0].mxu0
      %v832 = vadd.f32 %v458, %v831
      %v833 = vpop.f32.mrb[0].mxu0
      %v834 = vadd.f32 %v462, %v833
      %835 = vmatprep.mubr.f32.mxu0 0.0
      %836 = vmatmul.mubr.f32.gmra.mrb[0].mxu0 %v340
      %v837 = vpop.f32.mrb[0].mxu0
      %v838 = vadd.f32 %v458, %v837
      %v839 = vpop.f32.mrb[0].mxu0
      %v840 = vadd.f32 %v462, %v839
      %841 = vmatprep.mubr.f32.mxu0 0.0
      %842 = vmatmul.mubr.f32.gmra.mrb[0].mxu0 %v341
      %v843 = vpop.f32.mrb[0].mxu0
      %v844 = vadd.f32 %v458, %v843
      %v845 = vpop.f32.mrb[0].mxu0
      %v846 = vadd.f32 %v462, %v845
      %847 = vmatprep.mubr.f32.mxu0 0.0
      %848 = vmatmul.mubr.f32.gmra.mrb[0].mxu0 %v342
      %v849 = vpop.f32.mrb[0].mxu0
      %v850 = vadd.f32 %v458, %v849
      %v851 = vpop.f32.mrb[0].mxu0
      %v852 = vadd.f32 %v462, %v851
      %853 = vmatprep.mubr.f32.mxu0 0.0
      %854 = vmatmul.mubr.f32.gmra.mrb[0].mxu0 %v343
      %v855 = vpop.f32.mrb[0].mxu0
      %v856 = vadd.f32 %v458, %v855
      %v857 = vpop.f32.mrb[0].mxu0
      %v858 = vadd.f32 %v462, %v857
      %859 = vmatprep.mubr.f32.mxu0 0.0
      %860 = vmatmul.mubr.f32.gmra.mrb[0].mxu0 %v344
      %v861 = vpop.f32.mrb[0].mxu0
      %v862 = vadd.f32 %v458, %v861
      %v863 = vpop.f32.mrb[0].mxu0
      %v864 = vadd.f32 %v462, %v863
      %865 = vmatprep.mubr.f32.mxu0 0.0
      %866 = vmatmul.mubr.f32.gmra.mrb[0].mxu0 %v345
      %v867 = vpop.f32.mrb[0].mxu0
      %v868 = vadd.f32 %v458, %v867
      %v869 = vpop.f32.mrb[0].mxu0
      %v870 = vadd.f32 %v462, %v869
      %871 = vmatprep.mubr.f32.mxu0 0.0
      %872 = vmatmul.mubr.f32.gmra.mrb[0].mxu0 %v346
      %v873 = vpop.f32.mrb[0].mxu0
      %v874 = vadd.f32 %v458, %v873
      %v875 = vpop.f32.mrb[0].mxu0
      %v876 = vadd.f32 %v462, %v875
      %877 = vmatprep.mubr.f32.mxu0 0.0
      %878 = vmatmul.mubr.f32.gmra.mrb[0].mxu0 %v347
      %v879 = vpop.f32.mrb[0].mxu0
      %v880 = vadd.f32 %v458, %v879
      %v881 = vpop.f32.mrb[0].mxu0
      %v882 = vadd.f32 %v462, %v881
      %883 = vmatprep.mubr.f32.mxu0 0.0
      %884 = vmatmul.mubr.f32.gmra.mrb[0].mxu0 %v348
      %v885 = vpop.f32.mrb[0].mxu0
      %v886 = vadd.f32 %v458, %v885
      %v887 = vpop.f32.mrb[0].mxu0
      %v888 = vadd.f32 %v462, %v887
      %889 = vmatprep.mubr.f32.mxu0 0.0
      %890 = vmatmul.mubr.f32.gmra.mrb[0].mxu0 %v349
      %v891 = vpop.f32.mrb[0].mxu0
      %v892 = vadd.f32 %v458, %v891
      %v893 = vpop.f32.mrb[0].mxu0
      %v894 = vadd.f32 %v462, %v893
      %895 = vmatprep.mubr.f32.mxu0 0.0
      %896 = vmatmul.mubr.f32.gmra.mrb[0].mxu0 %v350
      %v897 = vpop.f32.mrb[0].mxu0
      %v898 = vadd.f32 %v458, %v897
      %v899 = vpop.f32.mrb[0].mxu0
      %v900 = vadd.f32 %v462, %v899
      %901 = vmatprep.mubr.f32.mxu0 0.0
      %902 = vmatmul.mubr.f32.gmra.mrb[0].mxu0 %v351
      %v903 = vpop.f32.mrb[0].mxu0
      %v904 = vadd.f32 %v458, %v903
      %v905 = vpop.f32.mrb[0].mxu0
      %v906 = vadd.f32 %v462, %v905
      %907 = vmatprep.mubr.f32.mxu0 0.0
      %908 = vmatmul.mubr.f32.gmra.mrb[0].mxu0 %v352
      %v909 = vpop.f32.mrb[0].mxu0
      %v910 = vadd.f32 %v458, %v909
      %v911 = vpop.f32.mrb[0].mxu0
      %v912 = vadd.f32 %v462, %v911
      %913 = vmatprep.mubr.f32.mxu0 0.0
      %914 = vmatmul.mubr.f32.gmra.mrb[0].mxu0 %v353
      %v915 = vpop.f32.mrb[0].mxu0
      %v916 = vadd.f32 %v458, %v915
      %v917 = vpop.f32.mrb[0].mxu0
      %v918 = vadd.f32 %v462, %v917
      %919 = vmatprep.mubr.f32.mxu0 0.0
      %920 = vmatmul.mubr.f32.gmra.mrb[0].mxu0 %v354
      %v921 = vpop.f32.mrb[0].mxu0
      %v922 = vadd.f32 %v458, %v921
      %v923 = vpop.f32.mrb[0].mxu0
      %v924 = vadd.f32 %v462, %v923
      %925 = vmatprep.mubr.f32.mxu0 0.0
      %926 = vmatmul.mubr.f32.gmra.mrb[0].mxu0 %v355
      %v927 = vpop.f32.mrb[0].mxu0
      %v928 = vadd.f32 %v458, %v927
      %v929 = vpop.f32.mrb[0].mxu0
      %v930 = vadd.f32 %v462, %v929
      %931 = vmatprep.mubr.f32.mxu0 0.0
      %932 = vmatmul.mubr.f32.gmra.mrb[0].mxu0 %v356
      %v933 = vpop.f32.mrb[0].mxu0
      %v934 = vadd.f32 %v458, %v933
      %v935 = vpop.f32.mrb[0].mxu0
      %v936 = vadd.f32 %v462, %v935
      %937 = vmatprep.mubr.f32.mxu0 0.0
      %938 = vmatmul.mubr.f32.gmra.mrb[0].mxu0 %v357
      %v939 = vpop.f32.mrb[0].mxu0
      %v940 = vadd.f32 %v458, %v939
      %v941 = vpop.f32.mrb[0].mxu0
      %v942 = vadd.f32 %v462, %v941
      %943 = vmatprep.mubr.f32.mxu0 0.0
      %944 = vmatmul.mubr.f32.gmra.mrb[0].mxu0 %v358
      %v945 = vpop.f32.mrb[0].mxu0
      %v946 = vadd.f32 %v458, %v945
      %v947 = vpop.f32.mrb[0].mxu0
      %v948 = vadd.f32 %v462, %v947
      %949 = vmatprep.mubr.f32.mxu0 0.0
      %950 = vmatmul.mubr.f32.gmra.mrb[0].mxu0 %v359
      %v951 = vpop.f32.mrb[0].mxu0
      %v952 = vadd.f32 %v458, %v951
      %v953 = vpop.f32.mrb[0].mxu0
      %v954 = vadd.f32 %v462, %v953
      %955 = vmatprep.mubr.f32.mxu0 0.0
      %956 = vmatmul.mubr.f32.gmra.mrb[0].mxu0 %v360
      %v957 = vpop.f32.mrb[0].mxu0
      %v958 = vadd.f32 %v458, %v957
      %v959 = vpop.f32.mrb[0].mxu0
      %v960 = vadd.f32 %v462, %v959
      %961 = vmatprep.mubr.f32.mxu0 0.0
      %962 = vmatmul.mubr.f32.gmra.mrb[0].mxu0 %v361
      %v963 = vpop.f32.mrb[0].mxu0
      %v964 = vadd.f32 %v458, %v963
      %v965 = vpop.f32.mrb[0].mxu0
      %v966 = vadd.f32 %v462, %v965
      %967 = vmatprep.mubr.f32.mxu0 0.0
      %968 = vmatmul.mubr.f32.gmra.mrb[0].mxu0 %v362
      %v969 = vpop.f32.mrb[0].mxu0
      %v970 = vadd.f32 %v458, %v969
      %v971 = vpop.f32.mrb[0].mxu0
      %v972 = vadd.f32 %v462, %v971
      %973 = vmatprep.mubr.f32.mxu0 0.0
      %974 = vmatmul.mubr.f32.gmra.mrb[0].mxu0 %v363
      %v975 = vpop.f32.mrb[0].mxu0
      %v976 = vadd.f32 %v458, %v975
      %v977 = vpop.f32.mrb[0].mxu0
      %v978 = vadd.f32 %v462, %v977
      %979 = vmatprep.mubr.f32.mxu0 0.0
      %980 = vmatmul.mubr.f32.gmra.mrb[0].mxu0 %v364
      %v981 = vpop.f32.mrb[0].mxu0
      %v982 = vadd.f32 %v458, %v981
      %v983 = vpop.f32.mrb[0].mxu0
      %v984 = vadd.f32 %v462, %v983
      %985 = vdwg.mxu0
      %986 = vmatprep.subr.mxu0 0.0
      %987 = vmatpush1.msra.mxu0 %v369
      %988 = vmatprep.subr.mxu0 0.0
      %989 = vmatpush1.msra.mxu0 %v374
      %990 = vmatprep.subr.mxu0 0.0
      %991 = vmatpush1.msra.mxu0 %v379
      %992 = vmatprep.subr.mxu0 0.0
      %993 = vmatpush1.msra.mxu0 %v384
      %994 = vmatprep.subr.mxu0 0.0
      %995 = vmatpush1.msra.mxu0 %v389
      %996 = vmatprep.subr.mxu0 0.0
      %997 = vmatpush1.msra.mxu0 %v394
      %998 = vmatprep.subr.mxu0 0.0
      %999 = vmatpush1.msra.mxu0 %v399
      %1000 = vmatprep.subr.mxu0 0.0
      %1001 = vmatpush1.msra.mxu0 %v404
      %1002 = vmatprep.subr.mxu0 0.0
      %1003 = vmatpush1.msra.mxu0 %v409
      %1004 = vmatprep.subr.mxu0 0.0
      %1005 = vmatpush1.msra.mxu0 %v414
      %1006 = vmatprep.subr.mxu0 0.0
      %1007 = vmatpush1.msra.mxu0 %v419
      %1008 = vmatprep.subr.mxu0 0.0
      %1009 = vmatpush1.msra.mxu0 %v424
      %1010 = vmatprep.subr.mxu0 0.0
      %1011 = vmatpush1.msra.mxu0 %v429
      %1012 = vmatprep.subr.mxu0 0.0
      %1013 = vmatpush1.msra.mxu0 %v434
      %1014 = vmatprep.subr.mxu0 0.0
      %1015 = vmatpush1.msra.mxu0 %v439
      %1016 = vmatprep.subr.mxu0 0.0
      %1017 = vmatpush1.msra.mxu0 %v444
      %1018 = vmatprep.subr.mxu0 0.0
      %1019 = vmatpush1.msra.mxu0 0.0
      %1020 = vmatprep.subr.mxu0 0.0
      %1021 = vmatpush1.msra.mxu0 0.0
      %1022 = vmatprep.subr.mxu0 0.0
      %1023 = vmatpush1.msra.mxu0 0.0
      %1024 = vmatprep.subr.mxu0 0.0
      %1025 = vmatpush1.msra.mxu0 0.0
      %1026 = vmatprep.subr.mxu0 0.0
      %1027 = vmatpush1.msra.mxu0 0.0
      %1028 = vmatprep.subr.mxu0 0.0
      %1029 = vmatpush1.msra.mxu0 0.0
      %1030 = vmatprep.subr.mxu0 0.0
      %1031 = vmatpush1.msra.mxu0 0.0
      %1032 = vmatprep.subr.mxu0 0.0
      %1033 = vmatpush1.msra.mxu0 0.0
      %1034 = vmatprep.subr.mxu0 0.0
      %1035 = vmatpush1.msra.mxu0 0.0
      %1036 = vmatprep.subr.mxu0 0.0
      %1037 = vmatpush1.msra.mxu0 0.0
      %1038 = vmatprep.subr.mxu0 0.0
      %1039 = vmatpush1.msra.mxu0 0.0
      %1040 = vmatprep.subr.mxu0 0.0
      %1041 = vmatpush1.msra.mxu0 0.0
      %1042 = vmatprep.subr.mxu0 0.0
      %1043 = vmatpush1.msra.mxu0 0.0
      %1044 = vmatprep.subr.mxu0 0.0
      %1045 = vmatpush1.msra.mxu0 0.0
      %1046 = vmatprep.subr.mxu0 0.0
      %1047 = vmatpush1.msra.mxu0 0.0
      %1048 = vmatprep.subr.mxu0 0.0
      %1049 = vmatpush1.msra.mxu0 0.0
      %1050 = vmatprep.mubr.f32.mxu0 0.0
      %1051 = vmatmul.mubr.f32.gmra.mrb[0].mxu0 %v333
      %v1052 = vpop.f32.mrb[0].mxu0
      %v1053 = vadd.f32 %v466, %v1052
      %v1054 = vpop.f32.mrb[0].mxu0
      %1055 = vmatprep.mubr.f32.mxu0 0.0
      %1056 = vmatmul.mubr.f32.gmra.mrb[0].mxu0 %v334
      %v1057 = vpop.f32.mrb[0].mxu0
      %v1058 = vadd.f32 %v466, %v1057
      %v1059 = vpop.f32.mrb[0].mxu0
      %1060 = vmatprep.mubr.f32.mxu0 0.0
      %1061 = vmatmul.mubr.f32.gmra.mrb[0].mxu0 %v335
      %v1062 = vpop.f32.mrb[0].mxu0
      %v1063 = vadd.f32 %v466, %v1062
      %v1064 = vpop.f32.mrb[0].mxu0
      %1065 = vmatprep.mubr.f32.mxu0 0.0
      %1066 = vmatmul.mubr.f32.gmra.mrb[0].mxu0 %v336
      %v1067 = vpop.f32.mrb[0].mxu0
      %v1068 = vadd.f32 %v466, %v1067
      %v1069 = vpop.f32.mrb[0].mxu0
      %1070 = vmatprep.mubr.f32.mxu0 0.0
      %1071 = vmatmul.mubr.f32.gmra.mrb[0].mxu0 %v337
      %v1072 = vpop.f32.mrb[0].mxu0
      %v1073 = vadd.f32 %v466, %v1072
      %v1074 = vpop.f32.mrb[0].mxu0
      %1075 = vmatprep.mubr.f32.mxu0 0.0
      %1076 = vmatmul.mubr.f32.gmra.mrb[0].mxu0 %v338
      %v1077 = vpop.f32.mrb[0].mxu0
      %v1078 = vadd.f32 %v466, %v1077
      %v1079 = vpop.f32.mrb[0].mxu0
      %1080 = vmatprep.mubr.f32.mxu0 0.0
      %1081 = vmatmul.mubr.f32.gmra.mrb[0].mxu0 %v339
      %v1082 = vpop.f32.mrb[0].mxu0
      %v1083 = vadd.f32 %v466, %v1082
      %v1084 = vpop.f32.mrb[0].mxu0
      %1085 = vmatprep.mubr.f32.mxu0 0.0
      %1086 = vmatmul.mubr.f32.gmra.mrb[0].mxu0 %v340
      %v1087 = vpop.f32.mrb[0].mxu0
      %v1088 = vadd.f32 %v466, %v1087
      %v1089 = vpop.f32.mrb[0].mxu0
      %1090 = vmatprep.mubr.f32.mxu0 0.0
      %1091 = vmatmul.mubr.f32.gmra.mrb[0].mxu0 %v341
      %v1092 = vpop.f32.mrb[0].mxu0
      %v1093 = vadd.f32 %v466, %v1092
      %v1094 = vpop.f32.mrb[0].mxu0
      %1095 = vmatprep.mubr.f32.mxu0 0.0
      %1096 = vmatmul.mubr.f32.gmra.mrb[0].mxu0 %v342
      %v1097 = vpop.f32.mrb[0].mxu0
      %v1098 = vadd.f32 %v466, %v1097
      %v1099 = vpop.f32.mrb[0].mxu0
      %1100 = vmatprep.mubr.f32.mxu0 0.0
      %1101 = vmatmul.mubr.f32.gmra.mrb[0].mxu0 %v343
      %v1102 = vpop.f32.mrb[0].mxu0
      %v1103 = vadd.f32 %v466, %v1102
      %v1104 = vpop.f32.mrb[0].mxu0
      %1105 = vmatprep.mubr.f32.mxu0 0.0
      %1106 = vmatmul.mubr.f32.gmra.mrb[0].mxu0 %v344
      %v1107 = vpop.f32.mrb[0].mxu0
      %v1108 = vadd.f32 %v466, %v1107
      %v1109 = vpop.f32.mrb[0].mxu0
      %1110 = vmatprep.mubr.f32.mxu0 0.0
      %1111 = vmatmul.mubr.f32.gmra.mrb[0].mxu0 %v345
      %v1112 = vpop.f32.mrb[0].mxu0
      %v1113 = vadd.f32 %v466, %v1112
      %v1114 = vpop.f32.mrb[0].mxu0
      %1115 = vmatprep.mubr.f32.mxu0 0.0
      %1116 = vmatmul.mubr.f32.gmra.mrb[0].mxu0 %v346
      %v1117 = vpop.f32.mrb[0].mxu0
      %v1118 = vadd.f32 %v466, %v1117
      %v1119 = vpop.f32.mrb[0].mxu0
      %1120 = vmatprep.mubr.f32.mxu0 0.0
      %1121 = vmatmul.mubr.f32.gmra.mrb[0].mxu0 %v347
      %v1122 = vpop.f32.mrb[0].mxu0
      %v1123 = vadd.f32 %v466, %v1122
      %v1124 = vpop.f32.mrb[0].mxu0
      %1125 = vmatprep.mubr.f32.mxu0 0.0
      %1126 = vmatmul.mubr.f32.gmra.mrb[0].mxu0 %v348
      %v1127 = vpop.f32.mrb[0].mxu0
      %v1128 = vadd.f32 %v466, %v1127
      %v1129 = vpop.f32.mrb[0].mxu0
      %1130 = vmatprep.mubr.f32.mxu0 0.0
      %1131 = vmatmul.mubr.f32.gmra.mrb[0].mxu0 %v349
      %v1132 = vpop.f32.mrb[0].mxu0
      %v1133 = vadd.f32 %v466, %v1132
      %v1134 = vpop.f32.mrb[0].mxu0
      %1135 = vmatprep.mubr.f32.mxu0 0.0
      %1136 = vmatmul.mubr.f32.gmra.mrb[0].mxu0 %v350
      %v1137 = vpop.f32.mrb[0].mxu0
      %v1138 = vadd.f32 %v466, %v1137
      %v1139 = vpop.f32.mrb[0].mxu0
      %1140 = vmatprep.mubr.f32.mxu0 0.0
      %1141 = vmatmul.mubr.f32.gmra.mrb[0].mxu0 %v351
      %v1142 = vpop.f32.mrb[0].mxu0
      %v1143 = vadd.f32 %v466, %v1142
      %v1144 = vpop.f32.mrb[0].mxu0
      %1145 = vmatprep.mubr.f32.mxu0 0.0
      %1146 = vmatmul.mubr.f32.gmra.mrb[0].mxu0 %v352
      %v1147 = vpop.f32.mrb[0].mxu0
      %v1148 = vadd.f32 %v466, %v1147
      %v1149 = vpop.f32.mrb[0].mxu0
      %1150 = vmatprep.mubr.f32.mxu0 0.0
      %1151 = vmatmul.mubr.f32.gmra.mrb[0].mxu0 %v353
      %v1152 = vpop.f32.mrb[0].mxu0
      %v1153 = vadd.f32 %v466, %v1152
      %v1154 = vpop.f32.mrb[0].mxu0
      %1155 = vmatprep.mubr.f32.mxu0 0.0
      %1156 = vmatmul.mubr.f32.gmra.mrb[0].mxu0 %v354
      %v1157 = vpop.f32.mrb[0].mxu0
      %v1158 = vadd.f32 %v466, %v1157
      %v1159 = vpop.f32.mrb[0].mxu0
      %1160 = vmatprep.mubr.f32.mxu0 0.0
      %1161 = vmatmul.mubr.f32.gmra.mrb[0].mxu0 %v355
      %v1162 = vpop.f32.mrb[0].mxu0
      %v1163 = vadd.f32 %v466, %v1162
      %v1164 = vpop.f32.mrb[0].mxu0
      %1165 = vmatprep.mubr.f32.mxu0 0.0
      %1166 = vmatmul.mubr.f32.gmra.mrb[0].mxu0 %v356
      %v1167 = vpop.f32.mrb[0].mxu0
      %v1168 = vadd.f32 %v466, %v1167
      %v1169 = vpop.f32.mrb[0].mxu0
      %1170 = vmatprep.mubr.f32.mxu0 0.0
      %1171 = vmatmul.mubr.f32.gmra.mrb[0].mxu0 %v357
      %v1172 = vpop.f32.mrb[0].mxu0
      %v1173 = vadd.f32 %v466, %v1172
      %v1174 = vpop.f32.mrb[0].mxu0
      %1175 = vmatprep.mubr.f32.mxu0 0.0
      %1176 = vmatmul.mubr.f32.gmra.mrb[0].mxu0 %v358
      %v1177 = vpop.f32.mrb[0].mxu0
      %v1178 = vadd.f32 %v466, %v1177
      %v1179 = vpop.f32.mrb[0].mxu0
      %1180 = vmatprep.mubr.f32.mxu0 0.0
      %1181 = vmatmul.mubr.f32.gmra.mrb[0].mxu0 %v359
      %v1182 = vpop.f32.mrb[0].mxu0
      %v1183 = vadd.f32 %v466, %v1182
      %v1184 = vpop.f32.mrb[0].mxu0
      %1185 = vmatprep.mubr.f32.mxu0 0.0
      %1186 = vmatmul.mubr.f32.gmra.mrb[0].mxu0 %v360
      %v1187 = vpop.f32.mrb[0].mxu0
      %v1188 = vadd.f32 %v466, %v1187
      %v1189 = vpop.f32.mrb[0].mxu0
      %1190 = vmatprep.mubr.f32.mxu0 0.0
      %1191 = vmatmul.mubr.f32.gmra.mrb[0].mxu0 %v361
      %v1192 = vpop.f32.mrb[0].mxu0
      %v1193 = vadd.f32 %v466, %v1192
      %v1194 = vpop.f32.mrb[0].mxu0
      %1195 = vmatprep.mubr.f32.mxu0 0.0
      %1196 = vmatmul.mubr.f32.gmra.mrb[0].mxu0 %v362
      %v1197 = vpop.f32.mrb[0].mxu0
      %v1198 = vadd.f32 %v466, %v1197
      %v1199 = vpop.f32.mrb[0].mxu0
      %1200 = vmatprep.mubr.f32.mxu0 0.0
      %1201 = vmatmul.mubr.f32.gmra.mrb[0].mxu0 %v363
      %v1202 = vpop.f32.mrb[0].mxu0
      %v1203 = vadd.f32 %v466, %v1202
      %v1204 = vpop.f32.mrb[0].mxu0
      %1205 = vmatprep.mubr.f32.mxu0 0.0
      %1206 = vmatmul.mubr.f32.gmra.mrb[0].mxu0 %v364
      %v1207 = vpop.f32.mrb[0].mxu0
      %v1208 = vadd.f32 %v466, %v1207
      %v1209 = vpop.f32.mrb[0].mxu0
      %1210 = vdwg.mxu0
      %1211 = vst [vmem:[#allocation2] sm:$0xff] 0.0
      %1212 = vst [vmem:[#allocation2 + $0x8] sm:$0xff] 0.0
      %1213 = vst [vmem:[#allocation2 + $0x10] sm:$0xf] 0.0
      %1214 = vst [vmem:[#allocation2 + $0x18] sm:$0xff] 0.0
      %1215 = vst [vmem:[#allocation2 + $0x20] sm:$0xff] 0.0
      %1216 = vst [vmem:[#allocation2 + $0x28] sm:$0xf] 0.0
      %s1217 = scalar_lea.vmem [#allocation2], 432
      %1218 = vst [vmem:[%s1217] sm:$0xff] 0.0
      %1219 = vst [vmem:[%s1217 + $0x8] sm:$0xff] 0.0
      %1220 = vst [vmem:[%s1217 + $0x10] sm:$0xf] 0.0
      %1221 = vst [vmem:[%s1217 + $0x18] sm:$0xff] 0.0
      %1222 = vst [vmem:[%s1217 + $0x20] sm:$0xff] 0.0
      %1223 = vst [vmem:[%s1217 + $0x28] sm:$0xf] 0.0
      %1224 = vst [vmem:[#allocation2] sm:$0x3] 0.0
      %1225 = vst [vmem:[#allocation2 + $0x18] sm:$0x3] 0.0
      %1226 = vst [vmem:[#allocation2 + $0x30] sm:$0x3] 0.0
      %1227 = vst [vmem:[#allocation2 + $0x48] sm:$0x3] 0.0
      %1228 = vst [vmem:[#allocation2 + $0x60] sm:$0x3] 0.0
      %1229 = vst [vmem:[#allocation2 + $0x78] sm:$0x3] 0.0
      %1230 = vst [vmem:[#allocation2 + $0x90] sm:$0x3] 0.0
      %1231 = vst [vmem:[#allocation2 + $0xa8] sm:$0x3] 0.0
      %1232 = vst [vmem:[#allocation2 + $0xc0] sm:$0x3] 0.0
      %1233 = vst [vmem:[#allocation2 + $0xd8] sm:$0x3] 0.0
      %1234 = vst [vmem:[#allocation2 + $0xf0] sm:$0x3] 0.0
      %1235 = vst [vmem:[#allocation2 + $0x108] sm:$0x3] 0.0
      %1236 = vst [vmem:[#allocation2 + $0x120] sm:$0x3] 0.0
      %1237 = vst [vmem:[#allocation2 + $0x138] sm:$0x3] 0.0
      %1238 = vst [vmem:[#allocation2 + $0x150] sm:$0x3] 0.0
      %1239 = vst [vmem:[#allocation2 + $0x168] sm:$0x3] 0.0
      %1240 = vst [vmem:[#allocation2 + $0x180] sm:$0x3] 0.0
      %1241 = vst [vmem:[#allocation2 + $0x198] sm:$0x3] 0.0
      %1242 = vst [vmem:[#allocation2 + $0x1b0] sm:$0x3] 0.0
      %1243 = vst [vmem:[#allocation2 + $0x1c8] sm:$0x3] 0.0
      %1244 = vst [vmem:[#allocation2 + $0x12] sm:$0x3] 0.0
      %1245 = vst [vmem:[#allocation2 + $0x2a] sm:$0x3] 0.0
      %1246 = vst [vmem:[#allocation2 + $0x42] sm:$0x3] 0.0
      %1247 = vst [vmem:[#allocation2 + $0x5a] sm:$0x3] 0.0
      %1248 = vst [vmem:[#allocation2 + $0x72] sm:$0x3] 0.0
      %1249 = vst [vmem:[#allocation2 + $0x8a] sm:$0x3] 0.0
      %1250 = vst [vmem:[#allocation2 + $0xa2] sm:$0x3] 0.0
      %1251 = vst [vmem:[#allocation2 + $0xba] sm:$0x3] 0.0
      %1252 = vst [vmem:[#allocation2 + $0xd2] sm:$0x3] 0.0
      %1253 = vst [vmem:[#allocation2 + $0xea] sm:$0x3] 0.0
      %1254 = vst [vmem:[#allocation2 + $0x102] sm:$0x3] 0.0
      %1255 = vst [vmem:[#allocation2 + $0x11a] sm:$0x3] 0.0
      %1256 = vst [vmem:[#allocation2 + $0x132] sm:$0x3] 0.0
      %1257 = vst [vmem:[#allocation2 + $0x14a] sm:$0x3] 0.0
      %1258 = vst [vmem:[#allocation2 + $0x162] sm:$0x3] 0.0
      %1259 = vst [vmem:[#allocation2 + $0x17a] sm:$0x3] 0.0
      %1260 = vst [vmem:[#allocation2 + $0x192] sm:$0x3] 0.0
      %1261 = vst [vmem:[#allocation2 + $0x1aa] sm:$0x3] 0.0
      %1262 = vst [vmem:[#allocation2 + $0x1c2] sm:$0x3] 0.0
      %1263 = vst [vmem:[#allocation2 + $0x1da] sm:$0x3] 0.0
      %1264 = vst [vmem:[#allocation3] sm:$0xff] 0.0
      %1265 = vst [vmem:[#allocation3 + $0x8] sm:$0xff] 0.0
      %1266 = vst [vmem:[#allocation3 + $0x10] sm:$0xf] 0.0
      %1267 = vst [vmem:[#allocation3 + $0x18] sm:$0xff] 0.0
      %1268 = vst [vmem:[#allocation3 + $0x20] sm:$0xff] 0.0
      %1269 = vst [vmem:[#allocation3 + $0x28] sm:$0xf] 0.0
      %s1270 = scalar_lea.vmem [#allocation3], 432
      %1271 = vst [vmem:[%s1270] sm:$0xff] 0.0
      %1272 = vst [vmem:[%s1270 + $0x8] sm:$0xff] 0.0
      %1273 = vst [vmem:[%s1270 + $0x10] sm:$0xf] 0.0
      %1274 = vst [vmem:[%s1270 + $0x18] sm:$0xff] 0.0
      %1275 = vst [vmem:[%s1270 + $0x20] sm:$0xff] 0.0
      %1276 = vst [vmem:[%s1270 + $0x28] sm:$0xf] 0.0
      %1277 = vst [vmem:[#allocation3] sm:$0x3] 0.0
      %1278 = vst [vmem:[#allocation3 + $0x18] sm:$0x3] 0.0
      %1279 = vst [vmem:[#allocation3 + $0x30] sm:$0x3] 0.0
      %1280 = vst [vmem:[#allocation3 + $0x48] sm:$0x3] 0.0
      %1281 = vst [vmem:[#allocation3 + $0x60] sm:$0x3] 0.0
      %1282 = vst [vmem:[#allocation3 + $0x78] sm:$0x3] 0.0
      %1283 = vst [vmem:[#allocation3 + $0x90] sm:$0x3] 0.0
      %1284 = vst [vmem:[#allocation3 + $0xa8] sm:$0x3] 0.0
      %1285 = vst [vmem:[#allocation3 + $0xc0] sm:$0x3] 0.0
      %1286 = vst [vmem:[#allocation3 + $0xd8] sm:$0x3] 0.0
      %1287 = vst [vmem:[#allocation3 + $0xf0] sm:$0x3] 0.0
      %1288 = vst [vmem:[#allocation3 + $0x108] sm:$0x3] 0.0
      %1289 = vst [vmem:[#allocation3 + $0x120] sm:$0x3] 0.0
      %1290 = vst [vmem:[#allocation3 + $0x138] sm:$0x3] 0.0
      %1291 = vst [vmem:[#allocation3 + $0x150] sm:$0x3] 0.0
      %1292 = vst [vmem:[#allocation3 + $0x168] sm:$0x3] 0.0
      %1293 = vst [vmem:[#allocation3 + $0x180] sm:$0x3] 0.0
      %1294 = vst [vmem:[#allocation3 + $0x198] sm:$0x3] 0.0
      %1295 = vst [vmem:[#allocation3 + $0x1b0] sm:$0x3] 0.0
      %1296 = vst [vmem:[#allocation3 + $0x1c8] sm:$0x3] 0.0
      %1297 = vst [vmem:[#allocation3 + $0x12] sm:$0x3] 0.0
      %1298 = vst [vmem:[#allocation3 + $0x2a] sm:$0x3] 0.0
      %1299 = vst [vmem:[#allocation3 + $0x42] sm:$0x3] 0.0
      %1300 = vst [vmem:[#allocation3 + $0x5a] sm:$0x3] 0.0
      %1301 = vst [vmem:[#allocation3 + $0x72] sm:$0x3] 0.0
      %1302 = vst [vmem:[#allocation3 + $0x8a] sm:$0x3] 0.0
      %1303 = vst [vmem:[#allocation3 + $0xa2] sm:$0x3] 0.0
      %1304 = vst [vmem:[#allocation3 + $0xba] sm:$0x3] 0.0
      %1305 = vst [vmem:[#allocation3 + $0xd2] sm:$0x3] 0.0
      %1306 = vst [vmem:[#allocation3 + $0xea] sm:$0x3] 0.0
      %1307 = vst [vmem:[#allocation3 + $0x102] sm:$0x3] 0.0
      %1308 = vst [vmem:[#allocation3 + $0x11a] sm:$0x3] 0.0
      %1309 = vst [vmem:[#allocation3 + $0x132] sm:$0x3] 0.0
      %1310 = vst [vmem:[#allocation3 + $0x14a] sm:$0x3] 0.0
      %1311 = vst [vmem:[#allocation3 + $0x162] sm:$0x3] 0.0
      %1312 = vst [vmem:[#allocation3 + $0x17a] sm:$0x3] 0.0
      %1313 = vst [vmem:[#allocation3 + $0x192] sm:$0x3] 0.0
      %1314 = vst [vmem:[#allocation3 + $0x1aa] sm:$0x3] 0.0
      %1315 = vst [vmem:[#allocation3 + $0x1c2] sm:$0x3] 0.0
      %1316 = vst [vmem:[#allocation3 + $0x1da] sm:$0x3] 0.0
      %s1317 = scalar_lea.vmem [#allocation2], 48
      %1318 = vst [vmem:[%s1317 + $0x2] sm:$0xff] %v541
      %1319 = vst [vmem:[%s1317 + $0xa] sm:$0xff] %v547
      %1320 = vst [vmem:[%s1317 + $0x1a] sm:$0xff] %v553
      %1321 = vst [vmem:[%s1317 + $0x22] sm:$0xff] %v559
      %1322 = vst [vmem:[%s1317 + $0x32] sm:$0xff] %v565
      %1323 = vst [vmem:[%s1317 + $0x3a] sm:$0xff] %v571
      %1324 = vst [vmem:[%s1317 + $0x4a] sm:$0xff] %v577
      %1325 = vst [vmem:[%s1317 + $0x52] sm:$0xff] %v583
      %1326 = vst [vmem:[%s1317 + $0x62] sm:$0xff] %v589
      %1327 = vst [vmem:[%s1317 + $0x6a] sm:$0xff] %v595
      %1328 = vst [vmem:[%s1317 + $0x7a] sm:$0xff] %v601
      %1329 = vst [vmem:[%s1317 + $0x82] sm:$0xff] %v607
      %1330 = vst [vmem:[%s1317 + $0x92] sm:$0xff] %v613
      %1331 = vst [vmem:[%s1317 + $0x9a] sm:$0xff] %v619
      %1332 = vst [vmem:[%s1317 + $0xaa] sm:$0xff] %v625
      %1333 = vst [vmem:[%s1317 + $0xb2] sm:$0xff] %v631
      %1334 = vst [vmem:[%s1317 + $0xc2] sm:$0xff] %v637
      %1335 = vst [vmem:[%s1317 + $0xca] sm:$0xff] %v643
      %1336 = vst [vmem:[%s1317 + $0xda] sm:$0xff] %v649
      %1337 = vst [vmem:[%s1317 + $0xe2] sm:$0xff] %v655
      %1338 = vst [vmem:[%s1317 + $0xf2] sm:$0xff] %v661
      %1339 = vst [vmem:[%s1317 + $0xfa] sm:$0xff] %v667
      %1340 = vst [vmem:[%s1317 + $0x10a] sm:$0xff] %v673
      %1341 = vst [vmem:[%s1317 + $0x112] sm:$0xff] %v679
      %1342 = vst [vmem:[%s1317 + $0x122] sm:$0xff] %v685
      %1343 = vst [vmem:[%s1317 + $0x12a] sm:$0xff] %v691
      %1344 = vst [vmem:[%s1317 + $0x13a] sm:$0xff] %v697
      %1345 = vst [vmem:[%s1317 + $0x142] sm:$0xff] %v703
      %1346 = vst [vmem:[%s1317 + $0x152] sm:$0xff] %v709
      %1347 = vst [vmem:[%s1317 + $0x15a] sm:$0xff] %v715
      %1348 = vst [vmem:[%s1317 + $0x16a] sm:$0xff] %v721
      %1349 = vst [vmem:[%s1317 + $0x172] sm:$0xff] %v727
      %v1350 = vld [vmem:[%s3] sm:$0x1]
      %s1351 = scalar_lea.vmem [#allocation2], 24
      %v1352 = vld [vmem:[%s1351 + $0x1] sm:$0xff]
      %v1353 = vld [vmem:[%s1351 + $0x9] sm:$0xff]
      %v1354 = vld [vmem:[%s1351 + $0x19] sm:$0xff]
      %v1355 = vld [vmem:[%s1351 + $0x21] sm:$0xff]
      %v1356 = vld [vmem:[%s1351 + $0x31] sm:$0xff]
      %v1357 = vld [vmem:[%s1351 + $0x39] sm:$0xff]
      %v1358 = vld [vmem:[%s1351 + $0x49] sm:$0xff]
      %v1359 = vld [vmem:[%s1351 + $0x51] sm:$0xff]
      %v1360 = vld [vmem:[%s1351 + $0x61] sm:$0xff]
      %v1361 = vld [vmem:[%s1351 + $0x69] sm:$0xff]
      %v1362 = vld [vmem:[%s1351 + $0x79] sm:$0xff]
      %v1363 = vld [vmem:[%s1351 + $0x81] sm:$0xff]
      %v1364 = vld [vmem:[%s1351 + $0x91] sm:$0xff]
      %v1365 = vld [vmem:[%s1351 + $0x99] sm:$0xff]
      %v1366 = vld [vmem:[%s1351 + $0xa9] sm:$0xff]
      %v1367 = vld [vmem:[%s1351 + $0xb1] sm:$0xff]
      %v1368 = vlaneseq
      %v1369 = vshrl.u32 %v1368, 7
      %v1370 = vsub.s32 0, %v1369
      %v1371 = vrot.slane %v1350, %v1370
      %v1372 = vmul.f32 %v1352, %v1371
      %v1373 = vmul.f32 %v1353, %v1371
      %v1374 = vmul.f32 %v1354, %v1371
      %v1375 = vmul.f32 %v1355, %v1371
      %v1376 = vmul.f32 %v1356, %v1371
      %v1377 = vmul.f32 %v1357, %v1371
      %v1378 = vmul.f32 %v1358, %v1371
      %v1379 = vmul.f32 %v1359, %v1371
      %v1380 = vmul.f32 %v1360, %v1371
      %v1381 = vmul.f32 %v1361, %v1371
      %v1382 = vmul.f32 %v1362, %v1371
      %v1383 = vmul.f32 %v1363, %v1371
      %v1384 = vmul.f32 %v1364, %v1371
      %v1385 = vmul.f32 %v1365, %v1371
      %v1386 = vmul.f32 %v1366, %v1371
      %v1387 = vmul.f32 %v1367, %v1371
      %v1388 = vadd.f32 %v1372, 0.0
      %v1389 = vadd.f32 %v1373, 0.0
      %v1390 = vadd.f32 %v1374, 0.0
      %v1391 = vadd.f32 %v1375, 0.0
      %v1392 = vadd.f32 %v1376, 0.0
      %v1393 = vadd.f32 %v1377, 0.0
      %v1394 = vadd.f32 %v1378, 0.0
      %v1395 = vadd.f32 %v1379, 0.0
      %v1396 = vadd.f32 %v1380, 0.0
      %v1397 = vadd.f32 %v1381, 0.0
      %v1398 = vadd.f32 %v1382, 0.0
      %v1399 = vadd.f32 %v1383, 0.0
      %v1400 = vadd.f32 %v1384, 0.0
      %v1401 = vadd.f32 %v1385, 0.0
      %v1402 = vadd.f32 %v1386, 0.0
      %v1403 = vadd.f32 %v1387, 0.0
      %v1404 = vld [vmem:[%s3 + $0x1] sm:$0x1]
      %v1405 = vld [vmem:[%s1351 + $0x2] sm:$0xff]
      %v1406 = vld [vmem:[%s1351 + $0xa] sm:$0xff]
      %v1407 = vld [vmem:[%s1351 + $0x1a] sm:$0xff]
      %v1408 = vld [vmem:[%s1351 + $0x22] sm:$0xff]
      %v1409 = vld [vmem:[%s1351 + $0x32] sm:$0xff]
      %v1410 = vld [vmem:[%s1351 + $0x3a] sm:$0xff]
      %v1411 = vld [vmem:[%s1351 + $0x4a] sm:$0xff]
      %v1412 = vld [vmem:[%s1351 + $0x52] sm:$0xff]
      %v1413 = vld [vmem:[%s1351 + $0x62] sm:$0xff]
      %v1414 = vld [vmem:[%s1351 + $0x6a] sm:$0xff]
      %v1415 = vld [vmem:[%s1351 + $0x7a] sm:$0xff]
      %v1416 = vld [vmem:[%s1351 + $0x82] sm:$0xff]
      %v1417 = vld [vmem:[%s1351 + $0x92] sm:$0xff]
      %v1418 = vld [vmem:[%s1351 + $0x9a] sm:$0xff]
      %v1419 = vld [vmem:[%s1351 + $0xaa] sm:$0xff]
      %v1420 = vld [vmem:[%s1351 + $0xb2] sm:$0xff]
      %v1421 = vlaneseq
      %v1422 = vshrl.u32 %v1421, 7
      %v1423 = vsub.s32 0, %v1422
      %v1424 = vrot.slane %v1404, %v1423
      %v1425 = vmul.f32 %v1405, %v1424
      %v1426 = vmul.f32 %v1406, %v1424
      %v1427 = vmul.f32 %v1407, %v1424
      %v1428 = vmul.f32 %v1408, %v1424
      %v1429 = vmul.f32 %v1409, %v1424
      %v1430 = vmul.f32 %v1410, %v1424
      %v1431 = vmul.f32 %v1411, %v1424
      %v1432 = vmul.f32 %v1412, %v1424
      %v1433 = vmul.f32 %v1413, %v1424
      %v1434 = vmul.f32 %v1414, %v1424
      %v1435 = vmul.f32 %v1415, %v1424
      %v1436 = vmul.f32 %v1416, %v1424
      %v1437 = vmul.f32 %v1417, %v1424
      %v1438 = vmul.f32 %v1418, %v1424
      %v1439 = vmul.f32 %v1419, %v1424
      %v1440 = vmul.f32 %v1420, %v1424
      %v1441 = vadd.f32 %v1388, %v1425
      %v1442 = vadd.f32 %v1389, %v1426
      %v1443 = vadd.f32 %v1390, %v1427
      %v1444 = vadd.f32 %v1391, %v1428
      %v1445 = vadd.f32 %v1392, %v1429
      %v1446 = vadd.f32 %v1393, %v1430
      %v1447 = vadd.f32 %v1394, %v1431
      %v1448 = vadd.f32 %v1395, %v1432
      %v1449 = vadd.f32 %v1396, %v1433
      %v1450 = vadd.f32 %v1397, %v1434
      %v1451 = vadd.f32 %v1398, %v1435
      %v1452 = vadd.f32 %v1399, %v1436
      %v1453 = vadd.f32 %v1400, %v1437
      %v1454 = vadd.f32 %v1401, %v1438
      %v1455 = vadd.f32 %v1402, %v1439
      %v1456 = vadd.f32 %v1403, %v1440
      %v1457 = vld [vmem:[%s3 + $0x2] sm:$0x1]
      %v1458 = vld [vmem:[%s1351 + $0x3] sm:$0xff]
      %v1459 = vld [vmem:[%s1351 + $0xb] sm:$0xff]
      %v1460 = vld [vmem:[%s1351 + $0x1b] sm:$0xff]
      %v1461 = vld [vmem:[%s1351 + $0x23] sm:$0xff]
      %v1462 = vld [vmem:[%s1351 + $0x33] sm:$0xff]
      %v1463 = vld [vmem:[%s1351 + $0x3b] sm:$0xff]
      %v1464 = vld [vmem:[%s1351 + $0x4b] sm:$0xff]
      %v1465 = vld [vmem:[%s1351 + $0x53] sm:$0xff]
      %v1466 = vld [vmem:[%s1351 + $0x63] sm:$0xff]
      %v1467 = vld [vmem:[%s1351 + $0x6b] sm:$0xff]
      %v1468 = vld [vmem:[%s1351 + $0x7b] sm:$0xff]
      %v1469 = vld [vmem:[%s1351 + $0x83] sm:$0xff]
      %v1470 = vld [vmem:[%s1351 + $0x93] sm:$0xff]
      %v1471 = vld [vmem:[%s1351 + $0x9b] sm:$0xff]
      %v1472 = vld [vmem:[%s1351 + $0xab] sm:$0xff]
      %v1473 = vld [vmem:[%s1351 + $0xb3] sm:$0xff]
      %v1474 = vlaneseq
      %v1475 = vshrl.u32 %v1474, 7
      %v1476 = vsub.s32 0, %v1475
      %v1477 = vrot.slane %v1457, %v1476
      %v1478 = vmul.f32 %v1458, %v1477
      %v1479 = vmul.f32 %v1459, %v1477
      %v1480 = vmul.f32 %v1460, %v1477
      %v1481 = vmul.f32 %v1461, %v1477
      %v1482 = vmul.f32 %v1462, %v1477
      %v1483 = vmul.f32 %v1463, %v1477
      %v1484 = vmul.f32 %v1464, %v1477
      %v1485 = vmul.f32 %v1465, %v1477
      %v1486 = vmul.f32 %v1466, %v1477
      %v1487 = vmul.f32 %v1467, %v1477
      %v1488 = vmul.f32 %v1468, %v1477
      %v1489 = vmul.f32 %v1469, %v1477
      %v1490 = vmul.f32 %v1470, %v1477
      %v1491 = vmul.f32 %v1471, %v1477
      %v1492 = vmul.f32 %v1472, %v1477
      %v1493 = vmul.f32 %v1473, %v1477
      %v1494 = vadd.f32 %v1441, %v1478
      %v1495 = vadd.f32 %v1442, %v1479
      %v1496 = vadd.f32 %v1443, %v1480
      %v1497 = vadd.f32 %v1444, %v1481
      %v1498 = vadd.f32 %v1445, %v1482
      %v1499 = vadd.f32 %v1446, %v1483
      %v1500 = vadd.f32 %v1447, %v1484
      %v1501 = vadd.f32 %v1448, %v1485
      %v1502 = vadd.f32 %v1449, %v1486
      %v1503 = vadd.f32 %v1450, %v1487
      %v1504 = vadd.f32 %v1451, %v1488
      %v1505 = vadd.f32 %v1452, %v1489
      %v1506 = vadd.f32 %v1453, %v1490
      %v1507 = vadd.f32 %v1454, %v1491
      %v1508 = vadd.f32 %v1455, %v1492
      %v1509 = vadd.f32 %v1456, %v1493
      %s1510 = scalar_lea.vmem %s3, 4
      %v1511 = vld [vmem:[%s1510] sm:$0x1]
      %v1512 = vld [vmem:[%s1317 + $0x1] sm:$0xff]
      %v1513 = vld [vmem:[%s1317 + $0x9] sm:$0xff]
      %v1514 = vld [vmem:[%s1317 + $0x19] sm:$0xff]
      %v1515 = vld [vmem:[%s1317 + $0x21] sm:$0xff]
      %v1516 = vld [vmem:[%s1317 + $0x31] sm:$0xff]
      %v1517 = vld [vmem:[%s1317 + $0x39] sm:$0xff]
      %v1518 = vld [vmem:[%s1317 + $0x49] sm:$0xff]
      %v1519 = vld [vmem:[%s1317 + $0x51] sm:$0xff]
      %v1520 = vld [vmem:[%s1317 + $0x61] sm:$0xff]
      %v1521 = vld [vmem:[%s1317 + $0x69] sm:$0xff]
      %v1522 = vld [vmem:[%s1317 + $0x79] sm:$0xff]
      %v1523 = vld [vmem:[%s1317 + $0x81] sm:$0xff]
      %v1524 = vld [vmem:[%s1317 + $0x91] sm:$0xff]
      %v1525 = vld [vmem:[%s1317 + $0x99] sm:$0xff]
      %v1526 = vld [vmem:[%s1317 + $0xa9] sm:$0xff]
      %v1527 = vld [vmem:[%s1317 + $0xb1] sm:$0xff]
      %v1528 = vlaneseq
      %v1529 = vshrl.u32 %v1528, 7
      %v1530 = vsub.s32 0, %v1529
      %v1531 = vrot.slane %v1511, %v1530
      %v1532 = vmul.f32 %v1512, %v1531
      %v1533 = vmul.f32 %v1513, %v1531
      %v1534 = vmul.f32 %v1514, %v1531
      %v1535 = vmul.f32 %v1515, %v1531
      %v1536 = vmul.f32 %v1516, %v1531
      %v1537 = vmul.f32 %v1517, %v1531
      %v1538 = vmul.f32 %v1518, %v1531
      %v1539 = vmul.f32 %v1519, %v1531
      %v1540 = vmul.f32 %v1520, %v1531
      %v1541 = vmul.f32 %v1521, %v1531
      %v1542 = vmul.f32 %v1522, %v1531
      %v1543 = vmul.f32 %v1523, %v1531
      %v1544 = vmul.f32 %v1524, %v1531
      %v1545 = vmul.f32 %v1525, %v1531
      %v1546 = vmul.f32 %v1526, %v1531
      %v1547 = vmul.f32 %v1527, %v1531
      %v1548 = vadd.f32 %v1494, %v1532
      %v1549 = vadd.f32 %v1495, %v1533
      %v1550 = vadd.f32 %v1496, %v1534
      %v1551 = vadd.f32 %v1497, %v1535
      %v1552 = vadd.f32 %v1498, %v1536
      %v1553 = vadd.f32 %v1499, %v1537
      %v1554 = vadd.f32 %v1500, %v1538
      %v1555 = vadd.f32 %v1501, %v1539
      %v1556 = vadd.f32 %v1502, %v1540
      %v1557 = vadd.f32 %v1503, %v1541
      %v1558 = vadd.f32 %v1504, %v1542
      %v1559 = vadd.f32 %v1505, %v1543
      %v1560 = vadd.f32 %v1506, %v1544
      %v1561 = vadd.f32 %v1507, %v1545
      %v1562 = vadd.f32 %v1508, %v1546
      %v1563 = vadd.f32 %v1509, %v1547
      %v1564 = vld [vmem:[%s1510 + $0x1] sm:$0x1]
      %v1565 = vld [vmem:[%s1317 + $0x2] sm:$0xff]
      %v1566 = vld [vmem:[%s1317 + $0xa] sm:$0xff]
      %v1567 = vld [vmem:[%s1317 + $0x1a] sm:$0xff]
      %v1568 = vld [vmem:[%s1317 + $0x22] sm:$0xff]
      %v1569 = vld [vmem:[%s1317 + $0x32] sm:$0xff]
      %v1570 = vld [vmem:[%s1317 + $0x3a] sm:$0xff]
      %v1571 = vld [vmem:[%s1317 + $0x4a] sm:$0xff]
      %v1572 = vld [vmem:[%s1317 + $0x52] sm:$0xff]
      %v1573 = vld [vmem:[%s1317 + $0x62] sm:$0xff]
      %v1574 = vld [vmem:[%s1317 + $0x6a] sm:$0xff]
      %v1575 = vld [vmem:[%s1317 + $0x7a] sm:$0xff]
      %v1576 = vld [vmem:[%s1317 + $0x82] sm:$0xff]
      %v1577 = vld [vmem:[%s1317 + $0x92] sm:$0xff]
      %v1578 = vld [vmem:[%s1317 + $0x9a] sm:$0xff]
      %v1579 = vld [vmem:[%s1317 + $0xaa] sm:$0xff]
      %v1580 = vld [vmem:[%s1317 + $0xb2] sm:$0xff]
      %v1581 = vlaneseq
      %v1582 = vshrl.u32 %v1581, 7
      %v1583 = vsub.s32 0, %v1582
      %v1584 = vrot.slane %v1564, %v1583
      %v1585 = vmul.f32 %v1565, %v1584
      %v1586 = vmul.f32 %v1566, %v1584
      %v1587 = vmul.f32 %v1567, %v1584
      %v1588 = vmul.f32 %v1568, %v1584
      %v1589 = vmul.f32 %v1569, %v1584
      %v1590 = vmul.f32 %v1570, %v1584
      %v1591 = vmul.f32 %v1571, %v1584
      %v1592 = vmul.f32 %v1572, %v1584
      %v1593 = vmul.f32 %v1573, %v1584
      %v1594 = vmul.f32 %v1574, %v1584
      %v1595 = vmul.f32 %v1575, %v1584
      %v1596 = vmul.f32 %v1576, %v1584
      %v1597 = vmul.f32 %v1577, %v1584
      %v1598 = vmul.f32 %v1578, %v1584
      %v1599 = vmul.f32 %v1579, %v1584
      %v1600 = vmul.f32 %v1580, %v1584
      %v1601 = vadd.f32 %v1548, %v1585
      %v1602 = vadd.f32 %v1549, %v1586
      %v1603 = vadd.f32 %v1550, %v1587
      %v1604 = vadd.f32 %v1551, %v1588
      %v1605 = vadd.f32 %v1552, %v1589
      %v1606 = vadd.f32 %v1553, %v1590
      %v1607 = vadd.f32 %v1554, %v1591
      %v1608 = vadd.f32 %v1555, %v1592
      %v1609 = vadd.f32 %v1556, %v1593
      %v1610 = vadd.f32 %v1557, %v1594
      %v1611 = vadd.f32 %v1558, %v1595
      %v1612 = vadd.f32 %v1559, %v1596
      %v1613 = vadd.f32 %v1560, %v1597
      %v1614 = vadd.f32 %v1561, %v1598
      %v1615 = vadd.f32 %v1562, %v1599
      %v1616 = vadd.f32 %v1563, %v1600
      %v1617 = vld [vmem:[%s1510 + $0x2] sm:$0x1]
      %v1618 = vld [vmem:[%s1317 + $0x3] sm:$0xff]
      %v1619 = vld [vmem:[%s1317 + $0xb] sm:$0xff]
      %v1620 = vld [vmem:[%s1317 + $0x1b] sm:$0xff]
      %v1621 = vld [vmem:[%s1317 + $0x23] sm:$0xff]
      %v1622 = vld [vmem:[%s1317 + $0x33] sm:$0xff]
      %v1623 = vld [vmem:[%s1317 + $0x3b] sm:$0xff]
      %v1624 = vld [vmem:[%s1317 + $0x4b] sm:$0xff]
      %v1625 = vld [vmem:[%s1317 + $0x53] sm:$0xff]
      %v1626 = vld [vmem:[%s1317 + $0x63] sm:$0xff]
      %v1627 = vld [vmem:[%s1317 + $0x6b] sm:$0xff]
      %v1628 = vld [vmem:[%s1317 + $0x7b] sm:$0xff]
      %v1629 = vld [vmem:[%s1317 + $0x83] sm:$0xff]
      %v1630 = vld [vmem:[%s1317 + $0x93] sm:$0xff]
      %v1631 = vld [vmem:[%s1317 + $0x9b] sm:$0xff]
      %v1632 = vld [vmem:[%s1317 + $0xab] sm:$0xff]
      %v1633 = vld [vmem:[%s1317 + $0xb3] sm:$0xff]
      %v1634 = vlaneseq
      %v1635 = vshrl.u32 %v1634, 7
      %v1636 = vsub.s32 0, %v1635
      %v1637 = vrot.slane %v1617, %v1636
      %v1638 = vmul.f32 %v1618, %v1637
      %v1639 = vmul.f32 %v1619, %v1637
      %v1640 = vmul.f32 %v1620, %v1637
      %v1641 = vmul.f32 %v1621, %v1637
      %v1642 = vmul.f32 %v1622, %v1637
      %v1643 = vmul.f32 %v1623, %v1637
      %v1644 = vmul.f32 %v1624, %v1637
      %v1645 = vmul.f32 %v1625, %v1637
      %v1646 = vmul.f32 %v1626, %v1637
      %v1647 = vmul.f32 %v1627, %v1637
      %v1648 = vmul.f32 %v1628, %v1637
      %v1649 = vmul.f32 %v1629, %v1637
      %v1650 = vmul.f32 %v1630, %v1637
      %v1651 = vmul.f32 %v1631, %v1637
      %v1652 = vmul.f32 %v1632, %v1637
      %v1653 = vmul.f32 %v1633, %v1637
      %v1654 = vadd.f32 %v1601, %v1638
      %v1655 = vadd.f32 %v1602, %v1639
      %v1656 = vadd.f32 %v1603, %v1640
      %v1657 = vadd.f32 %v1604, %v1641
      %v1658 = vadd.f32 %v1605, %v1642
      %v1659 = vadd.f32 %v1606, %v1643
      %v1660 = vadd.f32 %v1607, %v1644
      %v1661 = vadd.f32 %v1608, %v1645
      %v1662 = vadd.f32 %v1609, %v1646
      %v1663 = vadd.f32 %v1610, %v1647
      %v1664 = vadd.f32 %v1611, %v1648
      %v1665 = vadd.f32 %v1612, %v1649
      %v1666 = vadd.f32 %v1613, %v1650
      %v1667 = vadd.f32 %v1614, %v1651
      %v1668 = vadd.f32 %v1615, %v1652
      %v1669 = vadd.f32 %v1616, %v1653
      %s1670 = scalar_lea.vmem %s3, 8
      %v1671 = vld [vmem:[%s1670] sm:$0x1]
      %s1672 = scalar_lea.vmem [#allocation2], 72
      %v1673 = vld [vmem:[%s1672 + $0x1] sm:$0xff]
      %v1674 = vld [vmem:[%s1672 + $0x9] sm:$0xff]
      %v1675 = vld [vmem:[%s1672 + $0x19] sm:$0xff]
      %v1676 = vld [vmem:[%s1672 + $0x21] sm:$0xff]
      %v1677 = vld [vmem:[%s1672 + $0x31] sm:$0xff]
      %v1678 = vld [vmem:[%s1672 + $0x39] sm:$0xff]
      %v1679 = vld [vmem:[%s1672 + $0x49] sm:$0xff]
      %v1680 = vld [vmem:[%s1672 + $0x51] sm:$0xff]
      %v1681 = vld [vmem:[%s1672 + $0x61] sm:$0xff]
      %v1682 = vld [vmem:[%s1672 + $0x69] sm:$0xff]
      %v1683 = vld [vmem:[%s1672 + $0x79] sm:$0xff]
      %v1684 = vld [vmem:[%s1672 + $0x81] sm:$0xff]
      %v1685 = vld [vmem:[%s1672 + $0x91] sm:$0xff]
      %v1686 = vld [vmem:[%s1672 + $0x99] sm:$0xff]
      %v1687 = vld [vmem:[%s1672 + $0xa9] sm:$0xff]
      %v1688 = vld [vmem:[%s1672 + $0xb1] sm:$0xff]
      %v1689 = vlaneseq
      %v1690 = vshrl.u32 %v1689, 7
      %v1691 = vsub.s32 0, %v1690
      %v1692 = vrot.slane %v1671, %v1691
      %v1693 = vmul.f32 %v1673, %v1692
      %v1694 = vmul.f32 %v1674, %v1692
      %v1695 = vmul.f32 %v1675, %v1692
      %v1696 = vmul.f32 %v1676, %v1692
      %v1697 = vmul.f32 %v1677, %v1692
      %v1698 = vmul.f32 %v1678, %v1692
      %v1699 = vmul.f32 %v1679, %v1692
      %v1700 = vmul.f32 %v1680, %v1692
      %v1701 = vmul.f32 %v1681, %v1692
      %v1702 = vmul.f32 %v1682, %v1692
      %v1703 = vmul.f32 %v1683, %v1692
      %v1704 = vmul.f32 %v1684, %v1692
      %v1705 = vmul.f32 %v1685, %v1692
      %v1706 = vmul.f32 %v1686, %v1692
      %v1707 = vmul.f32 %v1687, %v1692
      %v1708 = vmul.f32 %v1688, %v1692
      %v1709 = vadd.f32 %v1654, %v1693
      %v1710 = vadd.f32 %v1655, %v1694
      %v1711 = vadd.f32 %v1656, %v1695
      %v1712 = vadd.f32 %v1657, %v1696
      %v1713 = vadd.f32 %v1658, %v1697
      %v1714 = vadd.f32 %v1659, %v1698
      %v1715 = vadd.f32 %v1660, %v1699
      %v1716 = vadd.f32 %v1661, %v1700
      %v1717 = vadd.f32 %v1662, %v1701
      %v1718 = vadd.f32 %v1663, %v1702
      %v1719 = vadd.f32 %v1664, %v1703
      %v1720 = vadd.f32 %v1665, %v1704
      %v1721 = vadd.f32 %v1666, %v1705
      %v1722 = vadd.f32 %v1667, %v1706
      %v1723 = vadd.f32 %v1668, %v1707
      %v1724 = vadd.f32 %v1669, %v1708
      %v1725 = vld [vmem:[%s1670 + $0x1] sm:$0x1]
      %v1726 = vld [vmem:[%s1672 + $0x2] sm:$0xff]
      %v1727 = vld [vmem:[%s1672 + $0xa] sm:$0xff]
      %v1728 = vld [vmem:[%s1672 + $0x1a] sm:$0xff]
      %v1729 = vld [vmem:[%s1672 + $0x22] sm:$0xff]
      %v1730 = vld [vmem:[%s1672 + $0x32] sm:$0xff]
      %v1731 = vld [vmem:[%s1672 + $0x3a] sm:$0xff]
      %v1732 = vld [vmem:[%s1672 + $0x4a] sm:$0xff]
      %v1733 = vld [vmem:[%s1672 + $0x52] sm:$0xff]
      %v1734 = vld [vmem:[%s1672 + $0x62] sm:$0xff]
      %v1735 = vld [vmem:[%s1672 + $0x6a] sm:$0xff]
      %v1736 = vld [vmem:[%s1672 + $0x7a] sm:$0xff]
      %v1737 = vld [vmem:[%s1672 + $0x82] sm:$0xff]
      %v1738 = vld [vmem:[%s1672 + $0x92] sm:$0xff]
      %v1739 = vld [vmem:[%s1672 + $0x9a] sm:$0xff]
      %v1740 = vld [vmem:[%s1672 + $0xaa] sm:$0xff]
      %v1741 = vld [vmem:[%s1672 + $0xb2] sm:$0xff]
      %v1742 = vlaneseq
      %v1743 = vshrl.u32 %v1742, 7
      %v1744 = vsub.s32 0, %v1743
      %v1745 = vrot.slane %v1725, %v1744
      %v1746 = vmul.f32 %v1726, %v1745
      %v1747 = vmul.f32 %v1727, %v1745
      %v1748 = vmul.f32 %v1728, %v1745
      %v1749 = vmul.f32 %v1729, %v1745
      %v1750 = vmul.f32 %v1730, %v1745
      %v1751 = vmul.f32 %v1731, %v1745
      %v1752 = vmul.f32 %v1732, %v1745
      %v1753 = vmul.f32 %v1733, %v1745
      %v1754 = vmul.f32 %v1734, %v1745
      %v1755 = vmul.f32 %v1735, %v1745
      %v1756 = vmul.f32 %v1736, %v1745
      %v1757 = vmul.f32 %v1737, %v1745
      %v1758 = vmul.f32 %v1738, %v1745
      %v1759 = vmul.f32 %v1739, %v1745
      %v1760 = vmul.f32 %v1740, %v1745
      %v1761 = vmul.f32 %v1741, %v1745
      %v1762 = vadd.f32 %v1709, %v1746
      %v1763 = vadd.f32 %v1710, %v1747
      %v1764 = vadd.f32 %v1711, %v1748
      %v1765 = vadd.f32 %v1712, %v1749
      %v1766 = vadd.f32 %v1713, %v1750
      %v1767 = vadd.f32 %v1714, %v1751
      %v1768 = vadd.f32 %v1715, %v1752
      %v1769 = vadd.f32 %v1716, %v1753
      %v1770 = vadd.f32 %v1717, %v1754
      %v1771 = vadd.f32 %v1718, %v1755
      %v1772 = vadd.f32 %v1719, %v1756
      %v1773 = vadd.f32 %v1720, %v1757
      %v1774 = vadd.f32 %v1721, %v1758
      %v1775 = vadd.f32 %v1722, %v1759
      %v1776 = vadd.f32 %v1723, %v1760
      %v1777 = vadd.f32 %v1724, %v1761
      %v1778 = vld [vmem:[%s1670 + $0x2] sm:$0x1]
      %v1779 = vld [vmem:[%s1672 + $0x3] sm:$0xff]
      %v1780 = vld [vmem:[%s1672 + $0xb] sm:$0xff]
      %v1781 = vld [vmem:[%s1672 + $0x1b] sm:$0xff]
      %v1782 = vld [vmem:[%s1672 + $0x23] sm:$0xff]
      %v1783 = vld [vmem:[%s1672 + $0x33] sm:$0xff]
      %v1784 = vld [vmem:[%s1672 + $0x3b] sm:$0xff]
      %v1785 = vld [vmem:[%s1672 + $0x4b] sm:$0xff]
      %v1786 = vld [vmem:[%s1672 + $0x53] sm:$0xff]
      %v1787 = vld [vmem:[%s1672 + $0x63] sm:$0xff]
      %v1788 = vld [vmem:[%s1672 + $0x6b] sm:$0xff]
      %v1789 = vld [vmem:[%s1672 + $0x7b] sm:$0xff]
      %v1790 = vld [vmem:[%s1672 + $0x83] sm:$0xff]
      %v1791 = vld [vmem:[%s1672 + $0x93] sm:$0xff]
      %v1792 = vld [vmem:[%s1672 + $0x9b] sm:$0xff]
      %v1793 = vld [vmem:[%s1672 + $0xab] sm:$0xff]
      %v1794 = vld [vmem:[%s1672 + $0xb3] sm:$0xff]
      %v1795 = vlaneseq
      %v1796 = vshrl.u32 %v1795, 7
      %v1797 = vsub.s32 0, %v1796
      %v1798 = vrot.slane %v1778, %v1797
      %v1799 = vmul.f32 %v1779, %v1798
      %v1800 = vmul.f32 %v1780, %v1798
      %v1801 = vmul.f32 %v1781, %v1798
      %v1802 = vmul.f32 %v1782, %v1798
      %v1803 = vmul.f32 %v1783, %v1798
      %v1804 = vmul.f32 %v1784, %v1798
      %v1805 = vmul.f32 %v1785, %v1798
      %v1806 = vmul.f32 %v1786, %v1798
      %v1807 = vmul.f32 %v1787, %v1798
      %v1808 = vmul.f32 %v1788, %v1798
      %v1809 = vmul.f32 %v1789, %v1798
      %v1810 = vmul.f32 %v1790, %v1798
      %v1811 = vmul.f32 %v1791, %v1798
      %v1812 = vmul.f32 %v1792, %v1798
      %v1813 = vmul.f32 %v1793, %v1798
      %v1814 = vmul.f32 %v1794, %v1798
      %v1815 = vadd.f32 %v1762, %v1799
      %v1816 = vadd.f32 %v1763, %v1800
      %v1817 = vadd.f32 %v1764, %v1801
      %v1818 = vadd.f32 %v1765, %v1802
      %v1819 = vadd.f32 %v1766, %v1803
      %v1820 = vadd.f32 %v1767, %v1804
      %v1821 = vadd.f32 %v1768, %v1805
      %v1822 = vadd.f32 %v1769, %v1806
      %v1823 = vadd.f32 %v1770, %v1807
      %v1824 = vadd.f32 %v1771, %v1808
      %v1825 = vadd.f32 %v1772, %v1809
      %v1826 = vadd.f32 %v1773, %v1810
      %v1827 = vadd.f32 %v1774, %v1811
      %v1828 = vadd.f32 %v1775, %v1812
      %v1829 = vadd.f32 %v1776, %v1813
      %v1830 = vadd.f32 %v1777, %v1814
      %v1831 = vmul.f32 %v1815, 0.5
      %v1832 = vmul.f32 %v1816, 0.5
      %v1833 = vmul.f32 %v1817, 0.5
      %v1834 = vmul.f32 %v1818, 0.5
      %v1835 = vmul.f32 %v1819, 0.5
      %v1836 = vmul.f32 %v1820, 0.5
      %v1837 = vmul.f32 %v1821, 0.5
      %v1838 = vmul.f32 %v1822, 0.5
      %v1839 = vmul.f32 %v1823, 0.5
      %v1840 = vmul.f32 %v1824, 0.5
      %v1841 = vmul.f32 %v1825, 0.5
      %v1842 = vmul.f32 %v1826, 0.5
      %v1843 = vmul.f32 %v1827, 0.5
      %v1844 = vmul.f32 %v1828, 0.5
      %v1845 = vmul.f32 %v1829, 0.5
      %v1846 = vmul.f32 %v1830, 0.5
      %v1847 = vmul.f32 %v1815, 0.044715
      %v1848 = vmul.f32 %v1816, 0.044715
      %v1849 = vmul.f32 %v1817, 0.044715
      %v1850 = vmul.f32 %v1818, 0.044715
      %v1851 = vmul.f32 %v1819, 0.044715
      %v1852 = vmul.f32 %v1820, 0.044715
      %v1853 = vmul.f32 %v1821, 0.044715
      %v1854 = vmul.f32 %v1822, 0.044715
      %v1855 = vmul.f32 %v1823, 0.044715
      %v1856 = vmul.f32 %v1824, 0.044715
      %v1857 = vmul.f32 %v1825, 0.044715
      %v1858 = vmul.f32 %v1826, 0.044715
      %v1859 = vmul.f32 %v1827, 0.044715
      %v1860 = vmul.f32 %v1828, 0.044715
      %v1861 = vmul.f32 %v1829, 0.044715
      %v1862 = vmul.f32 %v1830, 0.044715
      %v1863 = vmul.f32 %v1847, %v1815
      %v1864 = vmul.f32 %v1848, %v1816
      %v1865 = vmul.f32 %v1849, %v1817
      %v1866 = vmul.f32 %v1850, %v1818
      %v1867 = vmul.f32 %v1851, %v1819
      %v1868 = vmul.f32 %v1852, %v1820
      %v1869 = vmul.f32 %v1853, %v1821
      %v1870 = vmul.f32 %v1854, %v1822
      %v1871 = vmul.f32 %v1855, %v1823
      %v1872 = vmul.f32 %v1856, %v1824
      %v1873 = vmul.f32 %v1857, %v1825
      %v1874 = vmul.f32 %v1858, %v1826
      %v1875 = vmul.f32 %v1859, %v1827
      %v1876 = vmul.f32 %v1860, %v1828
      %v1877 = vmul.f32 %v1861, %v1829
      %v1878 = vmul.f32 %v1862, %v1830
      %v1879 = vmul.f32 %v1863, %v1815
      %v1880 = vmul.f32 %v1864, %v1816
      %v1881 = vmul.f32 %v1865, %v1817
      %v1882 = vmul.f32 %v1866, %v1818
      %v1883 = vmul.f32 %v1867, %v1819
      %v1884 = vmul.f32 %v1868, %v1820
      %v1885 = vmul.f32 %v1869, %v1821
      %v1886 = vmul.f32 %v1870, %v1822
      %v1887 = vmul.f32 %v1871, %v1823
      %v1888 = vmul.f32 %v1872, %v1824
      %v1889 = vmul.f32 %v1873, %v1825
      %v1890 = vmul.f32 %v1874, %v1826
      %v1891 = vmul.f32 %v1875, %v1827
      %v1892 = vmul.f32 %v1876, %v1828
      %v1893 = vmul.f32 %v1877, %v1829
      %v1894 = vmul.f32 %v1878, %v1830
      %v1895 = vadd.f32 %v1815, %v1879
      %v1896 = vadd.f32 %v1816, %v1880
      %v1897 = vadd.f32 %v1817, %v1881
      %v1898 = vadd.f32 %v1818, %v1882
      %v1899 = vadd.f32 %v1819, %v1883
      %v1900 = vadd.f32 %v1820, %v1884
      %v1901 = vadd.f32 %v1821, %v1885
      %v1902 = vadd.f32 %v1822, %v1886
      %v1903 = vadd.f32 %v1823, %v1887
      %v1904 = vadd.f32 %v1824, %v1888
      %v1905 = vadd.f32 %v1825, %v1889
      %v1906 = vadd.f32 %v1826, %v1890
      %v1907 = vadd.f32 %v1827, %v1891
      %v1908 = vadd.f32 %v1828, %v1892
      %v1909 = vadd.f32 %v1829, %v1893
      %v1910 = vadd.f32 %v1830, %v1894
      %v1911 = vmul.f32 %v1895, 0.7978846
      %v1912 = vmul.f32 %v1896, 0.7978846
      %v1913 = vmul.f32 %v1897, 0.7978846
      %v1914 = vmul.f32 %v1898, 0.7978846
      %v1915 = vmul.f32 %v1899, 0.7978846
      %v1916 = vmul.f32 %v1900, 0.7978846
      %v1917 = vmul.f32 %v1901, 0.7978846
      %v1918 = vmul.f32 %v1902, 0.7978846
      %v1919 = vmul.f32 %v1903, 0.7978846
      %v1920 = vmul.f32 %v1904, 0.7978846
      %v1921 = vmul.f32 %v1905, 0.7978846
      %v1922 = vmul.f32 %v1906, 0.7978846
      %v1923 = vmul.f32 %v1907, 0.7978846
      %v1924 = vmul.f32 %v1908, 0.7978846
      %v1925 = vmul.f32 %v1909, 0.7978846
      %v1926 = vmul.f32 %v1910, 0.7978846
      %v1927 = vtanh.pop %v1911
      %v1928 = vtanh.pop %v1912
      %v1929 = vtanh.pop %v1913
      %v1930 = vtanh.pop %v1914
      %v1931 = vtanh.pop %v1915
      %v1932 = vtanh.pop %v1916
      %v1933 = vtanh.pop %v1917
      %v1934 = vtanh.pop %v1918
      %v1935 = vtanh.pop %v1919
      %v1936 = vtanh.pop %v1920
      %v1937 = vtanh.pop %v1921
      %v1938 = vtanh.pop %v1922
      %v1939 = vtanh.pop %v1923
      %v1940 = vtanh.pop %v1924
      %v1941 = vtanh.pop %v1925
      %v1942 = vtanh.pop %v1926
      %v1943 = vadd.f32 %v1927, 1.0
      %v1944 = vadd.f32 %v1928, 1.0
      %v1945 = vadd.f32 %v1929, 1.0
      %v1946 = vadd.f32 %v1930, 1.0
      %v1947 = vadd.f32 %v1931, 1.0
      %v1948 = vadd.f32 %v1932, 1.0
      %v1949 = vadd.f32 %v1933, 1.0
      %v1950 = vadd.f32 %v1934, 1.0
      %v1951 = vadd.f32 %v1935, 1.0
      %v1952 = vadd.f32 %v1936, 1.0
      %v1953 = vadd.f32 %v1937, 1.0
      %v1954 = vadd.f32 %v1938, 1.0
      %v1955 = vadd.f32 %v1939, 1.0
      %v1956 = vadd.f32 %v1940, 1.0
      %v1957 = vadd.f32 %v1941, 1.0
      %v1958 = vadd.f32 %v1942, 1.0
      %v1959 = vmul.f32 %v1831, %v1943
      %v1960 = vmul.f32 %v1832, %v1944
      %v1961 = vmul.f32 %v1833, %v1945
      %v1962 = vmul.f32 %v1834, %v1946
      %v1963 = vmul.f32 %v1835, %v1947
      %v1964 = vmul.f32 %v1836, %v1948
      %v1965 = vmul.f32 %v1837, %v1949
      %v1966 = vmul.f32 %v1838, %v1950
      %v1967 = vmul.f32 %v1839, %v1951
      %v1968 = vmul.f32 %v1840, %v1952
      %v1969 = vmul.f32 %v1841, %v1953
      %v1970 = vmul.f32 %v1842, %v1954
      %v1971 = vmul.f32 %v1843, %v1955
      %v1972 = vmul.f32 %v1844, %v1956
      %v1973 = vmul.f32 %v1845, %v1957
      %v1974 = vmul.f32 %v1846, %v1958
      %s1975 = scalar_lea.vmem [#allocation3], 48
      %1976 = vst [vmem:[%s1975 + $0x2] sm:$0xff] %v1959
      %1977 = vst [vmem:[%s1975 + $0xa] sm:$0xff] %v1960
      %1978 = vst [vmem:[%s1975 + $0x1a] sm:$0xff] %v1961
      %1979 = vst [vmem:[%s1975 + $0x22] sm:$0xff] %v1962
      %1980 = vst [vmem:[%s1975 + $0x32] sm:$0xff] %v1963
      %1981 = vst [vmem:[%s1975 + $0x3a] sm:$0xff] %v1964
      %1982 = vst [vmem:[%s1975 + $0x4a] sm:$0xff] %v1965
      %1983 = vst [vmem:[%s1975 + $0x52] sm:$0xff] %v1966
      %1984 = vst [vmem:[%s1975 + $0x62] sm:$0xff] %v1967
      %1985 = vst [vmem:[%s1975 + $0x6a] sm:$0xff] %v1968
      %1986 = vst [vmem:[%s1975 + $0x7a] sm:$0xff] %v1969
      %1987 = vst [vmem:[%s1975 + $0x82] sm:$0xff] %v1970
      %1988 = vst [vmem:[%s1975 + $0x92] sm:$0xff] %v1971
      %1989 = vst [vmem:[%s1975 + $0x9a] sm:$0xff] %v1972
      %1990 = vst [vmem:[%s1975 + $0xaa] sm:$0xff] %v1973
      %1991 = vst [vmem:[%s1975 + $0xb2] sm:$0xff] %v1974
      %v1992 = vmul.f32 %v1959, %v796
      %v1993 = vmul.f32 %v1960, %v802
      %v1994 = vmul.f32 %v1961, %v808
      %v1995 = vmul.f32 %v1962, %v814
      %v1996 = vmul.f32 %v1963, %v820
      %v1997 = vmul.f32 %v1964, %v826
      %v1998 = vmul.f32 %v1965, %v832
      %v1999 = vmul.f32 %v1966, %v838
      %v2000 = vmul.f32 %v1967, %v844
      %v2001 = vmul.f32 %v1968, %v850
      %v2002 = vmul.f32 %v1969, %v856
      %v2003 = vmul.f32 %v1970, %v862
      %v2004 = vmul.f32 %v1971, %v868
      %v2005 = vmul.f32 %v1972, %v874
      %v2006 = vmul.f32 %v1973, %v880
      %v2007 = vmul.f32 %v1974, %v886
      %2008 = vst [vmem:[#allocation4] sm:$0xff] %v1992
      %2009 = vst [vmem:[#allocation4 + $0x8] sm:$0xff] %v1993
      %2010 = vst [vmem:[#allocation4 + $0x10] sm:$0xff] %v1994
      %2011 = vst [vmem:[#allocation4 + $0x18] sm:$0xff] %v1995
      %2012 = vst [vmem:[#allocation4 + $0x20] sm:$0xff] %v1996
      %2013 = vst [vmem:[#allocation4 + $0x28] sm:$0xff] %v1997
      %2014 = vst [vmem:[#allocation4 + $0x30] sm:$0xff] %v1998
      %2015 = vst [vmem:[#allocation4 + $0x38] sm:$0xff] %v1999
      %2016 = vst [vmem:[#allocation4 + $0x40] sm:$0xff] %v2000
      %2017 = vst [vmem:[#allocation4 + $0x48] sm:$0xff] %v2001
      %2018 = vst [vmem:[#allocation4 + $0x50] sm:$0xff] %v2002
      %2019 = vst [vmem:[#allocation4 + $0x58] sm:$0xff] %v2003
      %2020 = vst [vmem:[#allocation4 + $0x60] sm:$0xff] %v2004
      %2021 = vst [vmem:[#allocation4 + $0x68] sm:$0xff] %v2005
      %2022 = vst [vmem:[#allocation4 + $0x70] sm:$0xff] %v2006
      %2023 = vst [vmem:[#allocation4 + $0x78] sm:$0xff] %v2007
      %v2024 = vld [vmem:[%s3] sm:$0x1]
      %s2025 = scalar_lea.vmem [#allocation2], 216
      %v2026 = vld [vmem:[%s2025 + $0x1] sm:$0xff]
      %v2027 = vld [vmem:[%s2025 + $0x9] sm:$0xff]
      %v2028 = vld [vmem:[%s2025 + $0x19] sm:$0xff]
      %v2029 = vld [vmem:[%s2025 + $0x21] sm:$0xff]
      %v2030 = vld [vmem:[%s2025 + $0x31] sm:$0xff]
      %v2031 = vld [vmem:[%s2025 + $0x39] sm:$0xff]
      %v2032 = vld [vmem:[%s2025 + $0x49] sm:$0xff]
      %v2033 = vld [vmem:[%s2025 + $0x51] sm:$0xff]
      %v2034 = vld [vmem:[%s2025 + $0x61] sm:$0xff]
      %v2035 = vld [vmem:[%s2025 + $0x69] sm:$0xff]
      %v2036 = vld [vmem:[%s2025 + $0x79] sm:$0xff]
      %v2037 = vld [vmem:[%s2025 + $0x81] sm:$0xff]
      %v2038 = vld [vmem:[%s2025 + $0x91] sm:$0xff]
      %v2039 = vld [vmem:[%s2025 + $0x99] sm:$0xff]
      %v2040 = vld [vmem:[%s2025 + $0xa9] sm:$0xff]
      %v2041 = vld [vmem:[%s2025 + $0xb1] sm:$0xff]
      %v2042 = vlaneseq
      %v2043 = vshrl.u32 %v2042, 7
      %v2044 = vsub.s32 0, %v2043
      %v2045 = vrot.slane %v2024, %v2044
      %v2046 = vmul.f32 %v2026, %v2045
      %v2047 = vmul.f32 %v2027, %v2045
      %v2048 = vmul.f32 %v2028, %v2045
      %v2049 = vmul.f32 %v2029, %v2045
      %v2050 = vmul.f32 %v2030, %v2045
      %v2051 = vmul.f32 %v2031, %v2045
      %v2052 = vmul.f32 %v2032, %v2045
      %v2053 = vmul.f32 %v2033, %v2045
      %v2054 = vmul.f32 %v2034, %v2045
      %v2055 = vmul.f32 %v2035, %v2045
      %v2056 = vmul.f32 %v2036, %v2045
      %v2057 = vmul.f32 %v2037, %v2045
      %v2058 = vmul.f32 %v2038, %v2045
      %v2059 = vmul.f32 %v2039, %v2045
      %v2060 = vmul.f32 %v2040, %v2045
      %v2061 = vmul.f32 %v2041, %v2045
      %v2062 = vadd.f32 %v2046, 0.0
      %v2063 = vadd.f32 %v2047, 0.0
      %v2064 = vadd.f32 %v2048, 0.0
      %v2065 = vadd.f32 %v2049, 0.0
      %v2066 = vadd.f32 %v2050, 0.0
      %v2067 = vadd.f32 %v2051, 0.0
      %v2068 = vadd.f32 %v2052, 0.0
      %v2069 = vadd.f32 %v2053, 0.0
      %v2070 = vadd.f32 %v2054, 0.0
      %v2071 = vadd.f32 %v2055, 0.0
      %v2072 = vadd.f32 %v2056, 0.0
      %v2073 = vadd.f32 %v2057, 0.0
      %v2074 = vadd.f32 %v2058, 0.0
      %v2075 = vadd.f32 %v2059, 0.0
      %v2076 = vadd.f32 %v2060, 0.0
      %v2077 = vadd.f32 %v2061, 0.0
      %v2078 = vld [vmem:[%s3 + $0x1] sm:$0x1]
      %v2079 = vld [vmem:[%s2025 + $0x2] sm:$0xff]
      %v2080 = vld [vmem:[%s2025 + $0xa] sm:$0xff]
      %v2081 = vld [vmem:[%s2025 + $0x1a] sm:$0xff]
      %v2082 = vld [vmem:[%s2025 + $0x22] sm:$0xff]
      %v2083 = vld [vmem:[%s2025 + $0x32] sm:$0xff]
      %v2084 = vld [vmem:[%s2025 + $0x3a] sm:$0xff]
      %v2085 = vld [vmem:[%s2025 + $0x4a] sm:$0xff]
      %v2086 = vld [vmem:[%s2025 + $0x52] sm:$0xff]
      %v2087 = vld [vmem:[%s2025 + $0x62] sm:$0xff]
      %v2088 = vld [vmem:[%s2025 + $0x6a] sm:$0xff]
      %v2089 = vld [vmem:[%s2025 + $0x7a] sm:$0xff]
      %v2090 = vld [vmem:[%s2025 + $0x82] sm:$0xff]
      %v2091 = vld [vmem:[%s2025 + $0x92] sm:$0xff]
      %v2092 = vld [vmem:[%s2025 + $0x9a] sm:$0xff]
      %v2093 = vld [vmem:[%s2025 + $0xaa] sm:$0xff]
      %v2094 = vld [vmem:[%s2025 + $0xb2] sm:$0xff]
      %v2095 = vlaneseq
      %v2096 = vshrl.u32 %v2095, 7
      %v2097 = vsub.s32 0, %v2096
      %v2098 = vrot.slane %v2078, %v2097
      %v2099 = vmul.f32 %v2079, %v2098
      %v2100 = vmul.f32 %v2080, %v2098
      %v2101 = vmul.f32 %v2081, %v2098
      %v2102 = vmul.f32 %v2082, %v2098
      %v2103 = vmul.f32 %v2083, %v2098
      %v2104 = vmul.f32 %v2084, %v2098
      %v2105 = vmul.f32 %v2085, %v2098
      %v2106 = vmul.f32 %v2086, %v2098
      %v2107 = vmul.f32 %v2087, %v2098
      %v2108 = vmul.f32 %v2088, %v2098
      %v2109 = vmul.f32 %v2089, %v2098
      %v2110 = vmul.f32 %v2090, %v2098
      %v2111 = vmul.f32 %v2091, %v2098
      %v2112 = vmul.f32 %v2092, %v2098
      %v2113 = vmul.f32 %v2093, %v2098
      %v2114 = vmul.f32 %v2094, %v2098
      %v2115 = vadd.f32 %v2062, %v2099
      %v2116 = vadd.f32 %v2063, %v2100
      %v2117 = vadd.f32 %v2064, %v2101
      %v2118 = vadd.f32 %v2065, %v2102
      %v2119 = vadd.f32 %v2066, %v2103
      %v2120 = vadd.f32 %v2067, %v2104
      %v2121 = vadd.f32 %v2068, %v2105
      %v2122 = vadd.f32 %v2069, %v2106
      %v2123 = vadd.f32 %v2070, %v2107
      %v2124 = vadd.f32 %v2071, %v2108
      %v2125 = vadd.f32 %v2072, %v2109
      %v2126 = vadd.f32 %v2073, %v2110
      %v2127 = vadd.f32 %v2074, %v2111
      %v2128 = vadd.f32 %v2075, %v2112
      %v2129 = vadd.f32 %v2076, %v2113
      %v2130 = vadd.f32 %v2077, %v2114
      %v2131 = vld [vmem:[%s3 + $0x2] sm:$0x1]
      %v2132 = vld [vmem:[%s2025 + $0x3] sm:$0xff]
      %v2133 = vld [vmem:[%s2025 + $0xb] sm:$0xff]
      %v2134 = vld [vmem:[%s2025 + $0x1b] sm:$0xff]
      %v2135 = vld [vmem:[%s2025 + $0x23] sm:$0xff]
      %v2136 = vld [vmem:[%s2025 + $0x33] sm:$0xff]
      %v2137 = vld [vmem:[%s2025 + $0x3b] sm:$0xff]
      %v2138 = vld [vmem:[%s2025 + $0x4b] sm:$0xff]
      %v2139 = vld [vmem:[%s2025 + $0x53] sm:$0xff]
      %v2140 = vld [vmem:[%s2025 + $0x63] sm:$0xff]
      %v2141 = vld [vmem:[%s2025 + $0x6b] sm:$0xff]
      %v2142 = vld [vmem:[%s2025 + $0x7b] sm:$0xff]
      %v2143 = vld [vmem:[%s2025 + $0x83] sm:$0xff]
      %v2144 = vld [vmem:[%s2025 + $0x93] sm:$0xff]
      %v2145 = vld [vmem:[%s2025 + $0x9b] sm:$0xff]
      %v2146 = vld [vmem:[%s2025 + $0xab] sm:$0xff]
      %v2147 = vld [vmem:[%s2025 + $0xb3] sm:$0xff]
      %v2148 = vlaneseq
      %v2149 = vshrl.u32 %v2148, 7
      %v2150 = vsub.s32 0, %v2149
      %v2151 = vrot.slane %v2131, %v2150
      %v2152 = vmul.f32 %v2132, %v2151
      %v2153 = vmul.f32 %v2133, %v2151
      %v2154 = vmul.f32 %v2134, %v2151
      %v2155 = vmul.f32 %v2135, %v2151
      %v2156 = vmul.f32 %v2136, %v2151
      %v2157 = vmul.f32 %v2137, %v2151
      %v2158 = vmul.f32 %v2138, %v2151
      %v2159 = vmul.f32 %v2139, %v2151
      %v2160 = vmul.f32 %v2140, %v2151
      %v2161 = vmul.f32 %v2141, %v2151
      %v2162 = vmul.f32 %v2142, %v2151
      %v2163 = vmul.f32 %v2143, %v2151
      %v2164 = vmul.f32 %v2144, %v2151
      %v2165 = vmul.f32 %v2145, %v2151
      %v2166 = vmul.f32 %v2146, %v2151
      %v2167 = vmul.f32 %v2147, %v2151
      %v2168 = vadd.f32 %v2115, %v2152
      %v2169 = vadd.f32 %v2116, %v2153
      %v2170 = vadd.f32 %v2117, %v2154
      %v2171 = vadd.f32 %v2118, %v2155
      %v2172 = vadd.f32 %v2119, %v2156
      %v2173 = vadd.f32 %v2120, %v2157
      %v2174 = vadd.f32 %v2121, %v2158
      %v2175 = vadd.f32 %v2122, %v2159
      %v2176 = vadd.f32 %v2123, %v2160
      %v2177 = vadd.f32 %v2124, %v2161
      %v2178 = vadd.f32 %v2125, %v2162
      %v2179 = vadd.f32 %v2126, %v2163
      %v2180 = vadd.f32 %v2127, %v2164
      %v2181 = vadd.f32 %v2128, %v2165
      %v2182 = vadd.f32 %v2129, %v2166
      %v2183 = vadd.f32 %v2130, %v2167
      %v2184 = vld [vmem:[%s1510] sm:$0x1]
      %s2185 = scalar_lea.vmem [#allocation2], 240
      %v2186 = vld [vmem:[%s2185 + $0x1] sm:$0xff]
      %v2187 = vld [vmem:[%s2185 + $0x9] sm:$0xff]
      %v2188 = vld [vmem:[%s2185 + $0x19] sm:$0xff]
      %v2189 = vld [vmem:[%s2185 + $0x21] sm:$0xff]
      %v2190 = vld [vmem:[%s2185 + $0x31] sm:$0xff]
      %v2191 = vld [vmem:[%s2185 + $0x39] sm:$0xff]
      %v2192 = vld [vmem:[%s2185 + $0x49] sm:$0xff]
      %v2193 = vld [vmem:[%s2185 + $0x51] sm:$0xff]
      %v2194 = vld [vmem:[%s2185 + $0x61] sm:$0xff]
      %v2195 = vld [vmem:[%s2185 + $0x69] sm:$0xff]
      %v2196 = vld [vmem:[%s2185 + $0x79] sm:$0xff]
      %v2197 = vld [vmem:[%s2185 + $0x81] sm:$0xff]
      %v2198 = vld [vmem:[%s2185 + $0x91] sm:$0xff]
      %v2199 = vld [vmem:[%s2185 + $0x99] sm:$0xff]
      %v2200 = vld [vmem:[%s2185 + $0xa9] sm:$0xff]
      %v2201 = vld [vmem:[%s2185 + $0xb1] sm:$0xff]
      %v2202 = vlaneseq
      %v2203 = vshrl.u32 %v2202, 7
      %v2204 = vsub.s32 0, %v2203
      %v2205 = vrot.slane %v2184, %v2204
      %v2206 = vmul.f32 %v2186, %v2205
      %v2207 = vmul.f32 %v2187, %v2205
      %v2208 = vmul.f32 %v2188, %v2205
      %v2209 = vmul.f32 %v2189, %v2205
      %v2210 = vmul.f32 %v2190, %v2205
      %v2211 = vmul.f32 %v2191, %v2205
      %v2212 = vmul.f32 %v2192, %v2205
      %v2213 = vmul.f32 %v2193, %v2205
      %v2214 = vmul.f32 %v2194, %v2205
      %v2215 = vmul.f32 %v2195, %v2205
      %v2216 = vmul.f32 %v2196, %v2205
      %v2217 = vmul.f32 %v2197, %v2205
      %v2218 = vmul.f32 %v2198, %v2205
      %v2219 = vmul.f32 %v2199, %v2205
      %v2220 = vmul.f32 %v2200, %v2205
      %v2221 = vmul.f32 %v2201, %v2205
      %v2222 = vadd.f32 %v2168, %v2206
      %v2223 = vadd.f32 %v2169, %v2207
      %v2224 = vadd.f32 %v2170, %v2208
      %v2225 = vadd.f32 %v2171, %v2209
      %v2226 = vadd.f32 %v2172, %v2210
      %v2227 = vadd.f32 %v2173, %v2211
      %v2228 = vadd.f32 %v2174, %v2212
      %v2229 = vadd.f32 %v2175, %v2213
      %v2230 = vadd.f32 %v2176, %v2214
      %v2231 = vadd.f32 %v2177, %v2215
      %v2232 = vadd.f32 %v2178, %v2216
      %v2233 = vadd.f32 %v2179, %v2217
      %v2234 = vadd.f32 %v2180, %v2218
      %v2235 = vadd.f32 %v2181, %v2219
      %v2236 = vadd.f32 %v2182, %v2220
      %v2237 = vadd.f32 %v2183, %v2221
      %v2238 = vld [vmem:[%s1510 + $0x1] sm:$0x1]
      %v2239 = vld [vmem:[%s2185 + $0x2] sm:$0xff]
      %v2240 = vld [vmem:[%s2185 + $0xa] sm:$0xff]
      %v2241 = vld [vmem:[%s2185 + $0x1a] sm:$0xff]
      %v2242 = vld [vmem:[%s2185 + $0x22] sm:$0xff]
      %v2243 = vld [vmem:[%s2185 + $0x32] sm:$0xff]
      %v2244 = vld [vmem:[%s2185 + $0x3a] sm:$0xff]
      %v2245 = vld [vmem:[%s2185 + $0x4a] sm:$0xff]
      %v2246 = vld [vmem:[%s2185 + $0x52] sm:$0xff]
      %v2247 = vld [vmem:[%s2185 + $0x62] sm:$0xff]
      %v2248 = vld [vmem:[%s2185 + $0x6a] sm:$0xff]
      %v2249 = vld [vmem:[%s2185 + $0x7a] sm:$0xff]
      %v2250 = vld [vmem:[%s2185 + $0x82] sm:$0xff]
      %v2251 = vld [vmem:[%s2185 + $0x92] sm:$0xff]
      %v2252 = vld [vmem:[%s2185 + $0x9a] sm:$0xff]
      %v2253 = vld [vmem:[%s2185 + $0xaa] sm:$0xff]
      %v2254 = vld [vmem:[%s2185 + $0xb2] sm:$0xff]
      %v2255 = vlaneseq
      %v2256 = vshrl.u32 %v2255, 7
      %v2257 = vsub.s32 0, %v2256
      %v2258 = vrot.slane %v2238, %v2257
      %v2259 = vmul.f32 %v2239, %v2258
      %v2260 = vmul.f32 %v2240, %v2258
      %v2261 = vmul.f32 %v2241, %v2258
      %v2262 = vmul.f32 %v2242, %v2258
      %v2263 = vmul.f32 %v2243, %v2258
      %v2264 = vmul.f32 %v2244, %v2258
      %v2265 = vmul.f32 %v2245, %v2258
      %v2266 = vmul.f32 %v2246, %v2258
      %v2267 = vmul.f32 %v2247, %v2258
      %v2268 = vmul.f32 %v2248, %v2258
      %v2269 = vmul.f32 %v2249, %v2258
      %v2270 = vmul.f32 %v2250, %v2258
      %v2271 = vmul.f32 %v2251, %v2258
      %v2272 = vmul.f32 %v2252, %v2258
      %v2273 = vmul.f32 %v2253, %v2258
      %v2274 = vmul.f32 %v2254, %v2258
      %v2275 = vadd.f32 %v2222, %v2259
      %v2276 = vadd.f32 %v2223, %v2260
      %v2277 = vadd.f32 %v2224, %v2261
      %v2278 = vadd.f32 %v2225, %v2262
      %v2279 = vadd.f32 %v2226, %v2263
      %v2280 = vadd.f32 %v2227, %v2264
      %v2281 = vadd.f32 %v2228, %v2265
      %v2282 = vadd.f32 %v2229, %v2266
      %v2283 = vadd.f32 %v2230, %v2267
      %v2284 = vadd.f32 %v2231, %v2268
      %v2285 = vadd.f32 %v2232, %v2269
      %v2286 = vadd.f32 %v2233, %v2270
      %v2287 = vadd.f32 %v2234, %v2271
      %v2288 = vadd.f32 %v2235, %v2272
      %v2289 = vadd.f32 %v2236, %v2273
      %v2290 = vadd.f32 %v2237, %v2274
      %v2291 = vld [vmem:[%s1510 + $0x2] sm:$0x1]
      %v2292 = vld [vmem:[%s2185 + $0x3] sm:$0xff]
      %v2293 = vld [vmem:[%s2185 + $0xb] sm:$0xff]
      %v2294 = vld [vmem:[%s2185 + $0x1b] sm:$0xff]
      %v2295 = vld [vmem:[%s2185 + $0x23] sm:$0xff]
      %v2296 = vld [vmem:[%s2185 + $0x33] sm:$0xff]
      %v2297 = vld [vmem:[%s2185 + $0x3b] sm:$0xff]
      %v2298 = vld [vmem:[%s2185 + $0x4b] sm:$0xff]
      %v2299 = vld [vmem:[%s2185 + $0x53] sm:$0xff]
      %v2300 = vld [vmem:[%s2185 + $0x63] sm:$0xff]
      %v2301 = vld [vmem:[%s2185 + $0x6b] sm:$0xff]
      %v2302 = vld [vmem:[%s2185 + $0x7b] sm:$0xff]
      %v2303 = vld [vmem:[%s2185 + $0x83] sm:$0xff]
      %v2304 = vld [vmem:[%s2185 + $0x93] sm:$0xff]
      %v2305 = vld [vmem:[%s2185 + $0x9b] sm:$0xff]
      %v2306 = vld [vmem:[%s2185 + $0xab] sm:$0xff]
      %v2307 = vld [vmem:[%s2185 + $0xb3] sm:$0xff]
      %v2308 = vlaneseq
      %v2309 = vshrl.u32 %v2308, 7
      %v2310 = vsub.s32 0, %v2309
      %v2311 = vrot.slane %v2291, %v2310
      %v2312 = vmul.f32 %v2292, %v2311
      %v2313 = vmul.f32 %v2293, %v2311
      %v2314 = vmul.f32 %v2294, %v2311
      %v2315 = vmul.f32 %v2295, %v2311
      %v2316 = vmul.f32 %v2296, %v2311
      %v2317 = vmul.f32 %v2297, %v2311
      %v2318 = vmul.f32 %v2298, %v2311
      %v2319 = vmul.f32 %v2299, %v2311
      %v2320 = vmul.f32 %v2300, %v2311
      %v2321 = vmul.f32 %v2301, %v2311
      %v2322 = vmul.f32 %v2302, %v2311
      %v2323 = vmul.f32 %v2303, %v2311
      %v2324 = vmul.f32 %v2304, %v2311
      %v2325 = vmul.f32 %v2305, %v2311
      %v2326 = vmul.f32 %v2306, %v2311
      %v2327 = vmul.f32 %v2307, %v2311
      %v2328 = vadd.f32 %v2275, %v2312
      %v2329 = vadd.f32 %v2276, %v2313
      %v2330 = vadd.f32 %v2277, %v2314
      %v2331 = vadd.f32 %v2278, %v2315
      %v2332 = vadd.f32 %v2279, %v2316
      %v2333 = vadd.f32 %v2280, %v2317
      %v2334 = vadd.f32 %v2281, %v2318
      %v2335 = vadd.f32 %v2282, %v2319
      %v2336 = vadd.f32 %v2283, %v2320
      %v2337 = vadd.f32 %v2284, %v2321
      %v2338 = vadd.f32 %v2285, %v2322
      %v2339 = vadd.f32 %v2286, %v2323
      %v2340 = vadd.f32 %v2287, %v2324
      %v2341 = vadd.f32 %v2288, %v2325
      %v2342 = vadd.f32 %v2289, %v2326
      %v2343 = vadd.f32 %v2290, %v2327
      %v2344 = vld [vmem:[%s1670] sm:$0x1]
      %s2345 = scalar_lea.vmem [#allocation2], 264
      %v2346 = vld [vmem:[%s2345 + $0x1] sm:$0xff]
      %v2347 = vld [vmem:[%s2345 + $0x9] sm:$0xff]
      %v2348 = vld [vmem:[%s2345 + $0x19] sm:$0xff]
      %v2349 = vld [vmem:[%s2345 + $0x21] sm:$0xff]
      %v2350 = vld [vmem:[%s2345 + $0x31] sm:$0xff]
      %v2351 = vld [vmem:[%s2345 + $0x39] sm:$0xff]
      %v2352 = vld [vmem:[%s2345 + $0x49] sm:$0xff]
      %v2353 = vld [vmem:[%s2345 + $0x51] sm:$0xff]
      %v2354 = vld [vmem:[%s2345 + $0x61] sm:$0xff]
      %v2355 = vld [vmem:[%s2345 + $0x69] sm:$0xff]
      %v2356 = vld [vmem:[%s2345 + $0x79] sm:$0xff]
      %v2357 = vld [vmem:[%s2345 + $0x81] sm:$0xff]
      %v2358 = vld [vmem:[%s2345 + $0x91] sm:$0xff]
      %v2359 = vld [vmem:[%s2345 + $0x99] sm:$0xff]
      %v2360 = vld [vmem:[%s2345 + $0xa9] sm:$0xff]
      %v2361 = vld [vmem:[%s2345 + $0xb1] sm:$0xff]
      %v2362 = vlaneseq
      %v2363 = vshrl.u32 %v2362, 7
      %v2364 = vsub.s32 0, %v2363
      %v2365 = vrot.slane %v2344, %v2364
      %v2366 = vmul.f32 %v2346, %v2365
      %v2367 = vmul.f32 %v2347, %v2365
      %v2368 = vmul.f32 %v2348, %v2365
      %v2369 = vmul.f32 %v2349, %v2365
      %v2370 = vmul.f32 %v2350, %v2365
      %v2371 = vmul.f32 %v2351, %v2365
      %v2372 = vmul.f32 %v2352, %v2365
      %v2373 = vmul.f32 %v2353, %v2365
      %v2374 = vmul.f32 %v2354, %v2365
      %v2375 = vmul.f32 %v2355, %v2365
      %v2376 = vmul.f32 %v2356, %v2365
      %v2377 = vmul.f32 %v2357, %v2365
      %v2378 = vmul.f32 %v2358, %v2365
      %v2379 = vmul.f32 %v2359, %v2365
      %v2380 = vmul.f32 %v2360, %v2365
      %v2381 = vmul.f32 %v2361, %v2365
      %v2382 = vadd.f32 %v2328, %v2366
      %v2383 = vadd.f32 %v2329, %v2367
      %v2384 = vadd.f32 %v2330, %v2368
      %v2385 = vadd.f32 %v2331, %v2369
      %v2386 = vadd.f32 %v2332, %v2370
      %v2387 = vadd.f32 %v2333, %v2371
      %v2388 = vadd.f32 %v2334, %v2372
      %v2389 = vadd.f32 %v2335, %v2373
      %v2390 = vadd.f32 %v2336, %v2374
      %v2391 = vadd.f32 %v2337, %v2375
      %v2392 = vadd.f32 %v2338, %v2376
      %v2393 = vadd.f32 %v2339, %v2377
      %v2394 = vadd.f32 %v2340, %v2378
      %v2395 = vadd.f32 %v2341, %v2379
      %v2396 = vadd.f32 %v2342, %v2380
      %v2397 = vadd.f32 %v2343, %v2381
      %v2398 = vld [vmem:[%s1670 + $0x1] sm:$0x1]
      %v2399 = vld [vmem:[%s2345 + $0x2] sm:$0xff]
      %v2400 = vld [vmem:[%s2345 + $0xa] sm:$0xff]
      %v2401 = vld [vmem:[%s2345 + $0x1a] sm:$0xff]
      %v2402 = vld [vmem:[%s2345 + $0x22] sm:$0xff]
      %v2403 = vld [vmem:[%s2345 + $0x32] sm:$0xff]
      %v2404 = vld [vmem:[%s2345 + $0x3a] sm:$0xff]
      %v2405 = vld [vmem:[%s2345 + $0x4a] sm:$0xff]
      %v2406 = vld [vmem:[%s2345 + $0x52] sm:$0xff]
      %v2407 = vld [vmem:[%s2345 + $0x62] sm:$0xff]
      %v2408 = vld [vmem:[%s2345 + $0x6a] sm:$0xff]
      %v2409 = vld [vmem:[%s2345 + $0x7a] sm:$0xff]
      %v2410 = vld [vmem:[%s2345 + $0x82] sm:$0xff]
      %v2411 = vld [vmem:[%s2345 + $0x92] sm:$0xff]
      %v2412 = vld [vmem:[%s2345 + $0x9a] sm:$0xff]
      %v2413 = vld [vmem:[%s2345 + $0xaa] sm:$0xff]
      %v2414 = vld [vmem:[%s2345 + $0xb2] sm:$0xff]
      %v2415 = vlaneseq
      %v2416 = vshrl.u32 %v2415, 7
      %v2417 = vsub.s32 0, %v2416
      %v2418 = vrot.slane %v2398, %v2417
      %v2419 = vmul.f32 %v2399, %v2418
      %v2420 = vmul.f32 %v2400, %v2418
      %v2421 = vmul.f32 %v2401, %v2418
      %v2422 = vmul.f32 %v2402, %v2418
      %v2423 = vmul.f32 %v2403, %v2418
      %v2424 = vmul.f32 %v2404, %v2418
      %v2425 = vmul.f32 %v2405, %v2418
      %v2426 = vmul.f32 %v2406, %v2418
      %v2427 = vmul.f32 %v2407, %v2418
      %v2428 = vmul.f32 %v2408, %v2418
      %v2429 = vmul.f32 %v2409, %v2418
      %v2430 = vmul.f32 %v2410, %v2418
      %v2431 = vmul.f32 %v2411, %v2418
      %v2432 = vmul.f32 %v2412, %v2418
      %v2433 = vmul.f32 %v2413, %v2418
      %v2434 = vmul.f32 %v2414, %v2418
      %v2435 = vadd.f32 %v2382, %v2419
      %v2436 = vadd.f32 %v2383, %v2420
      %v2437 = vadd.f32 %v2384, %v2421
      %v2438 = vadd.f32 %v2385, %v2422
      %v2439 = vadd.f32 %v2386, %v2423
      %v2440 = vadd.f32 %v2387, %v2424
      %v2441 = vadd.f32 %v2388, %v2425
      %v2442 = vadd.f32 %v2389, %v2426
      %v2443 = vadd.f32 %v2390, %v2427
      %v2444 = vadd.f32 %v2391, %v2428
      %v2445 = vadd.f32 %v2392, %v2429
      %v2446 = vadd.f32 %v2393, %v2430
      %v2447 = vadd.f32 %v2394, %v2431
      %v2448 = vadd.f32 %v2395, %v2432
      %v2449 = vadd.f32 %v2396, %v2433
      %v2450 = vadd.f32 %v2397, %v2434
      %v2451 = vld [vmem:[%s1670 + $0x2] sm:$0x1]
      %v2452 = vld [vmem:[%s2345 + $0x3] sm:$0xff]
      %v2453 = vld [vmem:[%s2345 + $0xb] sm:$0xff]
      %v2454 = vld [vmem:[%s2345 + $0x1b] sm:$0xff]
      %v2455 = vld [vmem:[%s2345 + $0x23] sm:$0xff]
      %v2456 = vld [vmem:[%s2345 + $0x33] sm:$0xff]
      %v2457 = vld [vmem:[%s2345 + $0x3b] sm:$0xff]
      %v2458 = vld [vmem:[%s2345 + $0x4b] sm:$0xff]
      %v2459 = vld [vmem:[%s2345 + $0x53] sm:$0xff]
      %v2460 = vld [vmem:[%s2345 + $0x63] sm:$0xff]
      %v2461 = vld [vmem:[%s2345 + $0x6b] sm:$0xff]
      %v2462 = vld [vmem:[%s2345 + $0x7b] sm:$0xff]
      %v2463 = vld [vmem:[%s2345 + $0x83] sm:$0xff]
      %v2464 = vld [vmem:[%s2345 + $0x93] sm:$0xff]
      %v2465 = vld [vmem:[%s2345 + $0x9b] sm:$0xff]
      %v2466 = vld [vmem:[%s2345 + $0xab] sm:$0xff]
      %v2467 = vld [vmem:[%s2345 + $0xb3] sm:$0xff]
      %v2468 = vlaneseq
      %v2469 = vshrl.u32 %v2468, 7
      %v2470 = vsub.s32 0, %v2469
      %v2471 = vrot.slane %v2451, %v2470
      %v2472 = vmul.f32 %v2452, %v2471
      %v2473 = vmul.f32 %v2453, %v2471
      %v2474 = vmul.f32 %v2454, %v2471
      %v2475 = vmul.f32 %v2455, %v2471
      %v2476 = vmul.f32 %v2456, %v2471
      %v2477 = vmul.f32 %v2457, %v2471
      %v2478 = vmul.f32 %v2458, %v2471
      %v2479 = vmul.f32 %v2459, %v2471
      %v2480 = vmul.f32 %v2460, %v2471
      %v2481 = vmul.f32 %v2461, %v2471
      %v2482 = vmul.f32 %v2462, %v2471
      %v2483 = vmul.f32 %v2463, %v2471
      %v2484 = vmul.f32 %v2464, %v2471
      %v2485 = vmul.f32 %v2465, %v2471
      %v2486 = vmul.f32 %v2466, %v2471
      %v2487 = vmul.f32 %v2467, %v2471
      %v2488 = vadd.f32 %v2435, %v2472
      %v2489 = vadd.f32 %v2436, %v2473
      %v2490 = vadd.f32 %v2437, %v2474
      %v2491 = vadd.f32 %v2438, %v2475
      %v2492 = vadd.f32 %v2439, %v2476
      %v2493 = vadd.f32 %v2440, %v2477
      %v2494 = vadd.f32 %v2441, %v2478
      %v2495 = vadd.f32 %v2442, %v2479
      %v2496 = vadd.f32 %v2443, %v2480
      %v2497 = vadd.f32 %v2444, %v2481
      %v2498 = vadd.f32 %v2445, %v2482
      %v2499 = vadd.f32 %v2446, %v2483
      %v2500 = vadd.f32 %v2447, %v2484
      %v2501 = vadd.f32 %v2448, %v2485
      %v2502 = vadd.f32 %v2449, %v2486
      %v2503 = vadd.f32 %v2450, %v2487
      %v2504 = vmul.f32 %v2488, 0.5
      %v2505 = vmul.f32 %v2489, 0.5
      %v2506 = vmul.f32 %v2490, 0.5
      %v2507 = vmul.f32 %v2491, 0.5
      %v2508 = vmul.f32 %v2492, 0.5
      %v2509 = vmul.f32 %v2493, 0.5
      %v2510 = vmul.f32 %v2494, 0.5
      %v2511 = vmul.f32 %v2495, 0.5
      %v2512 = vmul.f32 %v2496, 0.5
      %v2513 = vmul.f32 %v2497, 0.5
      %v2514 = vmul.f32 %v2498, 0.5
      %v2515 = vmul.f32 %v2499, 0.5
      %v2516 = vmul.f32 %v2500, 0.5
      %v2517 = vmul.f32 %v2501, 0.5
      %v2518 = vmul.f32 %v2502, 0.5
      %v2519 = vmul.f32 %v2503, 0.5
      %v2520 = vmul.f32 %v2488, 0.044715
      %v2521 = vmul.f32 %v2489, 0.044715
      %v2522 = vmul.f32 %v2490, 0.044715
      %v2523 = vmul.f32 %v2491, 0.044715
      %v2524 = vmul.f32 %v2492, 0.044715
      %v2525 = vmul.f32 %v2493, 0.044715
      %v2526 = vmul.f32 %v2494, 0.044715
      %v2527 = vmul.f32 %v2495, 0.044715
      %v2528 = vmul.f32 %v2496, 0.044715
      %v2529 = vmul.f32 %v2497, 0.044715
      %v2530 = vmul.f32 %v2498, 0.044715
      %v2531 = vmul.f32 %v2499, 0.044715
      %v2532 = vmul.f32 %v2500, 0.044715
      %v2533 = vmul.f32 %v2501, 0.044715
      %v2534 = vmul.f32 %v2502, 0.044715
      %v2535 = vmul.f32 %v2503, 0.044715
      %v2536 = vmul.f32 %v2520, %v2488
      %v2537 = vmul.f32 %v2521, %v2489
      %v2538 = vmul.f32 %v2522, %v2490
      %v2539 = vmul.f32 %v2523, %v2491
      %v2540 = vmul.f32 %v2524, %v2492
      %v2541 = vmul.f32 %v2525, %v2493
      %v2542 = vmul.f32 %v2526, %v2494
      %v2543 = vmul.f32 %v2527, %v2495
      %v2544 = vmul.f32 %v2528, %v2496
      %v2545 = vmul.f32 %v2529, %v2497
      %v2546 = vmul.f32 %v2530, %v2498
      %v2547 = vmul.f32 %v2531, %v2499
      %v2548 = vmul.f32 %v2532, %v2500
      %v2549 = vmul.f32 %v2533, %v2501
      %v2550 = vmul.f32 %v2534, %v2502
      %v2551 = vmul.f32 %v2535, %v2503
      %v2552 = vmul.f32 %v2536, %v2488
      %v2553 = vmul.f32 %v2537, %v2489
      %v2554 = vmul.f32 %v2538, %v2490
      %v2555 = vmul.f32 %v2539, %v2491
      %v2556 = vmul.f32 %v2540, %v2492
      %v2557 = vmul.f32 %v2541, %v2493
      %v2558 = vmul.f32 %v2542, %v2494
      %v2559 = vmul.f32 %v2543, %v2495
      %v2560 = vmul.f32 %v2544, %v2496
      %v2561 = vmul.f32 %v2545, %v2497
      %v2562 = vmul.f32 %v2546, %v2498
      %v2563 = vmul.f32 %v2547, %v2499
      %v2564 = vmul.f32 %v2548, %v2500
      %v2565 = vmul.f32 %v2549, %v2501
      %v2566 = vmul.f32 %v2550, %v2502
      %v2567 = vmul.f32 %v2551, %v2503
      %v2568 = vadd.f32 %v2488, %v2552
      %v2569 = vadd.f32 %v2489, %v2553
      %v2570 = vadd.f32 %v2490, %v2554
      %v2571 = vadd.f32 %v2491, %v2555
      %v2572 = vadd.f32 %v2492, %v2556
      %v2573 = vadd.f32 %v2493, %v2557
      %v2574 = vadd.f32 %v2494, %v2558
      %v2575 = vadd.f32 %v2495, %v2559
      %v2576 = vadd.f32 %v2496, %v2560
      %v2577 = vadd.f32 %v2497, %v2561
      %v2578 = vadd.f32 %v2498, %v2562
      %v2579 = vadd.f32 %v2499, %v2563
      %v2580 = vadd.f32 %v2500, %v2564
      %v2581 = vadd.f32 %v2501, %v2565
      %v2582 = vadd.f32 %v2502, %v2566
      %v2583 = vadd.f32 %v2503, %v2567
      %v2584 = vmul.f32 %v2568, 0.7978846
      %v2585 = vmul.f32 %v2569, 0.7978846
      %v2586 = vmul.f32 %v2570, 0.7978846
      %v2587 = vmul.f32 %v2571, 0.7978846
      %v2588 = vmul.f32 %v2572, 0.7978846
      %v2589 = vmul.f32 %v2573, 0.7978846
      %v2590 = vmul.f32 %v2574, 0.7978846
      %v2591 = vmul.f32 %v2575, 0.7978846
      %v2592 = vmul.f32 %v2576, 0.7978846
      %v2593 = vmul.f32 %v2577, 0.7978846
      %v2594 = vmul.f32 %v2578, 0.7978846
      %v2595 = vmul.f32 %v2579, 0.7978846
      %v2596 = vmul.f32 %v2580, 0.7978846
      %v2597 = vmul.f32 %v2581, 0.7978846
      %v2598 = vmul.f32 %v2582, 0.7978846
      %v2599 = vmul.f32 %v2583, 0.7978846
      %v2600 = vtanh.pop %v2584
      %v2601 = vtanh.pop %v2585
      %v2602 = vtanh.pop %v2586
      %v2603 = vtanh.pop %v2587
      %v2604 = vtanh.pop %v2588
      %v2605 = vtanh.pop %v2589
      %v2606 = vtanh.pop %v2590
      %v2607 = vtanh.pop %v2591
      %v2608 = vtanh.pop %v2592
      %v2609 = vtanh.pop %v2593
      %v2610 = vtanh.pop %v2594
      %v2611 = vtanh.pop %v2595
      %v2612 = vtanh.pop %v2596
      %v2613 = vtanh.pop %v2597
      %v2614 = vtanh.pop %v2598
      %v2615 = vtanh.pop %v2599
      %v2616 = vadd.f32 %v2600, 1.0
      %v2617 = vadd.f32 %v2601, 1.0
      %v2618 = vadd.f32 %v2602, 1.0
      %v2619 = vadd.f32 %v2603, 1.0
      %v2620 = vadd.f32 %v2604, 1.0
      %v2621 = vadd.f32 %v2605, 1.0
      %v2622 = vadd.f32 %v2606, 1.0
      %v2623 = vadd.f32 %v2607, 1.0
      %v2624 = vadd.f32 %v2608, 1.0
      %v2625 = vadd.f32 %v2609, 1.0
      %v2626 = vadd.f32 %v2610, 1.0
      %v2627 = vadd.f32 %v2611, 1.0
      %v2628 = vadd.f32 %v2612, 1.0
      %v2629 = vadd.f32 %v2613, 1.0
      %v2630 = vadd.f32 %v2614, 1.0
      %v2631 = vadd.f32 %v2615, 1.0
      %v2632 = vmul.f32 %v2504, %v2616
      %v2633 = vmul.f32 %v2505, %v2617
      %v2634 = vmul.f32 %v2506, %v2618
      %v2635 = vmul.f32 %v2507, %v2619
      %v2636 = vmul.f32 %v2508, %v2620
      %v2637 = vmul.f32 %v2509, %v2621
      %v2638 = vmul.f32 %v2510, %v2622
      %v2639 = vmul.f32 %v2511, %v2623
      %v2640 = vmul.f32 %v2512, %v2624
      %v2641 = vmul.f32 %v2513, %v2625
      %v2642 = vmul.f32 %v2514, %v2626
      %v2643 = vmul.f32 %v2515, %v2627
      %v2644 = vmul.f32 %v2516, %v2628
      %v2645 = vmul.f32 %v2517, %v2629
      %v2646 = vmul.f32 %v2518, %v2630
      %v2647 = vmul.f32 %v2519, %v2631
      %s2648 = scalar_lea.vmem [#allocation3], 240
      %2649 = vst [vmem:[%s2648 + $0x2] sm:$0xff] %v2632
      %2650 = vst [vmem:[%s2648 + $0xa] sm:$0xff] %v2633
      %2651 = vst [vmem:[%s2648 + $0x1a] sm:$0xff] %v2634
      %2652 = vst [vmem:[%s2648 + $0x22] sm:$0xff] %v2635
      %2653 = vst [vmem:[%s2648 + $0x32] sm:$0xff] %v2636
      %2654 = vst [vmem:[%s2648 + $0x3a] sm:$0xff] %v2637
      %2655 = vst [vmem:[%s2648 + $0x4a] sm:$0xff] %v2638
      %2656 = vst [vmem:[%s2648 + $0x52] sm:$0xff] %v2639
      %2657 = vst [vmem:[%s2648 + $0x62] sm:$0xff] %v2640
      %2658 = vst [vmem:[%s2648 + $0x6a] sm:$0xff] %v2641
      %2659 = vst [vmem:[%s2648 + $0x7a] sm:$0xff] %v2642
      %2660 = vst [vmem:[%s2648 + $0x82] sm:$0xff] %v2643
      %2661 = vst [vmem:[%s2648 + $0x92] sm:$0xff] %v2644
      %2662 = vst [vmem:[%s2648 + $0x9a] sm:$0xff] %v2645
      %2663 = vst [vmem:[%s2648 + $0xaa] sm:$0xff] %v2646
      %2664 = vst [vmem:[%s2648 + $0xb2] sm:$0xff] %v2647
      %v2665 = vmul.f32 %v2632, %v892
      %v2666 = vmul.f32 %v2633, %v898
      %v2667 = vmul.f32 %v2634, %v904
      %v2668 = vmul.f32 %v2635, %v910
      %v2669 = vmul.f32 %v2636, %v916
      %v2670 = vmul.f32 %v2637, %v922
      %v2671 = vmul.f32 %v2638, %v928
      %v2672 = vmul.f32 %v2639, %v934
      %v2673 = vmul.f32 %v2640, %v940
      %v2674 = vmul.f32 %v2641, %v946
      %v2675 = vmul.f32 %v2642, %v952
      %v2676 = vmul.f32 %v2643, %v958
      %v2677 = vmul.f32 %v2644, %v964
      %v2678 = vmul.f32 %v2645, %v970
      %v2679 = vmul.f32 %v2646, %v976
      %v2680 = vmul.f32 %v2647, %v982
      %s2681 = scalar_lea.vmem [#allocation4], 128
      %2682 = vst [vmem:[%s2681] sm:$0xff] %v2665
      %2683 = vst [vmem:[%s2681 + $0x8] sm:$0xff] %v2666
      %2684 = vst [vmem:[%s2681 + $0x10] sm:$0xff] %v2667
      %2685 = vst [vmem:[%s2681 + $0x18] sm:$0xff] %v2668
      %2686 = vst [vmem:[%s2681 + $0x20] sm:$0xff] %v2669
      %2687 = vst [vmem:[%s2681 + $0x28] sm:$0xff] %v2670
      %2688 = vst [vmem:[%s2681 + $0x30] sm:$0xff] %v2671
      %2689 = vst [vmem:[%s2681 + $0x38] sm:$0xff] %v2672
      %2690 = vst [vmem:[%s2681 + $0x40] sm:$0xff] %v2673
      %2691 = vst [vmem:[%s2681 + $0x48] sm:$0xff] %v2674
      %2692 = vst [vmem:[%s2681 + $0x50] sm:$0xff] %v2675
      %2693 = vst [vmem:[%s2681 + $0x58] sm:$0xff] %v2676
      %2694 = vst [vmem:[%s2681 + $0x60] sm:$0xff] %v2677
      %2695 = vst [vmem:[%s2681 + $0x68] sm:$0xff] %v2678
      %2696 = vst [vmem:[%s2681 + $0x70] sm:$0xff] %v2679
      %2697 = vst [vmem:[%s2681 + $0x78] sm:$0xff] %v2680
      %v2698 = vld [vmem:[%s4] sm:$0x1]
      %v2699 = vld [vmem:[#allocation3] sm:$0xff]
      %v2700 = vld [vmem:[#allocation3 + $0x8] sm:$0xff]
      %v2701 = vld [vmem:[#allocation3 + $0x18] sm:$0xff]
      %v2702 = vld [vmem:[#allocation3 + $0x20] sm:$0xff]
      %v2703 = vld [vmem:[#allocation3 + $0x30] sm:$0xff]
      %v2704 = vld [vmem:[#allocation3 + $0x38] sm:$0xff]
      %v2705 = vld [vmem:[#allocation3 + $0x48] sm:$0xff]
      %v2706 = vld [vmem:[#allocation3 + $0x50] sm:$0xff]
      %v2707 = vld [vmem:[#allocation3 + $0x60] sm:$0xff]
      %v2708 = vld [vmem:[#allocation3 + $0x68] sm:$0xff]
      %v2709 = vld [vmem:[#allocation3 + $0x78] sm:$0xff]
      %v2710 = vld [vmem:[#allocation3 + $0x80] sm:$0xff]
      %v2711 = vld [vmem:[#allocation3 + $0x90] sm:$0xff]
      %v2712 = vld [vmem:[#allocation3 + $0x98] sm:$0xff]
      %v2713 = vld [vmem:[#allocation3 + $0xa8] sm:$0xff]
      %v2714 = vld [vmem:[#allocation3 + $0xb0] sm:$0xff]
      %v2715 = vlaneseq
      %v2716 = vshrl.u32 %v2715, 7
      %v2717 = vsub.s32 0, %v2716
      %v2718 = vrot.slane %v2698, %v2717
      %v2719 = vmul.f32 %v2699, %v2718
      %v2720 = vmul.f32 %v2700, %v2718
      %v2721 = vmul.f32 %v2701, %v2718
      %v2722 = vmul.f32 %v2702, %v2718
      %v2723 = vmul.f32 %v2703, %v2718
      %v2724 = vmul.f32 %v2704, %v2718
      %v2725 = vmul.f32 %v2705, %v2718
      %v2726 = vmul.f32 %v2706, %v2718
      %v2727 = vmul.f32 %v2707, %v2718
      %v2728 = vmul.f32 %v2708, %v2718
      %v2729 = vmul.f32 %v2709, %v2718
      %v2730 = vmul.f32 %v2710, %v2718
      %v2731 = vmul.f32 %v2711, %v2718
      %v2732 = vmul.f32 %v2712, %v2718
      %v2733 = vmul.f32 %v2713, %v2718
      %v2734 = vmul.f32 %v2714, %v2718
      %v2735 = vadd.f32 %v2719, 0.0
      %v2736 = vadd.f32 %v2720, 0.0
      %v2737 = vadd.f32 %v2721, 0.0
      %v2738 = vadd.f32 %v2722, 0.0
      %v2739 = vadd.f32 %v2723, 0.0
      %v2740 = vadd.f32 %v2724, 0.0
      %v2741 = vadd.f32 %v2725, 0.0
      %v2742 = vadd.f32 %v2726, 0.0
      %v2743 = vadd.f32 %v2727, 0.0
      %v2744 = vadd.f32 %v2728, 0.0
      %v2745 = vadd.f32 %v2729, 0.0
      %v2746 = vadd.f32 %v2730, 0.0
      %v2747 = vadd.f32 %v2731, 0.0
      %v2748 = vadd.f32 %v2732, 0.0
      %v2749 = vadd.f32 %v2733, 0.0
      %v2750 = vadd.f32 %v2734, 0.0
      %v2751 = vld [vmem:[%s4 + $0x1] sm:$0x1]
      %v2752 = vld [vmem:[#allocation3 + $0x1] sm:$0xff]
      %v2753 = vld [vmem:[#allocation3 + $0x9] sm:$0xff]
      %v2754 = vld [vmem:[#allocation3 + $0x19] sm:$0xff]
      %v2755 = vld [vmem:[#allocation3 + $0x21] sm:$0xff]
      %v2756 = vld [vmem:[#allocation3 + $0x31] sm:$0xff]
      %v2757 = vld [vmem:[#allocation3 + $0x39] sm:$0xff]
      %v2758 = vld [vmem:[#allocation3 + $0x49] sm:$0xff]
      %v2759 = vld [vmem:[#allocation3 + $0x51] sm:$0xff]
      %v2760 = vld [vmem:[#allocation3 + $0x61] sm:$0xff]
      %v2761 = vld [vmem:[#allocation3 + $0x69] sm:$0xff]
      %v2762 = vld [vmem:[#allocation3 + $0x79] sm:$0xff]
      %v2763 = vld [vmem:[#allocation3 + $0x81] sm:$0xff]
      %v2764 = vld [vmem:[#allocation3 + $0x91] sm:$0xff]
      %v2765 = vld [vmem:[#allocation3 + $0x99] sm:$0xff]
      %v2766 = vld [vmem:[#allocation3 + $0xa9] sm:$0xff]
      %v2767 = vld [vmem:[#allocation3 + $0xb1] sm:$0xff]
      %v2768 = vlaneseq
      %v2769 = vshrl.u32 %v2768, 7
      %v2770 = vsub.s32 0, %v2769
      %v2771 = vrot.slane %v2751, %v2770
      %v2772 = vmul.f32 %v2752, %v2771
      %v2773 = vmul.f32 %v2753, %v2771
      %v2774 = vmul.f32 %v2754, %v2771
      %v2775 = vmul.f32 %v2755, %v2771
      %v2776 = vmul.f32 %v2756, %v2771
      %v2777 = vmul.f32 %v2757, %v2771
      %v2778 = vmul.f32 %v2758, %v2771
      %v2779 = vmul.f32 %v2759, %v2771
      %v2780 = vmul.f32 %v2760, %v2771
      %v2781 = vmul.f32 %v2761, %v2771
      %v2782 = vmul.f32 %v2762, %v2771
      %v2783 = vmul.f32 %v2763, %v2771
      %v2784 = vmul.f32 %v2764, %v2771
      %v2785 = vmul.f32 %v2765, %v2771
      %v2786 = vmul.f32 %v2766, %v2771
      %v2787 = vmul.f32 %v2767, %v2771
      %v2788 = vadd.f32 %v2735, %v2772
      %v2789 = vadd.f32 %v2736, %v2773
      %v2790 = vadd.f32 %v2737, %v2774
      %v2791 = vadd.f32 %v2738, %v2775
      %v2792 = vadd.f32 %v2739, %v2776
      %v2793 = vadd.f32 %v2740, %v2777
      %v2794 = vadd.f32 %v2741, %v2778
      %v2795 = vadd.f32 %v2742, %v2779
      %v2796 = vadd.f32 %v2743, %v2780
      %v2797 = vadd.f32 %v2744, %v2781
      %v2798 = vadd.f32 %v2745, %v2782
      %v2799 = vadd.f32 %v2746, %v2783
      %v2800 = vadd.f32 %v2747, %v2784
      %v2801 = vadd.f32 %v2748, %v2785
      %v2802 = vadd.f32 %v2749, %v2786
      %v2803 = vadd.f32 %v2750, %v2787
      %v2804 = vld [vmem:[%s4 + $0x2] sm:$0x1]
      %v2805 = vld [vmem:[#allocation3 + $0x2] sm:$0xff]
      %v2806 = vld [vmem:[#allocation3 + $0xa] sm:$0xff]
      %v2807 = vld [vmem:[#allocation3 + $0x1a] sm:$0xff]
      %v2808 = vld [vmem:[#allocation3 + $0x22] sm:$0xff]
      %v2809 = vld [vmem:[#allocation3 + $0x32] sm:$0xff]
      %v2810 = vld [vmem:[#allocation3 + $0x3a] sm:$0xff]
      %v2811 = vld [vmem:[#allocation3 + $0x4a] sm:$0xff]
      %v2812 = vld [vmem:[#allocation3 + $0x52] sm:$0xff]
      %v2813 = vld [vmem:[#allocation3 + $0x62] sm:$0xff]
      %v2814 = vld [vmem:[#allocation3 + $0x6a] sm:$0xff]
      %v2815 = vld [vmem:[#allocation3 + $0x7a] sm:$0xff]
      %v2816 = vld [vmem:[#allocation3 + $0x82] sm:$0xff]
      %v2817 = vld [vmem:[#allocation3 + $0x92] sm:$0xff]
      %v2818 = vld [vmem:[#allocation3 + $0x9a] sm:$0xff]
      %v2819 = vld [vmem:[#allocation3 + $0xaa] sm:$0xff]
      %v2820 = vld [vmem:[#allocation3 + $0xb2] sm:$0xff]
      %v2821 = vlaneseq
      %v2822 = vshrl.u32 %v2821, 7
      %v2823 = vsub.s32 0, %v2822
      %v2824 = vrot.slane %v2804, %v2823
      %v2825 = vmul.f32 %v2805, %v2824
      %v2826 = vmul.f32 %v2806, %v2824
      %v2827 = vmul.f32 %v2807, %v2824
      %v2828 = vmul.f32 %v2808, %v2824
      %v2829 = vmul.f32 %v2809, %v2824
      %v2830 = vmul.f32 %v2810, %v2824
      %v2831 = vmul.f32 %v2811, %v2824
      %v2832 = vmul.f32 %v2812, %v2824
      %v2833 = vmul.f32 %v2813, %v2824
      %v2834 = vmul.f32 %v2814, %v2824
      %v2835 = vmul.f32 %v2815, %v2824
      %v2836 = vmul.f32 %v2816, %v2824
      %v2837 = vmul.f32 %v2817, %v2824
      %v2838 = vmul.f32 %v2818, %v2824
      %v2839 = vmul.f32 %v2819, %v2824
      %v2840 = vmul.f32 %v2820, %v2824
      %v2841 = vadd.f32 %v2788, %v2825
      %v2842 = vadd.f32 %v2789, %v2826
      %v2843 = vadd.f32 %v2790, %v2827
      %v2844 = vadd.f32 %v2791, %v2828
      %v2845 = vadd.f32 %v2792, %v2829
      %v2846 = vadd.f32 %v2793, %v2830
      %v2847 = vadd.f32 %v2794, %v2831
      %v2848 = vadd.f32 %v2795, %v2832
      %v2849 = vadd.f32 %v2796, %v2833
      %v2850 = vadd.f32 %v2797, %v2834
      %v2851 = vadd.f32 %v2798, %v2835
      %v2852 = vadd.f32 %v2799, %v2836
      %v2853 = vadd.f32 %v2800, %v2837
      %v2854 = vadd.f32 %v2801, %v2838
      %v2855 = vadd.f32 %v2802, %v2839
      %v2856 = vadd.f32 %v2803, %v2840
      %v2857 = vld [vmem:[%s4 + $0x3] sm:$0x1]
      %v2858 = vld [vmem:[#allocation3 + $0x3] sm:$0xff]
      %v2859 = vld [vmem:[#allocation3 + $0xb] sm:$0xff]
      %v2860 = vld [vmem:[#allocation3 + $0x1b] sm:$0xff]
      %v2861 = vld [vmem:[#allocation3 + $0x23] sm:$0xff]
      %v2862 = vld [vmem:[#allocation3 + $0x33] sm:$0xff]
      %v2863 = vld [vmem:[#allocation3 + $0x3b] sm:$0xff]
      %v2864 = vld [vmem:[#allocation3 + $0x4b] sm:$0xff]
      %v2865 = vld [vmem:[#allocation3 + $0x53] sm:$0xff]
      %v2866 = vld [vmem:[#allocation3 + $0x63] sm:$0xff]
      %v2867 = vld [vmem:[#allocation3 + $0x6b] sm:$0xff]
      %v2868 = vld [vmem:[#allocation3 + $0x7b] sm:$0xff]
      %v2869 = vld [vmem:[#allocation3 + $0x83] sm:$0xff]
      %v2870 = vld [vmem:[#allocation3 + $0x93] sm:$0xff]
      %v2871 = vld [vmem:[#allocation3 + $0x9b] sm:$0xff]
      %v2872 = vld [vmem:[#allocation3 + $0xab] sm:$0xff]
      %v2873 = vld [vmem:[#allocation3 + $0xb3] sm:$0xff]
      %v2874 = vlaneseq
      %v2875 = vshrl.u32 %v2874, 7
      %v2876 = vsub.s32 0, %v2875
      %v2877 = vrot.slane %v2857, %v2876
      %v2878 = vmul.f32 %v2858, %v2877
      %v2879 = vmul.f32 %v2859, %v2877
      %v2880 = vmul.f32 %v2860, %v2877
      %v2881 = vmul.f32 %v2861, %v2877
      %v2882 = vmul.f32 %v2862, %v2877
      %v2883 = vmul.f32 %v2863, %v2877
      %v2884 = vmul.f32 %v2864, %v2877
      %v2885 = vmul.f32 %v2865, %v2877
      %v2886 = vmul.f32 %v2866, %v2877
      %v2887 = vmul.f32 %v2867, %v2877
      %v2888 = vmul.f32 %v2868, %v2877
      %v2889 = vmul.f32 %v2869, %v2877
      %v2890 = vmul.f32 %v2870, %v2877
      %v2891 = vmul.f32 %v2871, %v2877
      %v2892 = vmul.f32 %v2872, %v2877
      %v2893 = vmul.f32 %v2873, %v2877
      %v2894 = vadd.f32 %v2841, %v2878
      %v2895 = vadd.f32 %v2842, %v2879
      %v2896 = vadd.f32 %v2843, %v2880
      %v2897 = vadd.f32 %v2844, %v2881
      %v2898 = vadd.f32 %v2845, %v2882
      %v2899 = vadd.f32 %v2846, %v2883
      %v2900 = vadd.f32 %v2847, %v2884
      %v2901 = vadd.f32 %v2848, %v2885
      %v2902 = vadd.f32 %v2849, %v2886
      %v2903 = vadd.f32 %v2850, %v2887
      %v2904 = vadd.f32 %v2851, %v2888
      %v2905 = vadd.f32 %v2852, %v2889
      %v2906 = vadd.f32 %v2853, %v2890
      %v2907 = vadd.f32 %v2854, %v2891
      %v2908 = vadd.f32 %v2855, %v2892
      %v2909 = vadd.f32 %v2856, %v2893
      %v2910 = vld [vmem:[%s4 + $0x4] sm:$0x1]
      %v2911 = vld [vmem:[#allocation3 + $0x4] sm:$0xff]
      %v2912 = vld [vmem:[#allocation3 + $0xc] sm:$0xff]
      %v2913 = vld [vmem:[#allocation3 + $0x1c] sm:$0xff]
      %v2914 = vld [vmem:[#allocation3 + $0x24] sm:$0xff]
      %v2915 = vld [vmem:[#allocation3 + $0x34] sm:$0xff]
      %v2916 = vld [vmem:[#allocation3 + $0x3c] sm:$0xff]
      %v2917 = vld [vmem:[#allocation3 + $0x4c] sm:$0xff]
      %v2918 = vld [vmem:[#allocation3 + $0x54] sm:$0xff]
      %v2919 = vld [vmem:[#allocation3 + $0x64] sm:$0xff]
      %v2920 = vld [vmem:[#allocation3 + $0x6c] sm:$0xff]
      %v2921 = vld [vmem:[#allocation3 + $0x7c] sm:$0xff]
      %v2922 = vld [vmem:[#allocation3 + $0x84] sm:$0xff]
      %v2923 = vld [vmem:[#allocation3 + $0x94] sm:$0xff]
      %v2924 = vld [vmem:[#allocation3 + $0x9c] sm:$0xff]
      %v2925 = vld [vmem:[#allocation3 + $0xac] sm:$0xff]
      %v2926 = vld [vmem:[#allocation3 + $0xb4] sm:$0xff]
      %v2927 = vlaneseq
      %v2928 = vshrl.u32 %v2927, 7
      %v2929 = vsub.s32 0, %v2928
      %v2930 = vrot.slane %v2910, %v2929
      %v2931 = vmul.f32 %v2911, %v2930
      %v2932 = vmul.f32 %v2912, %v2930
      %v2933 = vmul.f32 %v2913, %v2930
      %v2934 = vmul.f32 %v2914, %v2930
      %v2935 = vmul.f32 %v2915, %v2930
      %v2936 = vmul.f32 %v2916, %v2930
      %v2937 = vmul.f32 %v2917, %v2930
      %v2938 = vmul.f32 %v2918, %v2930
      %v2939 = vmul.f32 %v2919, %v2930
      %v2940 = vmul.f32 %v2920, %v2930
      %v2941 = vmul.f32 %v2921, %v2930
      %v2942 = vmul.f32 %v2922, %v2930
      %v2943 = vmul.f32 %v2923, %v2930
      %v2944 = vmul.f32 %v2924, %v2930
      %v2945 = vmul.f32 %v2925, %v2930
      %v2946 = vmul.f32 %v2926, %v2930
      %v2947 = vadd.f32 %v2894, %v2931
      %v2948 = vadd.f32 %v2895, %v2932
      %v2949 = vadd.f32 %v2896, %v2933
      %v2950 = vadd.f32 %v2897, %v2934
      %v2951 = vadd.f32 %v2898, %v2935
      %v2952 = vadd.f32 %v2899, %v2936
      %v2953 = vadd.f32 %v2900, %v2937
      %v2954 = vadd.f32 %v2901, %v2938
      %v2955 = vadd.f32 %v2902, %v2939
      %v2956 = vadd.f32 %v2903, %v2940
      %v2957 = vadd.f32 %v2904, %v2941
      %v2958 = vadd.f32 %v2905, %v2942
      %v2959 = vadd.f32 %v2906, %v2943
      %v2960 = vadd.f32 %v2907, %v2944
      %v2961 = vadd.f32 %v2908, %v2945
      %v2962 = vadd.f32 %v2909, %v2946
      %s2963 = scalar_lea.vmem %s4, 8
      %v2964 = vld [vmem:[%s2963] sm:$0x1]
      %s2965 = scalar_lea.vmem [#allocation3], 24
      %v2966 = vld [vmem:[%s2965] sm:$0xff]
      %v2967 = vld [vmem:[%s2965 + $0x8] sm:$0xff]
      %v2968 = vld [vmem:[%s2965 + $0x18] sm:$0xff]
      %v2969 = vld [vmem:[%s2965 + $0x20] sm:$0xff]
      %v2970 = vld [vmem:[%s2965 + $0x30] sm:$0xff]
      %v2971 = vld [vmem:[%s2965 + $0x38] sm:$0xff]
      %v2972 = vld [vmem:[%s2965 + $0x48] sm:$0xff]
      %v2973 = vld [vmem:[%s2965 + $0x50] sm:$0xff]
      %v2974 = vld [vmem:[%s2965 + $0x60] sm:$0xff]
      %v2975 = vld [vmem:[%s2965 + $0x68] sm:$0xff]
      %v2976 = vld [vmem:[%s2965 + $0x78] sm:$0xff]
      %v2977 = vld [vmem:[%s2965 + $0x80] sm:$0xff]
      %v2978 = vld [vmem:[%s2965 + $0x90] sm:$0xff]
      %v2979 = vld [vmem:[%s2965 + $0x98] sm:$0xff]
      %v2980 = vld [vmem:[%s2965 + $0xa8] sm:$0xff]
      %v2981 = vld [vmem:[%s2965 + $0xb0] sm:$0xff]
      %v2982 = vlaneseq
      %v2983 = vshrl.u32 %v2982, 7
      %v2984 = vsub.s32 0, %v2983
      %v2985 = vrot.slane %v2964, %v2984
      %v2986 = vmul.f32 %v2966, %v2985
      %v2987 = vmul.f32 %v2967, %v2985
      %v2988 = vmul.f32 %v2968, %v2985
      %v2989 = vmul.f32 %v2969, %v2985
      %v2990 = vmul.f32 %v2970, %v2985
      %v2991 = vmul.f32 %v2971, %v2985
      %v2992 = vmul.f32 %v2972, %v2985
      %v2993 = vmul.f32 %v2973, %v2985
      %v2994 = vmul.f32 %v2974, %v2985
      %v2995 = vmul.f32 %v2975, %v2985
      %v2996 = vmul.f32 %v2976, %v2985
      %v2997 = vmul.f32 %v2977, %v2985
      %v2998 = vmul.f32 %v2978, %v2985
      %v2999 = vmul.f32 %v2979, %v2985
      %v3000 = vmul.f32 %v2980, %v2985
      %v3001 = vmul.f32 %v2981, %v2985
      %v3002 = vadd.f32 %v2947, %v2986
      %v3003 = vadd.f32 %v2948, %v2987
      %v3004 = vadd.f32 %v2949, %v2988
      %v3005 = vadd.f32 %v2950, %v2989
      %v3006 = vadd.f32 %v2951, %v2990
      %v3007 = vadd.f32 %v2952, %v2991
      %v3008 = vadd.f32 %v2953, %v2992
      %v3009 = vadd.f32 %v2954, %v2993
      %v3010 = vadd.f32 %v2955, %v2994
      %v3011 = vadd.f32 %v2956, %v2995
      %v3012 = vadd.f32 %v2957, %v2996
      %v3013 = vadd.f32 %v2958, %v2997
      %v3014 = vadd.f32 %v2959, %v2998
      %v3015 = vadd.f32 %v2960, %v2999
      %v3016 = vadd.f32 %v2961, %v3000
      %v3017 = vadd.f32 %v2962, %v3001
      %v3018 = vld [vmem:[%s2963 + $0x1] sm:$0x1]
      %v3019 = vld [vmem:[%s2965 + $0x1] sm:$0xff]
      %v3020 = vld [vmem:[%s2965 + $0x9] sm:$0xff]
      %v3021 = vld [vmem:[%s2965 + $0x19] sm:$0xff]
      %v3022 = vld [vmem:[%s2965 + $0x21] sm:$0xff]
      %v3023 = vld [vmem:[%s2965 + $0x31] sm:$0xff]
      %v3024 = vld [vmem:[%s2965 + $0x39] sm:$0xff]
      %v3025 = vld [vmem:[%s2965 + $0x49] sm:$0xff]
      %v3026 = vld [vmem:[%s2965 + $0x51] sm:$0xff]
      %v3027 = vld [vmem:[%s2965 + $0x61] sm:$0xff]
      %v3028 = vld [vmem:[%s2965 + $0x69] sm:$0xff]
      %v3029 = vld [vmem:[%s2965 + $0x79] sm:$0xff]
      %v3030 = vld [vmem:[%s2965 + $0x81] sm:$0xff]
      %v3031 = vld [vmem:[%s2965 + $0x91] sm:$0xff]
      %v3032 = vld [vmem:[%s2965 + $0x99] sm:$0xff]
      %v3033 = vld [vmem:[%s2965 + $0xa9] sm:$0xff]
      %v3034 = vld [vmem:[%s2965 + $0xb1] sm:$0xff]
      %v3035 = vlaneseq
      %v3036 = vshrl.u32 %v3035, 7
      %v3037 = vsub.s32 0, %v3036
      %v3038 = vrot.slane %v3018, %v3037
      %v3039 = vmul.f32 %v3019, %v3038
      %v3040 = vmul.f32 %v3020, %v3038
      %v3041 = vmul.f32 %v3021, %v3038
      %v3042 = vmul.f32 %v3022, %v3038
      %v3043 = vmul.f32 %v3023, %v3038
      %v3044 = vmul.f32 %v3024, %v3038
      %v3045 = vmul.f32 %v3025, %v3038
      %v3046 = vmul.f32 %v3026, %v3038
      %v3047 = vmul.f32 %v3027, %v3038
      %v3048 = vmul.f32 %v3028, %v3038
      %v3049 = vmul.f32 %v3029, %v3038
      %v3050 = vmul.f32 %v3030, %v3038
      %v3051 = vmul.f32 %v3031, %v3038
      %v3052 = vmul.f32 %v3032, %v3038
      %v3053 = vmul.f32 %v3033, %v3038
      %v3054 = vmul.f32 %v3034, %v3038
      %v3055 = vadd.f32 %v3002, %v3039
      %v3056 = vadd.f32 %v3003, %v3040
      %v3057 = vadd.f32 %v3004, %v3041
      %v3058 = vadd.f32 %v3005, %v3042
      %v3059 = vadd.f32 %v3006, %v3043
      %v3060 = vadd.f32 %v3007, %v3044
      %v3061 = vadd.f32 %v3008, %v3045
      %v3062 = vadd.f32 %v3009, %v3046
      %v3063 = vadd.f32 %v3010, %v3047
      %v3064 = vadd.f32 %v3011, %v3048
      %v3065 = vadd.f32 %v3012, %v3049
      %v3066 = vadd.f32 %v3013, %v3050
      %v3067 = vadd.f32 %v3014, %v3051
      %v3068 = vadd.f32 %v3015, %v3052
      %v3069 = vadd.f32 %v3016, %v3053
      %v3070 = vadd.f32 %v3017, %v3054
      %v3071 = vld [vmem:[%s2963 + $0x2] sm:$0x1]
      %v3072 = vld [vmem:[%s2965 + $0x2] sm:$0xff]
      %v3073 = vld [vmem:[%s2965 + $0xa] sm:$0xff]
      %v3074 = vld [vmem:[%s2965 + $0x1a] sm:$0xff]
      %v3075 = vld [vmem:[%s2965 + $0x22] sm:$0xff]
      %v3076 = vld [vmem:[%s2965 + $0x32] sm:$0xff]
      %v3077 = vld [vmem:[%s2965 + $0x3a] sm:$0xff]
      %v3078 = vld [vmem:[%s2965 + $0x4a] sm:$0xff]
      %v3079 = vld [vmem:[%s2965 + $0x52] sm:$0xff]
      %v3080 = vld [vmem:[%s2965 + $0x62] sm:$0xff]
      %v3081 = vld [vmem:[%s2965 + $0x6a] sm:$0xff]
      %v3082 = vld [vmem:[%s2965 + $0x7a] sm:$0xff]
      %v3083 = vld [vmem:[%s2965 + $0x82] sm:$0xff]
      %v3084 = vld [vmem:[%s2965 + $0x92] sm:$0xff]
      %v3085 = vld [vmem:[%s2965 + $0x9a] sm:$0xff]
      %v3086 = vld [vmem:[%s2965 + $0xaa] sm:$0xff]
      %v3087 = vld [vmem:[%s2965 + $0xb2] sm:$0xff]
      %v3088 = vlaneseq
      %v3089 = vshrl.u32 %v3088, 7
      %v3090 = vsub.s32 0, %v3089
      %v3091 = vrot.slane %v3071, %v3090
      %v3092 = vmul.f32 %v3072, %v3091
      %v3093 = vmul.f32 %v3073, %v3091
      %v3094 = vmul.f32 %v3074, %v3091
      %v3095 = vmul.f32 %v3075, %v3091
      %v3096 = vmul.f32 %v3076, %v3091
      %v3097 = vmul.f32 %v3077, %v3091
      %v3098 = vmul.f32 %v3078, %v3091
      %v3099 = vmul.f32 %v3079, %v3091
      %v3100 = vmul.f32 %v3080, %v3091
      %v3101 = vmul.f32 %v3081, %v3091
      %v3102 = vmul.f32 %v3082, %v3091
      %v3103 = vmul.f32 %v3083, %v3091
      %v3104 = vmul.f32 %v3084, %v3091
      %v3105 = vmul.f32 %v3085, %v3091
      %v3106 = vmul.f32 %v3086, %v3091
      %v3107 = vmul.f32 %v3087, %v3091
      %v3108 = vadd.f32 %v3055, %v3092
      %v3109 = vadd.f32 %v3056, %v3093
      %v3110 = vadd.f32 %v3057, %v3094
      %v3111 = vadd.f32 %v3058, %v3095
      %v3112 = vadd.f32 %v3059, %v3096
      %v3113 = vadd.f32 %v3060, %v3097
      %v3114 = vadd.f32 %v3061, %v3098
      %v3115 = vadd.f32 %v3062, %v3099
      %v3116 = vadd.f32 %v3063, %v3100
      %v3117 = vadd.f32 %v3064, %v3101
      %v3118 = vadd.f32 %v3065, %v3102
      %v3119 = vadd.f32 %v3066, %v3103
      %v3120 = vadd.f32 %v3067, %v3104
      %v3121 = vadd.f32 %v3068, %v3105
      %v3122 = vadd.f32 %v3069, %v3106
      %v3123 = vadd.f32 %v3070, %v3107
      %v3124 = vld [vmem:[%s2963 + $0x3] sm:$0x1]
      %v3125 = vld [vmem:[%s2965 + $0x3] sm:$0xff]
      %v3126 = vld [vmem:[%s2965 + $0xb] sm:$0xff]
      %v3127 = vld [vmem:[%s2965 + $0x1b] sm:$0xff]
      %v3128 = vld [vmem:[%s2965 + $0x23] sm:$0xff]
      %v3129 = vld [vmem:[%s2965 + $0x33] sm:$0xff]
      %v3130 = vld [vmem:[%s2965 + $0x3b] sm:$0xff]
      %v3131 = vld [vmem:[%s2965 + $0x4b] sm:$0xff]
      %v3132 = vld [vmem:[%s2965 + $0x53] sm:$0xff]
      %v3133 = vld [vmem:[%s2965 + $0x63] sm:$0xff]
      %v3134 = vld [vmem:[%s2965 + $0x6b] sm:$0xff]
      %v3135 = vld [vmem:[%s2965 + $0x7b] sm:$0xff]
      %v3136 = vld [vmem:[%s2965 + $0x83] sm:$0xff]
      %v3137 = vld [vmem:[%s2965 + $0x93] sm:$0xff]
      %v3138 = vld [vmem:[%s2965 + $0x9b] sm:$0xff]
      %v3139 = vld [vmem:[%s2965 + $0xab] sm:$0xff]
      %v3140 = vld [vmem:[%s2965 + $0xb3] sm:$0xff]
      %v3141 = vlaneseq
      %v3142 = vshrl.u32 %v3141, 7
      %v3143 = vsub.s32 0, %v3142
      %v3144 = vrot.slane %v3124, %v3143
      %v3145 = vmul.f32 %v3125, %v3144
      %v3146 = vmul.f32 %v3126, %v3144
      %v3147 = vmul.f32 %v3127, %v3144
      %v3148 = vmul.f32 %v3128, %v3144
      %v3149 = vmul.f32 %v3129, %v3144
      %v3150 = vmul.f32 %v3130, %v3144
      %v3151 = vmul.f32 %v3131, %v3144
      %v3152 = vmul.f32 %v3132, %v3144
      %v3153 = vmul.f32 %v3133, %v3144
      %v3154 = vmul.f32 %v3134, %v3144
      %v3155 = vmul.f32 %v3135, %v3144
      %v3156 = vmul.f32 %v3136, %v3144
      %v3157 = vmul.f32 %v3137, %v3144
      %v3158 = vmul.f32 %v3138, %v3144
      %v3159 = vmul.f32 %v3139, %v3144
      %v3160 = vmul.f32 %v3140, %v3144
      %v3161 = vadd.f32 %v3108, %v3145
      %v3162 = vadd.f32 %v3109, %v3146
      %v3163 = vadd.f32 %v3110, %v3147
      %v3164 = vadd.f32 %v3111, %v3148
      %v3165 = vadd.f32 %v3112, %v3149
      %v3166 = vadd.f32 %v3113, %v3150
      %v3167 = vadd.f32 %v3114, %v3151
      %v3168 = vadd.f32 %v3115, %v3152
      %v3169 = vadd.f32 %v3116, %v3153
      %v3170 = vadd.f32 %v3117, %v3154
      %v3171 = vadd.f32 %v3118, %v3155
      %v3172 = vadd.f32 %v3119, %v3156
      %v3173 = vadd.f32 %v3120, %v3157
      %v3174 = vadd.f32 %v3121, %v3158
      %v3175 = vadd.f32 %v3122, %v3159
      %v3176 = vadd.f32 %v3123, %v3160
      %v3177 = vld [vmem:[%s2963 + $0x4] sm:$0x1]
      %v3178 = vld [vmem:[%s2965 + $0x4] sm:$0xff]
      %v3179 = vld [vmem:[%s2965 + $0xc] sm:$0xff]
      %v3180 = vld [vmem:[%s2965 + $0x1c] sm:$0xff]
      %v3181 = vld [vmem:[%s2965 + $0x24] sm:$0xff]
      %v3182 = vld [vmem:[%s2965 + $0x34] sm:$0xff]
      %v3183 = vld [vmem:[%s2965 + $0x3c] sm:$0xff]
      %v3184 = vld [vmem:[%s2965 + $0x4c] sm:$0xff]
      %v3185 = vld [vmem:[%s2965 + $0x54] sm:$0xff]
      %v3186 = vld [vmem:[%s2965 + $0x64] sm:$0xff]
      %v3187 = vld [vmem:[%s2965 + $0x6c] sm:$0xff]
      %v3188 = vld [vmem:[%s2965 + $0x7c] sm:$0xff]
      %v3189 = vld [vmem:[%s2965 + $0x84] sm:$0xff]
      %v3190 = vld [vmem:[%s2965 + $0x94] sm:$0xff]
      %v3191 = vld [vmem:[%s2965 + $0x9c] sm:$0xff]
      %v3192 = vld [vmem:[%s2965 + $0xac] sm:$0xff]
      %v3193 = vld [vmem:[%s2965 + $0xb4] sm:$0xff]
      %v3194 = vlaneseq
      %v3195 = vshrl.u32 %v3194, 7
      %v3196 = vsub.s32 0, %v3195
      %v3197 = vrot.slane %v3177, %v3196
      %v3198 = vmul.f32 %v3178, %v3197
      %v3199 = vmul.f32 %v3179, %v3197
      %v3200 = vmul.f32 %v3180, %v3197
      %v3201 = vmul.f32 %v3181, %v3197
      %v3202 = vmul.f32 %v3182, %v3197
      %v3203 = vmul.f32 %v3183, %v3197
      %v3204 = vmul.f32 %v3184, %v3197
      %v3205 = vmul.f32 %v3185, %v3197
      %v3206 = vmul.f32 %v3186, %v3197
      %v3207 = vmul.f32 %v3187, %v3197
      %v3208 = vmul.f32 %v3188, %v3197
      %v3209 = vmul.f32 %v3189, %v3197
      %v3210 = vmul.f32 %v3190, %v3197
      %v3211 = vmul.f32 %v3191, %v3197
      %v3212 = vmul.f32 %v3192, %v3197
      %v3213 = vmul.f32 %v3193, %v3197
      %v3214 = vadd.f32 %v3161, %v3198
      %v3215 = vadd.f32 %v3162, %v3199
      %v3216 = vadd.f32 %v3163, %v3200
      %v3217 = vadd.f32 %v3164, %v3201
      %v3218 = vadd.f32 %v3165, %v3202
      %v3219 = vadd.f32 %v3166, %v3203
      %v3220 = vadd.f32 %v3167, %v3204
      %v3221 = vadd.f32 %v3168, %v3205
      %v3222 = vadd.f32 %v3169, %v3206
      %v3223 = vadd.f32 %v3170, %v3207
      %v3224 = vadd.f32 %v3171, %v3208
      %v3225 = vadd.f32 %v3172, %v3209
      %v3226 = vadd.f32 %v3173, %v3210
      %v3227 = vadd.f32 %v3174, %v3211
      %v3228 = vadd.f32 %v3175, %v3212
      %v3229 = vadd.f32 %v3176, %v3213
      %s3230 = scalar_lea.vmem %s4, 16
      %v3231 = vld [vmem:[%s3230] sm:$0x1]
      %v3232 = vld [vmem:[%s1975] sm:$0xff]
      %v3233 = vld [vmem:[%s1975 + $0x8] sm:$0xff]
      %v3234 = vld [vmem:[%s1975 + $0x18] sm:$0xff]
      %v3235 = vld [vmem:[%s1975 + $0x20] sm:$0xff]
      %v3236 = vld [vmem:[%s1975 + $0x30] sm:$0xff]
      %v3237 = vld [vmem:[%s1975 + $0x38] sm:$0xff]
      %v3238 = vld [vmem:[%s1975 + $0x48] sm:$0xff]
      %v3239 = vld [vmem:[%s1975 + $0x50] sm:$0xff]
      %v3240 = vld [vmem:[%s1975 + $0x60] sm:$0xff]
      %v3241 = vld [vmem:[%s1975 + $0x68] sm:$0xff]
      %v3242 = vld [vmem:[%s1975 + $0x78] sm:$0xff]
      %v3243 = vld [vmem:[%s1975 + $0x80] sm:$0xff]
      %v3244 = vld [vmem:[%s1975 + $0x90] sm:$0xff]
      %v3245 = vld [vmem:[%s1975 + $0x98] sm:$0xff]
      %v3246 = vld [vmem:[%s1975 + $0xa8] sm:$0xff]
      %v3247 = vld [vmem:[%s1975 + $0xb0] sm:$0xff]
      %v3248 = vlaneseq
      %v3249 = vshrl.u32 %v3248, 7
      %v3250 = vsub.s32 0, %v3249
      %v3251 = vrot.slane %v3231, %v3250
      %v3252 = vmul.f32 %v3232, %v3251
      %v3253 = vmul.f32 %v3233, %v3251
      %v3254 = vmul.f32 %v3234, %v3251
      %v3255 = vmul.f32 %v3235, %v3251
      %v3256 = vmul.f32 %v3236, %v3251
      %v3257 = vmul.f32 %v3237, %v3251
      %v3258 = vmul.f32 %v3238, %v3251
      %v3259 = vmul.f32 %v3239, %v3251
      %v3260 = vmul.f32 %v3240, %v3251
      %v3261 = vmul.f32 %v3241, %v3251
      %v3262 = vmul.f32 %v3242, %v3251
      %v3263 = vmul.f32 %v3243, %v3251
      %v3264 = vmul.f32 %v3244, %v3251
      %v3265 = vmul.f32 %v3245, %v3251
      %v3266 = vmul.f32 %v3246, %v3251
      %v3267 = vmul.f32 %v3247, %v3251
      %v3268 = vadd.f32 %v3214, %v3252
      %v3269 = vadd.f32 %v3215, %v3253
      %v3270 = vadd.f32 %v3216, %v3254
      %v3271 = vadd.f32 %v3217, %v3255
      %v3272 = vadd.f32 %v3218, %v3256
      %v3273 = vadd.f32 %v3219, %v3257
      %v3274 = vadd.f32 %v3220, %v3258
      %v3275 = vadd.f32 %v3221, %v3259
      %v3276 = vadd.f32 %v3222, %v3260
      %v3277 = vadd.f32 %v3223, %v3261
      %v3278 = vadd.f32 %v3224, %v3262
      %v3279 = vadd.f32 %v3225, %v3263
      %v3280 = vadd.f32 %v3226, %v3264
      %v3281 = vadd.f32 %v3227, %v3265
      %v3282 = vadd.f32 %v3228, %v3266
      %v3283 = vadd.f32 %v3229, %v3267
      %v3284 = vld [vmem:[%s3230 + $0x1] sm:$0x1]
      %v3285 = vld [vmem:[%s1975 + $0x1] sm:$0xff]
      %v3286 = vld [vmem:[%s1975 + $0x9] sm:$0xff]
      %v3287 = vld [vmem:[%s1975 + $0x19] sm:$0xff]
      %v3288 = vld [vmem:[%s1975 + $0x21] sm:$0xff]
      %v3289 = vld [vmem:[%s1975 + $0x31] sm:$0xff]
      %v3290 = vld [vmem:[%s1975 + $0x39] sm:$0xff]
      %v3291 = vld [vmem:[%s1975 + $0x49] sm:$0xff]
      %v3292 = vld [vmem:[%s1975 + $0x51] sm:$0xff]
      %v3293 = vld [vmem:[%s1975 + $0x61] sm:$0xff]
      %v3294 = vld [vmem:[%s1975 + $0x69] sm:$0xff]
      %v3295 = vld [vmem:[%s1975 + $0x79] sm:$0xff]
      %v3296 = vld [vmem:[%s1975 + $0x81] sm:$0xff]
      %v3297 = vld [vmem:[%s1975 + $0x91] sm:$0xff]
      %v3298 = vld [vmem:[%s1975 + $0x99] sm:$0xff]
      %v3299 = vld [vmem:[%s1975 + $0xa9] sm:$0xff]
      %v3300 = vld [vmem:[%s1975 + $0xb1] sm:$0xff]
      %v3301 = vlaneseq
      %v3302 = vshrl.u32 %v3301, 7
      %v3303 = vsub.s32 0, %v3302
      %v3304 = vrot.slane %v3284, %v3303
      %v3305 = vmul.f32 %v3285, %v3304
      %v3306 = vmul.f32 %v3286, %v3304
      %v3307 = vmul.f32 %v3287, %v3304
      %v3308 = vmul.f32 %v3288, %v3304
      %v3309 = vmul.f32 %v3289, %v3304
      %v3310 = vmul.f32 %v3290, %v3304
      %v3311 = vmul.f32 %v3291, %v3304
      %v3312 = vmul.f32 %v3292, %v3304
      %v3313 = vmul.f32 %v3293, %v3304
      %v3314 = vmul.f32 %v3294, %v3304
      %v3315 = vmul.f32 %v3295, %v3304
      %v3316 = vmul.f32 %v3296, %v3304
      %v3317 = vmul.f32 %v3297, %v3304
      %v3318 = vmul.f32 %v3298, %v3304
      %v3319 = vmul.f32 %v3299, %v3304
      %v3320 = vmul.f32 %v3300, %v3304
      %v3321 = vadd.f32 %v3268, %v3305
      %v3322 = vadd.f32 %v3269, %v3306
      %v3323 = vadd.f32 %v3270, %v3307
      %v3324 = vadd.f32 %v3271, %v3308
      %v3325 = vadd.f32 %v3272, %v3309
      %v3326 = vadd.f32 %v3273, %v3310
      %v3327 = vadd.f32 %v3274, %v3311
      %v3328 = vadd.f32 %v3275, %v3312
      %v3329 = vadd.f32 %v3276, %v3313
      %v3330 = vadd.f32 %v3277, %v3314
      %v3331 = vadd.f32 %v3278, %v3315
      %v3332 = vadd.f32 %v3279, %v3316
      %v3333 = vadd.f32 %v3280, %v3317
      %v3334 = vadd.f32 %v3281, %v3318
      %v3335 = vadd.f32 %v3282, %v3319
      %v3336 = vadd.f32 %v3283, %v3320
      %v3337 = vld [vmem:[%s3230 + $0x2] sm:$0x1]
      %v3338 = vld [vmem:[%s1975 + $0x2] sm:$0xff]
      %v3339 = vld [vmem:[%s1975 + $0xa] sm:$0xff]
      %v3340 = vld [vmem:[%s1975 + $0x1a] sm:$0xff]
      %v3341 = vld [vmem:[%s1975 + $0x22] sm:$0xff]
      %v3342 = vld [vmem:[%s1975 + $0x32] sm:$0xff]
      %v3343 = vld [vmem:[%s1975 + $0x3a] sm:$0xff]
      %v3344 = vld [vmem:[%s1975 + $0x4a] sm:$0xff]
      %v3345 = vld [vmem:[%s1975 + $0x52] sm:$0xff]
      %v3346 = vld [vmem:[%s1975 + $0x62] sm:$0xff]
      %v3347 = vld [vmem:[%s1975 + $0x6a] sm:$0xff]
      %v3348 = vld [vmem:[%s1975 + $0x7a] sm:$0xff]
      %v3349 = vld [vmem:[%s1975 + $0x82] sm:$0xff]
      %v3350 = vld [vmem:[%s1975 + $0x92] sm:$0xff]
      %v3351 = vld [vmem:[%s1975 + $0x9a] sm:$0xff]
      %v3352 = vld [vmem:[%s1975 + $0xaa] sm:$0xff]
      %v3353 = vld [vmem:[%s1975 + $0xb2] sm:$0xff]
      %v3354 = vlaneseq
      %v3355 = vshrl.u32 %v3354, 7
      %v3356 = vsub.s32 0, %v3355
      %v3357 = vrot.slane %v3337, %v3356
      %v3358 = vmul.f32 %v3338, %v3357
      %v3359 = vmul.f32 %v3339, %v3357
      %v3360 = vmul.f32 %v3340, %v3357
      %v3361 = vmul.f32 %v3341, %v3357
      %v3362 = vmul.f32 %v3342, %v3357
      %v3363 = vmul.f32 %v3343, %v3357
      %v3364 = vmul.f32 %v3344, %v3357
      %v3365 = vmul.f32 %v3345, %v3357
      %v3366 = vmul.f32 %v3346, %v3357
      %v3367 = vmul.f32 %v3347, %v3357
      %v3368 = vmul.f32 %v3348, %v3357
      %v3369 = vmul.f32 %v3349, %v3357
      %v3370 = vmul.f32 %v3350, %v3357
      %v3371 = vmul.f32 %v3351, %v3357
      %v3372 = vmul.f32 %v3352, %v3357
      %v3373 = vmul.f32 %v3353, %v3357
      %v3374 = vadd.f32 %v3321, %v3358
      %v3375 = vadd.f32 %v3322, %v3359
      %v3376 = vadd.f32 %v3323, %v3360
      %v3377 = vadd.f32 %v3324, %v3361
      %v3378 = vadd.f32 %v3325, %v3362
      %v3379 = vadd.f32 %v3326, %v3363
      %v3380 = vadd.f32 %v3327, %v3364
      %v3381 = vadd.f32 %v3328, %v3365
      %v3382 = vadd.f32 %v3329, %v3366
      %v3383 = vadd.f32 %v3330, %v3367
      %v3384 = vadd.f32 %v3331, %v3368
      %v3385 = vadd.f32 %v3332, %v3369
      %v3386 = vadd.f32 %v3333, %v3370
      %v3387 = vadd.f32 %v3334, %v3371
      %v3388 = vadd.f32 %v3335, %v3372
      %v3389 = vadd.f32 %v3336, %v3373
      %v3390 = vld [vmem:[%s3230 + $0x3] sm:$0x1]
      %v3391 = vld [vmem:[%s1975 + $0x3] sm:$0xff]
      %v3392 = vld [vmem:[%s1975 + $0xb] sm:$0xff]
      %v3393 = vld [vmem:[%s1975 + $0x1b] sm:$0xff]
      %v3394 = vld [vmem:[%s1975 + $0x23] sm:$0xff]
      %v3395 = vld [vmem:[%s1975 + $0x33] sm:$0xff]
      %v3396 = vld [vmem:[%s1975 + $0x3b] sm:$0xff]
      %v3397 = vld [vmem:[%s1975 + $0x4b] sm:$0xff]
      %v3398 = vld [vmem:[%s1975 + $0x53] sm:$0xff]
      %v3399 = vld [vmem:[%s1975 + $0x63] sm:$0xff]
      %v3400 = vld [vmem:[%s1975 + $0x6b] sm:$0xff]
      %v3401 = vld [vmem:[%s1975 + $0x7b] sm:$0xff]
      %v3402 = vld [vmem:[%s1975 + $0x83] sm:$0xff]
      %v3403 = vld [vmem:[%s1975 + $0x93] sm:$0xff]
      %v3404 = vld [vmem:[%s1975 + $0x9b] sm:$0xff]
      %v3405 = vld [vmem:[%s1975 + $0xab] sm:$0xff]
      %v3406 = vld [vmem:[%s1975 + $0xb3] sm:$0xff]
      %v3407 = vlaneseq
      %v3408 = vshrl.u32 %v3407, 7
      %v3409 = vsub.s32 0, %v3408
      %v3410 = vrot.slane %v3390, %v3409
      %v3411 = vmul.f32 %v3391, %v3410
      %v3412 = vmul.f32 %v3392, %v3410
      %v3413 = vmul.f32 %v3393, %v3410
      %v3414 = vmul.f32 %v3394, %v3410
      %v3415 = vmul.f32 %v3395, %v3410
      %v3416 = vmul.f32 %v3396, %v3410
      %v3417 = vmul.f32 %v3397, %v3410
      %v3418 = vmul.f32 %v3398, %v3410
      %v3419 = vmul.f32 %v3399, %v3410
      %v3420 = vmul.f32 %v3400, %v3410
      %v3421 = vmul.f32 %v3401, %v3410
      %v3422 = vmul.f32 %v3402, %v3410
      %v3423 = vmul.f32 %v3403, %v3410
      %v3424 = vmul.f32 %v3404, %v3410
      %v3425 = vmul.f32 %v3405, %v3410
      %v3426 = vmul.f32 %v3406, %v3410
      %v3427 = vadd.f32 %v3374, %v3411
      %v3428 = vadd.f32 %v3375, %v3412
      %v3429 = vadd.f32 %v3376, %v3413
      %v3430 = vadd.f32 %v3377, %v3414
      %v3431 = vadd.f32 %v3378, %v3415
      %v3432 = vadd.f32 %v3379, %v3416
      %v3433 = vadd.f32 %v3380, %v3417
      %v3434 = vadd.f32 %v3381, %v3418
      %v3435 = vadd.f32 %v3382, %v3419
      %v3436 = vadd.f32 %v3383, %v3420
      %v3437 = vadd.f32 %v3384, %v3421
      %v3438 = vadd.f32 %v3385, %v3422
      %v3439 = vadd.f32 %v3386, %v3423
      %v3440 = vadd.f32 %v3387, %v3424
      %v3441 = vadd.f32 %v3388, %v3425
      %v3442 = vadd.f32 %v3389, %v3426
      %v3443 = vld [vmem:[%s3230 + $0x4] sm:$0x1]
      %v3444 = vld [vmem:[%s1975 + $0x4] sm:$0xff]
      %v3445 = vld [vmem:[%s1975 + $0xc] sm:$0xff]
      %v3446 = vld [vmem:[%s1975 + $0x1c] sm:$0xff]
      %v3447 = vld [vmem:[%s1975 + $0x24] sm:$0xff]
      %v3448 = vld [vmem:[%s1975 + $0x34] sm:$0xff]
      %v3449 = vld [vmem:[%s1975 + $0x3c] sm:$0xff]
      %v3450 = vld [vmem:[%s1975 + $0x4c] sm:$0xff]
      %v3451 = vld [vmem:[%s1975 + $0x54] sm:$0xff]
      %v3452 = vld [vmem:[%s1975 + $0x64] sm:$0xff]
      %v3453 = vld [vmem:[%s1975 + $0x6c] sm:$0xff]
      %v3454 = vld [vmem:[%s1975 + $0x7c] sm:$0xff]
      %v3455 = vld [vmem:[%s1975 + $0x84] sm:$0xff]
      %v3456 = vld [vmem:[%s1975 + $0x94] sm:$0xff]
      %v3457 = vld [vmem:[%s1975 + $0x9c] sm:$0xff]
      %v3458 = vld [vmem:[%s1975 + $0xac] sm:$0xff]
      %v3459 = vld [vmem:[%s1975 + $0xb4] sm:$0xff]
      %v3460 = vlaneseq
      %v3461 = vshrl.u32 %v3460, 7
      %v3462 = vsub.s32 0, %v3461
      %v3463 = vrot.slane %v3443, %v3462
      %v3464 = vmul.f32 %v3444, %v3463
      %v3465 = vmul.f32 %v3445, %v3463
      %v3466 = vmul.f32 %v3446, %v3463
      %v3467 = vmul.f32 %v3447, %v3463
      %v3468 = vmul.f32 %v3448, %v3463
      %v3469 = vmul.f32 %v3449, %v3463
      %v3470 = vmul.f32 %v3450, %v3463
      %v3471 = vmul.f32 %v3451, %v3463
      %v3472 = vmul.f32 %v3452, %v3463
      %v3473 = vmul.f32 %v3453, %v3463
      %v3474 = vmul.f32 %v3454, %v3463
      %v3475 = vmul.f32 %v3455, %v3463
      %v3476 = vmul.f32 %v3456, %v3463
      %v3477 = vmul.f32 %v3457, %v3463
      %v3478 = vmul.f32 %v3458, %v3463
      %v3479 = vmul.f32 %v3459, %v3463
      %v3480 = vadd.f32 %v3427, %v3464
      %v3481 = vadd.f32 %v3428, %v3465
      %v3482 = vadd.f32 %v3429, %v3466
      %v3483 = vadd.f32 %v3430, %v3467
      %v3484 = vadd.f32 %v3431, %v3468
      %v3485 = vadd.f32 %v3432, %v3469
      %v3486 = vadd.f32 %v3433, %v3470
      %v3487 = vadd.f32 %v3434, %v3471
      %v3488 = vadd.f32 %v3435, %v3472
      %v3489 = vadd.f32 %v3436, %v3473
      %v3490 = vadd.f32 %v3437, %v3474
      %v3491 = vadd.f32 %v3438, %v3475
      %v3492 = vadd.f32 %v3439, %v3476
      %v3493 = vadd.f32 %v3440, %v3477
      %v3494 = vadd.f32 %v3441, %v3478
      %v3495 = vadd.f32 %v3442, %v3479
      %s3496 = scalar_lea.vmem %s4, 24
      %v3497 = vld [vmem:[%s3496] sm:$0x1]
      %s3498 = scalar_lea.vmem [#allocation3], 72
      %v3499 = vld [vmem:[%s3498] sm:$0xff]
      %v3500 = vld [vmem:[%s3498 + $0x8] sm:$0xff]
      %v3501 = vld [vmem:[%s3498 + $0x18] sm:$0xff]
      %v3502 = vld [vmem:[%s3498 + $0x20] sm:$0xff]
      %v3503 = vld [vmem:[%s3498 + $0x30] sm:$0xff]
      %v3504 = vld [vmem:[%s3498 + $0x38] sm:$0xff]
      %v3505 = vld [vmem:[%s3498 + $0x48] sm:$0xff]
      %v3506 = vld [vmem:[%s3498 + $0x50] sm:$0xff]
      %v3507 = vld [vmem:[%s3498 + $0x60] sm:$0xff]
      %v3508 = vld [vmem:[%s3498 + $0x68] sm:$0xff]
      %v3509 = vld [vmem:[%s3498 + $0x78] sm:$0xff]
      %v3510 = vld [vmem:[%s3498 + $0x80] sm:$0xff]
      %v3511 = vld [vmem:[%s3498 + $0x90] sm:$0xff]
      %v3512 = vld [vmem:[%s3498 + $0x98] sm:$0xff]
      %v3513 = vld [vmem:[%s3498 + $0xa8] sm:$0xff]
      %v3514 = vld [vmem:[%s3498 + $0xb0] sm:$0xff]
      %v3515 = vlaneseq
      %v3516 = vshrl.u32 %v3515, 7
      %v3517 = vsub.s32 0, %v3516
      %v3518 = vrot.slane %v3497, %v3517
      %v3519 = vmul.f32 %v3499, %v3518
      %v3520 = vmul.f32 %v3500, %v3518
      %v3521 = vmul.f32 %v3501, %v3518
      %v3522 = vmul.f32 %v3502, %v3518
      %v3523 = vmul.f32 %v3503, %v3518
      %v3524 = vmul.f32 %v3504, %v3518
      %v3525 = vmul.f32 %v3505, %v3518
      %v3526 = vmul.f32 %v3506, %v3518
      %v3527 = vmul.f32 %v3507, %v3518
      %v3528 = vmul.f32 %v3508, %v3518
      %v3529 = vmul.f32 %v3509, %v3518
      %v3530 = vmul.f32 %v3510, %v3518
      %v3531 = vmul.f32 %v3511, %v3518
      %v3532 = vmul.f32 %v3512, %v3518
      %v3533 = vmul.f32 %v3513, %v3518
      %v3534 = vmul.f32 %v3514, %v3518
      %v3535 = vadd.f32 %v3480, %v3519
      %v3536 = vadd.f32 %v3481, %v3520
      %v3537 = vadd.f32 %v3482, %v3521
      %v3538 = vadd.f32 %v3483, %v3522
      %v3539 = vadd.f32 %v3484, %v3523
      %v3540 = vadd.f32 %v3485, %v3524
      %v3541 = vadd.f32 %v3486, %v3525
      %v3542 = vadd.f32 %v3487, %v3526
      %v3543 = vadd.f32 %v3488, %v3527
      %v3544 = vadd.f32 %v3489, %v3528
      %v3545 = vadd.f32 %v3490, %v3529
      %v3546 = vadd.f32 %v3491, %v3530
      %v3547 = vadd.f32 %v3492, %v3531
      %v3548 = vadd.f32 %v3493, %v3532
      %v3549 = vadd.f32 %v3494, %v3533
      %v3550 = vadd.f32 %v3495, %v3534
      %v3551 = vld [vmem:[%s3496 + $0x1] sm:$0x1]
      %v3552 = vld [vmem:[%s3498 + $0x1] sm:$0xff]
      %v3553 = vld [vmem:[%s3498 + $0x9] sm:$0xff]
      %v3554 = vld [vmem:[%s3498 + $0x19] sm:$0xff]
      %v3555 = vld [vmem:[%s3498 + $0x21] sm:$0xff]
      %v3556 = vld [vmem:[%s3498 + $0x31] sm:$0xff]
      %v3557 = vld [vmem:[%s3498 + $0x39] sm:$0xff]
      %v3558 = vld [vmem:[%s3498 + $0x49] sm:$0xff]
      %v3559 = vld [vmem:[%s3498 + $0x51] sm:$0xff]
      %v3560 = vld [vmem:[%s3498 + $0x61] sm:$0xff]
      %v3561 = vld [vmem:[%s3498 + $0x69] sm:$0xff]
      %v3562 = vld [vmem:[%s3498 + $0x79] sm:$0xff]
      %v3563 = vld [vmem:[%s3498 + $0x81] sm:$0xff]
      %v3564 = vld [vmem:[%s3498 + $0x91] sm:$0xff]
      %v3565 = vld [vmem:[%s3498 + $0x99] sm:$0xff]
      %v3566 = vld [vmem:[%s3498 + $0xa9] sm:$0xff]
      %v3567 = vld [vmem:[%s3498 + $0xb1] sm:$0xff]
      %v3568 = vlaneseq
      %v3569 = vshrl.u32 %v3568, 7
      %v3570 = vsub.s32 0, %v3569
      %v3571 = vrot.slane %v3551, %v3570
      %v3572 = vmul.f32 %v3552, %v3571
      %v3573 = vmul.f32 %v3553, %v3571
      %v3574 = vmul.f32 %v3554, %v3571
      %v3575 = vmul.f32 %v3555, %v3571
      %v3576 = vmul.f32 %v3556, %v3571
      %v3577 = vmul.f32 %v3557, %v3571
      %v3578 = vmul.f32 %v3558, %v3571
      %v3579 = vmul.f32 %v3559, %v3571
      %v3580 = vmul.f32 %v3560, %v3571
      %v3581 = vmul.f32 %v3561, %v3571
      %v3582 = vmul.f32 %v3562, %v3571
      %v3583 = vmul.f32 %v3563, %v3571
      %v3584 = vmul.f32 %v3564, %v3571
      %v3585 = vmul.f32 %v3565, %v3571
      %v3586 = vmul.f32 %v3566, %v3571
      %v3587 = vmul.f32 %v3567, %v3571
      %v3588 = vadd.f32 %v3535, %v3572
      %v3589 = vadd.f32 %v3536, %v3573
      %v3590 = vadd.f32 %v3537, %v3574
      %v3591 = vadd.f32 %v3538, %v3575
      %v3592 = vadd.f32 %v3539, %v3576
      %v3593 = vadd.f32 %v3540, %v3577
      %v3594 = vadd.f32 %v3541, %v3578
      %v3595 = vadd.f32 %v3542, %v3579
      %v3596 = vadd.f32 %v3543, %v3580
      %v3597 = vadd.f32 %v3544, %v3581
      %v3598 = vadd.f32 %v3545, %v3582
      %v3599 = vadd.f32 %v3546, %v3583
      %v3600 = vadd.f32 %v3547, %v3584
      %v3601 = vadd.f32 %v3548, %v3585
      %v3602 = vadd.f32 %v3549, %v3586
      %v3603 = vadd.f32 %v3550, %v3587
      %v3604 = vld [vmem:[%s3496 + $0x2] sm:$0x1]
      %v3605 = vld [vmem:[%s3498 + $0x2] sm:$0xff]
      %v3606 = vld [vmem:[%s3498 + $0xa] sm:$0xff]
      %v3607 = vld [vmem:[%s3498 + $0x1a] sm:$0xff]
      %v3608 = vld [vmem:[%s3498 + $0x22] sm:$0xff]
      %v3609 = vld [vmem:[%s3498 + $0x32] sm:$0xff]
      %v3610 = vld [vmem:[%s3498 + $0x3a] sm:$0xff]
      %v3611 = vld [vmem:[%s3498 + $0x4a] sm:$0xff]
      %v3612 = vld [vmem:[%s3498 + $0x52] sm:$0xff]
      %v3613 = vld [vmem:[%s3498 + $0x62] sm:$0xff]
      %v3614 = vld [vmem:[%s3498 + $0x6a] sm:$0xff]
      %v3615 = vld [vmem:[%s3498 + $0x7a] sm:$0xff]
      %v3616 = vld [vmem:[%s3498 + $0x82] sm:$0xff]
      %v3617 = vld [vmem:[%s3498 + $0x92] sm:$0xff]
      %v3618 = vld [vmem:[%s3498 + $0x9a] sm:$0xff]
      %v3619 = vld [vmem:[%s3498 + $0xaa] sm:$0xff]
      %v3620 = vld [vmem:[%s3498 + $0xb2] sm:$0xff]
      %v3621 = vlaneseq
      %v3622 = vshrl.u32 %v3621, 7
      %v3623 = vsub.s32 0, %v3622
      %v3624 = vrot.slane %v3604, %v3623
      %v3625 = vmul.f32 %v3605, %v3624
      %v3626 = vmul.f32 %v3606, %v3624
      %v3627 = vmul.f32 %v3607, %v3624
      %v3628 = vmul.f32 %v3608, %v3624
      %v3629 = vmul.f32 %v3609, %v3624
      %v3630 = vmul.f32 %v3610, %v3624
      %v3631 = vmul.f32 %v3611, %v3624
      %v3632 = vmul.f32 %v3612, %v3624
      %v3633 = vmul.f32 %v3613, %v3624
      %v3634 = vmul.f32 %v3614, %v3624
      %v3635 = vmul.f32 %v3615, %v3624
      %v3636 = vmul.f32 %v3616, %v3624
      %v3637 = vmul.f32 %v3617, %v3624
      %v3638 = vmul.f32 %v3618, %v3624
      %v3639 = vmul.f32 %v3619, %v3624
      %v3640 = vmul.f32 %v3620, %v3624
      %v3641 = vadd.f32 %v3588, %v3625
      %v3642 = vadd.f32 %v3589, %v3626
      %v3643 = vadd.f32 %v3590, %v3627
      %v3644 = vadd.f32 %v3591, %v3628
      %v3645 = vadd.f32 %v3592, %v3629
      %v3646 = vadd.f32 %v3593, %v3630
      %v3647 = vadd.f32 %v3594, %v3631
      %v3648 = vadd.f32 %v3595, %v3632
      %v3649 = vadd.f32 %v3596, %v3633
      %v3650 = vadd.f32 %v3597, %v3634
      %v3651 = vadd.f32 %v3598, %v3635
      %v3652 = vadd.f32 %v3599, %v3636
      %v3653 = vadd.f32 %v3600, %v3637
      %v3654 = vadd.f32 %v3601, %v3638
      %v3655 = vadd.f32 %v3602, %v3639
      %v3656 = vadd.f32 %v3603, %v3640
      %v3657 = vld [vmem:[%s3496 + $0x3] sm:$0x1]
      %v3658 = vld [vmem:[%s3498 + $0x3] sm:$0xff]
      %v3659 = vld [vmem:[%s3498 + $0xb] sm:$0xff]
      %v3660 = vld [vmem:[%s3498 + $0x1b] sm:$0xff]
      %v3661 = vld [vmem:[%s3498 + $0x23] sm:$0xff]
      %v3662 = vld [vmem:[%s3498 + $0x33] sm:$0xff]
      %v3663 = vld [vmem:[%s3498 + $0x3b] sm:$0xff]
      %v3664 = vld [vmem:[%s3498 + $0x4b] sm:$0xff]
      %v3665 = vld [vmem:[%s3498 + $0x53] sm:$0xff]
      %v3666 = vld [vmem:[%s3498 + $0x63] sm:$0xff]
      %v3667 = vld [vmem:[%s3498 + $0x6b] sm:$0xff]
      %v3668 = vld [vmem:[%s3498 + $0x7b] sm:$0xff]
      %v3669 = vld [vmem:[%s3498 + $0x83] sm:$0xff]
      %v3670 = vld [vmem:[%s3498 + $0x93] sm:$0xff]
      %v3671 = vld [vmem:[%s3498 + $0x9b] sm:$0xff]
      %v3672 = vld [vmem:[%s3498 + $0xab] sm:$0xff]
      %v3673 = vld [vmem:[%s3498 + $0xb3] sm:$0xff]
      %v3674 = vlaneseq
      %v3675 = vshrl.u32 %v3674, 7
      %v3676 = vsub.s32 0, %v3675
      %v3677 = vrot.slane %v3657, %v3676
      %v3678 = vmul.f32 %v3658, %v3677
      %v3679 = vmul.f32 %v3659, %v3677
      %v3680 = vmul.f32 %v3660, %v3677
      %v3681 = vmul.f32 %v3661, %v3677
      %v3682 = vmul.f32 %v3662, %v3677
      %v3683 = vmul.f32 %v3663, %v3677
      %v3684 = vmul.f32 %v3664, %v3677
      %v3685 = vmul.f32 %v3665, %v3677
      %v3686 = vmul.f32 %v3666, %v3677
      %v3687 = vmul.f32 %v3667, %v3677
      %v3688 = vmul.f32 %v3668, %v3677
      %v3689 = vmul.f32 %v3669, %v3677
      %v3690 = vmul.f32 %v3670, %v3677
      %v3691 = vmul.f32 %v3671, %v3677
      %v3692 = vmul.f32 %v3672, %v3677
      %v3693 = vmul.f32 %v3673, %v3677
      %v3694 = vadd.f32 %v3641, %v3678
      %v3695 = vadd.f32 %v3642, %v3679
      %v3696 = vadd.f32 %v3643, %v3680
      %v3697 = vadd.f32 %v3644, %v3681
      %v3698 = vadd.f32 %v3645, %v3682
      %v3699 = vadd.f32 %v3646, %v3683
      %v3700 = vadd.f32 %v3647, %v3684
      %v3701 = vadd.f32 %v3648, %v3685
      %v3702 = vadd.f32 %v3649, %v3686
      %v3703 = vadd.f32 %v3650, %v3687
      %v3704 = vadd.f32 %v3651, %v3688
      %v3705 = vadd.f32 %v3652, %v3689
      %v3706 = vadd.f32 %v3653, %v3690
      %v3707 = vadd.f32 %v3654, %v3691
      %v3708 = vadd.f32 %v3655, %v3692
      %v3709 = vadd.f32 %v3656, %v3693
      %v3710 = vld [vmem:[%s3496 + $0x4] sm:$0x1]
      %v3711 = vld [vmem:[%s3498 + $0x4] sm:$0xff]
      %v3712 = vld [vmem:[%s3498 + $0xc] sm:$0xff]
      %v3713 = vld [vmem:[%s3498 + $0x1c] sm:$0xff]
      %v3714 = vld [vmem:[%s3498 + $0x24] sm:$0xff]
      %v3715 = vld [vmem:[%s3498 + $0x34] sm:$0xff]
      %v3716 = vld [vmem:[%s3498 + $0x3c] sm:$0xff]
      %v3717 = vld [vmem:[%s3498 + $0x4c] sm:$0xff]
      %v3718 = vld [vmem:[%s3498 + $0x54] sm:$0xff]
      %v3719 = vld [vmem:[%s3498 + $0x64] sm:$0xff]
      %v3720 = vld [vmem:[%s3498 + $0x6c] sm:$0xff]
      %v3721 = vld [vmem:[%s3498 + $0x7c] sm:$0xff]
      %v3722 = vld [vmem:[%s3498 + $0x84] sm:$0xff]
      %v3723 = vld [vmem:[%s3498 + $0x94] sm:$0xff]
      %v3724 = vld [vmem:[%s3498 + $0x9c] sm:$0xff]
      %v3725 = vld [vmem:[%s3498 + $0xac] sm:$0xff]
      %v3726 = vld [vmem:[%s3498 + $0xb4] sm:$0xff]
      %v3727 = vlaneseq
      %v3728 = vshrl.u32 %v3727, 7
      %v3729 = vsub.s32 0, %v3728
      %v3730 = vrot.slane %v3710, %v3729
      %v3731 = vmul.f32 %v3711, %v3730
      %v3732 = vmul.f32 %v3712, %v3730
      %v3733 = vmul.f32 %v3713, %v3730
      %v3734 = vmul.f32 %v3714, %v3730
      %v3735 = vmul.f32 %v3715, %v3730
      %v3736 = vmul.f32 %v3716, %v3730
      %v3737 = vmul.f32 %v3717, %v3730
      %v3738 = vmul.f32 %v3718, %v3730
      %v3739 = vmul.f32 %v3719, %v3730
      %v3740 = vmul.f32 %v3720, %v3730
      %v3741 = vmul.f32 %v3721, %v3730
      %v3742 = vmul.f32 %v3722, %v3730
      %v3743 = vmul.f32 %v3723, %v3730
      %v3744 = vmul.f32 %v3724, %v3730
      %v3745 = vmul.f32 %v3725, %v3730
      %v3746 = vmul.f32 %v3726, %v3730
      %v3747 = vadd.f32 %v3694, %v3731
      %v3748 = vadd.f32 %v3695, %v3732
      %v3749 = vadd.f32 %v3696, %v3733
      %v3750 = vadd.f32 %v3697, %v3734
      %v3751 = vadd.f32 %v3698, %v3735
      %v3752 = vadd.f32 %v3699, %v3736
      %v3753 = vadd.f32 %v3700, %v3737
      %v3754 = vadd.f32 %v3701, %v3738
      %v3755 = vadd.f32 %v3702, %v3739
      %v3756 = vadd.f32 %v3703, %v3740
      %v3757 = vadd.f32 %v3704, %v3741
      %v3758 = vadd.f32 %v3705, %v3742
      %v3759 = vadd.f32 %v3706, %v3743
      %v3760 = vadd.f32 %v3707, %v3744
      %v3761 = vadd.f32 %v3708, %v3745
      %v3762 = vadd.f32 %v3709, %v3746
      %s3763 = scalar_lea.vmem %s4, 32
      %v3764 = vld [vmem:[%s3763] sm:$0x1]
      %s3765 = scalar_lea.vmem [#allocation3], 96
      %v3766 = vld [vmem:[%s3765] sm:$0xff]
      %v3767 = vld [vmem:[%s3765 + $0x8] sm:$0xff]
      %v3768 = vld [vmem:[%s3765 + $0x18] sm:$0xff]
      %v3769 = vld [vmem:[%s3765 + $0x20] sm:$0xff]
      %v3770 = vld [vmem:[%s3765 + $0x30] sm:$0xff]
      %v3771 = vld [vmem:[%s3765 + $0x38] sm:$0xff]
      %v3772 = vld [vmem:[%s3765 + $0x48] sm:$0xff]
      %v3773 = vld [vmem:[%s3765 + $0x50] sm:$0xff]
      %v3774 = vld [vmem:[%s3765 + $0x60] sm:$0xff]
      %v3775 = vld [vmem:[%s3765 + $0x68] sm:$0xff]
      %v3776 = vld [vmem:[%s3765 + $0x78] sm:$0xff]
      %v3777 = vld [vmem:[%s3765 + $0x80] sm:$0xff]
      %v3778 = vld [vmem:[%s3765 + $0x90] sm:$0xff]
      %v3779 = vld [vmem:[%s3765 + $0x98] sm:$0xff]
      %v3780 = vld [vmem:[%s3765 + $0xa8] sm:$0xff]
      %v3781 = vld [vmem:[%s3765 + $0xb0] sm:$0xff]
      %v3782 = vlaneseq
      %v3783 = vshrl.u32 %v3782, 7
      %v3784 = vsub.s32 0, %v3783
      %v3785 = vrot.slane %v3764, %v3784
      %v3786 = vmul.f32 %v3766, %v3785
      %v3787 = vmul.f32 %v3767, %v3785
      %v3788 = vmul.f32 %v3768, %v3785
      %v3789 = vmul.f32 %v3769, %v3785
      %v3790 = vmul.f32 %v3770, %v3785
      %v3791 = vmul.f32 %v3771, %v3785
      %v3792 = vmul.f32 %v3772, %v3785
      %v3793 = vmul.f32 %v3773, %v3785
      %v3794 = vmul.f32 %v3774, %v3785
      %v3795 = vmul.f32 %v3775, %v3785
      %v3796 = vmul.f32 %v3776, %v3785
      %v3797 = vmul.f32 %v3777, %v3785
      %v3798 = vmul.f32 %v3778, %v3785
      %v3799 = vmul.f32 %v3779, %v3785
      %v3800 = vmul.f32 %v3780, %v3785
      %v3801 = vmul.f32 %v3781, %v3785
      %v3802 = vadd.f32 %v3747, %v3786
      %v3803 = vadd.f32 %v3748, %v3787
      %v3804 = vadd.f32 %v3749, %v3788
      %v3805 = vadd.f32 %v3750, %v3789
      %v3806 = vadd.f32 %v3751, %v3790
      %v3807 = vadd.f32 %v3752, %v3791
      %v3808 = vadd.f32 %v3753, %v3792
      %v3809 = vadd.f32 %v3754, %v3793
      %v3810 = vadd.f32 %v3755, %v3794
      %v3811 = vadd.f32 %v3756, %v3795
      %v3812 = vadd.f32 %v3757, %v3796
      %v3813 = vadd.f32 %v3758, %v3797
      %v3814 = vadd.f32 %v3759, %v3798
      %v3815 = vadd.f32 %v3760, %v3799
      %v3816 = vadd.f32 %v3761, %v3800
      %v3817 = vadd.f32 %v3762, %v3801
      %v3818 = vld [vmem:[%s3763 + $0x1] sm:$0x1]
      %v3819 = vld [vmem:[%s3765 + $0x1] sm:$0xff]
      %v3820 = vld [vmem:[%s3765 + $0x9] sm:$0xff]
      %v3821 = vld [vmem:[%s3765 + $0x19] sm:$0xff]
      %v3822 = vld [vmem:[%s3765 + $0x21] sm:$0xff]
      %v3823 = vld [vmem:[%s3765 + $0x31] sm:$0xff]
      %v3824 = vld [vmem:[%s3765 + $0x39] sm:$0xff]
      %v3825 = vld [vmem:[%s3765 + $0x49] sm:$0xff]
      %v3826 = vld [vmem:[%s3765 + $0x51] sm:$0xff]
      %v3827 = vld [vmem:[%s3765 + $0x61] sm:$0xff]
      %v3828 = vld [vmem:[%s3765 + $0x69] sm:$0xff]
      %v3829 = vld [vmem:[%s3765 + $0x79] sm:$0xff]
      %v3830 = vld [vmem:[%s3765 + $0x81] sm:$0xff]
      %v3831 = vld [vmem:[%s3765 + $0x91] sm:$0xff]
      %v3832 = vld [vmem:[%s3765 + $0x99] sm:$0xff]
      %v3833 = vld [vmem:[%s3765 + $0xa9] sm:$0xff]
      %v3834 = vld [vmem:[%s3765 + $0xb1] sm:$0xff]
      %v3835 = vlaneseq
      %v3836 = vshrl.u32 %v3835, 7
      %v3837 = vsub.s32 0, %v3836
      %v3838 = vrot.slane %v3818, %v3837
      %v3839 = vmul.f32 %v3819, %v3838
      %v3840 = vmul.f32 %v3820, %v3838
      %v3841 = vmul.f32 %v3821, %v3838
      %v3842 = vmul.f32 %v3822, %v3838
      %v3843 = vmul.f32 %v3823, %v3838
      %v3844 = vmul.f32 %v3824, %v3838
      %v3845 = vmul.f32 %v3825, %v3838
      %v3846 = vmul.f32 %v3826, %v3838
      %v3847 = vmul.f32 %v3827, %v3838
      %v3848 = vmul.f32 %v3828, %v3838
      %v3849 = vmul.f32 %v3829, %v3838
      %v3850 = vmul.f32 %v3830, %v3838
      %v3851 = vmul.f32 %v3831, %v3838
      %v3852 = vmul.f32 %v3832, %v3838
      %v3853 = vmul.f32 %v3833, %v3838
      %v3854 = vmul.f32 %v3834, %v3838
      %v3855 = vadd.f32 %v3802, %v3839
      %v3856 = vadd.f32 %v3803, %v3840
      %v3857 = vadd.f32 %v3804, %v3841
      %v3858 = vadd.f32 %v3805, %v3842
      %v3859 = vadd.f32 %v3806, %v3843
      %v3860 = vadd.f32 %v3807, %v3844
      %v3861 = vadd.f32 %v3808, %v3845
      %v3862 = vadd.f32 %v3809, %v3846
      %v3863 = vadd.f32 %v3810, %v3847
      %v3864 = vadd.f32 %v3811, %v3848
      %v3865 = vadd.f32 %v3812, %v3849
      %v3866 = vadd.f32 %v3813, %v3850
      %v3867 = vadd.f32 %v3814, %v3851
      %v3868 = vadd.f32 %v3815, %v3852
      %v3869 = vadd.f32 %v3816, %v3853
      %v3870 = vadd.f32 %v3817, %v3854
      %v3871 = vld [vmem:[%s3763 + $0x2] sm:$0x1]
      %v3872 = vld [vmem:[%s3765 + $0x2] sm:$0xff]
      %v3873 = vld [vmem:[%s3765 + $0xa] sm:$0xff]
      %v3874 = vld [vmem:[%s3765 + $0x1a] sm:$0xff]
      %v3875 = vld [vmem:[%s3765 + $0x22] sm:$0xff]
      %v3876 = vld [vmem:[%s3765 + $0x32] sm:$0xff]
      %v3877 = vld [vmem:[%s3765 + $0x3a] sm:$0xff]
      %v3878 = vld [vmem:[%s3765 + $0x4a] sm:$0xff]
      %v3879 = vld [vmem:[%s3765 + $0x52] sm:$0xff]
      %v3880 = vld [vmem:[%s3765 + $0x62] sm:$0xff]
      %v3881 = vld [vmem:[%s3765 + $0x6a] sm:$0xff]
      %v3882 = vld [vmem:[%s3765 + $0x7a] sm:$0xff]
      %v3883 = vld [vmem:[%s3765 + $0x82] sm:$0xff]
      %v3884 = vld [vmem:[%s3765 + $0x92] sm:$0xff]
      %v3885 = vld [vmem:[%s3765 + $0x9a] sm:$0xff]
      %v3886 = vld [vmem:[%s3765 + $0xaa] sm:$0xff]
      %v3887 = vld [vmem:[%s3765 + $0xb2] sm:$0xff]
      %v3888 = vlaneseq
      %v3889 = vshrl.u32 %v3888, 7
      %v3890 = vsub.s32 0, %v3889
      %v3891 = vrot.slane %v3871, %v3890
      %v3892 = vmul.f32 %v3872, %v3891
      %v3893 = vmul.f32 %v3873, %v3891
      %v3894 = vmul.f32 %v3874, %v3891
      %v3895 = vmul.f32 %v3875, %v3891
      %v3896 = vmul.f32 %v3876, %v3891
      %v3897 = vmul.f32 %v3877, %v3891
      %v3898 = vmul.f32 %v3878, %v3891
      %v3899 = vmul.f32 %v3879, %v3891
      %v3900 = vmul.f32 %v3880, %v3891
      %v3901 = vmul.f32 %v3881, %v3891
      %v3902 = vmul.f32 %v3882, %v3891
      %v3903 = vmul.f32 %v3883, %v3891
      %v3904 = vmul.f32 %v3884, %v3891
      %v3905 = vmul.f32 %v3885, %v3891
      %v3906 = vmul.f32 %v3886, %v3891
      %v3907 = vmul.f32 %v3887, %v3891
      %v3908 = vadd.f32 %v3855, %v3892
      %v3909 = vadd.f32 %v3856, %v3893
      %v3910 = vadd.f32 %v3857, %v3894
      %v3911 = vadd.f32 %v3858, %v3895
      %v3912 = vadd.f32 %v3859, %v3896
      %v3913 = vadd.f32 %v3860, %v3897
      %v3914 = vadd.f32 %v3861, %v3898
      %v3915 = vadd.f32 %v3862, %v3899
      %v3916 = vadd.f32 %v3863, %v3900
      %v3917 = vadd.f32 %v3864, %v3901
      %v3918 = vadd.f32 %v3865, %v3902
      %v3919 = vadd.f32 %v3866, %v3903
      %v3920 = vadd.f32 %v3867, %v3904
      %v3921 = vadd.f32 %v3868, %v3905
      %v3922 = vadd.f32 %v3869, %v3906
      %v3923 = vadd.f32 %v3870, %v3907
      %v3924 = vld [vmem:[%s3763 + $0x3] sm:$0x1]
      %v3925 = vld [vmem:[%s3765 + $0x3] sm:$0xff]
      %v3926 = vld [vmem:[%s3765 + $0xb] sm:$0xff]
      %v3927 = vld [vmem:[%s3765 + $0x1b] sm:$0xff]
      %v3928 = vld [vmem:[%s3765 + $0x23] sm:$0xff]
      %v3929 = vld [vmem:[%s3765 + $0x33] sm:$0xff]
      %v3930 = vld [vmem:[%s3765 + $0x3b] sm:$0xff]
      %v3931 = vld [vmem:[%s3765 + $0x4b] sm:$0xff]
      %v3932 = vld [vmem:[%s3765 + $0x53] sm:$0xff]
      %v3933 = vld [vmem:[%s3765 + $0x63] sm:$0xff]
      %v3934 = vld [vmem:[%s3765 + $0x6b] sm:$0xff]
      %v3935 = vld [vmem:[%s3765 + $0x7b] sm:$0xff]
      %v3936 = vld [vmem:[%s3765 + $0x83] sm:$0xff]
      %v3937 = vld [vmem:[%s3765 + $0x93] sm:$0xff]
      %v3938 = vld [vmem:[%s3765 + $0x9b] sm:$0xff]
      %v3939 = vld [vmem:[%s3765 + $0xab] sm:$0xff]
      %v3940 = vld [vmem:[%s3765 + $0xb3] sm:$0xff]
      %v3941 = vlaneseq
      %v3942 = vshrl.u32 %v3941, 7
      %v3943 = vsub.s32 0, %v3942
      %v3944 = vrot.slane %v3924, %v3943
      %v3945 = vmul.f32 %v3925, %v3944
      %v3946 = vmul.f32 %v3926, %v3944
      %v3947 = vmul.f32 %v3927, %v3944
      %v3948 = vmul.f32 %v3928, %v3944
      %v3949 = vmul.f32 %v3929, %v3944
      %v3950 = vmul.f32 %v3930, %v3944
      %v3951 = vmul.f32 %v3931, %v3944
      %v3952 = vmul.f32 %v3932, %v3944
      %v3953 = vmul.f32 %v3933, %v3944
      %v3954 = vmul.f32 %v3934, %v3944
      %v3955 = vmul.f32 %v3935, %v3944
      %v3956 = vmul.f32 %v3936, %v3944
      %v3957 = vmul.f32 %v3937, %v3944
      %v3958 = vmul.f32 %v3938, %v3944
      %v3959 = vmul.f32 %v3939, %v3944
      %v3960 = vmul.f32 %v3940, %v3944
      %v3961 = vadd.f32 %v3908, %v3945
      %v3962 = vadd.f32 %v3909, %v3946
      %v3963 = vadd.f32 %v3910, %v3947
      %v3964 = vadd.f32 %v3911, %v3948
      %v3965 = vadd.f32 %v3912, %v3949
      %v3966 = vadd.f32 %v3913, %v3950
      %v3967 = vadd.f32 %v3914, %v3951
      %v3968 = vadd.f32 %v3915, %v3952
      %v3969 = vadd.f32 %v3916, %v3953
      %v3970 = vadd.f32 %v3917, %v3954
      %v3971 = vadd.f32 %v3918, %v3955
      %v3972 = vadd.f32 %v3919, %v3956
      %v3973 = vadd.f32 %v3920, %v3957
      %v3974 = vadd.f32 %v3921, %v3958
      %v3975 = vadd.f32 %v3922, %v3959
      %v3976 = vadd.f32 %v3923, %v3960
      %v3977 = vld [vmem:[%s3763 + $0x4] sm:$0x1]
      %v3978 = vld [vmem:[%s3765 + $0x4] sm:$0xff]
      %v3979 = vld [vmem:[%s3765 + $0xc] sm:$0xff]
      %v3980 = vld [vmem:[%s3765 + $0x1c] sm:$0xff]
      %v3981 = vld [vmem:[%s3765 + $0x24] sm:$0xff]
      %v3982 = vld [vmem:[%s3765 + $0x34] sm:$0xff]
      %v3983 = vld [vmem:[%s3765 + $0x3c] sm:$0xff]
      %v3984 = vld [vmem:[%s3765 + $0x4c] sm:$0xff]
      %v3985 = vld [vmem:[%s3765 + $0x54] sm:$0xff]
      %v3986 = vld [vmem:[%s3765 + $0x64] sm:$0xff]
      %v3987 = vld [vmem:[%s3765 + $0x6c] sm:$0xff]
      %v3988 = vld [vmem:[%s3765 + $0x7c] sm:$0xff]
      %v3989 = vld [vmem:[%s3765 + $0x84] sm:$0xff]
      %v3990 = vld [vmem:[%s3765 + $0x94] sm:$0xff]
      %v3991 = vld [vmem:[%s3765 + $0x9c] sm:$0xff]
      %v3992 = vld [vmem:[%s3765 + $0xac] sm:$0xff]
      %v3993 = vld [vmem:[%s3765 + $0xb4] sm:$0xff]
      %v3994 = vlaneseq
      %v3995 = vshrl.u32 %v3994, 7
      %v3996 = vsub.s32 0, %v3995
      %v3997 = vrot.slane %v3977, %v3996
      %v3998 = vmul.f32 %v3978, %v3997
      %v3999 = vmul.f32 %v3979, %v3997
      %v4000 = vmul.f32 %v3980, %v3997
      %v4001 = vmul.f32 %v3981, %v3997
      %v4002 = vmul.f32 %v3982, %v3997
      %v4003 = vmul.f32 %v3983, %v3997
      %v4004 = vmul.f32 %v3984, %v3997
      %v4005 = vmul.f32 %v3985, %v3997
      %v4006 = vmul.f32 %v3986, %v3997
      %v4007 = vmul.f32 %v3987, %v3997
      %v4008 = vmul.f32 %v3988, %v3997
      %v4009 = vmul.f32 %v3989, %v3997
      %v4010 = vmul.f32 %v3990, %v3997
      %v4011 = vmul.f32 %v3991, %v3997
      %v4012 = vmul.f32 %v3992, %v3997
      %v4013 = vmul.f32 %v3993, %v3997
      %v4014 = vadd.f32 %v3961, %v3998
      %v4015 = vadd.f32 %v3962, %v3999
      %v4016 = vadd.f32 %v3963, %v4000
      %v4017 = vadd.f32 %v3964, %v4001
      %v4018 = vadd.f32 %v3965, %v4002
      %v4019 = vadd.f32 %v3966, %v4003
      %v4020 = vadd.f32 %v3967, %v4004
      %v4021 = vadd.f32 %v3968, %v4005
      %v4022 = vadd.f32 %v3969, %v4006
      %v4023 = vadd.f32 %v3970, %v4007
      %v4024 = vadd.f32 %v3971, %v4008
      %v4025 = vadd.f32 %v3972, %v4009
      %v4026 = vadd.f32 %v3973, %v4010
      %v4027 = vadd.f32 %v3974, %v4011
      %v4028 = vadd.f32 %v3975, %v4012
      %v4029 = vadd.f32 %v3976, %v4013
      %v4030 = vmul.f32 %v4014, 0.5
      %v4031 = vmul.f32 %v4015, 0.5
      %v4032 = vmul.f32 %v4016, 0.5
      %v4033 = vmul.f32 %v4017, 0.5
      %v4034 = vmul.f32 %v4018, 0.5
      %v4035 = vmul.f32 %v4019, 0.5
      %v4036 = vmul.f32 %v4020, 0.5
      %v4037 = vmul.f32 %v4021, 0.5
      %v4038 = vmul.f32 %v4022, 0.5
      %v4039 = vmul.f32 %v4023, 0.5
      %v4040 = vmul.f32 %v4024, 0.5
      %v4041 = vmul.f32 %v4025, 0.5
      %v4042 = vmul.f32 %v4026, 0.5
      %v4043 = vmul.f32 %v4027, 0.5
      %v4044 = vmul.f32 %v4028, 0.5
      %v4045 = vmul.f32 %v4029, 0.5
      %v4046 = vmul.f32 %v4014, 0.044715
      %v4047 = vmul.f32 %v4015, 0.044715
      %v4048 = vmul.f32 %v4016, 0.044715
      %v4049 = vmul.f32 %v4017, 0.044715
      %v4050 = vmul.f32 %v4018, 0.044715
      %v4051 = vmul.f32 %v4019, 0.044715
      %v4052 = vmul.f32 %v4020, 0.044715
      %v4053 = vmul.f32 %v4021, 0.044715
      %v4054 = vmul.f32 %v4022, 0.044715
      %v4055 = vmul.f32 %v4023, 0.044715
      %v4056 = vmul.f32 %v4024, 0.044715
      %v4057 = vmul.f32 %v4025, 0.044715
      %v4058 = vmul.f32 %v4026, 0.044715
      %v4059 = vmul.f32 %v4027, 0.044715
      %v4060 = vmul.f32 %v4028, 0.044715
      %v4061 = vmul.f32 %v4029, 0.044715
      %v4062 = vmul.f32 %v4046, %v4014
      %v4063 = vmul.f32 %v4047, %v4015
      %v4064 = vmul.f32 %v4048, %v4016
      %v4065 = vmul.f32 %v4049, %v4017
      %v4066 = vmul.f32 %v4050, %v4018
      %v4067 = vmul.f32 %v4051, %v4019
      %v4068 = vmul.f32 %v4052, %v4020
      %v4069 = vmul.f32 %v4053, %v4021
      %v4070 = vmul.f32 %v4054, %v4022
      %v4071 = vmul.f32 %v4055, %v4023
      %v4072 = vmul.f32 %v4056, %v4024
      %v4073 = vmul.f32 %v4057, %v4025
      %v4074 = vmul.f32 %v4058, %v4026
      %v4075 = vmul.f32 %v4059, %v4027
      %v4076 = vmul.f32 %v4060, %v4028
      %v4077 = vmul.f32 %v4061, %v4029
      %v4078 = vmul.f32 %v4062, %v4014
      %v4079 = vmul.f32 %v4063, %v4015
      %v4080 = vmul.f32 %v4064, %v4016
      %v4081 = vmul.f32 %v4065, %v4017
      %v4082 = vmul.f32 %v4066, %v4018
      %v4083 = vmul.f32 %v4067, %v4019
      %v4084 = vmul.f32 %v4068, %v4020
      %v4085 = vmul.f32 %v4069, %v4021
      %v4086 = vmul.f32 %v4070, %v4022
      %v4087 = vmul.f32 %v4071, %v4023
      %v4088 = vmul.f32 %v4072, %v4024
      %v4089 = vmul.f32 %v4073, %v4025
      %v4090 = vmul.f32 %v4074, %v4026
      %v4091 = vmul.f32 %v4075, %v4027
      %v4092 = vmul.f32 %v4076, %v4028
      %v4093 = vmul.f32 %v4077, %v4029
      %v4094 = vadd.f32 %v4014, %v4078
      %v4095 = vadd.f32 %v4015, %v4079
      %v4096 = vadd.f32 %v4016, %v4080
      %v4097 = vadd.f32 %v4017, %v4081
      %v4098 = vadd.f32 %v4018, %v4082
      %v4099 = vadd.f32 %v4019, %v4083
      %v4100 = vadd.f32 %v4020, %v4084
      %v4101 = vadd.f32 %v4021, %v4085
      %v4102 = vadd.f32 %v4022, %v4086
      %v4103 = vadd.f32 %v4023, %v4087
      %v4104 = vadd.f32 %v4024, %v4088
      %v4105 = vadd.f32 %v4025, %v4089
      %v4106 = vadd.f32 %v4026, %v4090
      %v4107 = vadd.f32 %v4027, %v4091
      %v4108 = vadd.f32 %v4028, %v4092
      %v4109 = vadd.f32 %v4029, %v4093
      %v4110 = vmul.f32 %v4094, 0.7978846
      %v4111 = vmul.f32 %v4095, 0.7978846
      %v4112 = vmul.f32 %v4096, 0.7978846
      %v4113 = vmul.f32 %v4097, 0.7978846
      %v4114 = vmul.f32 %v4098, 0.7978846
      %v4115 = vmul.f32 %v4099, 0.7978846
      %v4116 = vmul.f32 %v4100, 0.7978846
      %v4117 = vmul.f32 %v4101, 0.7978846
      %v4118 = vmul.f32 %v4102, 0.7978846
      %v4119 = vmul.f32 %v4103, 0.7978846
      %v4120 = vmul.f32 %v4104, 0.7978846
      %v4121 = vmul.f32 %v4105, 0.7978846
      %v4122 = vmul.f32 %v4106, 0.7978846
      %v4123 = vmul.f32 %v4107, 0.7978846
      %v4124 = vmul.f32 %v4108, 0.7978846
      %v4125 = vmul.f32 %v4109, 0.7978846
      %v4126 = vtanh.pop %v4110
      %v4127 = vtanh.pop %v4111
      %v4128 = vtanh.pop %v4112
      %v4129 = vtanh.pop %v4113
      %v4130 = vtanh.pop %v4114
      %v4131 = vtanh.pop %v4115
      %v4132 = vtanh.pop %v4116
      %v4133 = vtanh.pop %v4117
      %v4134 = vtanh.pop %v4118
      %v4135 = vtanh.pop %v4119
      %v4136 = vtanh.pop %v4120
      %v4137 = vtanh.pop %v4121
      %v4138 = vtanh.pop %v4122
      %v4139 = vtanh.pop %v4123
      %v4140 = vtanh.pop %v4124
      %v4141 = vtanh.pop %v4125
      %v4142 = vadd.f32 %v4126, 1.0
      %v4143 = vadd.f32 %v4127, 1.0
      %v4144 = vadd.f32 %v4128, 1.0
      %v4145 = vadd.f32 %v4129, 1.0
      %v4146 = vadd.f32 %v4130, 1.0
      %v4147 = vadd.f32 %v4131, 1.0
      %v4148 = vadd.f32 %v4132, 1.0
      %v4149 = vadd.f32 %v4133, 1.0
      %v4150 = vadd.f32 %v4134, 1.0
      %v4151 = vadd.f32 %v4135, 1.0
      %v4152 = vadd.f32 %v4136, 1.0
      %v4153 = vadd.f32 %v4137, 1.0
      %v4154 = vadd.f32 %v4138, 1.0
      %v4155 = vadd.f32 %v4139, 1.0
      %v4156 = vadd.f32 %v4140, 1.0
      %v4157 = vadd.f32 %v4141, 1.0
      %v4158 = vmul.f32 %v4030, %v4142
      %v4159 = vmul.f32 %v4031, %v4143
      %v4160 = vmul.f32 %v4032, %v4144
      %v4161 = vmul.f32 %v4033, %v4145
      %v4162 = vmul.f32 %v4034, %v4146
      %v4163 = vmul.f32 %v4035, %v4147
      %v4164 = vmul.f32 %v4036, %v4148
      %v4165 = vmul.f32 %v4037, %v4149
      %v4166 = vmul.f32 %v4038, %v4150
      %v4167 = vmul.f32 %v4039, %v4151
      %v4168 = vmul.f32 %v4040, %v4152
      %v4169 = vmul.f32 %v4041, %v4153
      %v4170 = vmul.f32 %v4042, %v4154
      %v4171 = vmul.f32 %v4043, %v4155
      %v4172 = vmul.f32 %v4044, %v4156
      %v4173 = vmul.f32 %v4045, %v4157
      %4174 = vst [vmem:[%s1317 + $0x2] sm:$0xff] %v4158
      %4175 = vst [vmem:[%s1317 + $0xa] sm:$0xff] %v4159
      %4176 = vst [vmem:[%s1317 + $0x1a] sm:$0xff] %v4160
      %4177 = vst [vmem:[%s1317 + $0x22] sm:$0xff] %v4161
      %4178 = vst [vmem:[%s1317 + $0x32] sm:$0xff] %v4162
      %4179 = vst [vmem:[%s1317 + $0x3a] sm:$0xff] %v4163
      %4180 = vst [vmem:[%s1317 + $0x4a] sm:$0xff] %v4164
      %4181 = vst [vmem:[%s1317 + $0x52] sm:$0xff] %v4165
      %4182 = vst [vmem:[%s1317 + $0x62] sm:$0xff] %v4166
      %4183 = vst [vmem:[%s1317 + $0x6a] sm:$0xff] %v4167
      %4184 = vst [vmem:[%s1317 + $0x7a] sm:$0xff] %v4168
      %4185 = vst [vmem:[%s1317 + $0x82] sm:$0xff] %v4169
      %4186 = vst [vmem:[%s1317 + $0x92] sm:$0xff] %v4170
      %4187 = vst [vmem:[%s1317 + $0x9a] sm:$0xff] %v4171
      %4188 = vst [vmem:[%s1317 + $0xaa] sm:$0xff] %v4172
      %4189 = vst [vmem:[%s1317 + $0xb2] sm:$0xff] %v4173
      %v4190 = vld [vmem:[#allocation4] sm:$0xff]
      %v4191 = vld [vmem:[#allocation4 + $0x8] sm:$0xff]
      %v4192 = vld [vmem:[#allocation4 + $0x10] sm:$0xff]
      %v4193 = vld [vmem:[#allocation4 + $0x18] sm:$0xff]
      %v4194 = vld [vmem:[#allocation4 + $0x20] sm:$0xff]
      %v4195 = vld [vmem:[#allocation4 + $0x28] sm:$0xff]
      %v4196 = vld [vmem:[#allocation4 + $0x30] sm:$0xff]
      %v4197 = vld [vmem:[#allocation4 + $0x38] sm:$0xff]
      %v4198 = vld [vmem:[#allocation4 + $0x40] sm:$0xff]
      %v4199 = vld [vmem:[#allocation4 + $0x48] sm:$0xff]
      %v4200 = vld [vmem:[#allocation4 + $0x50] sm:$0xff]
      %v4201 = vld [vmem:[#allocation4 + $0x58] sm:$0xff]
      %v4202 = vld [vmem:[#allocation4 + $0x60] sm:$0xff]
      %v4203 = vld [vmem:[#allocation4 + $0x68] sm:$0xff]
      %v4204 = vld [vmem:[#allocation4 + $0x70] sm:$0xff]
      %v4205 = vld [vmem:[#allocation4 + $0x78] sm:$0xff]
      %v4206 = vmul.f32 %v4158, %v798
      %v4207 = vmul.f32 %v4159, %v804
      %v4208 = vmul.f32 %v4160, %v810
      %v4209 = vmul.f32 %v4161, %v816
      %v4210 = vmul.f32 %v4162, %v822
      %v4211 = vmul.f32 %v4163, %v828
      %v4212 = vmul.f32 %v4164, %v834
      %v4213 = vmul.f32 %v4165, %v840
      %v4214 = vmul.f32 %v4166, %v846
      %v4215 = vmul.f32 %v4167, %v852
      %v4216 = vmul.f32 %v4168, %v858
      %v4217 = vmul.f32 %v4169, %v864
      %v4218 = vmul.f32 %v4170, %v870
      %v4219 = vmul.f32 %v4171, %v876
      %v4220 = vmul.f32 %v4172, %v882
      %v4221 = vmul.f32 %v4173, %v888
      %v4222 = vadd.f32 %v4190, %v4206
      %v4223 = vadd.f32 %v4191, %v4207
      %v4224 = vadd.f32 %v4192, %v4208
      %v4225 = vadd.f32 %v4193, %v4209
      %v4226 = vadd.f32 %v4194, %v4210
      %v4227 = vadd.f32 %v4195, %v4211
      %v4228 = vadd.f32 %v4196, %v4212
      %v4229 = vadd.f32 %v4197, %v4213
      %v4230 = vadd.f32 %v4198, %v4214
      %v4231 = vadd.f32 %v4199, %v4215
      %v4232 = vadd.f32 %v4200, %v4216
      %v4233 = vadd.f32 %v4201, %v4217
      %v4234 = vadd.f32 %v4202, %v4218
      %v4235 = vadd.f32 %v4203, %v4219
      %v4236 = vadd.f32 %v4204, %v4220
      %v4237 = vadd.f32 %v4205, %v4221
      %4238 = vst [vmem:[#allocation4] sm:$0xff] %v4222
      %4239 = vst [vmem:[#allocation4 + $0x8] sm:$0xff] %v4223
      %4240 = vst [vmem:[#allocation4 + $0x10] sm:$0xff] %v4224
      %4241 = vst [vmem:[#allocation4 + $0x18] sm:$0xff] %v4225
      %4242 = vst [vmem:[#allocation4 + $0x20] sm:$0xff] %v4226
      %4243 = vst [vmem:[#allocation4 + $0x28] sm:$0xff] %v4227
      %4244 = vst [vmem:[#allocation4 + $0x30] sm:$0xff] %v4228
      %4245 = vst [vmem:[#allocation4 + $0x38] sm:$0xff] %v4229
      %4246 = vst [vmem:[#allocation4 + $0x40] sm:$0xff] %v4230
      %4247 = vst [vmem:[#allocation4 + $0x48] sm:$0xff] %v4231
      %4248 = vst [vmem:[#allocation4 + $0x50] sm:$0xff] %v4232
      %4249 = vst [vmem:[#allocation4 + $0x58] sm:$0xff] %v4233
      %4250 = vst [vmem:[#allocation4 + $0x60] sm:$0xff] %v4234
      %4251 = vst [vmem:[#allocation4 + $0x68] sm:$0xff] %v4235
      %4252 = vst [vmem:[#allocation4 + $0x70] sm:$0xff] %v4236
      %4253 = vst [vmem:[#allocation4 + $0x78] sm:$0xff] %v4237
      %v4254 = vld [vmem:[%s4] sm:$0x1]
      %s4255 = scalar_lea.vmem [#allocation3], 192
      %v4256 = vld [vmem:[%s4255] sm:$0xff]
      %v4257 = vld [vmem:[%s4255 + $0x8] sm:$0xff]
      %v4258 = vld [vmem:[%s4255 + $0x18] sm:$0xff]
      %v4259 = vld [vmem:[%s4255 + $0x20] sm:$0xff]
      %v4260 = vld [vmem:[%s4255 + $0x30] sm:$0xff]
      %v4261 = vld [vmem:[%s4255 + $0x38] sm:$0xff]
      %v4262 = vld [vmem:[%s4255 + $0x48] sm:$0xff]
      %v4263 = vld [vmem:[%s4255 + $0x50] sm:$0xff]
      %v4264 = vld [vmem:[%s4255 + $0x60] sm:$0xff]
      %v4265 = vld [vmem:[%s4255 + $0x68] sm:$0xff]
      %v4266 = vld [vmem:[%s4255 + $0x78] sm:$0xff]
      %v4267 = vld [vmem:[%s4255 + $0x80] sm:$0xff]
      %v4268 = vld [vmem:[%s4255 + $0x90] sm:$0xff]
      %v4269 = vld [vmem:[%s4255 + $0x98] sm:$0xff]
      %v4270 = vld [vmem:[%s4255 + $0xa8] sm:$0xff]
      %v4271 = vld [vmem:[%s4255 + $0xb0] sm:$0xff]
      %v4272 = vlaneseq
      %v4273 = vshrl.u32 %v4272, 7
      %v4274 = vsub.s32 0, %v4273
      %v4275 = vrot.slane %v4254, %v4274
      %v4276 = vmul.f32 %v4256, %v4275
      %v4277 = vmul.f32 %v4257, %v4275
      %v4278 = vmul.f32 %v4258, %v4275
      %v4279 = vmul.f32 %v4259, %v4275
      %v4280 = vmul.f32 %v4260, %v4275
      %v4281 = vmul.f32 %v4261, %v4275
      %v4282 = vmul.f32 %v4262, %v4275
      %v4283 = vmul.f32 %v4263, %v4275
      %v4284 = vmul.f32 %v4264, %v4275
      %v4285 = vmul.f32 %v4265, %v4275
      %v4286 = vmul.f32 %v4266, %v4275
      %v4287 = vmul.f32 %v4267, %v4275
      %v4288 = vmul.f32 %v4268, %v4275
      %v4289 = vmul.f32 %v4269, %v4275
      %v4290 = vmul.f32 %v4270, %v4275
      %v4291 = vmul.f32 %v4271, %v4275
      %v4292 = vadd.f32 %v4276, 0.0
      %v4293 = vadd.f32 %v4277, 0.0
      %v4294 = vadd.f32 %v4278, 0.0
      %v4295 = vadd.f32 %v4279, 0.0
      %v4296 = vadd.f32 %v4280, 0.0
      %v4297 = vadd.f32 %v4281, 0.0
      %v4298 = vadd.f32 %v4282, 0.0
      %v4299 = vadd.f32 %v4283, 0.0
      %v4300 = vadd.f32 %v4284, 0.0
      %v4301 = vadd.f32 %v4285, 0.0
      %v4302 = vadd.f32 %v4286, 0.0
      %v4303 = vadd.f32 %v4287, 0.0
      %v4304 = vadd.f32 %v4288, 0.0
      %v4305 = vadd.f32 %v4289, 0.0
      %v4306 = vadd.f32 %v4290, 0.0
      %v4307 = vadd.f32 %v4291, 0.0
      %v4308 = vld [vmem:[%s4 + $0x1] sm:$0x1]
      %v4309 = vld [vmem:[%s4255 + $0x1] sm:$0xff]
      %v4310 = vld [vmem:[%s4255 + $0x9] sm:$0xff]
      %v4311 = vld [vmem:[%s4255 + $0x19] sm:$0xff]
      %v4312 = vld [vmem:[%s4255 + $0x21] sm:$0xff]
      %v4313 = vld [vmem:[%s4255 + $0x31] sm:$0xff]
      %v4314 = vld [vmem:[%s4255 + $0x39] sm:$0xff]
      %v4315 = vld [vmem:[%s4255 + $0x49] sm:$0xff]
      %v4316 = vld [vmem:[%s4255 + $0x51] sm:$0xff]
      %v4317 = vld [vmem:[%s4255 + $0x61] sm:$0xff]
      %v4318 = vld [vmem:[%s4255 + $0x69] sm:$0xff]
      %v4319 = vld [vmem:[%s4255 + $0x79] sm:$0xff]
      %v4320 = vld [vmem:[%s4255 + $0x81] sm:$0xff]
      %v4321 = vld [vmem:[%s4255 + $0x91] sm:$0xff]
      %v4322 = vld [vmem:[%s4255 + $0x99] sm:$0xff]
      %v4323 = vld [vmem:[%s4255 + $0xa9] sm:$0xff]
      %v4324 = vld [vmem:[%s4255 + $0xb1] sm:$0xff]
      %v4325 = vlaneseq
      %v4326 = vshrl.u32 %v4325, 7
      %v4327 = vsub.s32 0, %v4326
      %v4328 = vrot.slane %v4308, %v4327
      %v4329 = vmul.f32 %v4309, %v4328
      %v4330 = vmul.f32 %v4310, %v4328
      %v4331 = vmul.f32 %v4311, %v4328
      %v4332 = vmul.f32 %v4312, %v4328
      %v4333 = vmul.f32 %v4313, %v4328
      %v4334 = vmul.f32 %v4314, %v4328
      %v4335 = vmul.f32 %v4315, %v4328
      %v4336 = vmul.f32 %v4316, %v4328
      %v4337 = vmul.f32 %v4317, %v4328
      %v4338 = vmul.f32 %v4318, %v4328
      %v4339 = vmul.f32 %v4319, %v4328
      %v4340 = vmul.f32 %v4320, %v4328
      %v4341 = vmul.f32 %v4321, %v4328
      %v4342 = vmul.f32 %v4322, %v4328
      %v4343 = vmul.f32 %v4323, %v4328
      %v4344 = vmul.f32 %v4324, %v4328
      %v4345 = vadd.f32 %v4292, %v4329
      %v4346 = vadd.f32 %v4293, %v4330
      %v4347 = vadd.f32 %v4294, %v4331
      %v4348 = vadd.f32 %v4295, %v4332
      %v4349 = vadd.f32 %v4296, %v4333
      %v4350 = vadd.f32 %v4297, %v4334
      %v4351 = vadd.f32 %v4298, %v4335
      %v4352 = vadd.f32 %v4299, %v4336
      %v4353 = vadd.f32 %v4300, %v4337
      %v4354 = vadd.f32 %v4301, %v4338
      %v4355 = vadd.f32 %v4302, %v4339
      %v4356 = vadd.f32 %v4303, %v4340
      %v4357 = vadd.f32 %v4304, %v4341
      %v4358 = vadd.f32 %v4305, %v4342
      %v4359 = vadd.f32 %v4306, %v4343
      %v4360 = vadd.f32 %v4307, %v4344
      %v4361 = vld [vmem:[%s4 + $0x2] sm:$0x1]
      %v4362 = vld [vmem:[%s4255 + $0x2] sm:$0xff]
      %v4363 = vld [vmem:[%s4255 + $0xa] sm:$0xff]
      %v4364 = vld [vmem:[%s4255 + $0x1a] sm:$0xff]
      %v4365 = vld [vmem:[%s4255 + $0x22] sm:$0xff]
      %v4366 = vld [vmem:[%s4255 + $0x32] sm:$0xff]
      %v4367 = vld [vmem:[%s4255 + $0x3a] sm:$0xff]
      %v4368 = vld [vmem:[%s4255 + $0x4a] sm:$0xff]
      %v4369 = vld [vmem:[%s4255 + $0x52] sm:$0xff]
      %v4370 = vld [vmem:[%s4255 + $0x62] sm:$0xff]
      %v4371 = vld [vmem:[%s4255 + $0x6a] sm:$0xff]
      %v4372 = vld [vmem:[%s4255 + $0x7a] sm:$0xff]
      %v4373 = vld [vmem:[%s4255 + $0x82] sm:$0xff]
      %v4374 = vld [vmem:[%s4255 + $0x92] sm:$0xff]
      %v4375 = vld [vmem:[%s4255 + $0x9a] sm:$0xff]
      %v4376 = vld [vmem:[%s4255 + $0xaa] sm:$0xff]
      %v4377 = vld [vmem:[%s4255 + $0xb2] sm:$0xff]
      %v4378 = vlaneseq
      %v4379 = vshrl.u32 %v4378, 7
      %v4380 = vsub.s32 0, %v4379
      %v4381 = vrot.slane %v4361, %v4380
      %v4382 = vmul.f32 %v4362, %v4381
      %v4383 = vmul.f32 %v4363, %v4381
      %v4384 = vmul.f32 %v4364, %v4381
      %v4385 = vmul.f32 %v4365, %v4381
      %v4386 = vmul.f32 %v4366, %v4381
      %v4387 = vmul.f32 %v4367, %v4381
      %v4388 = vmul.f32 %v4368, %v4381
      %v4389 = vmul.f32 %v4369, %v4381
      %v4390 = vmul.f32 %v4370, %v4381
      %v4391 = vmul.f32 %v4371, %v4381
      %v4392 = vmul.f32 %v4372, %v4381
      %v4393 = vmul.f32 %v4373, %v4381
      %v4394 = vmul.f32 %v4374, %v4381
      %v4395 = vmul.f32 %v4375, %v4381
      %v4396 = vmul.f32 %v4376, %v4381
      %v4397 = vmul.f32 %v4377, %v4381
      %v4398 = vadd.f32 %v4345, %v4382
      %v4399 = vadd.f32 %v4346, %v4383
      %v4400 = vadd.f32 %v4347, %v4384
      %v4401 = vadd.f32 %v4348, %v4385
      %v4402 = vadd.f32 %v4349, %v4386
      %v4403 = vadd.f32 %v4350, %v4387
      %v4404 = vadd.f32 %v4351, %v4388
      %v4405 = vadd.f32 %v4352, %v4389
      %v4406 = vadd.f32 %v4353, %v4390
      %v4407 = vadd.f32 %v4354, %v4391
      %v4408 = vadd.f32 %v4355, %v4392
      %v4409 = vadd.f32 %v4356, %v4393
      %v4410 = vadd.f32 %v4357, %v4394
      %v4411 = vadd.f32 %v4358, %v4395
      %v4412 = vadd.f32 %v4359, %v4396
      %v4413 = vadd.f32 %v4360, %v4397
      %v4414 = vld [vmem:[%s4 + $0x3] sm:$0x1]
      %v4415 = vld [vmem:[%s4255 + $0x3] sm:$0xff]
      %v4416 = vld [vmem:[%s4255 + $0xb] sm:$0xff]
      %v4417 = vld [vmem:[%s4255 + $0x1b] sm:$0xff]
      %v4418 = vld [vmem:[%s4255 + $0x23] sm:$0xff]
      %v4419 = vld [vmem:[%s4255 + $0x33] sm:$0xff]
      %v4420 = vld [vmem:[%s4255 + $0x3b] sm:$0xff]
      %v4421 = vld [vmem:[%s4255 + $0x4b] sm:$0xff]
      %v4422 = vld [vmem:[%s4255 + $0x53] sm:$0xff]
      %v4423 = vld [vmem:[%s4255 + $0x63] sm:$0xff]
      %v4424 = vld [vmem:[%s4255 + $0x6b] sm:$0xff]
      %v4425 = vld [vmem:[%s4255 + $0x7b] sm:$0xff]
      %v4426 = vld [vmem:[%s4255 + $0x83] sm:$0xff]
      %v4427 = vld [vmem:[%s4255 + $0x93] sm:$0xff]
      %v4428 = vld [vmem:[%s4255 + $0x9b] sm:$0xff]
      %v4429 = vld [vmem:[%s4255 + $0xab] sm:$0xff]
      %v4430 = vld [vmem:[%s4255 + $0xb3] sm:$0xff]
      %v4431 = vlaneseq
      %v4432 = vshrl.u32 %v4431, 7
      %v4433 = vsub.s32 0, %v4432
      %v4434 = vrot.slane %v4414, %v4433
      %v4435 = vmul.f32 %v4415, %v4434
      %v4436 = vmul.f32 %v4416, %v4434
      %v4437 = vmul.f32 %v4417, %v4434
      %v4438 = vmul.f32 %v4418, %v4434
      %v4439 = vmul.f32 %v4419, %v4434
      %v4440 = vmul.f32 %v4420, %v4434
      %v4441 = vmul.f32 %v4421, %v4434
      %v4442 = vmul.f32 %v4422, %v4434
      %v4443 = vmul.f32 %v4423, %v4434
      %v4444 = vmul.f32 %v4424, %v4434
      %v4445 = vmul.f32 %v4425, %v4434
      %v4446 = vmul.f32 %v4426, %v4434
      %v4447 = vmul.f32 %v4427, %v4434
      %v4448 = vmul.f32 %v4428, %v4434
      %v4449 = vmul.f32 %v4429, %v4434
      %v4450 = vmul.f32 %v4430, %v4434
      %v4451 = vadd.f32 %v4398, %v4435
      %v4452 = vadd.f32 %v4399, %v4436
      %v4453 = vadd.f32 %v4400, %v4437
      %v4454 = vadd.f32 %v4401, %v4438
      %v4455 = vadd.f32 %v4402, %v4439
      %v4456 = vadd.f32 %v4403, %v4440
      %v4457 = vadd.f32 %v4404, %v4441
      %v4458 = vadd.f32 %v4405, %v4442
      %v4459 = vadd.f32 %v4406, %v4443
      %v4460 = vadd.f32 %v4407, %v4444
      %v4461 = vadd.f32 %v4408, %v4445
      %v4462 = vadd.f32 %v4409, %v4446
      %v4463 = vadd.f32 %v4410, %v4447
      %v4464 = vadd.f32 %v4411, %v4448
      %v4465 = vadd.f32 %v4412, %v4449
      %v4466 = vadd.f32 %v4413, %v4450
      %v4467 = vld [vmem:[%s4 + $0x4] sm:$0x1]
      %v4468 = vld [vmem:[%s4255 + $0x4] sm:$0xff]
      %v4469 = vld [vmem:[%s4255 + $0xc] sm:$0xff]
      %v4470 = vld [vmem:[%s4255 + $0x1c] sm:$0xff]
      %v4471 = vld [vmem:[%s4255 + $0x24] sm:$0xff]
      %v4472 = vld [vmem:[%s4255 + $0x34] sm:$0xff]
      %v4473 = vld [vmem:[%s4255 + $0x3c] sm:$0xff]
      %v4474 = vld [vmem:[%s4255 + $0x4c] sm:$0xff]
      %v4475 = vld [vmem:[%s4255 + $0x54] sm:$0xff]
      %v4476 = vld [vmem:[%s4255 + $0x64] sm:$0xff]
      %v4477 = vld [vmem:[%s4255 + $0x6c] sm:$0xff]
      %v4478 = vld [vmem:[%s4255 + $0x7c] sm:$0xff]
      %v4479 = vld [vmem:[%s4255 + $0x84] sm:$0xff]
      %v4480 = vld [vmem:[%s4255 + $0x94] sm:$0xff]
      %v4481 = vld [vmem:[%s4255 + $0x9c] sm:$0xff]
      %v4482 = vld [vmem:[%s4255 + $0xac] sm:$0xff]
      %v4483 = vld [vmem:[%s4255 + $0xb4] sm:$0xff]
      %v4484 = vlaneseq
      %v4485 = vshrl.u32 %v4484, 7
      %v4486 = vsub.s32 0, %v4485
      %v4487 = vrot.slane %v4467, %v4486
      %v4488 = vmul.f32 %v4468, %v4487
      %v4489 = vmul.f32 %v4469, %v4487
      %v4490 = vmul.f32 %v4470, %v4487
      %v4491 = vmul.f32 %v4471, %v4487
      %v4492 = vmul.f32 %v4472, %v4487
      %v4493 = vmul.f32 %v4473, %v4487
      %v4494 = vmul.f32 %v4474, %v4487
      %v4495 = vmul.f32 %v4475, %v4487
      %v4496 = vmul.f32 %v4476, %v4487
      %v4497 = vmul.f32 %v4477, %v4487
      %v4498 = vmul.f32 %v4478, %v4487
      %v4499 = vmul.f32 %v4479, %v4487
      %v4500 = vmul.f32 %v4480, %v4487
      %v4501 = vmul.f32 %v4481, %v4487
      %v4502 = vmul.f32 %v4482, %v4487
      %v4503 = vmul.f32 %v4483, %v4487
      %v4504 = vadd.f32 %v4451, %v4488
      %v4505 = vadd.f32 %v4452, %v4489
      %v4506 = vadd.f32 %v4453, %v4490
      %v4507 = vadd.f32 %v4454, %v4491
      %v4508 = vadd.f32 %v4455, %v4492
      %v4509 = vadd.f32 %v4456, %v4493
      %v4510 = vadd.f32 %v4457, %v4494
      %v4511 = vadd.f32 %v4458, %v4495
      %v4512 = vadd.f32 %v4459, %v4496
      %v4513 = vadd.f32 %v4460, %v4497
      %v4514 = vadd.f32 %v4461, %v4498
      %v4515 = vadd.f32 %v4462, %v4499
      %v4516 = vadd.f32 %v4463, %v4500
      %v4517 = vadd.f32 %v4464, %v4501
      %v4518 = vadd.f32 %v4465, %v4502
      %v4519 = vadd.f32 %v4466, %v4503
      %v4520 = vld [vmem:[%s2963] sm:$0x1]
      %s4521 = scalar_lea.vmem [#allocation3], 216
      %v4522 = vld [vmem:[%s4521] sm:$0xff]
      %v4523 = vld [vmem:[%s4521 + $0x8] sm:$0xff]
      %v4524 = vld [vmem:[%s4521 + $0x18] sm:$0xff]
      %v4525 = vld [vmem:[%s4521 + $0x20] sm:$0xff]
      %v4526 = vld [vmem:[%s4521 + $0x30] sm:$0xff]
      %v4527 = vld [vmem:[%s4521 + $0x38] sm:$0xff]
      %v4528 = vld [vmem:[%s4521 + $0x48] sm:$0xff]
      %v4529 = vld [vmem:[%s4521 + $0x50] sm:$0xff]
      %v4530 = vld [vmem:[%s4521 + $0x60] sm:$0xff]
      %v4531 = vld [vmem:[%s4521 + $0x68] sm:$0xff]
      %v4532 = vld [vmem:[%s4521 + $0x78] sm:$0xff]
      %v4533 = vld [vmem:[%s4521 + $0x80] sm:$0xff]
      %v4534 = vld [vmem:[%s4521 + $0x90] sm:$0xff]
      %v4535 = vld [vmem:[%s4521 + $0x98] sm:$0xff]
      %v4536 = vld [vmem:[%s4521 + $0xa8] sm:$0xff]
      %v4537 = vld [vmem:[%s4521 + $0xb0] sm:$0xff]
      %v4538 = vlaneseq
      %v4539 = vshrl.u32 %v4538, 7
      %v4540 = vsub.s32 0, %v4539
      %v4541 = vrot.slane %v4520, %v4540
      %v4542 = vmul.f32 %v4522, %v4541
      %v4543 = vmul.f32 %v4523, %v4541
      %v4544 = vmul.f32 %v4524, %v4541
      %v4545 = vmul.f32 %v4525, %v4541
      %v4546 = vmul.f32 %v4526, %v4541
      %v4547 = vmul.f32 %v4527, %v4541
      %v4548 = vmul.f32 %v4528, %v4541
      %v4549 = vmul.f32 %v4529, %v4541
      %v4550 = vmul.f32 %v4530, %v4541
      %v4551 = vmul.f32 %v4531, %v4541
      %v4552 = vmul.f32 %v4532, %v4541
      %v4553 = vmul.f32 %v4533, %v4541
      %v4554 = vmul.f32 %v4534, %v4541
      %v4555 = vmul.f32 %v4535, %v4541
      %v4556 = vmul.f32 %v4536, %v4541
      %v4557 = vmul.f32 %v4537, %v4541
      %v4558 = vadd.f32 %v4504, %v4542
      %v4559 = vadd.f32 %v4505, %v4543
      %v4560 = vadd.f32 %v4506, %v4544
      %v4561 = vadd.f32 %v4507, %v4545
      %v4562 = vadd.f32 %v4508, %v4546
      %v4563 = vadd.f32 %v4509, %v4547
      %v4564 = vadd.f32 %v4510, %v4548
      %v4565 = vadd.f32 %v4511, %v4549
      %v4566 = vadd.f32 %v4512, %v4550
      %v4567 = vadd.f32 %v4513, %v4551
      %v4568 = vadd.f32 %v4514, %v4552
      %v4569 = vadd.f32 %v4515, %v4553
      %v4570 = vadd.f32 %v4516, %v4554
      %v4571 = vadd.f32 %v4517, %v4555
      %v4572 = vadd.f32 %v4518, %v4556
      %v4573 = vadd.f32 %v4519, %v4557
      %v4574 = vld [vmem:[%s2963 + $0x1] sm:$0x1]
      %v4575 = vld [vmem:[%s4521 + $0x1] sm:$0xff]
      %v4576 = vld [vmem:[%s4521 + $0x9] sm:$0xff]
      %v4577 = vld [vmem:[%s4521 + $0x19] sm:$0xff]
      %v4578 = vld [vmem:[%s4521 + $0x21] sm:$0xff]
      %v4579 = vld [vmem:[%s4521 + $0x31] sm:$0xff]
      %v4580 = vld [vmem:[%s4521 + $0x39] sm:$0xff]
      %v4581 = vld [vmem:[%s4521 + $0x49] sm:$0xff]
      %v4582 = vld [vmem:[%s4521 + $0x51] sm:$0xff]
      %v4583 = vld [vmem:[%s4521 + $0x61] sm:$0xff]
      %v4584 = vld [vmem:[%s4521 + $0x69] sm:$0xff]
      %v4585 = vld [vmem:[%s4521 + $0x79] sm:$0xff]
      %v4586 = vld [vmem:[%s4521 + $0x81] sm:$0xff]
      %v4587 = vld [vmem:[%s4521 + $0x91] sm:$0xff]
      %v4588 = vld [vmem:[%s4521 + $0x99] sm:$0xff]
      %v4589 = vld [vmem:[%s4521 + $0xa9] sm:$0xff]
      %v4590 = vld [vmem:[%s4521 + $0xb1] sm:$0xff]
      %v4591 = vlaneseq
      %v4592 = vshrl.u32 %v4591, 7
      %v4593 = vsub.s32 0, %v4592
      %v4594 = vrot.slane %v4574, %v4593
      %v4595 = vmul.f32 %v4575, %v4594
      %v4596 = vmul.f32 %v4576, %v4594
      %v4597 = vmul.f32 %v4577, %v4594
      %v4598 = vmul.f32 %v4578, %v4594
      %v4599 = vmul.f32 %v4579, %v4594
      %v4600 = vmul.f32 %v4580, %v4594
      %v4601 = vmul.f32 %v4581, %v4594
      %v4602 = vmul.f32 %v4582, %v4594
      %v4603 = vmul.f32 %v4583, %v4594
      %v4604 = vmul.f32 %v4584, %v4594
      %v4605 = vmul.f32 %v4585, %v4594
      %v4606 = vmul.f32 %v4586, %v4594
      %v4607 = vmul.f32 %v4587, %v4594
      %v4608 = vmul.f32 %v4588, %v4594
      %v4609 = vmul.f32 %v4589, %v4594
      %v4610 = vmul.f32 %v4590, %v4594
      %v4611 = vadd.f32 %v4558, %v4595
      %v4612 = vadd.f32 %v4559, %v4596
      %v4613 = vadd.f32 %v4560, %v4597
      %v4614 = vadd.f32 %v4561, %v4598
      %v4615 = vadd.f32 %v4562, %v4599
      %v4616 = vadd.f32 %v4563, %v4600
      %v4617 = vadd.f32 %v4564, %v4601
      %v4618 = vadd.f32 %v4565, %v4602
      %v4619 = vadd.f32 %v4566, %v4603
      %v4620 = vadd.f32 %v4567, %v4604
      %v4621 = vadd.f32 %v4568, %v4605
      %v4622 = vadd.f32 %v4569, %v4606
      %v4623 = vadd.f32 %v4570, %v4607
      %v4624 = vadd.f32 %v4571, %v4608
      %v4625 = vadd.f32 %v4572, %v4609
      %v4626 = vadd.f32 %v4573, %v4610
      %v4627 = vld [vmem:[%s2963 + $0x2] sm:$0x1]
      %v4628 = vld [vmem:[%s4521 + $0x2] sm:$0xff]
      %v4629 = vld [vmem:[%s4521 + $0xa] sm:$0xff]
      %v4630 = vld [vmem:[%s4521 + $0x1a] sm:$0xff]
      %v4631 = vld [vmem:[%s4521 + $0x22] sm:$0xff]
      %v4632 = vld [vmem:[%s4521 + $0x32] sm:$0xff]
      %v4633 = vld [vmem:[%s4521 + $0x3a] sm:$0xff]
      %v4634 = vld [vmem:[%s4521 + $0x4a] sm:$0xff]
      %v4635 = vld [vmem:[%s4521 + $0x52] sm:$0xff]
      %v4636 = vld [vmem:[%s4521 + $0x62] sm:$0xff]
      %v4637 = vld [vmem:[%s4521 + $0x6a] sm:$0xff]
      %v4638 = vld [vmem:[%s4521 + $0x7a] sm:$0xff]
      %v4639 = vld [vmem:[%s4521 + $0x82] sm:$0xff]
      %v4640 = vld [vmem:[%s4521 + $0x92] sm:$0xff]
      %v4641 = vld [vmem:[%s4521 + $0x9a] sm:$0xff]
      %v4642 = vld [vmem:[%s4521 + $0xaa] sm:$0xff]
      %v4643 = vld [vmem:[%s4521 + $0xb2] sm:$0xff]
      %v4644 = vlaneseq
      %v4645 = vshrl.u32 %v4644, 7
      %v4646 = vsub.s32 0, %v4645
      %v4647 = vrot.slane %v4627, %v4646
      %v4648 = vmul.f32 %v4628, %v4647
      %v4649 = vmul.f32 %v4629, %v4647
      %v4650 = vmul.f32 %v4630, %v4647
      %v4651 = vmul.f32 %v4631, %v4647
      %v4652 = vmul.f32 %v4632, %v4647
      %v4653 = vmul.f32 %v4633, %v4647
      %v4654 = vmul.f32 %v4634, %v4647
      %v4655 = vmul.f32 %v4635, %v4647
      %v4656 = vmul.f32 %v4636, %v4647
      %v4657 = vmul.f32 %v4637, %v4647
      %v4658 = vmul.f32 %v4638, %v4647
      %v4659 = vmul.f32 %v4639, %v4647
      %v4660 = vmul.f32 %v4640, %v4647
      %v4661 = vmul.f32 %v4641, %v4647
      %v4662 = vmul.f32 %v4642, %v4647
      %v4663 = vmul.f32 %v4643, %v4647
      %v4664 = vadd.f32 %v4611, %v4648
      %v4665 = vadd.f32 %v4612, %v4649
      %v4666 = vadd.f32 %v4613, %v4650
      %v4667 = vadd.f32 %v4614, %v4651
      %v4668 = vadd.f32 %v4615, %v4652
      %v4669 = vadd.f32 %v4616, %v4653
      %v4670 = vadd.f32 %v4617, %v4654
      %v4671 = vadd.f32 %v4618, %v4655
      %v4672 = vadd.f32 %v4619, %v4656
      %v4673 = vadd.f32 %v4620, %v4657
      %v4674 = vadd.f32 %v4621, %v4658
      %v4675 = vadd.f32 %v4622, %v4659
      %v4676 = vadd.f32 %v4623, %v4660
      %v4677 = vadd.f32 %v4624, %v4661
      %v4678 = vadd.f32 %v4625, %v4662
      %v4679 = vadd.f32 %v4626, %v4663
      %v4680 = vld [vmem:[%s2963 + $0x3] sm:$0x1]
      %v4681 = vld [vmem:[%s4521 + $0x3] sm:$0xff]
      %v4682 = vld [vmem:[%s4521 + $0xb] sm:$0xff]
      %v4683 = vld [vmem:[%s4521 + $0x1b] sm:$0xff]
      %v4684 = vld [vmem:[%s4521 + $0x23] sm:$0xff]
      %v4685 = vld [vmem:[%s4521 + $0x33] sm:$0xff]
      %v4686 = vld [vmem:[%s4521 + $0x3b] sm:$0xff]
      %v4687 = vld [vmem:[%s4521 + $0x4b] sm:$0xff]
      %v4688 = vld [vmem:[%s4521 + $0x53] sm:$0xff]
      %v4689 = vld [vmem:[%s4521 + $0x63] sm:$0xff]
      %v4690 = vld [vmem:[%s4521 + $0x6b] sm:$0xff]
      %v4691 = vld [vmem:[%s4521 + $0x7b] sm:$0xff]
      %v4692 = vld [vmem:[%s4521 + $0x83] sm:$0xff]
      %v4693 = vld [vmem:[%s4521 + $0x93] sm:$0xff]
      %v4694 = vld [vmem:[%s4521 + $0x9b] sm:$0xff]
      %v4695 = vld [vmem:[%s4521 + $0xab] sm:$0xff]
      %v4696 = vld [vmem:[%s4521 + $0xb3] sm:$0xff]
      %v4697 = vlaneseq
      %v4698 = vshrl.u32 %v4697, 7
      %v4699 = vsub.s32 0, %v4698
      %v4700 = vrot.slane %v4680, %v4699
      %v4701 = vmul.f32 %v4681, %v4700
      %v4702 = vmul.f32 %v4682, %v4700
      %v4703 = vmul.f32 %v4683, %v4700
      %v4704 = vmul.f32 %v4684, %v4700
      %v4705 = vmul.f32 %v4685, %v4700
      %v4706 = vmul.f32 %v4686, %v4700
      %v4707 = vmul.f32 %v4687, %v4700
      %v4708 = vmul.f32 %v4688, %v4700
      %v4709 = vmul.f32 %v4689, %v4700
      %v4710 = vmul.f32 %v4690, %v4700
      %v4711 = vmul.f32 %v4691, %v4700
      %v4712 = vmul.f32 %v4692, %v4700
      %v4713 = vmul.f32 %v4693, %v4700
      %v4714 = vmul.f32 %v4694, %v4700
      %v4715 = vmul.f32 %v4695, %v4700
      %v4716 = vmul.f32 %v4696, %v4700
      %v4717 = vadd.f32 %v4664, %v4701
      %v4718 = vadd.f32 %v4665, %v4702
      %v4719 = vadd.f32 %v4666, %v4703
      %v4720 = vadd.f32 %v4667, %v4704
      %v4721 = vadd.f32 %v4668, %v4705
      %v4722 = vadd.f32 %v4669, %v4706
      %v4723 = vadd.f32 %v4670, %v4707
      %v4724 = vadd.f32 %v4671, %v4708
      %v4725 = vadd.f32 %v4672, %v4709
      %v4726 = vadd.f32 %v4673, %v4710
      %v4727 = vadd.f32 %v4674, %v4711
      %v4728 = vadd.f32 %v4675, %v4712
      %v4729 = vadd.f32 %v4676, %v4713
      %v4730 = vadd.f32 %v4677, %v4714
      %v4731 = vadd.f32 %v4678, %v4715
      %v4732 = vadd.f32 %v4679, %v4716
      %v4733 = vld [vmem:[%s2963 + $0x4] sm:$0x1]
      %v4734 = vld [vmem:[%s4521 + $0x4] sm:$0xff]
      %v4735 = vld [vmem:[%s4521 + $0xc] sm:$0xff]
      %v4736 = vld [vmem:[%s4521 + $0x1c] sm:$0xff]
      %v4737 = vld [vmem:[%s4521 + $0x24] sm:$0xff]
      %v4738 = vld [vmem:[%s4521 + $0x34] sm:$0xff]
      %v4739 = vld [vmem:[%s4521 + $0x3c] sm:$0xff]
      %v4740 = vld [vmem:[%s4521 + $0x4c] sm:$0xff]
      %v4741 = vld [vmem:[%s4521 + $0x54] sm:$0xff]
      %v4742 = vld [vmem:[%s4521 + $0x64] sm:$0xff]
      %v4743 = vld [vmem:[%s4521 + $0x6c] sm:$0xff]
      %v4744 = vld [vmem:[%s4521 + $0x7c] sm:$0xff]
      %v4745 = vld [vmem:[%s4521 + $0x84] sm:$0xff]
      %v4746 = vld [vmem:[%s4521 + $0x94] sm:$0xff]
      %v4747 = vld [vmem:[%s4521 + $0x9c] sm:$0xff]
      %v4748 = vld [vmem:[%s4521 + $0xac] sm:$0xff]
      %v4749 = vld [vmem:[%s4521 + $0xb4] sm:$0xff]
      %v4750 = vlaneseq
      %v4751 = vshrl.u32 %v4750, 7
      %v4752 = vsub.s32 0, %v4751
      %v4753 = vrot.slane %v4733, %v4752
      %v4754 = vmul.f32 %v4734, %v4753
      %v4755 = vmul.f32 %v4735, %v4753
      %v4756 = vmul.f32 %v4736, %v4753
      %v4757 = vmul.f32 %v4737, %v4753
      %v4758 = vmul.f32 %v4738, %v4753
      %v4759 = vmul.f32 %v4739, %v4753
      %v4760 = vmul.f32 %v4740, %v4753
      %v4761 = vmul.f32 %v4741, %v4753
      %v4762 = vmul.f32 %v4742, %v4753
      %v4763 = vmul.f32 %v4743, %v4753
      %v4764 = vmul.f32 %v4744, %v4753
      %v4765 = vmul.f32 %v4745, %v4753
      %v4766 = vmul.f32 %v4746, %v4753
      %v4767 = vmul.f32 %v4747, %v4753
      %v4768 = vmul.f32 %v4748, %v4753
      %v4769 = vmul.f32 %v4749, %v4753
      %v4770 = vadd.f32 %v4717, %v4754
      %v4771 = vadd.f32 %v4718, %v4755
      %v4772 = vadd.f32 %v4719, %v4756
      %v4773 = vadd.f32 %v4720, %v4757
      %v4774 = vadd.f32 %v4721, %v4758
      %v4775 = vadd.f32 %v4722, %v4759
      %v4776 = vadd.f32 %v4723, %v4760
      %v4777 = vadd.f32 %v4724, %v4761
      %v4778 = vadd.f32 %v4725, %v4762
      %v4779 = vadd.f32 %v4726, %v4763
      %v4780 = vadd.f32 %v4727, %v4764
      %v4781 = vadd.f32 %v4728, %v4765
      %v4782 = vadd.f32 %v4729, %v4766
      %v4783 = vadd.f32 %v4730, %v4767
      %v4784 = vadd.f32 %v4731, %v4768
      %v4785 = vadd.f32 %v4732, %v4769
      %v4786 = vld [vmem:[%s3230] sm:$0x1]
      %v4787 = vld [vmem:[%s2648] sm:$0xff]
      %v4788 = vld [vmem:[%s2648 + $0x8] sm:$0xff]
      %v4789 = vld [vmem:[%s2648 + $0x18] sm:$0xff]
      %v4790 = vld [vmem:[%s2648 + $0x20] sm:$0xff]
      %v4791 = vld [vmem:[%s2648 + $0x30] sm:$0xff]
      %v4792 = vld [vmem:[%s2648 + $0x38] sm:$0xff]
      %v4793 = vld [vmem:[%s2648 + $0x48] sm:$0xff]
      %v4794 = vld [vmem:[%s2648 + $0x50] sm:$0xff]
      %v4795 = vld [vmem:[%s2648 + $0x60] sm:$0xff]
      %v4796 = vld [vmem:[%s2648 + $0x68] sm:$0xff]
      %v4797 = vld [vmem:[%s2648 + $0x78] sm:$0xff]
      %v4798 = vld [vmem:[%s2648 + $0x80] sm:$0xff]
      %v4799 = vld [vmem:[%s2648 + $0x90] sm:$0xff]
      %v4800 = vld [vmem:[%s2648 + $0x98] sm:$0xff]
      %v4801 = vld [vmem:[%s2648 + $0xa8] sm:$0xff]
      %v4802 = vld [vmem:[%s2648 + $0xb0] sm:$0xff]
      %v4803 = vlaneseq
      %v4804 = vshrl.u32 %v4803, 7
      %v4805 = vsub.s32 0, %v4804
      %v4806 = vrot.slane %v4786, %v4805
      %v4807 = vmul.f32 %v4787, %v4806
      %v4808 = vmul.f32 %v4788, %v4806
      %v4809 = vmul.f32 %v4789, %v4806
      %v4810 = vmul.f32 %v4790, %v4806
      %v4811 = vmul.f32 %v4791, %v4806
      %v4812 = vmul.f32 %v4792, %v4806
      %v4813 = vmul.f32 %v4793, %v4806
      %v4814 = vmul.f32 %v4794, %v4806
      %v4815 = vmul.f32 %v4795, %v4806
      %v4816 = vmul.f32 %v4796, %v4806
      %v4817 = vmul.f32 %v4797, %v4806
      %v4818 = vmul.f32 %v4798, %v4806
      %v4819 = vmul.f32 %v4799, %v4806
      %v4820 = vmul.f32 %v4800, %v4806
      %v4821 = vmul.f32 %v4801, %v4806
      %v4822 = vmul.f32 %v4802, %v4806
      %v4823 = vadd.f32 %v4770, %v4807
      %v4824 = vadd.f32 %v4771, %v4808
      %v4825 = vadd.f32 %v4772, %v4809
      %v4826 = vadd.f32 %v4773, %v4810
      %v4827 = vadd.f32 %v4774, %v4811
      %v4828 = vadd.f32 %v4775, %v4812
      %v4829 = vadd.f32 %v4776, %v4813
      %v4830 = vadd.f32 %v4777, %v4814
      %v4831 = vadd.f32 %v4778, %v4815
      %v4832 = vadd.f32 %v4779, %v4816
      %v4833 = vadd.f32 %v4780, %v4817
      %v4834 = vadd.f32 %v4781, %v4818
      %v4835 = vadd.f32 %v4782, %v4819
      %v4836 = vadd.f32 %v4783, %v4820
      %v4837 = vadd.f32 %v4784, %v4821
      %v4838 = vadd.f32 %v4785, %v4822
      %v4839 = vld [vmem:[%s3230 + $0x1] sm:$0x1]
      %v4840 = vld [vmem:[%s2648 + $0x1] sm:$0xff]
      %v4841 = vld [vmem:[%s2648 + $0x9] sm:$0xff]
      %v4842 = vld [vmem:[%s2648 + $0x19] sm:$0xff]
      %v4843 = vld [vmem:[%s2648 + $0x21] sm:$0xff]
      %v4844 = vld [vmem:[%s2648 + $0x31] sm:$0xff]
      %v4845 = vld [vmem:[%s2648 + $0x39] sm:$0xff]
      %v4846 = vld [vmem:[%s2648 + $0x49] sm:$0xff]
      %v4847 = vld [vmem:[%s2648 + $0x51] sm:$0xff]
      %v4848 = vld [vmem:[%s2648 + $0x61] sm:$0xff]
      %v4849 = vld [vmem:[%s2648 + $0x69] sm:$0xff]
      %v4850 = vld [vmem:[%s2648 + $0x79] sm:$0xff]
      %v4851 = vld [vmem:[%s2648 + $0x81] sm:$0xff]
      %v4852 = vld [vmem:[%s2648 + $0x91] sm:$0xff]
      %v4853 = vld [vmem:[%s2648 + $0x99] sm:$0xff]
      %v4854 = vld [vmem:[%s2648 + $0xa9] sm:$0xff]
      %v4855 = vld [vmem:[%s2648 + $0xb1] sm:$0xff]
      %v4856 = vlaneseq
      %v4857 = vshrl.u32 %v4856, 7
      %v4858 = vsub.s32 0, %v4857
      %v4859 = vrot.slane %v4839, %v4858
      %v4860 = vmul.f32 %v4840, %v4859
      %v4861 = vmul.f32 %v4841, %v4859
      %v4862 = vmul.f32 %v4842, %v4859
      %v4863 = vmul.f32 %v4843, %v4859
      %v4864 = vmul.f32 %v4844, %v4859
      %v4865 = vmul.f32 %v4845, %v4859
      %v4866 = vmul.f32 %v4846, %v4859
      %v4867 = vmul.f32 %v4847, %v4859
      %v4868 = vmul.f32 %v4848, %v4859
      %v4869 = vmul.f32 %v4849, %v4859
      %v4870 = vmul.f32 %v4850, %v4859
      %v4871 = vmul.f32 %v4851, %v4859
      %v4872 = vmul.f32 %v4852, %v4859
      %v4873 = vmul.f32 %v4853, %v4859
      %v4874 = vmul.f32 %v4854, %v4859
      %v4875 = vmul.f32 %v4855, %v4859
      %v4876 = vadd.f32 %v4823, %v4860
      %v4877 = vadd.f32 %v4824, %v4861
      %v4878 = vadd.f32 %v4825, %v4862
      %v4879 = vadd.f32 %v4826, %v4863
      %v4880 = vadd.f32 %v4827, %v4864
      %v4881 = vadd.f32 %v4828, %v4865
      %v4882 = vadd.f32 %v4829, %v4866
      %v4883 = vadd.f32 %v4830, %v4867
      %v4884 = vadd.f32 %v4831, %v4868
      %v4885 = vadd.f32 %v4832, %v4869
      %v4886 = vadd.f32 %v4833, %v4870
      %v4887 = vadd.f32 %v4834, %v4871
      %v4888 = vadd.f32 %v4835, %v4872
      %v4889 = vadd.f32 %v4836, %v4873
      %v4890 = vadd.f32 %v4837, %v4874
      %v4891 = vadd.f32 %v4838, %v4875
      %v4892 = vld [vmem:[%s3230 + $0x2] sm:$0x1]
      %v4893 = vld [vmem:[%s2648 + $0x2] sm:$0xff]
      %v4894 = vld [vmem:[%s2648 + $0xa] sm:$0xff]
      %v4895 = vld [vmem:[%s2648 + $0x1a] sm:$0xff]
      %v4896 = vld [vmem:[%s2648 + $0x22] sm:$0xff]
      %v4897 = vld [vmem:[%s2648 + $0x32] sm:$0xff]
      %v4898 = vld [vmem:[%s2648 + $0x3a] sm:$0xff]
      %v4899 = vld [vmem:[%s2648 + $0x4a] sm:$0xff]
      %v4900 = vld [vmem:[%s2648 + $0x52] sm:$0xff]
      %v4901 = vld [vmem:[%s2648 + $0x62] sm:$0xff]
      %v4902 = vld [vmem:[%s2648 + $0x6a] sm:$0xff]
      %v4903 = vld [vmem:[%s2648 + $0x7a] sm:$0xff]
      %v4904 = vld [vmem:[%s2648 + $0x82] sm:$0xff]
      %v4905 = vld [vmem:[%s2648 + $0x92] sm:$0xff]
      %v4906 = vld [vmem:[%s2648 + $0x9a] sm:$0xff]
      %v4907 = vld [vmem:[%s2648 + $0xaa] sm:$0xff]
      %v4908 = vld [vmem:[%s2648 + $0xb2] sm:$0xff]
      %v4909 = vlaneseq
      %v4910 = vshrl.u32 %v4909, 7
      %v4911 = vsub.s32 0, %v4910
      %v4912 = vrot.slane %v4892, %v4911
      %v4913 = vmul.f32 %v4893, %v4912
      %v4914 = vmul.f32 %v4894, %v4912
      %v4915 = vmul.f32 %v4895, %v4912
      %v4916 = vmul.f32 %v4896, %v4912
      %v4917 = vmul.f32 %v4897, %v4912
      %v4918 = vmul.f32 %v4898, %v4912
      %v4919 = vmul.f32 %v4899, %v4912
      %v4920 = vmul.f32 %v4900, %v4912
      %v4921 = vmul.f32 %v4901, %v4912
      %v4922 = vmul.f32 %v4902, %v4912
      %v4923 = vmul.f32 %v4903, %v4912
      %v4924 = vmul.f32 %v4904, %v4912
      %v4925 = vmul.f32 %v4905, %v4912
      %v4926 = vmul.f32 %v4906, %v4912
      %v4927 = vmul.f32 %v4907, %v4912
      %v4928 = vmul.f32 %v4908, %v4912
      %v4929 = vadd.f32 %v4876, %v4913
      %v4930 = vadd.f32 %v4877, %v4914
      %v4931 = vadd.f32 %v4878, %v4915
      %v4932 = vadd.f32 %v4879, %v4916
      %v4933 = vadd.f32 %v4880, %v4917
      %v4934 = vadd.f32 %v4881, %v4918
      %v4935 = vadd.f32 %v4882, %v4919
      %v4936 = vadd.f32 %v4883, %v4920
      %v4937 = vadd.f32 %v4884, %v4921
      %v4938 = vadd.f32 %v4885, %v4922
      %v4939 = vadd.f32 %v4886, %v4923
      %v4940 = vadd.f32 %v4887, %v4924
      %v4941 = vadd.f32 %v4888, %v4925
      %v4942 = vadd.f32 %v4889, %v4926
      %v4943 = vadd.f32 %v4890, %v4927
      %v4944 = vadd.f32 %v4891, %v4928
      %v4945 = vld [vmem:[%s3230 + $0x3] sm:$0x1]
      %v4946 = vld [vmem:[%s2648 + $0x3] sm:$0xff]
      %v4947 = vld [vmem:[%s2648 + $0xb] sm:$0xff]
      %v4948 = vld [vmem:[%s2648 + $0x1b] sm:$0xff]
      %v4949 = vld [vmem:[%s2648 + $0x23] sm:$0xff]
      %v4950 = vld [vmem:[%s2648 + $0x33] sm:$0xff]
      %v4951 = vld [vmem:[%s2648 + $0x3b] sm:$0xff]
      %v4952 = vld [vmem:[%s2648 + $0x4b] sm:$0xff]
      %v4953 = vld [vmem:[%s2648 + $0x53] sm:$0xff]
      %v4954 = vld [vmem:[%s2648 + $0x63] sm:$0xff]
      %v4955 = vld [vmem:[%s2648 + $0x6b] sm:$0xff]
      %v4956 = vld [vmem:[%s2648 + $0x7b] sm:$0xff]
      %v4957 = vld [vmem:[%s2648 + $0x83] sm:$0xff]
      %v4958 = vld [vmem:[%s2648 + $0x93] sm:$0xff]
      %v4959 = vld [vmem:[%s2648 + $0x9b] sm:$0xff]
      %v4960 = vld [vmem:[%s2648 + $0xab] sm:$0xff]
      %v4961 = vld [vmem:[%s2648 + $0xb3] sm:$0xff]
      %v4962 = vlaneseq
      %v4963 = vshrl.u32 %v4962, 7
      %v4964 = vsub.s32 0, %v4963
      %v4965 = vrot.slane %v4945, %v4964
      %v4966 = vmul.f32 %v4946, %v4965
      %v4967 = vmul.f32 %v4947, %v4965
      %v4968 = vmul.f32 %v4948, %v4965
      %v4969 = vmul.f32 %v4949, %v4965
      %v4970 = vmul.f32 %v4950, %v4965
      %v4971 = vmul.f32 %v4951, %v4965
      %v4972 = vmul.f32 %v4952, %v4965
      %v4973 = vmul.f32 %v4953, %v4965
      %v4974 = vmul.f32 %v4954, %v4965
      %v4975 = vmul.f32 %v4955, %v4965
      %v4976 = vmul.f32 %v4956, %v4965
      %v4977 = vmul.f32 %v4957, %v4965
      %v4978 = vmul.f32 %v4958, %v4965
      %v4979 = vmul.f32 %v4959, %v4965
      %v4980 = vmul.f32 %v4960, %v4965
      %v4981 = vmul.f32 %v4961, %v4965
      %v4982 = vadd.f32 %v4929, %v4966
      %v4983 = vadd.f32 %v4930, %v4967
      %v4984 = vadd.f32 %v4931, %v4968
      %v4985 = vadd.f32 %v4932, %v4969
      %v4986 = vadd.f32 %v4933, %v4970
      %v4987 = vadd.f32 %v4934, %v4971
      %v4988 = vadd.f32 %v4935, %v4972
      %v4989 = vadd.f32 %v4936, %v4973
      %v4990 = vadd.f32 %v4937, %v4974
      %v4991 = vadd.f32 %v4938, %v4975
      %v4992 = vadd.f32 %v4939, %v4976
      %v4993 = vadd.f32 %v4940, %v4977
      %v4994 = vadd.f32 %v4941, %v4978
      %v4995 = vadd.f32 %v4942, %v4979
      %v4996 = vadd.f32 %v4943, %v4980
      %v4997 = vadd.f32 %v4944, %v4981
      %v4998 = vld [vmem:[%s3230 + $0x4] sm:$0x1]
      %v4999 = vld [vmem:[%s2648 + $0x4] sm:$0xff]
      %v5000 = vld [vmem:[%s2648 + $0xc] sm:$0xff]
      %v5001 = vld [vmem:[%s2648 + $0x1c] sm:$0xff]
      %v5002 = vld [vmem:[%s2648 + $0x24] sm:$0xff]
      %v5003 = vld [vmem:[%s2648 + $0x34] sm:$0xff]
      %v5004 = vld [vmem:[%s2648 + $0x3c] sm:$0xff]
      %v5005 = vld [vmem:[%s2648 + $0x4c] sm:$0xff]
      %v5006 = vld [vmem:[%s2648 + $0x54] sm:$0xff]
      %v5007 = vld [vmem:[%s2648 + $0x64] sm:$0xff]
      %v5008 = vld [vmem:[%s2648 + $0x6c] sm:$0xff]
      %v5009 = vld [vmem:[%s2648 + $0x7c] sm:$0xff]
      %v5010 = vld [vmem:[%s2648 + $0x84] sm:$0xff]
      %v5011 = vld [vmem:[%s2648 + $0x94] sm:$0xff]
      %v5012 = vld [vmem:[%s2648 + $0x9c] sm:$0xff]
      %v5013 = vld [vmem:[%s2648 + $0xac] sm:$0xff]
      %v5014 = vld [vmem:[%s2648 + $0xb4] sm:$0xff]
      %v5015 = vlaneseq
      %v5016 = vshrl.u32 %v5015, 7
      %v5017 = vsub.s32 0, %v5016
      %v5018 = vrot.slane %v4998, %v5017
      %v5019 = vmul.f32 %v4999, %v5018
      %v5020 = vmul.f32 %v5000, %v5018
      %v5021 = vmul.f32 %v5001, %v5018
      %v5022 = vmul.f32 %v5002, %v5018
      %v5023 = vmul.f32 %v5003, %v5018
      %v5024 = vmul.f32 %v5004, %v5018
      %v5025 = vmul.f32 %v5005, %v5018
      %v5026 = vmul.f32 %v5006, %v5018
      %v5027 = vmul.f32 %v5007, %v5018
      %v5028 = vmul.f32 %v5008, %v5018
      %v5029 = vmul.f32 %v5009, %v5018
      %v5030 = vmul.f32 %v5010, %v5018
      %v5031 = vmul.f32 %v5011, %v5018
      %v5032 = vmul.f32 %v5012, %v5018
      %v5033 = vmul.f32 %v5013, %v5018
      %v5034 = vmul.f32 %v5014, %v5018
      %v5035 = vadd.f32 %v4982, %v5019
      %v5036 = vadd.f32 %v4983, %v5020
      %v5037 = vadd.f32 %v4984, %v5021
      %v5038 = vadd.f32 %v4985, %v5022
      %v5039 = vadd.f32 %v4986, %v5023
      %v5040 = vadd.f32 %v4987, %v5024
      %v5041 = vadd.f32 %v4988, %v5025
      %v5042 = vadd.f32 %v4989, %v5026
      %v5043 = vadd.f32 %v4990, %v5027
      %v5044 = vadd.f32 %v4991, %v5028
      %v5045 = vadd.f32 %v4992, %v5029
      %v5046 = vadd.f32 %v4993, %v5030
      %v5047 = vadd.f32 %v4994, %v5031
      %v5048 = vadd.f32 %v4995, %v5032
      %v5049 = vadd.f32 %v4996, %v5033
      %v5050 = vadd.f32 %v4997, %v5034
      %v5051 = vld [vmem:[%s3496] sm:$0x1]
      %s5052 = scalar_lea.vmem [#allocation3], 264
      %v5053 = vld [vmem:[%s5052] sm:$0xff]
      %v5054 = vld [vmem:[%s5052 + $0x8] sm:$0xff]
      %v5055 = vld [vmem:[%s5052 + $0x18] sm:$0xff]
      %v5056 = vld [vmem:[%s5052 + $0x20] sm:$0xff]
      %v5057 = vld [vmem:[%s5052 + $0x30] sm:$0xff]
      %v5058 = vld [vmem:[%s5052 + $0x38] sm:$0xff]
      %v5059 = vld [vmem:[%s5052 + $0x48] sm:$0xff]
      %v5060 = vld [vmem:[%s5052 + $0x50] sm:$0xff]
      %v5061 = vld [vmem:[%s5052 + $0x60] sm:$0xff]
      %v5062 = vld [vmem:[%s5052 + $0x68] sm:$0xff]
      %v5063 = vld [vmem:[%s5052 + $0x78] sm:$0xff]
      %v5064 = vld [vmem:[%s5052 + $0x80] sm:$0xff]
      %v5065 = vld [vmem:[%s5052 + $0x90] sm:$0xff]
      %v5066 = vld [vmem:[%s5052 + $0x98] sm:$0xff]
      %v5067 = vld [vmem:[%s5052 + $0xa8] sm:$0xff]
      %v5068 = vld [vmem:[%s5052 + $0xb0] sm:$0xff]
      %v5069 = vlaneseq
      %v5070 = vshrl.u32 %v5069, 7
      %v5071 = vsub.s32 0, %v5070
      %v5072 = vrot.slane %v5051, %v5071
      %v5073 = vmul.f32 %v5053, %v5072
      %v5074 = vmul.f32 %v5054, %v5072
      %v5075 = vmul.f32 %v5055, %v5072
      %v5076 = vmul.f32 %v5056, %v5072
      %v5077 = vmul.f32 %v5057, %v5072
      %v5078 = vmul.f32 %v5058, %v5072
      %v5079 = vmul.f32 %v5059, %v5072
      %v5080 = vmul.f32 %v5060, %v5072
      %v5081 = vmul.f32 %v5061, %v5072
      %v5082 = vmul.f32 %v5062, %v5072
      %v5083 = vmul.f32 %v5063, %v5072
      %v5084 = vmul.f32 %v5064, %v5072
      %v5085 = vmul.f32 %v5065, %v5072
      %v5086 = vmul.f32 %v5066, %v5072
      %v5087 = vmul.f32 %v5067, %v5072
      %v5088 = vmul.f32 %v5068, %v5072
      %v5089 = vadd.f32 %v5035, %v5073
      %v5090 = vadd.f32 %v5036, %v5074
      %v5091 = vadd.f32 %v5037, %v5075
      %v5092 = vadd.f32 %v5038, %v5076
      %v5093 = vadd.f32 %v5039, %v5077
      %v5094 = vadd.f32 %v5040, %v5078
      %v5095 = vadd.f32 %v5041, %v5079
      %v5096 = vadd.f32 %v5042, %v5080
      %v5097 = vadd.f32 %v5043, %v5081
      %v5098 = vadd.f32 %v5044, %v5082
      %v5099 = vadd.f32 %v5045, %v5083
      %v5100 = vadd.f32 %v5046, %v5084
      %v5101 = vadd.f32 %v5047, %v5085
      %v5102 = vadd.f32 %v5048, %v5086
      %v5103 = vadd.f32 %v5049, %v5087
      %v5104 = vadd.f32 %v5050, %v5088
      %v5105 = vld [vmem:[%s3496 + $0x1] sm:$0x1]
      %v5106 = vld [vmem:[%s5052 + $0x1] sm:$0xff]
      %v5107 = vld [vmem:[%s5052 + $0x9] sm:$0xff]
      %v5108 = vld [vmem:[%s5052 + $0x19] sm:$0xff]
      %v5109 = vld [vmem:[%s5052 + $0x21] sm:$0xff]
      %v5110 = vld [vmem:[%s5052 + $0x31] sm:$0xff]
      %v5111 = vld [vmem:[%s5052 + $0x39] sm:$0xff]
      %v5112 = vld [vmem:[%s5052 + $0x49] sm:$0xff]
      %v5113 = vld [vmem:[%s5052 + $0x51] sm:$0xff]
      %v5114 = vld [vmem:[%s5052 + $0x61] sm:$0xff]
      %v5115 = vld [vmem:[%s5052 + $0x69] sm:$0xff]
      %v5116 = vld [vmem:[%s5052 + $0x79] sm:$0xff]
      %v5117 = vld [vmem:[%s5052 + $0x81] sm:$0xff]
      %v5118 = vld [vmem:[%s5052 + $0x91] sm:$0xff]
      %v5119 = vld [vmem:[%s5052 + $0x99] sm:$0xff]
      %v5120 = vld [vmem:[%s5052 + $0xa9] sm:$0xff]
      %v5121 = vld [vmem:[%s5052 + $0xb1] sm:$0xff]
      %v5122 = vlaneseq
      %v5123 = vshrl.u32 %v5122, 7
      %v5124 = vsub.s32 0, %v5123
      %v5125 = vrot.slane %v5105, %v5124
      %v5126 = vmul.f32 %v5106, %v5125
      %v5127 = vmul.f32 %v5107, %v5125
      %v5128 = vmul.f32 %v5108, %v5125
      %v5129 = vmul.f32 %v5109, %v5125
      %v5130 = vmul.f32 %v5110, %v5125
      %v5131 = vmul.f32 %v5111, %v5125
      %v5132 = vmul.f32 %v5112, %v5125
      %v5133 = vmul.f32 %v5113, %v5125
      %v5134 = vmul.f32 %v5114, %v5125
      %v5135 = vmul.f32 %v5115, %v5125
      %v5136 = vmul.f32 %v5116, %v5125
      %v5137 = vmul.f32 %v5117, %v5125
      %v5138 = vmul.f32 %v5118, %v5125
      %v5139 = vmul.f32 %v5119, %v5125
      %v5140 = vmul.f32 %v5120, %v5125
      %v5141 = vmul.f32 %v5121, %v5125
      %v5142 = vadd.f32 %v5089, %v5126
      %v5143 = vadd.f32 %v5090, %v5127
      %v5144 = vadd.f32 %v5091, %v5128
      %v5145 = vadd.f32 %v5092, %v5129
      %v5146 = vadd.f32 %v5093, %v5130
      %v5147 = vadd.f32 %v5094, %v5131
      %v5148 = vadd.f32 %v5095, %v5132
      %v5149 = vadd.f32 %v5096, %v5133
      %v5150 = vadd.f32 %v5097, %v5134
      %v5151 = vadd.f32 %v5098, %v5135
      %v5152 = vadd.f32 %v5099, %v5136
      %v5153 = vadd.f32 %v5100, %v5137
      %v5154 = vadd.f32 %v5101, %v5138
      %v5155 = vadd.f32 %v5102, %v5139
      %v5156 = vadd.f32 %v5103, %v5140
      %v5157 = vadd.f32 %v5104, %v5141
      %v5158 = vld [vmem:[%s3496 + $0x2] sm:$0x1]
      %v5159 = vld [vmem:[%s5052 + $0x2] sm:$0xff]
      %v5160 = vld [vmem:[%s5052 + $0xa] sm:$0xff]
      %v5161 = vld [vmem:[%s5052 + $0x1a] sm:$0xff]
      %v5162 = vld [vmem:[%s5052 + $0x22] sm:$0xff]
      %v5163 = vld [vmem:[%s5052 + $0x32] sm:$0xff]
      %v5164 = vld [vmem:[%s5052 + $0x3a] sm:$0xff]
      %v5165 = vld [vmem:[%s5052 + $0x4a] sm:$0xff]
      %v5166 = vld [vmem:[%s5052 + $0x52] sm:$0xff]
      %v5167 = vld [vmem:[%s5052 + $0x62] sm:$0xff]
      %v5168 = vld [vmem:[%s5052 + $0x6a] sm:$0xff]
      %v5169 = vld [vmem:[%s5052 + $0x7a] sm:$0xff]
      %v5170 = vld [vmem:[%s5052 + $0x82] sm:$0xff]
      %v5171 = vld [vmem:[%s5052 + $0x92] sm:$0xff]
      %v5172 = vld [vmem:[%s5052 + $0x9a] sm:$0xff]
      %v5173 = vld [vmem:[%s5052 + $0xaa] sm:$0xff]
      %v5174 = vld [vmem:[%s5052 + $0xb2] sm:$0xff]
      %v5175 = vlaneseq
      %v5176 = vshrl.u32 %v5175, 7
      %v5177 = vsub.s32 0, %v5176
      %v5178 = vrot.slane %v5158, %v5177
      %v5179 = vmul.f32 %v5159, %v5178
      %v5180 = vmul.f32 %v5160, %v5178
      %v5181 = vmul.f32 %v5161, %v5178
      %v5182 = vmul.f32 %v5162, %v5178
      %v5183 = vmul.f32 %v5163, %v5178
      %v5184 = vmul.f32 %v5164, %v5178
      %v5185 = vmul.f32 %v5165, %v5178
      %v5186 = vmul.f32 %v5166, %v5178
      %v5187 = vmul.f32 %v5167, %v5178
      %v5188 = vmul.f32 %v5168, %v5178
      %v5189 = vmul.f32 %v5169, %v5178
      %v5190 = vmul.f32 %v5170, %v5178
      %v5191 = vmul.f32 %v5171, %v5178
      %v5192 = vmul.f32 %v5172, %v5178
      %v5193 = vmul.f32 %v5173, %v5178
      %v5194 = vmul.f32 %v5174, %v5178
      %v5195 = vadd.f32 %v5142, %v5179
      %v5196 = vadd.f32 %v5143, %v5180
      %v5197 = vadd.f32 %v5144, %v5181
      %v5198 = vadd.f32 %v5145, %v5182
      %v5199 = vadd.f32 %v5146, %v5183
      %v5200 = vadd.f32 %v5147, %v5184
      %v5201 = vadd.f32 %v5148, %v5185
      %v5202 = vadd.f32 %v5149, %v5186
      %v5203 = vadd.f32 %v5150, %v5187
      %v5204 = vadd.f32 %v5151, %v5188
      %v5205 = vadd.f32 %v5152, %v5189
      %v5206 = vadd.f32 %v5153, %v5190
      %v5207 = vadd.f32 %v5154, %v5191
      %v5208 = vadd.f32 %v5155, %v5192
      %v5209 = vadd.f32 %v5156, %v5193
      %v5210 = vadd.f32 %v5157, %v5194
      %v5211 = vld [vmem:[%s3496 + $0x3] sm:$0x1]
      %v5212 = vld [vmem:[%s5052 + $0x3] sm:$0xff]
      %v5213 = vld [vmem:[%s5052 + $0xb] sm:$0xff]
      %v5214 = vld [vmem:[%s5052 + $0x1b] sm:$0xff]
      %v5215 = vld [vmem:[%s5052 + $0x23] sm:$0xff]
      %v5216 = vld [vmem:[%s5052 + $0x33] sm:$0xff]
      %v5217 = vld [vmem:[%s5052 + $0x3b] sm:$0xff]
      %v5218 = vld [vmem:[%s5052 + $0x4b] sm:$0xff]
      %v5219 = vld [vmem:[%s5052 + $0x53] sm:$0xff]
      %v5220 = vld [vmem:[%s5052 + $0x63] sm:$0xff]
      %v5221 = vld [vmem:[%s5052 + $0x6b] sm:$0xff]
      %v5222 = vld [vmem:[%s5052 + $0x7b] sm:$0xff]
      %v5223 = vld [vmem:[%s5052 + $0x83] sm:$0xff]
      %v5224 = vld [vmem:[%s5052 + $0x93] sm:$0xff]
      %v5225 = vld [vmem:[%s5052 + $0x9b] sm:$0xff]
      %v5226 = vld [vmem:[%s5052 + $0xab] sm:$0xff]
      %v5227 = vld [vmem:[%s5052 + $0xb3] sm:$0xff]
      %v5228 = vlaneseq
      %v5229 = vshrl.u32 %v5228, 7
      %v5230 = vsub.s32 0, %v5229
      %v5231 = vrot.slane %v5211, %v5230
      %v5232 = vmul.f32 %v5212, %v5231
      %v5233 = vmul.f32 %v5213, %v5231
      %v5234 = vmul.f32 %v5214, %v5231
      %v5235 = vmul.f32 %v5215, %v5231
      %v5236 = vmul.f32 %v5216, %v5231
      %v5237 = vmul.f32 %v5217, %v5231
      %v5238 = vmul.f32 %v5218, %v5231
      %v5239 = vmul.f32 %v5219, %v5231
      %v5240 = vmul.f32 %v5220, %v5231
      %v5241 = vmul.f32 %v5221, %v5231
      %v5242 = vmul.f32 %v5222, %v5231
      %v5243 = vmul.f32 %v5223, %v5231
      %v5244 = vmul.f32 %v5224, %v5231
      %v5245 = vmul.f32 %v5225, %v5231
      %v5246 = vmul.f32 %v5226, %v5231
      %v5247 = vmul.f32 %v5227, %v5231
      %v5248 = vadd.f32 %v5195, %v5232
      %v5249 = vadd.f32 %v5196, %v5233
      %v5250 = vadd.f32 %v5197, %v5234
      %v5251 = vadd.f32 %v5198, %v5235
      %v5252 = vadd.f32 %v5199, %v5236
      %v5253 = vadd.f32 %v5200, %v5237
      %v5254 = vadd.f32 %v5201, %v5238
      %v5255 = vadd.f32 %v5202, %v5239
      %v5256 = vadd.f32 %v5203, %v5240
      %v5257 = vadd.f32 %v5204, %v5241
      %v5258 = vadd.f32 %v5205, %v5242
      %v5259 = vadd.f32 %v5206, %v5243
      %v5260 = vadd.f32 %v5207, %v5244
      %v5261 = vadd.f32 %v5208, %v5245
      %v5262 = vadd.f32 %v5209, %v5246
      %v5263 = vadd.f32 %v5210, %v5247
      %v5264 = vld [vmem:[%s3496 + $0x4] sm:$0x1]
      %v5265 = vld [vmem:[%s5052 + $0x4] sm:$0xff]
      %v5266 = vld [vmem:[%s5052 + $0xc] sm:$0xff]
      %v5267 = vld [vmem:[%s5052 + $0x1c] sm:$0xff]
      %v5268 = vld [vmem:[%s5052 + $0x24] sm:$0xff]
      %v5269 = vld [vmem:[%s5052 + $0x34] sm:$0xff]
      %v5270 = vld [vmem:[%s5052 + $0x3c] sm:$0xff]
      %v5271 = vld [vmem:[%s5052 + $0x4c] sm:$0xff]
      %v5272 = vld [vmem:[%s5052 + $0x54] sm:$0xff]
      %v5273 = vld [vmem:[%s5052 + $0x64] sm:$0xff]
      %v5274 = vld [vmem:[%s5052 + $0x6c] sm:$0xff]
      %v5275 = vld [vmem:[%s5052 + $0x7c] sm:$0xff]
      %v5276 = vld [vmem:[%s5052 + $0x84] sm:$0xff]
      %v5277 = vld [vmem:[%s5052 + $0x94] sm:$0xff]
      %v5278 = vld [vmem:[%s5052 + $0x9c] sm:$0xff]
      %v5279 = vld [vmem:[%s5052 + $0xac] sm:$0xff]
      %v5280 = vld [vmem:[%s5052 + $0xb4] sm:$0xff]
      %v5281 = vlaneseq
      %v5282 = vshrl.u32 %v5281, 7
      %v5283 = vsub.s32 0, %v5282
      %v5284 = vrot.slane %v5264, %v5283
      %v5285 = vmul.f32 %v5265, %v5284
      %v5286 = vmul.f32 %v5266, %v5284
      %v5287 = vmul.f32 %v5267, %v5284
      %v5288 = vmul.f32 %v5268, %v5284
      %v5289 = vmul.f32 %v5269, %v5284
      %v5290 = vmul.f32 %v5270, %v5284
      %v5291 = vmul.f32 %v5271, %v5284
      %v5292 = vmul.f32 %v5272, %v5284
      %v5293 = vmul.f32 %v5273, %v5284
      %v5294 = vmul.f32 %v5274, %v5284
      %v5295 = vmul.f32 %v5275, %v5284
      %v5296 = vmul.f32 %v5276, %v5284
      %v5297 = vmul.f32 %v5277, %v5284
      %v5298 = vmul.f32 %v5278, %v5284
      %v5299 = vmul.f32 %v5279, %v5284
      %v5300 = vmul.f32 %v5280, %v5284
      %v5301 = vadd.f32 %v5248, %v5285
      %v5302 = vadd.f32 %v5249, %v5286
      %v5303 = vadd.f32 %v5250, %v5287
      %v5304 = vadd.f32 %v5251, %v5288
      %v5305 = vadd.f32 %v5252, %v5289
      %v5306 = vadd.f32 %v5253, %v5290
      %v5307 = vadd.f32 %v5254, %v5291
      %v5308 = vadd.f32 %v5255, %v5292
      %v5309 = vadd.f32 %v5256, %v5293
      %v5310 = vadd.f32 %v5257, %v5294
      %v5311 = vadd.f32 %v5258, %v5295
      %v5312 = vadd.f32 %v5259, %v5296
      %v5313 = vadd.f32 %v5260, %v5297
      %v5314 = vadd.f32 %v5261, %v5298
      %v5315 = vadd.f32 %v5262, %v5299
      %v5316 = vadd.f32 %v5263, %v5300
      %v5317 = vld [vmem:[%s3763] sm:$0x1]
      %s5318 = scalar_lea.vmem [#allocation3], 288
      %v5319 = vld [vmem:[%s5318] sm:$0xff]
      %v5320 = vld [vmem:[%s5318 + $0x8] sm:$0xff]
      %v5321 = vld [vmem:[%s5318 + $0x18] sm:$0xff]
      %v5322 = vld [vmem:[%s5318 + $0x20] sm:$0xff]
      %v5323 = vld [vmem:[%s5318 + $0x30] sm:$0xff]
      %v5324 = vld [vmem:[%s5318 + $0x38] sm:$0xff]
      %v5325 = vld [vmem:[%s5318 + $0x48] sm:$0xff]
      %v5326 = vld [vmem:[%s5318 + $0x50] sm:$0xff]
      %v5327 = vld [vmem:[%s5318 + $0x60] sm:$0xff]
      %v5328 = vld [vmem:[%s5318 + $0x68] sm:$0xff]
      %v5329 = vld [vmem:[%s5318 + $0x78] sm:$0xff]
      %v5330 = vld [vmem:[%s5318 + $0x80] sm:$0xff]
      %v5331 = vld [vmem:[%s5318 + $0x90] sm:$0xff]
      %v5332 = vld [vmem:[%s5318 + $0x98] sm:$0xff]
      %v5333 = vld [vmem:[%s5318 + $0xa8] sm:$0xff]
      %v5334 = vld [vmem:[%s5318 + $0xb0] sm:$0xff]
      %v5335 = vlaneseq
      %v5336 = vshrl.u32 %v5335, 7
      %v5337 = vsub.s32 0, %v5336
      %v5338 = vrot.slane %v5317, %v5337
      %v5339 = vmul.f32 %v5319, %v5338
      %v5340 = vmul.f32 %v5320, %v5338
      %v5341 = vmul.f32 %v5321, %v5338
      %v5342 = vmul.f32 %v5322, %v5338
      %v5343 = vmul.f32 %v5323, %v5338
      %v5344 = vmul.f32 %v5324, %v5338
      %v5345 = vmul.f32 %v5325, %v5338
      %v5346 = vmul.f32 %v5326, %v5338
      %v5347 = vmul.f32 %v5327, %v5338
      %v5348 = vmul.f32 %v5328, %v5338
      %v5349 = vmul.f32 %v5329, %v5338
      %v5350 = vmul.f32 %v5330, %v5338
      %v5351 = vmul.f32 %v5331, %v5338
      %v5352 = vmul.f32 %v5332, %v5338
      %v5353 = vmul.f32 %v5333, %v5338
      %v5354 = vmul.f32 %v5334, %v5338
      %v5355 = vadd.f32 %v5301, %v5339
      %v5356 = vadd.f32 %v5302, %v5340
      %v5357 = vadd.f32 %v5303, %v5341
      %v5358 = vadd.f32 %v5304, %v5342
      %v5359 = vadd.f32 %v5305, %v5343
      %v5360 = vadd.f32 %v5306, %v5344
      %v5361 = vadd.f32 %v5307, %v5345
      %v5362 = vadd.f32 %v5308, %v5346
      %v5363 = vadd.f32 %v5309, %v5347
      %v5364 = vadd.f32 %v5310, %v5348
      %v5365 = vadd.f32 %v5311, %v5349
      %v5366 = vadd.f32 %v5312, %v5350
      %v5367 = vadd.f32 %v5313, %v5351
      %v5368 = vadd.f32 %v5314, %v5352
      %v5369 = vadd.f32 %v5315, %v5353
      %v5370 = vadd.f32 %v5316, %v5354
      %v5371 = vld [vmem:[%s3763 + $0x1] sm:$0x1]
      %v5372 = vld [vmem:[%s5318 + $0x1] sm:$0xff]
      %v5373 = vld [vmem:[%s5318 + $0x9] sm:$0xff]
      %v5374 = vld [vmem:[%s5318 + $0x19] sm:$0xff]
      %v5375 = vld [vmem:[%s5318 + $0x21] sm:$0xff]
      %v5376 = vld [vmem:[%s5318 + $0x31] sm:$0xff]
      %v5377 = vld [vmem:[%s5318 + $0x39] sm:$0xff]
      %v5378 = vld [vmem:[%s5318 + $0x49] sm:$0xff]
      %v5379 = vld [vmem:[%s5318 + $0x51] sm:$0xff]
      %v5380 = vld [vmem:[%s5318 + $0x61] sm:$0xff]
      %v5381 = vld [vmem:[%s5318 + $0x69] sm:$0xff]
      %v5382 = vld [vmem:[%s5318 + $0x79] sm:$0xff]
      %v5383 = vld [vmem:[%s5318 + $0x81] sm:$0xff]
      %v5384 = vld [vmem:[%s5318 + $0x91] sm:$0xff]
      %v5385 = vld [vmem:[%s5318 + $0x99] sm:$0xff]
      %v5386 = vld [vmem:[%s5318 + $0xa9] sm:$0xff]
      %v5387 = vld [vmem:[%s5318 + $0xb1] sm:$0xff]
      %v5388 = vlaneseq
      %v5389 = vshrl.u32 %v5388, 7
      %v5390 = vsub.s32 0, %v5389
      %v5391 = vrot.slane %v5371, %v5390
      %v5392 = vmul.f32 %v5372, %v5391
      %v5393 = vmul.f32 %v5373, %v5391
      %v5394 = vmul.f32 %v5374, %v5391
      %v5395 = vmul.f32 %v5375, %v5391
      %v5396 = vmul.f32 %v5376, %v5391
      %v5397 = vmul.f32 %v5377, %v5391
      %v5398 = vmul.f32 %v5378, %v5391
      %v5399 = vmul.f32 %v5379, %v5391
      %v5400 = vmul.f32 %v5380, %v5391
      %v5401 = vmul.f32 %v5381, %v5391
      %v5402 = vmul.f32 %v5382, %v5391
      %v5403 = vmul.f32 %v5383, %v5391
      %v5404 = vmul.f32 %v5384, %v5391
      %v5405 = vmul.f32 %v5385, %v5391
      %v5406 = vmul.f32 %v5386, %v5391
      %v5407 = vmul.f32 %v5387, %v5391
      %v5408 = vadd.f32 %v5355, %v5392
      %v5409 = vadd.f32 %v5356, %v5393
      %v5410 = vadd.f32 %v5357, %v5394
      %v5411 = vadd.f32 %v5358, %v5395
      %v5412 = vadd.f32 %v5359, %v5396
      %v5413 = vadd.f32 %v5360, %v5397
      %v5414 = vadd.f32 %v5361, %v5398
      %v5415 = vadd.f32 %v5362, %v5399
      %v5416 = vadd.f32 %v5363, %v5400
      %v5417 = vadd.f32 %v5364, %v5401
      %v5418 = vadd.f32 %v5365, %v5402
      %v5419 = vadd.f32 %v5366, %v5403
      %v5420 = vadd.f32 %v5367, %v5404
      %v5421 = vadd.f32 %v5368, %v5405
      %v5422 = vadd.f32 %v5369, %v5406
      %v5423 = vadd.f32 %v5370, %v5407
      %v5424 = vld [vmem:[%s3763 + $0x2] sm:$0x1]
      %v5425 = vld [vmem:[%s5318 + $0x2] sm:$0xff]
      %v5426 = vld [vmem:[%s5318 + $0xa] sm:$0xff]
      %v5427 = vld [vmem:[%s5318 + $0x1a] sm:$0xff]
      %v5428 = vld [vmem:[%s5318 + $0x22] sm:$0xff]
      %v5429 = vld [vmem:[%s5318 + $0x32] sm:$0xff]
      %v5430 = vld [vmem:[%s5318 + $0x3a] sm:$0xff]
      %v5431 = vld [vmem:[%s5318 + $0x4a] sm:$0xff]
      %v5432 = vld [vmem:[%s5318 + $0x52] sm:$0xff]
      %v5433 = vld [vmem:[%s5318 + $0x62] sm:$0xff]
      %v5434 = vld [vmem:[%s5318 + $0x6a] sm:$0xff]
      %v5435 = vld [vmem:[%s5318 + $0x7a] sm:$0xff]
      %v5436 = vld [vmem:[%s5318 + $0x82] sm:$0xff]
      %v5437 = vld [vmem:[%s5318 + $0x92] sm:$0xff]
      %v5438 = vld [vmem:[%s5318 + $0x9a] sm:$0xff]
      %v5439 = vld [vmem:[%s5318 + $0xaa] sm:$0xff]
      %v5440 = vld [vmem:[%s5318 + $0xb2] sm:$0xff]
      %v5441 = vlaneseq
      %v5442 = vshrl.u32 %v5441, 7
      %v5443 = vsub.s32 0, %v5442
      %v5444 = vrot.slane %v5424, %v5443
      %v5445 = vmul.f32 %v5425, %v5444
      %v5446 = vmul.f32 %v5426, %v5444
      %v5447 = vmul.f32 %v5427, %v5444
      %v5448 = vmul.f32 %v5428, %v5444
      %v5449 = vmul.f32 %v5429, %v5444
      %v5450 = vmul.f32 %v5430, %v5444
      %v5451 = vmul.f32 %v5431, %v5444
      %v5452 = vmul.f32 %v5432, %v5444
      %v5453 = vmul.f32 %v5433, %v5444
      %v5454 = vmul.f32 %v5434, %v5444
      %v5455 = vmul.f32 %v5435, %v5444
      %v5456 = vmul.f32 %v5436, %v5444
      %v5457 = vmul.f32 %v5437, %v5444
      %v5458 = vmul.f32 %v5438, %v5444
      %v5459 = vmul.f32 %v5439, %v5444
      %v5460 = vmul.f32 %v5440, %v5444
      %v5461 = vadd.f32 %v5408, %v5445
      %v5462 = vadd.f32 %v5409, %v5446
      %v5463 = vadd.f32 %v5410, %v5447
      %v5464 = vadd.f32 %v5411, %v5448
      %v5465 = vadd.f32 %v5412, %v5449
      %v5466 = vadd.f32 %v5413, %v5450
      %v5467 = vadd.f32 %v5414, %v5451
      %v5468 = vadd.f32 %v5415, %v5452
      %v5469 = vadd.f32 %v5416, %v5453
      %v5470 = vadd.f32 %v5417, %v5454
      %v5471 = vadd.f32 %v5418, %v5455
      %v5472 = vadd.f32 %v5419, %v5456
      %v5473 = vadd.f32 %v5420, %v5457
      %v5474 = vadd.f32 %v5421, %v5458
      %v5475 = vadd.f32 %v5422, %v5459
      %v5476 = vadd.f32 %v5423, %v5460
      %v5477 = vld [vmem:[%s3763 + $0x3] sm:$0x1]
      %v5478 = vld [vmem:[%s5318 + $0x3] sm:$0xff]
      %v5479 = vld [vmem:[%s5318 + $0xb] sm:$0xff]
      %v5480 = vld [vmem:[%s5318 + $0x1b] sm:$0xff]
      %v5481 = vld [vmem:[%s5318 + $0x23] sm:$0xff]
      %v5482 = vld [vmem:[%s5318 + $0x33] sm:$0xff]
      %v5483 = vld [vmem:[%s5318 + $0x3b] sm:$0xff]
      %v5484 = vld [vmem:[%s5318 + $0x4b] sm:$0xff]
      %v5485 = vld [vmem:[%s5318 + $0x53] sm:$0xff]
      %v5486 = vld [vmem:[%s5318 + $0x63] sm:$0xff]
      %v5487 = vld [vmem:[%s5318 + $0x6b] sm:$0xff]
      %v5488 = vld [vmem:[%s5318 + $0x7b] sm:$0xff]
      %v5489 = vld [vmem:[%s5318 + $0x83] sm:$0xff]
      %v5490 = vld [vmem:[%s5318 + $0x93] sm:$0xff]
      %v5491 = vld [vmem:[%s5318 + $0x9b] sm:$0xff]
      %v5492 = vld [vmem:[%s5318 + $0xab] sm:$0xff]
      %v5493 = vld [vmem:[%s5318 + $0xb3] sm:$0xff]
      %v5494 = vlaneseq
      %v5495 = vshrl.u32 %v5494, 7
      %v5496 = vsub.s32 0, %v5495
      %v5497 = vrot.slane %v5477, %v5496
      %v5498 = vmul.f32 %v5478, %v5497
      %v5499 = vmul.f32 %v5479, %v5497
      %v5500 = vmul.f32 %v5480, %v5497
      %v5501 = vmul.f32 %v5481, %v5497
      %v5502 = vmul.f32 %v5482, %v5497
      %v5503 = vmul.f32 %v5483, %v5497
      %v5504 = vmul.f32 %v5484, %v5497
      %v5505 = vmul.f32 %v5485, %v5497
      %v5506 = vmul.f32 %v5486, %v5497
      %v5507 = vmul.f32 %v5487, %v5497
      %v5508 = vmul.f32 %v5488, %v5497
      %v5509 = vmul.f32 %v5489, %v5497
      %v5510 = vmul.f32 %v5490, %v5497
      %v5511 = vmul.f32 %v5491, %v5497
      %v5512 = vmul.f32 %v5492, %v5497
      %v5513 = vmul.f32 %v5493, %v5497
      %v5514 = vadd.f32 %v5461, %v5498
      %v5515 = vadd.f32 %v5462, %v5499
      %v5516 = vadd.f32 %v5463, %v5500
      %v5517 = vadd.f32 %v5464, %v5501
      %v5518 = vadd.f32 %v5465, %v5502
      %v5519 = vadd.f32 %v5466, %v5503
      %v5520 = vadd.f32 %v5467, %v5504
      %v5521 = vadd.f32 %v5468, %v5505
      %v5522 = vadd.f32 %v5469, %v5506
      %v5523 = vadd.f32 %v5470, %v5507
      %v5524 = vadd.f32 %v5471, %v5508
      %v5525 = vadd.f32 %v5472, %v5509
      %v5526 = vadd.f32 %v5473, %v5510
      %v5527 = vadd.f32 %v5474, %v5511
      %v5528 = vadd.f32 %v5475, %v5512
      %v5529 = vadd.f32 %v5476, %v5513
      %v5530 = vld [vmem:[%s3763 + $0x4] sm:$0x1]
      %v5531 = vld [vmem:[%s5318 + $0x4] sm:$0xff]
      %v5532 = vld [vmem:[%s5318 + $0xc] sm:$0xff]
      %v5533 = vld [vmem:[%s5318 + $0x1c] sm:$0xff]
      %v5534 = vld [vmem:[%s5318 + $0x24] sm:$0xff]
      %v5535 = vld [vmem:[%s5318 + $0x34] sm:$0xff]
      %v5536 = vld [vmem:[%s5318 + $0x3c] sm:$0xff]
      %v5537 = vld [vmem:[%s5318 + $0x4c] sm:$0xff]
      %v5538 = vld [vmem:[%s5318 + $0x54] sm:$0xff]
      %v5539 = vld [vmem:[%s5318 + $0x64] sm:$0xff]
      %v5540 = vld [vmem:[%s5318 + $0x6c] sm:$0xff]
      %v5541 = vld [vmem:[%s5318 + $0x7c] sm:$0xff]
      %v5542 = vld [vmem:[%s5318 + $0x84] sm:$0xff]
      %v5543 = vld [vmem:[%s5318 + $0x94] sm:$0xff]
      %v5544 = vld [vmem:[%s5318 + $0x9c] sm:$0xff]
      %v5545 = vld [vmem:[%s5318 + $0xac] sm:$0xff]
      %v5546 = vld [vmem:[%s5318 + $0xb4] sm:$0xff]
      %v5547 = vlaneseq
      %v5548 = vshrl.u32 %v5547, 7
      %v5549 = vsub.s32 0, %v5548
      %v5550 = vrot.slane %v5530, %v5549
      %v5551 = vmul.f32 %v5531, %v5550
      %v5552 = vmul.f32 %v5532, %v5550
      %v5553 = vmul.f32 %v5533, %v5550
      %v5554 = vmul.f32 %v5534, %v5550
      %v5555 = vmul.f32 %v5535, %v5550
      %v5556 = vmul.f32 %v5536, %v5550
      %v5557 = vmul.f32 %v5537, %v5550
      %v5558 = vmul.f32 %v5538, %v5550
      %v5559 = vmul.f32 %v5539, %v5550
      %v5560 = vmul.f32 %v5540, %v5550
      %v5561 = vmul.f32 %v5541, %v5550
      %v5562 = vmul.f32 %v5542, %v5550
      %v5563 = vmul.f32 %v5543, %v5550
      %v5564 = vmul.f32 %v5544, %v5550
      %v5565 = vmul.f32 %v5545, %v5550
      %v5566 = vmul.f32 %v5546, %v5550
      %v5567 = vadd.f32 %v5514, %v5551
      %v5568 = vadd.f32 %v5515, %v5552
      %v5569 = vadd.f32 %v5516, %v5553
      %v5570 = vadd.f32 %v5517, %v5554
      %v5571 = vadd.f32 %v5518, %v5555
      %v5572 = vadd.f32 %v5519, %v5556
      %v5573 = vadd.f32 %v5520, %v5557
      %v5574 = vadd.f32 %v5521, %v5558
      %v5575 = vadd.f32 %v5522, %v5559
      %v5576 = vadd.f32 %v5523, %v5560
      %v5577 = vadd.f32 %v5524, %v5561
      %v5578 = vadd.f32 %v5525, %v5562
      %v5579 = vadd.f32 %v5526, %v5563
      %v5580 = vadd.f32 %v5527, %v5564
      %v5581 = vadd.f32 %v5528, %v5565
      %v5582 = vadd.f32 %v5529, %v5566
      %v5583 = vmul.f32 %v5567, 0.5
      %v5584 = vmul.f32 %v5568, 0.5
      %v5585 = vmul.f32 %v5569, 0.5
      %v5586 = vmul.f32 %v5570, 0.5
      %v5587 = vmul.f32 %v5571, 0.5
      %v5588 = vmul.f32 %v5572, 0.5
      %v5589 = vmul.f32 %v5573, 0.5
      %v5590 = vmul.f32 %v5574, 0.5
      %v5591 = vmul.f32 %v5575, 0.5
      %v5592 = vmul.f32 %v5576, 0.5
      %v5593 = vmul.f32 %v5577, 0.5
      %v5594 = vmul.f32 %v5578, 0.5
      %v5595 = vmul.f32 %v5579, 0.5
      %v5596 = vmul.f32 %v5580, 0.5
      %v5597 = vmul.f32 %v5581, 0.5
      %v5598 = vmul.f32 %v5582, 0.5
      %v5599 = vmul.f32 %v5567, 0.044715
      %v5600 = vmul.f32 %v5568, 0.044715
      %v5601 = vmul.f32 %v5569, 0.044715
      %v5602 = vmul.f32 %v5570, 0.044715
      %v5603 = vmul.f32 %v5571, 0.044715
      %v5604 = vmul.f32 %v5572, 0.044715
      %v5605 = vmul.f32 %v5573, 0.044715
      %v5606 = vmul.f32 %v5574, 0.044715
      %v5607 = vmul.f32 %v5575, 0.044715
      %v5608 = vmul.f32 %v5576, 0.044715
      %v5609 = vmul.f32 %v5577, 0.044715
      %v5610 = vmul.f32 %v5578, 0.044715
      %v5611 = vmul.f32 %v5579, 0.044715
      %v5612 = vmul.f32 %v5580, 0.044715
      %v5613 = vmul.f32 %v5581, 0.044715
      %v5614 = vmul.f32 %v5582, 0.044715
      %v5615 = vmul.f32 %v5599, %v5567
      %v5616 = vmul.f32 %v5600, %v5568
      %v5617 = vmul.f32 %v5601, %v5569
      %v5618 = vmul.f32 %v5602, %v5570
      %v5619 = vmul.f32 %v5603, %v5571
      %v5620 = vmul.f32 %v5604, %v5572
      %v5621 = vmul.f32 %v5605, %v5573
      %v5622 = vmul.f32 %v5606, %v5574
      %v5623 = vmul.f32 %v5607, %v5575
      %v5624 = vmul.f32 %v5608, %v5576
      %v5625 = vmul.f32 %v5609, %v5577
      %v5626 = vmul.f32 %v5610, %v5578
      %v5627 = vmul.f32 %v5611, %v5579
      %v5628 = vmul.f32 %v5612, %v5580
      %v5629 = vmul.f32 %v5613, %v5581
      %v5630 = vmul.f32 %v5614, %v5582
      %v5631 = vmul.f32 %v5615, %v5567
      %v5632 = vmul.f32 %v5616, %v5568
      %v5633 = vmul.f32 %v5617, %v5569
      %v5634 = vmul.f32 %v5618, %v5570
      %v5635 = vmul.f32 %v5619, %v5571
      %v5636 = vmul.f32 %v5620, %v5572
      %v5637 = vmul.f32 %v5621, %v5573
      %v5638 = vmul.f32 %v5622, %v5574
      %v5639 = vmul.f32 %v5623, %v5575
      %v5640 = vmul.f32 %v5624, %v5576
      %v5641 = vmul.f32 %v5625, %v5577
      %v5642 = vmul.f32 %v5626, %v5578
      %v5643 = vmul.f32 %v5627, %v5579
      %v5644 = vmul.f32 %v5628, %v5580
      %v5645 = vmul.f32 %v5629, %v5581
      %v5646 = vmul.f32 %v5630, %v5582
      %v5647 = vadd.f32 %v5567, %v5631
      %v5648 = vadd.f32 %v5568, %v5632
      %v5649 = vadd.f32 %v5569, %v5633
      %v5650 = vadd.f32 %v5570, %v5634
      %v5651 = vadd.f32 %v5571, %v5635
      %v5652 = vadd.f32 %v5572, %v5636
      %v5653 = vadd.f32 %v5573, %v5637
      %v5654 = vadd.f32 %v5574, %v5638
      %v5655 = vadd.f32 %v5575, %v5639
      %v5656 = vadd.f32 %v5576, %v5640
      %v5657 = vadd.f32 %v5577, %v5641
      %v5658 = vadd.f32 %v5578, %v5642
      %v5659 = vadd.f32 %v5579, %v5643
      %v5660 = vadd.f32 %v5580, %v5644
      %v5661 = vadd.f32 %v5581, %v5645
      %v5662 = vadd.f32 %v5582, %v5646
      %v5663 = vmul.f32 %v5647, 0.7978846
      %v5664 = vmul.f32 %v5648, 0.7978846
      %v5665 = vmul.f32 %v5649, 0.7978846
      %v5666 = vmul.f32 %v5650, 0.7978846
      %v5667 = vmul.f32 %v5651, 0.7978846
      %v5668 = vmul.f32 %v5652, 0.7978846
      %v5669 = vmul.f32 %v5653, 0.7978846
      %v5670 = vmul.f32 %v5654, 0.7978846
      %v5671 = vmul.f32 %v5655, 0.7978846
      %v5672 = vmul.f32 %v5656, 0.7978846
      %v5673 = vmul.f32 %v5657, 0.7978846
      %v5674 = vmul.f32 %v5658, 0.7978846
      %v5675 = vmul.f32 %v5659, 0.7978846
      %v5676 = vmul.f32 %v5660, 0.7978846
      %v5677 = vmul.f32 %v5661, 0.7978846
      %v5678 = vmul.f32 %v5662, 0.7978846
      %v5679 = vtanh.pop %v5663
      %v5680 = vtanh.pop %v5664
      %v5681 = vtanh.pop %v5665
      %v5682 = vtanh.pop %v5666
      %v5683 = vtanh.pop %v5667
      %v5684 = vtanh.pop %v5668
      %v5685 = vtanh.pop %v5669
      %v5686 = vtanh.pop %v5670
      %v5687 = vtanh.pop %v5671
      %v5688 = vtanh.pop %v5672
      %v5689 = vtanh.pop %v5673
      %v5690 = vtanh.pop %v5674
      %v5691 = vtanh.pop %v5675
      %v5692 = vtanh.pop %v5676
      %v5693 = vtanh.pop %v5677
      %v5694 = vtanh.pop %v5678
      %v5695 = vadd.f32 %v5679, 1.0
      %v5696 = vadd.f32 %v5680, 1.0
      %v5697 = vadd.f32 %v5681, 1.0
      %v5698 = vadd.f32 %v5682, 1.0
      %v5699 = vadd.f32 %v5683, 1.0
      %v5700 = vadd.f32 %v5684, 1.0
      %v5701 = vadd.f32 %v5685, 1.0
      %v5702 = vadd.f32 %v5686, 1.0
      %v5703 = vadd.f32 %v5687, 1.0
      %v5704 = vadd.f32 %v5688, 1.0
      %v5705 = vadd.f32 %v5689, 1.0
      %v5706 = vadd.f32 %v5690, 1.0
      %v5707 = vadd.f32 %v5691, 1.0
      %v5708 = vadd.f32 %v5692, 1.0
      %v5709 = vadd.f32 %v5693, 1.0
      %v5710 = vadd.f32 %v5694, 1.0
      %v5711 = vmul.f32 %v5583, %v5695
      %v5712 = vmul.f32 %v5584, %v5696
      %v5713 = vmul.f32 %v5585, %v5697
      %v5714 = vmul.f32 %v5586, %v5698
      %v5715 = vmul.f32 %v5587, %v5699
      %v5716 = vmul.f32 %v5588, %v5700
      %v5717 = vmul.f32 %v5589, %v5701
      %v5718 = vmul.f32 %v5590, %v5702
      %v5719 = vmul.f32 %v5591, %v5703
      %v5720 = vmul.f32 %v5592, %v5704
      %v5721 = vmul.f32 %v5593, %v5705
      %v5722 = vmul.f32 %v5594, %v5706
      %v5723 = vmul.f32 %v5595, %v5707
      %v5724 = vmul.f32 %v5596, %v5708
      %v5725 = vmul.f32 %v5597, %v5709
      %v5726 = vmul.f32 %v5598, %v5710
      %5727 = vst [vmem:[%s2185 + $0x2] sm:$0xff] %v5711
      %5728 = vst [vmem:[%s2185 + $0xa] sm:$0xff] %v5712
      %5729 = vst [vmem:[%s2185 + $0x1a] sm:$0xff] %v5713
      %5730 = vst [vmem:[%s2185 + $0x22] sm:$0xff] %v5714
      %5731 = vst [vmem:[%s2185 + $0x32] sm:$0xff] %v5715
      %5732 = vst [vmem:[%s2185 + $0x3a] sm:$0xff] %v5716
      %5733 = vst [vmem:[%s2185 + $0x4a] sm:$0xff] %v5717
      %5734 = vst [vmem:[%s2185 + $0x52] sm:$0xff] %v5718
      %5735 = vst [vmem:[%s2185 + $0x62] sm:$0xff] %v5719
      %5736 = vst [vmem:[%s2185 + $0x6a] sm:$0xff] %v5720
      %5737 = vst [vmem:[%s2185 + $0x7a] sm:$0xff] %v5721
      %5738 = vst [vmem:[%s2185 + $0x82] sm:$0xff] %v5722
      %5739 = vst [vmem:[%s2185 + $0x92] sm:$0xff] %v5723
      %5740 = vst [vmem:[%s2185 + $0x9a] sm:$0xff] %v5724
      %5741 = vst [vmem:[%s2185 + $0xaa] sm:$0xff] %v5725
      %5742 = vst [vmem:[%s2185 + $0xb2] sm:$0xff] %v5726
      %v5743 = vld [vmem:[%s2681] sm:$0xff]
      %v5744 = vld [vmem:[%s2681 + $0x8] sm:$0xff]
      %v5745 = vld [vmem:[%s2681 + $0x10] sm:$0xff]
      %v5746 = vld [vmem:[%s2681 + $0x18] sm:$0xff]
      %v5747 = vld [vmem:[%s2681 + $0x20] sm:$0xff]
      %v5748 = vld [vmem:[%s2681 + $0x28] sm:$0xff]
      %v5749 = vld [vmem:[%s2681 + $0x30] sm:$0xff]
      %v5750 = vld [vmem:[%s2681 + $0x38] sm:$0xff]
      %v5751 = vld [vmem:[%s2681 + $0x40] sm:$0xff]
      %v5752 = vld [vmem:[%s2681 + $0x48] sm:$0xff]
      %v5753 = vld [vmem:[%s2681 + $0x50] sm:$0xff]
      %v5754 = vld [vmem:[%s2681 + $0x58] sm:$0xff]
      %v5755 = vld [vmem:[%s2681 + $0x60] sm:$0xff]
      %v5756 = vld [vmem:[%s2681 + $0x68] sm:$0xff]
      %v5757 = vld [vmem:[%s2681 + $0x70] sm:$0xff]
      %v5758 = vld [vmem:[%s2681 + $0x78] sm:$0xff]
      %v5759 = vmul.f32 %v5711, %v894
      %v5760 = vmul.f32 %v5712, %v900
      %v5761 = vmul.f32 %v5713, %v906
      %v5762 = vmul.f32 %v5714, %v912
      %v5763 = vmul.f32 %v5715, %v918
      %v5764 = vmul.f32 %v5716, %v924
      %v5765 = vmul.f32 %v5717, %v930
      %v5766 = vmul.f32 %v5718, %v936
      %v5767 = vmul.f32 %v5719, %v942
      %v5768 = vmul.f32 %v5720, %v948
      %v5769 = vmul.f32 %v5721, %v954
      %v5770 = vmul.f32 %v5722, %v960
      %v5771 = vmul.f32 %v5723, %v966
      %v5772 = vmul.f32 %v5724, %v972
      %v5773 = vmul.f32 %v5725, %v978
      %v5774 = vmul.f32 %v5726, %v984
      %v5775 = vadd.f32 %v5743, %v5759
      %v5776 = vadd.f32 %v5744, %v5760
      %v5777 = vadd.f32 %v5745, %v5761
      %v5778 = vadd.f32 %v5746, %v5762
      %v5779 = vadd.f32 %v5747, %v5763
      %v5780 = vadd.f32 %v5748, %v5764
      %v5781 = vadd.f32 %v5749, %v5765
      %v5782 = vadd.f32 %v5750, %v5766
      %v5783 = vadd.f32 %v5751, %v5767
      %v5784 = vadd.f32 %v5752, %v5768
      %v5785 = vadd.f32 %v5753, %v5769
      %v5786 = vadd.f32 %v5754, %v5770
      %v5787 = vadd.f32 %v5755, %v5771
      %v5788 = vadd.f32 %v5756, %v5772
      %v5789 = vadd.f32 %v5757, %v5773
      %v5790 = vadd.f32 %v5758, %v5774
      %5791 = vst [vmem:[%s2681] sm:$0xff] %v5775
      %5792 = vst [vmem:[%s2681 + $0x8] sm:$0xff] %v5776
      %5793 = vst [vmem:[%s2681 + $0x10] sm:$0xff] %v5777
      %5794 = vst [vmem:[%s2681 + $0x18] sm:$0xff] %v5778
      %5795 = vst [vmem:[%s2681 + $0x20] sm:$0xff] %v5779
      %5796 = vst [vmem:[%s2681 + $0x28] sm:$0xff] %v5780
      %5797 = vst [vmem:[%s2681 + $0x30] sm:$0xff] %v5781
      %5798 = vst [vmem:[%s2681 + $0x38] sm:$0xff] %v5782
      %5799 = vst [vmem:[%s2681 + $0x40] sm:$0xff] %v5783
      %5800 = vst [vmem:[%s2681 + $0x48] sm:$0xff] %v5784
      %5801 = vst [vmem:[%s2681 + $0x50] sm:$0xff] %v5785
      %5802 = vst [vmem:[%s2681 + $0x58] sm:$0xff] %v5786
      %5803 = vst [vmem:[%s2681 + $0x60] sm:$0xff] %v5787
      %5804 = vst [vmem:[%s2681 + $0x68] sm:$0xff] %v5788
      %5805 = vst [vmem:[%s2681 + $0x70] sm:$0xff] %v5789
      %5806 = vst [vmem:[%s2681 + $0x78] sm:$0xff] %v5790
      %v5807 = vld [vmem:[%s1317 + $0x2] sm:$0xff]
      %v5808 = vld [vmem:[%s1317 + $0xa] sm:$0xff]
      %v5809 = vld [vmem:[%s1317 + $0x1a] sm:$0xff]
      %v5810 = vld [vmem:[%s1317 + $0x22] sm:$0xff]
      %v5811 = vld [vmem:[%s1317 + $0x32] sm:$0xff]
      %v5812 = vld [vmem:[%s1317 + $0x3a] sm:$0xff]
      %v5813 = vld [vmem:[%s1317 + $0x4a] sm:$0xff]
      %v5814 = vld [vmem:[%s1317 + $0x52] sm:$0xff]
      %v5815 = vld [vmem:[%s1317 + $0x62] sm:$0xff]
      %v5816 = vld [vmem:[%s1317 + $0x6a] sm:$0xff]
      %v5817 = vld [vmem:[%s1317 + $0x7a] sm:$0xff]
      %v5818 = vld [vmem:[%s1317 + $0x82] sm:$0xff]
      %v5819 = vld [vmem:[%s1317 + $0x92] sm:$0xff]
      %v5820 = vld [vmem:[%s1317 + $0x9a] sm:$0xff]
      %v5821 = vld [vmem:[%s1317 + $0xaa] sm:$0xff]
      %v5822 = vld [vmem:[%s1317 + $0xb2] sm:$0xff]
      %v5823 = vld [vmem:[%s1317 + $0xc2] sm:$0xff]
      %v5824 = vld [vmem:[%s1317 + $0xca] sm:$0xff]
      %v5825 = vld [vmem:[%s1317 + $0xda] sm:$0xff]
      %v5826 = vld [vmem:[%s1317 + $0xe2] sm:$0xff]
      %v5827 = vld [vmem:[%s1317 + $0xf2] sm:$0xff]
      %v5828 = vld [vmem:[%s1317 + $0xfa] sm:$0xff]
      %v5829 = vld [vmem:[%s1317 + $0x10a] sm:$0xff]
      %v5830 = vld [vmem:[%s1317 + $0x112] sm:$0xff]
      %v5831 = vld [vmem:[%s1317 + $0x122] sm:$0xff]
      %v5832 = vld [vmem:[%s1317 + $0x12a] sm:$0xff]
      %v5833 = vld [vmem:[%s1317 + $0x13a] sm:$0xff]
      %v5834 = vld [vmem:[%s1317 + $0x142] sm:$0xff]
      %v5835 = vld [vmem:[%s1317 + $0x152] sm:$0xff]
      %v5836 = vld [vmem:[%s1317 + $0x15a] sm:$0xff]
      %v5837 = vld [vmem:[%s1317 + $0x16a] sm:$0xff]
      %v5838 = vld [vmem:[%s1317 + $0x172] sm:$0xff]
      %v5839 = vadd.f32 %v5807, %v5808
      %v5840 = vadd.f32 %v5839, %v5809
      %v5841 = vadd.f32 %v5840, %v5810
      %v5842 = vadd.f32 %v5841, %v5811
      %v5843 = vadd.f32 %v5842, %v5812
      %v5844 = vadd.f32 %v5843, %v5813
      %v5845 = vadd.f32 %v5844, %v5814
      %v5846 = vadd.f32 %v5845, %v5815
      %v5847 = vadd.f32 %v5846, %v5816
      %v5848 = vadd.f32 %v5847, %v5817
      %v5849 = vadd.f32 %v5848, %v5818
      %v5850 = vadd.f32 %v5849, %v5819
      %v5851 = vadd.f32 %v5850, %v5820
      %v5852 = vadd.f32 %v5851, %v5821
      %v5853 = vadd.f32 %v5852, %v5822
      %v5854 = vadd.f32 %v5853, %v5823
      %v5855 = vadd.f32 %v5854, %v5824
      %v5856 = vadd.f32 %v5855, %v5825
      %v5857 = vadd.f32 %v5856, %v5826
      %v5858 = vadd.f32 %v5857, %v5827
      %v5859 = vadd.f32 %v5858, %v5828
      %v5860 = vadd.f32 %v5859, %v5829
      %v5861 = vadd.f32 %v5860, %v5830
      %v5862 = vadd.f32 %v5861, %v5831
      %v5863 = vadd.f32 %v5862, %v5832
      %v5864 = vadd.f32 %v5863, %v5833
      %v5865 = vadd.f32 %v5864, %v5834
      %v5866 = vadd.f32 %v5865, %v5835
      %v5867 = vadd.f32 %v5866, %v5836
      %v5868 = vadd.f32 %v5867, %v5837
      %v5869 = vadd.f32 %v5868, %v5838
      %v5870 = vrot.slane %v5869, 4
      %v5871 = vadd.f32 %v5869, %v5870
      %v5872 = vrot.slane %v5871, 2
      %v5873 = vadd.f32 %v5871, %v5872
      %v5874 = vrot.slane %v5873, 1
      %v5875 = vadd.f32 %v5873, %v5874
      %v5876 = vrcp.pop 256.0
      %v5877 = vmul.f32 %v5875, %v5876
      %v5878 = vmul.f32 %v5877, 0.5
      %v5879 = vmul.f32 %v5877, 0.044715
      %v5880 = vmul.f32 %v5879, %v5877
      %v5881 = vmul.f32 %v5880, %v5877
      %v5882 = vadd.f32 %v5877, %v5881
      %v5883 = vmul.f32 %v5882, 0.7978846
      %v5884 = vtanh.pop %v5883
      %v5885 = vadd.f32 %v5884, 1.0
      %v5886 = vmul.f32 %v5878, %v5885
      %v5887 = vld [vmem:[#allocation4] sm:$0xff]
      %v5888 = vld [vmem:[#allocation4 + $0x8] sm:$0xff]
      %v5889 = vld [vmem:[#allocation4 + $0x10] sm:$0xff]
      %v5890 = vld [vmem:[#allocation4 + $0x18] sm:$0xff]
      %v5891 = vld [vmem:[#allocation4 + $0x20] sm:$0xff]
      %v5892 = vld [vmem:[#allocation4 + $0x28] sm:$0xff]
      %v5893 = vld [vmem:[#allocation4 + $0x30] sm:$0xff]
      %v5894 = vld [vmem:[#allocation4 + $0x38] sm:$0xff]
      %v5895 = vld [vmem:[#allocation4 + $0x40] sm:$0xff]
      %v5896 = vld [vmem:[#allocation4 + $0x48] sm:$0xff]
      %v5897 = vld [vmem:[#allocation4 + $0x50] sm:$0xff]
      %v5898 = vld [vmem:[#allocation4 + $0x58] sm:$0xff]
      %v5899 = vld [vmem:[#allocation4 + $0x60] sm:$0xff]
      %v5900 = vld [vmem:[#allocation4 + $0x68] sm:$0xff]
      %v5901 = vld [vmem:[#allocation4 + $0x70] sm:$0xff]
      %v5902 = vld [vmem:[#allocation4 + $0x78] sm:$0xff]
      %v5903 = vld [vmem:[#allocation4 + $0x80] sm:$0xff]
      %v5904 = vld [vmem:[#allocation4 + $0x88] sm:$0xff]
      %v5905 = vld [vmem:[#allocation4 + $0x90] sm:$0xff]
      %v5906 = vld [vmem:[#allocation4 + $0x98] sm:$0xff]
      %v5907 = vld [vmem:[#allocation4 + $0xa0] sm:$0xff]
      %v5908 = vld [vmem:[#allocation4 + $0xa8] sm:$0xff]
      %v5909 = vld [vmem:[#allocation4 + $0xb0] sm:$0xff]
      %v5910 = vld [vmem:[#allocation4 + $0xb8] sm:$0xff]
      %v5911 = vld [vmem:[#allocation4 + $0xc0] sm:$0xff]
      %v5912 = vld [vmem:[#allocation4 + $0xc8] sm:$0xff]
      %v5913 = vld [vmem:[#allocation4 + $0xd0] sm:$0xff]
      %v5914 = vld [vmem:[#allocation4 + $0xd8] sm:$0xff]
      %v5915 = vld [vmem:[#allocation4 + $0xe0] sm:$0xff]
      %v5916 = vld [vmem:[#allocation4 + $0xe8] sm:$0xff]
      %v5917 = vld [vmem:[#allocation4 + $0xf0] sm:$0xff]
      %v5918 = vld [vmem:[#allocation4 + $0xf8] sm:$0xff]
      %v5919 = vmul.f32 %v5886, %v1053
      %v5920 = vmul.f32 %v5886, %v1058
      %v5921 = vmul.f32 %v5886, %v1063
      %v5922 = vmul.f32 %v5886, %v1068
      %v5923 = vmul.f32 %v5886, %v1073
      %v5924 = vmul.f32 %v5886, %v1078
      %v5925 = vmul.f32 %v5886, %v1083
      %v5926 = vmul.f32 %v5886, %v1088
      %v5927 = vmul.f32 %v5886, %v1093
      %v5928 = vmul.f32 %v5886, %v1098
      %v5929 = vmul.f32 %v5886, %v1103
      %v5930 = vmul.f32 %v5886, %v1108
      %v5931 = vmul.f32 %v5886, %v1113
      %v5932 = vmul.f32 %v5886, %v1118
      %v5933 = vmul.f32 %v5886, %v1123
      %v5934 = vmul.f32 %v5886, %v1128
      %v5935 = vmul.f32 %v5886, %v1133
      %v5936 = vmul.f32 %v5886, %v1138
      %v5937 = vmul.f32 %v5886, %v1143
      %v5938 = vmul.f32 %v5886, %v1148
      %v5939 = vmul.f32 %v5886, %v1153
      %v5940 = vmul.f32 %v5886, %v1158
      %v5941 = vmul.f32 %v5886, %v1163
      %v5942 = vmul.f32 %v5886, %v1168
      %v5943 = vmul.f32 %v5886, %v1173
      %v5944 = vmul.f32 %v5886, %v1178
      %v5945 = vmul.f32 %v5886, %v1183
      %v5946 = vmul.f32 %v5886, %v1188
      %v5947 = vmul.f32 %v5886, %v1193
      %v5948 = vmul.f32 %v5886, %v1198
      %v5949 = vmul.f32 %v5886, %v1203
      %v5950 = vmul.f32 %v5886, %v1208
      %v5951 = vadd.f32 %v5887, %v5919
      %v5952 = vadd.f32 %v5888, %v5920
      %v5953 = vadd.f32 %v5889, %v5921
      %v5954 = vadd.f32 %v5890, %v5922
      %v5955 = vadd.f32 %v5891, %v5923
      %v5956 = vadd.f32 %v5892, %v5924
      %v5957 = vadd.f32 %v5893, %v5925
      %v5958 = vadd.f32 %v5894, %v5926
      %v5959 = vadd.f32 %v5895, %v5927
      %v5960 = vadd.f32 %v5896, %v5928
      %v5961 = vadd.f32 %v5897, %v5929
      %v5962 = vadd.f32 %v5898, %v5930
      %v5963 = vadd.f32 %v5899, %v5931
      %v5964 = vadd.f32 %v5900, %v5932
      %v5965 = vadd.f32 %v5901, %v5933
      %v5966 = vadd.f32 %v5902, %v5934
      %v5967 = vadd.f32 %v5903, %v5935
      %v5968 = vadd.f32 %v5904, %v5936
      %v5969 = vadd.f32 %v5905, %v5937
      %v5970 = vadd.f32 %v5906, %v5938
      %v5971 = vadd.f32 %v5907, %v5939
      %v5972 = vadd.f32 %v5908, %v5940
      %v5973 = vadd.f32 %v5909, %v5941
      %v5974 = vadd.f32 %v5910, %v5942
      %v5975 = vadd.f32 %v5911, %v5943
      %v5976 = vadd.f32 %v5912, %v5944
      %v5977 = vadd.f32 %v5913, %v5945
      %v5978 = vadd.f32 %v5914, %v5946
      %v5979 = vadd.f32 %v5915, %v5947
      %v5980 = vadd.f32 %v5916, %v5948
      %v5981 = vadd.f32 %v5917, %v5949
      %v5982 = vadd.f32 %v5918, %v5950
      %v5983 = vld [vmem:[%s5] sm:$0xff]
      %v5984 = vld [vmem:[%s5 + $0x8] sm:$0xff]
      %v5985 = vld [vmem:[%s5 + $0x10] sm:$0xff]
      %v5986 = vld [vmem:[%s5 + $0x18] sm:$0xff]
      %v5987 = vld [vmem:[%s5 + $0x20] sm:$0xff]
      %v5988 = vld [vmem:[%s5 + $0x28] sm:$0xff]
      %v5989 = vld [vmem:[%s5 + $0x30] sm:$0xff]
      %v5990 = vld [vmem:[%s5 + $0x38] sm:$0xff]
      %v5991 = vld [vmem:[%s5 + $0x40] sm:$0xff]
      %v5992 = vld [vmem:[%s5 + $0x48] sm:$0xff]
      %v5993 = vld [vmem:[%s5 + $0x50] sm:$0xff]
      %v5994 = vld [vmem:[%s5 + $0x58] sm:$0xff]
      %v5995 = vld [vmem:[%s5 + $0x60] sm:$0xff]
      %v5996 = vld [vmem:[%s5 + $0x68] sm:$0xff]
      %v5997 = vld [vmem:[%s5 + $0x70] sm:$0xff]
      %v5998 = vld [vmem:[%s5 + $0x78] sm:$0xff]
      %v5999 = vld [vmem:[%s6] sm:$0x1]
      %v6001 = vlaneseq
      %v6002 = vshrl.u32 %v6001, 7
      %v6003 = vsub.s32 0, %v6002
      %v6004 = vrot.slane %v5999, %v6003
      %6006 = vmatprep.subr.mxu0 0.0
      %6007 = vmatpush1.msra.mxu0 %v5983
      %6008 = vmatprep.subr.mxu0 0.0
      %6009 = vmatpush1.msra.mxu0 %v5984
      %6010 = vmatprep.subr.mxu0 0.0
      %6011 = vmatpush1.msra.mxu0 %v5985
      %6012 = vmatprep.subr.mxu0 0.0
      %6013 = vmatpush1.msra.mxu0 %v5986
      %6014 = vmatprep.subr.mxu0 0.0
      %6015 = vmatpush1.msra.mxu0 %v5987
      %6016 = vmatprep.subr.mxu0 0.0
      %6017 = vmatpush1.msra.mxu0 %v5988
      %6018 = vmatprep.subr.mxu0 0.0
      %6019 = vmatpush1.msra.mxu0 %v5989
      %6020 = vmatprep.subr.mxu0 0.0
      %6021 = vmatpush1.msra.mxu0 %v5990
      %6022 = vmatprep.subr.mxu0 0.0
      %6023 = vmatpush1.msra.mxu0 %v5991
      %6024 = vmatprep.subr.mxu0 0.0
      %6025 = vmatpush1.msra.mxu0 %v5992
      %6026 = vmatprep.subr.mxu0 0.0
      %6027 = vmatpush1.msra.mxu0 %v5993
      %6028 = vmatprep.subr.mxu0 0.0
      %6029 = vmatpush1.msra.mxu0 %v5994
      %6030 = vmatprep.subr.mxu0 0.0
      %6031 = vmatpush1.msra.mxu0 %v5995
      %6032 = vmatprep.subr.mxu0 0.0
      %6033 = vmatpush1.msra.mxu0 %v5996
      %6034 = vmatprep.subr.mxu0 0.0
      %6035 = vmatpush1.msra.mxu0 %v5997
      %6036 = vmatprep.subr.mxu0 0.0
      %6037 = vmatpush1.msra.mxu0 %v5998
      %6038 = vmatprep.subr.mxu0 0.0
      %6039 = vmatpush1.msra.mxu0 0.0
      %6040 = vmatprep.subr.mxu0 0.0
      %6041 = vmatpush1.msra.mxu0 0.0
      %6042 = vmatprep.subr.mxu0 0.0
      %6043 = vmatpush1.msra.mxu0 0.0
      %6044 = vmatprep.subr.mxu0 0.0
      %6045 = vmatpush1.msra.mxu0 0.0
      %6046 = vmatprep.subr.mxu0 0.0
      %6047 = vmatpush1.msra.mxu0 0.0
      %6048 = vmatprep.subr.mxu0 0.0
      %6049 = vmatpush1.msra.mxu0 0.0
      %6050 = vmatprep.subr.mxu0 0.0
      %6051 = vmatpush1.msra.mxu0 0.0
      %6052 = vmatprep.subr.mxu0 0.0
      %6053 = vmatpush1.msra.mxu0 0.0
      %6054 = vmatprep.subr.mxu0 0.0
      %6055 = vmatpush1.msra.mxu0 0.0
      %6056 = vmatprep.subr.mxu0 0.0
      %6057 = vmatpush1.msra.mxu0 0.0
      %6058 = vmatprep.subr.mxu0 0.0
      %6059 = vmatpush1.msra.mxu0 0.0
      %6060 = vmatprep.subr.mxu0 0.0
      %6061 = vmatpush1.msra.mxu0 0.0
      %6062 = vmatprep.subr.mxu0 0.0
      %6063 = vmatpush1.msra.mxu0 0.0
      %6064 = vmatprep.subr.mxu0 0.0
      %6065 = vmatpush1.msra.mxu0 0.0
      %6066 = vmatprep.subr.mxu0 0.0
      %6067 = vmatpush1.msra.mxu0 0.0
      %6068 = vmatprep.subr.mxu0 0.0
      %6069 = vmatpush1.msra.mxu0 0.0
      %6070 = vmatprep.mubr.f32.mxu0 0.0
      %6071 = vmatmul.mubr.f32.gmra.mrb[0].mxu0 %v5951
      %v6072 = vpop.f32.mrb[0].mxu0
      %v6073 = vadd.f32 %v6004, %v6072
      %v6074 = vpop.f32.mrb[0].mxu0
      %6075 = vmatprep.mubr.f32.mxu0 0.0
      %6076 = vmatmul.mubr.f32.gmra.mrb[0].mxu0 %v5952
      %v6077 = vpop.f32.mrb[0].mxu0
      %v6078 = vadd.f32 %v6004, %v6077
      %v6079 = vpop.f32.mrb[0].mxu0
      %6080 = vmatprep.mubr.f32.mxu0 0.0
      %6081 = vmatmul.mubr.f32.gmra.mrb[0].mxu0 %v5953
      %v6082 = vpop.f32.mrb[0].mxu0
      %v6083 = vadd.f32 %v6004, %v6082
      %v6084 = vpop.f32.mrb[0].mxu0
      %6085 = vmatprep.mubr.f32.mxu0 0.0
      %6086 = vmatmul.mubr.f32.gmra.mrb[0].mxu0 %v5954
      %v6087 = vpop.f32.mrb[0].mxu0
      %v6088 = vadd.f32 %v6004, %v6087
      %v6089 = vpop.f32.mrb[0].mxu0
      %6090 = vmatprep.mubr.f32.mxu0 0.0
      %6091 = vmatmul.mubr.f32.gmra.mrb[0].mxu0 %v5955
      %v6092 = vpop.f32.mrb[0].mxu0
      %v6093 = vadd.f32 %v6004, %v6092
      %v6094 = vpop.f32.mrb[0].mxu0
      %6095 = vmatprep.mubr.f32.mxu0 0.0
      %6096 = vmatmul.mubr.f32.gmra.mrb[0].mxu0 %v5956
      %v6097 = vpop.f32.mrb[0].mxu0
      %v6098 = vadd.f32 %v6004, %v6097
      %v6099 = vpop.f32.mrb[0].mxu0
      %6100 = vmatprep.mubr.f32.mxu0 0.0
      %6101 = vmatmul.mubr.f32.gmra.mrb[0].mxu0 %v5957
      %v6102 = vpop.f32.mrb[0].mxu0
      %v6103 = vadd.f32 %v6004, %v6102
      %v6104 = vpop.f32.mrb[0].mxu0
      %6105 = vmatprep.mubr.f32.mxu0 0.0
      %6106 = vmatmul.mubr.f32.gmra.mrb[0].mxu0 %v5958
      %v6107 = vpop.f32.mrb[0].mxu0
      %v6108 = vadd.f32 %v6004, %v6107
      %v6109 = vpop.f32.mrb[0].mxu0
      %6110 = vmatprep.mubr.f32.mxu0 0.0
      %6111 = vmatmul.mubr.f32.gmra.mrb[0].mxu0 %v5959
      %v6112 = vpop.f32.mrb[0].mxu0
      %v6113 = vadd.f32 %v6004, %v6112
      %v6114 = vpop.f32.mrb[0].mxu0
      %6115 = vmatprep.mubr.f32.mxu0 0.0
      %6116 = vmatmul.mubr.f32.gmra.mrb[0].mxu0 %v5960
      %v6117 = vpop.f32.mrb[0].mxu0
      %v6118 = vadd.f32 %v6004, %v6117
      %v6119 = vpop.f32.mrb[0].mxu0
      %6120 = vmatprep.mubr.f32.mxu0 0.0
      %6121 = vmatmul.mubr.f32.gmra.mrb[0].mxu0 %v5961
      %v6122 = vpop.f32.mrb[0].mxu0
      %v6123 = vadd.f32 %v6004, %v6122
      %v6124 = vpop.f32.mrb[0].mxu0
      %6125 = vmatprep.mubr.f32.mxu0 0.0
      %6126 = vmatmul.mubr.f32.gmra.mrb[0].mxu0 %v5962
      %v6127 = vpop.f32.mrb[0].mxu0
      %v6128 = vadd.f32 %v6004, %v6127
      %v6129 = vpop.f32.mrb[0].mxu0
      %6130 = vmatprep.mubr.f32.mxu0 0.0
      %6131 = vmatmul.mubr.f32.gmra.mrb[0].mxu0 %v5963
      %v6132 = vpop.f32.mrb[0].mxu0
      %v6133 = vadd.f32 %v6004, %v6132
      %v6134 = vpop.f32.mrb[0].mxu0
      %6135 = vmatprep.mubr.f32.mxu0 0.0
      %6136 = vmatmul.mubr.f32.gmra.mrb[0].mxu0 %v5964
      %v6137 = vpop.f32.mrb[0].mxu0
      %v6138 = vadd.f32 %v6004, %v6137
      %v6139 = vpop.f32.mrb[0].mxu0
      %6140 = vmatprep.mubr.f32.mxu0 0.0
      %6141 = vmatmul.mubr.f32.gmra.mrb[0].mxu0 %v5965
      %v6142 = vpop.f32.mrb[0].mxu0
      %v6143 = vadd.f32 %v6004, %v6142
      %v6144 = vpop.f32.mrb[0].mxu0
      %6145 = vmatprep.mubr.f32.mxu0 0.0
      %6146 = vmatmul.mubr.f32.gmra.mrb[0].mxu0 %v5966
      %v6147 = vpop.f32.mrb[0].mxu0
      %v6148 = vadd.f32 %v6004, %v6147
      %v6149 = vpop.f32.mrb[0].mxu0
      %6150 = vmatprep.mubr.f32.mxu0 0.0
      %6151 = vmatmul.mubr.f32.gmra.mrb[0].mxu0 %v5967
      %v6152 = vpop.f32.mrb[0].mxu0
      %v6153 = vadd.f32 %v6004, %v6152
      %v6154 = vpop.f32.mrb[0].mxu0
      %6155 = vmatprep.mubr.f32.mxu0 0.0
      %6156 = vmatmul.mubr.f32.gmra.mrb[0].mxu0 %v5968
      %v6157 = vpop.f32.mrb[0].mxu0
      %v6158 = vadd.f32 %v6004, %v6157
      %v6159 = vpop.f32.mrb[0].mxu0
      %6160 = vmatprep.mubr.f32.mxu0 0.0
      %6161 = vmatmul.mubr.f32.gmra.mrb[0].mxu0 %v5969
      %v6162 = vpop.f32.mrb[0].mxu0
      %v6163 = vadd.f32 %v6004, %v6162
      %v6164 = vpop.f32.mrb[0].mxu0
      %6165 = vmatprep.mubr.f32.mxu0 0.0
      %6166 = vmatmul.mubr.f32.gmra.mrb[0].mxu0 %v5970
      %v6167 = vpop.f32.mrb[0].mxu0
      %v6168 = vadd.f32 %v6004, %v6167
      %v6169 = vpop.f32.mrb[0].mxu0
      %6170 = vmatprep.mubr.f32.mxu0 0.0
      %6171 = vmatmul.mubr.f32.gmra.mrb[0].mxu0 %v5971
      %v6172 = vpop.f32.mrb[0].mxu0
      %v6173 = vadd.f32 %v6004, %v6172
      %v6174 = vpop.f32.mrb[0].mxu0
      %6175 = vmatprep.mubr.f32.mxu0 0.0
      %6176 = vmatmul.mubr.f32.gmra.mrb[0].mxu0 %v5972
      %v6177 = vpop.f32.mrb[0].mxu0
      %v6178 = vadd.f32 %v6004, %v6177
      %v6179 = vpop.f32.mrb[0].mxu0
      %6180 = vmatprep.mubr.f32.mxu0 0.0
      %6181 = vmatmul.mubr.f32.gmra.mrb[0].mxu0 %v5973
      %v6182 = vpop.f32.mrb[0].mxu0
      %v6183 = vadd.f32 %v6004, %v6182
      %v6184 = vpop.f32.mrb[0].mxu0
      %6185 = vmatprep.mubr.f32.mxu0 0.0
      %6186 = vmatmul.mubr.f32.gmra.mrb[0].mxu0 %v5974
      %v6187 = vpop.f32.mrb[0].mxu0
      %v6188 = vadd.f32 %v6004, %v6187
      %v6189 = vpop.f32.mrb[0].mxu0
      %6190 = vmatprep.mubr.f32.mxu0 0.0
      %6191 = vmatmul.mubr.f32.gmra.mrb[0].mxu0 %v5975
      %v6192 = vpop.f32.mrb[0].mxu0
      %v6193 = vadd.f32 %v6004, %v6192
      %v6194 = vpop.f32.mrb[0].mxu0
      %6195 = vmatprep.mubr.f32.mxu0 0.0
      %6196 = vmatmul.mubr.f32.gmra.mrb[0].mxu0 %v5976
      %v6197 = vpop.f32.mrb[0].mxu0
      %v6198 = vadd.f32 %v6004, %v6197
      %v6199 = vpop.f32.mrb[0].mxu0
      %6200 = vmatprep.mubr.f32.mxu0 0.0
      %6201 = vmatmul.mubr.f32.gmra.mrb[0].mxu0 %v5977
      %v6202 = vpop.f32.mrb[0].mxu0
      %v6203 = vadd.f32 %v6004, %v6202
      %v6204 = vpop.f32.mrb[0].mxu0
      %6205 = vmatprep.mubr.f32.mxu0 0.0
      %6206 = vmatmul.mubr.f32.gmra.mrb[0].mxu0 %v5978
      %v6207 = vpop.f32.mrb[0].mxu0
      %v6208 = vadd.f32 %v6004, %v6207
      %v6209 = vpop.f32.mrb[0].mxu0
      %6210 = vmatprep.mubr.f32.mxu0 0.0
      %6211 = vmatmul.mubr.f32.gmra.mrb[0].mxu0 %v5979
      %v6212 = vpop.f32.mrb[0].mxu0
      %v6213 = vadd.f32 %v6004, %v6212
      %v6214 = vpop.f32.mrb[0].mxu0
      %6215 = vmatprep.mubr.f32.mxu0 0.0
      %6216 = vmatmul.mubr.f32.gmra.mrb[0].mxu0 %v5980
      %v6217 = vpop.f32.mrb[0].mxu0
      %v6218 = vadd.f32 %v6004, %v6217
      %v6219 = vpop.f32.mrb[0].mxu0
      %6220 = vmatprep.mubr.f32.mxu0 0.0
      %6221 = vmatmul.mubr.f32.gmra.mrb[0].mxu0 %v5981
      %v6222 = vpop.f32.mrb[0].mxu0
      %v6223 = vadd.f32 %v6004, %v6222
      %v6224 = vpop.f32.mrb[0].mxu0
      %6225 = vmatprep.mubr.f32.mxu0 0.0
      %6226 = vmatmul.mubr.f32.gmra.mrb[0].mxu0 %v5982
      %v6227 = vpop.f32.mrb[0].mxu0
      %v6228 = vadd.f32 %v6004, %v6227
      %v6229 = vpop.f32.mrb[0].mxu0
      %6230 = vdwg.mxu0
      %v6231 = vmul.f32 %v539, %v6073
      %v6232 = vmul.f32 %v545, %v6078
      %v6233 = vmul.f32 %v551, %v6083
      %v6234 = vmul.f32 %v557, %v6088
      %v6235 = vmul.f32 %v563, %v6093
      %v6236 = vmul.f32 %v569, %v6098
      %v6237 = vmul.f32 %v575, %v6103
      %v6238 = vmul.f32 %v581, %v6108
      %v6239 = vmul.f32 %v587, %v6113
      %v6240 = vmul.f32 %v593, %v6118
      %v6241 = vmul.f32 %v599, %v6123
      %v6242 = vmul.f32 %v605, %v6128
      %v6243 = vmul.f32 %v611, %v6133
      %v6244 = vmul.f32 %v617, %v6138
      %v6245 = vmul.f32 %v623, %v6143
      %v6246 = vmul.f32 %v629, %v6148
      %v6247 = vmul.f32 %v635, %v6153
      %v6248 = vmul.f32 %v641, %v6158
      %v6249 = vmul.f32 %v647, %v6163
      %v6250 = vmul.f32 %v653, %v6168
      %v6251 = vmul.f32 %v659, %v6173
      %v6252 = vmul.f32 %v665, %v6178
      %v6253 = vmul.f32 %v671, %v6183
      %v6254 = vmul.f32 %v677, %v6188
      %v6255 = vmul.f32 %v683, %v6193
      %v6256 = vmul.f32 %v689, %v6198
      %v6257 = vmul.f32 %v695, %v6203
      %v6258 = vmul.f32 %v701, %v6208
      %v6259 = vmul.f32 %v707, %v6213
      %v6260 = vmul.f32 %v713, %v6218
      %v6261 = vmul.f32 %v719, %v6223
      %v6262 = vmul.f32 %v725, %v6228
      %v6263 = vld [vmem:[%s7] sm:$0xff]
      %v6264 = vld [vmem:[%s7 + $0x8] sm:$0xff]
      %v6265 = vld [vmem:[%s7 + $0x10] sm:$0xff]
      %v6266 = vld [vmem:[%s7 + $0x18] sm:$0xff]
      %v6267 = vld [vmem:[%s7 + $0x20] sm:$0xff]
      %v6268 = vld [vmem:[%s7 + $0x28] sm:$0xff]
      %v6269 = vld [vmem:[%s7 + $0x30] sm:$0xff]
      %v6270 = vld [vmem:[%s7 + $0x38] sm:$0xff]
      %v6271 = vld [vmem:[%s7 + $0x40] sm:$0xff]
      %v6272 = vld [vmem:[%s7 + $0x48] sm:$0xff]
      %v6273 = vld [vmem:[%s7 + $0x50] sm:$0xff]
      %v6274 = vld [vmem:[%s7 + $0x58] sm:$0xff]
      %v6275 = vld [vmem:[%s7 + $0x60] sm:$0xff]
      %v6276 = vld [vmem:[%s7 + $0x68] sm:$0xff]
      %v6277 = vld [vmem:[%s7 + $0x70] sm:$0xff]
      %v6278 = vld [vmem:[%s7 + $0x78] sm:$0xff]
      %v6279 = vld [vmem:[%s8] sm:$0x1]
      %v6281 = vlaneseq
      %v6282 = vshrl.u32 %v6281, 7
      %v6283 = vsub.s32 0, %v6282
      %v6284 = vrot.slane %v6279, %v6283
      %6286 = vmatprep.subr.mxu0 0.0
      %6287 = vmatpush1.msra.mxu0 %v6263
      %6288 = vmatprep.subr.mxu0 0.0
      %6289 = vmatpush1.msra.mxu0 %v6264
      %6290 = vmatprep.subr.mxu0 0.0
      %6291 = vmatpush1.msra.mxu0 %v6265
      %6292 = vmatprep.subr.mxu0 0.0
      %6293 = vmatpush1.msra.mxu0 %v6266
      %6294 = vmatprep.subr.mxu0 0.0
      %6295 = vmatpush1.msra.mxu0 %v6267
      %6296 = vmatprep.subr.mxu0 0.0
      %6297 = vmatpush1.msra.mxu0 %v6268
      %6298 = vmatprep.subr.mxu0 0.0
      %6299 = vmatpush1.msra.mxu0 %v6269
      %6300 = vmatprep.subr.mxu0 0.0
      %6301 = vmatpush1.msra.mxu0 %v6270
      %6302 = vmatprep.subr.mxu0 0.0
      %6303 = vmatpush1.msra.mxu0 %v6271
      %6304 = vmatprep.subr.mxu0 0.0
      %6305 = vmatpush1.msra.mxu0 %v6272
      %6306 = vmatprep.subr.mxu0 0.0
      %6307 = vmatpush1.msra.mxu0 %v6273
      %6308 = vmatprep.subr.mxu0 0.0
      %6309 = vmatpush1.msra.mxu0 %v6274
      %6310 = vmatprep.subr.mxu0 0.0
      %6311 = vmatpush1.msra.mxu0 %v6275
      %6312 = vmatprep.subr.mxu0 0.0
      %6313 = vmatpush1.msra.mxu0 %v6276
      %6314 = vmatprep.subr.mxu0 0.0
      %6315 = vmatpush1.msra.mxu0 %v6277
      %6316 = vmatprep.subr.mxu0 0.0
      %6317 = vmatpush1.msra.mxu0 %v6278
      %6318 = vmatprep.subr.mxu0 0.0
      %6319 = vmatpush1.msra.mxu0 0.0
      %6320 = vmatprep.subr.mxu0 0.0
      %6321 = vmatpush1.msra.mxu0 0.0
      %6322 = vmatprep.subr.mxu0 0.0
      %6323 = vmatpush1.msra.mxu0 0.0
      %6324 = vmatprep.subr.mxu0 0.0
      %6325 = vmatpush1.msra.mxu0 0.0
      %6326 = vmatprep.subr.mxu0 0.0
      %6327 = vmatpush1.msra.mxu0 0.0
      %6328 = vmatprep.subr.mxu0 0.0
      %6329 = vmatpush1.msra.mxu0 0.0
      %6330 = vmatprep.subr.mxu0 0.0
      %6331 = vmatpush1.msra.mxu0 0.0
      %6332 = vmatprep.subr.mxu0 0.0
      %6333 = vmatpush1.msra.mxu0 0.0
      %6334 = vmatprep.subr.mxu0 0.0
      %6335 = vmatpush1.msra.mxu0 0.0
      %6336 = vmatprep.subr.mxu0 0.0
      %6337 = vmatpush1.msra.mxu0 0.0
      %6338 = vmatprep.subr.mxu0 0.0
      %6339 = vmatpush1.msra.mxu0 0.0
      %6340 = vmatprep.subr.mxu0 0.0
      %6341 = vmatpush1.msra.mxu0 0.0
      %6342 = vmatprep.subr.mxu0 0.0
      %6343 = vmatpush1.msra.mxu0 0.0
      %6344 = vmatprep.subr.mxu0 0.0
      %6345 = vmatpush1.msra.mxu0 0.0
      %6346 = vmatprep.subr.mxu0 0.0
      %6347 = vmatpush1.msra.mxu0 0.0
      %6348 = vmatprep.subr.mxu0 0.0
      %6349 = vmatpush1.msra.mxu0 0.0
      %6350 = vmatprep.mubr.f32.mxu0 0.0
      %6351 = vmatmul.mubr.f32.gmra.mrb[0].mxu0 %v6231
      %v6352 = vpop.f32.mrb[0].mxu0
      %v6353 = vadd.f32 %v6284, %v6352
      %v6354 = vpop.f32.mrb[0].mxu0
      %6355 = vmatprep.mubr.f32.mxu0 0.0
      %6356 = vmatmul.mubr.f32.gmra.mrb[0].mxu0 %v6232
      %v6357 = vpop.f32.mrb[0].mxu0
      %v6358 = vadd.f32 %v6284, %v6357
      %v6359 = vpop.f32.mrb[0].mxu0
      %6360 = vmatprep.mubr.f32.mxu0 0.0
      %6361 = vmatmul.mubr.f32.gmra.mrb[0].mxu0 %v6233
      %v6362 = vpop.f32.mrb[0].mxu0
      %v6363 = vadd.f32 %v6284, %v6362
      %v6364 = vpop.f32.mrb[0].mxu0
      %6365 = vmatprep.mubr.f32.mxu0 0.0
      %6366 = vmatmul.mubr.f32.gmra.mrb[0].mxu0 %v6234
      %v6367 = vpop.f32.mrb[0].mxu0
      %v6368 = vadd.f32 %v6284, %v6367
      %v6369 = vpop.f32.mrb[0].mxu0
      %6370 = vmatprep.mubr.f32.mxu0 0.0
      %6371 = vmatmul.mubr.f32.gmra.mrb[0].mxu0 %v6235
      %v6372 = vpop.f32.mrb[0].mxu0
      %v6373 = vadd.f32 %v6284, %v6372
      %v6374 = vpop.f32.mrb[0].mxu0
      %6375 = vmatprep.mubr.f32.mxu0 0.0
      %6376 = vmatmul.mubr.f32.gmra.mrb[0].mxu0 %v6236
      %v6377 = vpop.f32.mrb[0].mxu0
      %v6378 = vadd.f32 %v6284, %v6377
      %v6379 = vpop.f32.mrb[0].mxu0
      %6380 = vmatprep.mubr.f32.mxu0 0.0
      %6381 = vmatmul.mubr.f32.gmra.mrb[0].mxu0 %v6237
      %v6382 = vpop.f32.mrb[0].mxu0
      %v6383 = vadd.f32 %v6284, %v6382
      %v6384 = vpop.f32.mrb[0].mxu0
      %6385 = vmatprep.mubr.f32.mxu0 0.0
      %6386 = vmatmul.mubr.f32.gmra.mrb[0].mxu0 %v6238
      %v6387 = vpop.f32.mrb[0].mxu0
      %v6388 = vadd.f32 %v6284, %v6387
      %v6389 = vpop.f32.mrb[0].mxu0
      %6390 = vmatprep.mubr.f32.mxu0 0.0
      %6391 = vmatmul.mubr.f32.gmra.mrb[0].mxu0 %v6239
      %v6392 = vpop.f32.mrb[0].mxu0
      %v6393 = vadd.f32 %v6284, %v6392
      %v6394 = vpop.f32.mrb[0].mxu0
      %6395 = vmatprep.mubr.f32.mxu0 0.0
      %6396 = vmatmul.mubr.f32.gmra.mrb[0].mxu0 %v6240
      %v6397 = vpop.f32.mrb[0].mxu0
      %v6398 = vadd.f32 %v6284, %v6397
      %v6399 = vpop.f32.mrb[0].mxu0
      %6400 = vmatprep.mubr.f32.mxu0 0.0
      %6401 = vmatmul.mubr.f32.gmra.mrb[0].mxu0 %v6241
      %v6402 = vpop.f32.mrb[0].mxu0
      %v6403 = vadd.f32 %v6284, %v6402
      %v6404 = vpop.f32.mrb[0].mxu0
      %6405 = vmatprep.mubr.f32.mxu0 0.0
      %6406 = vmatmul.mubr.f32.gmra.mrb[0].mxu0 %v6242
      %v6407 = vpop.f32.mrb[0].mxu0
      %v6408 = vadd.f32 %v6284, %v6407
      %v6409 = vpop.f32.mrb[0].mxu0
      %6410 = vmatprep.mubr.f32.mxu0 0.0
      %6411 = vmatmul.mubr.f32.gmra.mrb[0].mxu0 %v6243
      %v6412 = vpop.f32.mrb[0].mxu0
      %v6413 = vadd.f32 %v6284, %v6412
      %v6414 = vpop.f32.mrb[0].mxu0
      %6415 = vmatprep.mubr.f32.mxu0 0.0
      %6416 = vmatmul.mubr.f32.gmra.mrb[0].mxu0 %v6244
      %v6417 = vpop.f32.mrb[0].mxu0
      %v6418 = vadd.f32 %v6284, %v6417
      %v6419 = vpop.f32.mrb[0].mxu0
      %6420 = vmatprep.mubr.f32.mxu0 0.0
      %6421 = vmatmul.mubr.f32.gmra.mrb[0].mxu0 %v6245
      %v6422 = vpop.f32.mrb[0].mxu0
      %v6423 = vadd.f32 %v6284, %v6422
      %v6424 = vpop.f32.mrb[0].mxu0
      %6425 = vmatprep.mubr.f32.mxu0 0.0
      %6426 = vmatmul.mubr.f32.gmra.mrb[0].mxu0 %v6246
      %v6427 = vpop.f32.mrb[0].mxu0
      %v6428 = vadd.f32 %v6284, %v6427
      %v6429 = vpop.f32.mrb[0].mxu0
      %6430 = vmatprep.mubr.f32.mxu0 0.0
      %6431 = vmatmul.mubr.f32.gmra.mrb[0].mxu0 %v6247
      %v6432 = vpop.f32.mrb[0].mxu0
      %v6433 = vadd.f32 %v6284, %v6432
      %v6434 = vpop.f32.mrb[0].mxu0
      %6435 = vmatprep.mubr.f32.mxu0 0.0
      %6436 = vmatmul.mubr.f32.gmra.mrb[0].mxu0 %v6248
      %v6437 = vpop.f32.mrb[0].mxu0
      %v6438 = vadd.f32 %v6284, %v6437
      %v6439 = vpop.f32.mrb[0].mxu0
      %6440 = vmatprep.mubr.f32.mxu0 0.0
      %6441 = vmatmul.mubr.f32.gmra.mrb[0].mxu0 %v6249
      %v6442 = vpop.f32.mrb[0].mxu0
      %v6443 = vadd.f32 %v6284, %v6442
      %v6444 = vpop.f32.mrb[0].mxu0
      %6445 = vmatprep.mubr.f32.mxu0 0.0
      %6446 = vmatmul.mubr.f32.gmra.mrb[0].mxu0 %v6250
      %v6447 = vpop.f32.mrb[0].mxu0
      %v6448 = vadd.f32 %v6284, %v6447
      %v6449 = vpop.f32.mrb[0].mxu0
      %6450 = vmatprep.mubr.f32.mxu0 0.0
      %6451 = vmatmul.mubr.f32.gmra.mrb[0].mxu0 %v6251
      %v6452 = vpop.f32.mrb[0].mxu0
      %v6453 = vadd.f32 %v6284, %v6452
      %v6454 = vpop.f32.mrb[0].mxu0
      %6455 = vmatprep.mubr.f32.mxu0 0.0
      %6456 = vmatmul.mubr.f32.gmra.mrb[0].mxu0 %v6252
      %v6457 = vpop.f32.mrb[0].mxu0
      %v6458 = vadd.f32 %v6284, %v6457
      %v6459 = vpop.f32.mrb[0].mxu0
      %6460 = vmatprep.mubr.f32.mxu0 0.0
      %6461 = vmatmul.mubr.f32.gmra.mrb[0].mxu0 %v6253
      %v6462 = vpop.f32.mrb[0].mxu0
      %v6463 = vadd.f32 %v6284, %v6462
      %v6464 = vpop.f32.mrb[0].mxu0
      %6465 = vmatprep.mubr.f32.mxu0 0.0
      %6466 = vmatmul.mubr.f32.gmra.mrb[0].mxu0 %v6254
      %v6467 = vpop.f32.mrb[0].mxu0
      %v6468 = vadd.f32 %v6284, %v6467
      %v6469 = vpop.f32.mrb[0].mxu0
      %6470 = vmatprep.mubr.f32.mxu0 0.0
      %6471 = vmatmul.mubr.f32.gmra.mrb[0].mxu0 %v6255
      %v6472 = vpop.f32.mrb[0].mxu0
      %v6473 = vadd.f32 %v6284, %v6472
      %v6474 = vpop.f32.mrb[0].mxu0
      %6475 = vmatprep.mubr.f32.mxu0 0.0
      %6476 = vmatmul.mubr.f32.gmra.mrb[0].mxu0 %v6256
      %v6477 = vpop.f32.mrb[0].mxu0
      %v6478 = vadd.f32 %v6284, %v6477
      %v6479 = vpop.f32.mrb[0].mxu0
      %6480 = vmatprep.mubr.f32.mxu0 0.0
      %6481 = vmatmul.mubr.f32.gmra.mrb[0].mxu0 %v6257
      %v6482 = vpop.f32.mrb[0].mxu0
      %v6483 = vadd.f32 %v6284, %v6482
      %v6484 = vpop.f32.mrb[0].mxu0
      %6485 = vmatprep.mubr.f32.mxu0 0.0
      %6486 = vmatmul.mubr.f32.gmra.mrb[0].mxu0 %v6258
      %v6487 = vpop.f32.mrb[0].mxu0
      %v6488 = vadd.f32 %v6284, %v6487
      %v6489 = vpop.f32.mrb[0].mxu0
      %6490 = vmatprep.mubr.f32.mxu0 0.0
      %6491 = vmatmul.mubr.f32.gmra.mrb[0].mxu0 %v6259
      %v6492 = vpop.f32.mrb[0].mxu0
      %v6493 = vadd.f32 %v6284, %v6492
      %v6494 = vpop.f32.mrb[0].mxu0
      %6495 = vmatprep.mubr.f32.mxu0 0.0
      %6496 = vmatmul.mubr.f32.gmra.mrb[0].mxu0 %v6260
      %v6497 = vpop.f32.mrb[0].mxu0
      %v6498 = vadd.f32 %v6284, %v6497
      %v6499 = vpop.f32.mrb[0].mxu0
      %6500 = vmatprep.mubr.f32.mxu0 0.0
      %6501 = vmatmul.mubr.f32.gmra.mrb[0].mxu0 %v6261
      %v6502 = vpop.f32.mrb[0].mxu0
      %v6503 = vadd.f32 %v6284, %v6502
      %v6504 = vpop.f32.mrb[0].mxu0
      %6505 = vmatprep.mubr.f32.mxu0 0.0
      %6506 = vmatmul.mubr.f32.gmra.mrb[0].mxu0 %v6262
      %v6507 = vpop.f32.mrb[0].mxu0
      %v6508 = vadd.f32 %v6284, %v6507
      %v6509 = vpop.f32.mrb[0].mxu0
      %6510 = vdwg.mxu0
      %6511 = vst [vmem:[%s332] sm:$0xff] %v6353
      %6512 = vst [vmem:[%s332 + $0x8] sm:$0xff] %v6358
      %6513 = vst [vmem:[%s332 + $0x10] sm:$0xff] %v6363
      %6514 = vst [vmem:[%s332 + $0x18] sm:$0xff] %v6368
      %6515 = vst [vmem:[%s332 + $0x20] sm:$0xff] %v6373
      %6516 = vst [vmem:[%s332 + $0x28] sm:$0xff] %v6378
      %6517 = vst [vmem:[%s332 + $0x30] sm:$0xff] %v6383
      %6518 = vst [vmem:[%s332 + $0x38] sm:$0xff] %v6388
      %6519 = vst [vmem:[%s332 + $0x40] sm:$0xff] %v6393
      %6520 = vst [vmem:[%s332 + $0x48] sm:$0xff] %v6398
      %6521 = vst [vmem:[%s332 + $0x50] sm:$0xff] %v6403
      %6522 = vst [vmem:[%s332 + $0x58] sm:$0xff] %v6408
      %6523 = vst [vmem:[%s332 + $0x60] sm:$0xff] %v6413
      %6524 = vst [vmem:[%s332 + $0x68] sm:$0xff] %v6418
      %6525 = vst [vmem:[%s332 + $0x70] sm:$0xff] %v6423
      %6526 = vst [vmem:[%s332 + $0x78] sm:$0xff] %v6428
      %6527 = vst [vmem:[%s332 + $0x80] sm:$0xff] %v6433
      %6528 = vst [vmem:[%s332 + $0x88] sm:$0xff] %v6438
      %6529 = vst [vmem:[%s332 + $0x90] sm:$0xff] %v6443
      %6530 = vst [vmem:[%s332 + $0x98] sm:$0xff] %v6448
      %6531 = vst [vmem:[%s332 + $0xa0] sm:$0xff] %v6453
      %6532 = vst [vmem:[%s332 + $0xa8] sm:$0xff] %v6458
      %6533 = vst [vmem:[%s332 + $0xb0] sm:$0xff] %v6463
      %6534 = vst [vmem:[%s332 + $0xb8] sm:$0xff] %v6468
      %6535 = vst [vmem:[%s332 + $0xc0] sm:$0xff] %v6473
      %6536 = vst [vmem:[%s332 + $0xc8] sm:$0xff] %v6478
      %6537 = vst [vmem:[%s332 + $0xd0] sm:$0xff] %v6483
      %6538 = vst [vmem:[%s332 + $0xd8] sm:$0xff] %v6488
      %6539 = vst [vmem:[%s332 + $0xe0] sm:$0xff] %v6493
      %6540 = vst [vmem:[%s332 + $0xe8] sm:$0xff] %v6498
      %6541 = vst [vmem:[%s332 + $0xf0] sm:$0xff] %v6503
      %6542 = vst [vmem:[%s332 + $0xf8] sm:$0xff] %v6508
      %p6543 = scmp.lt.s32.totalorder %s20, 1
      %s6544 = scalar_select %p6543, %s20, 1
      %s6545 = smul.addr %s6544, 32
      %s6546 = smul.addr %s6545, 8
      %s6547 = scalar_lea.vmem %s9, %s6546
      // Predicated region
      $region57: #{focal_modulation_pallas.1} parent=55 // pred_check
        %p6548 = pneg %p232
      $region58: #{focal_modulation_pallas.1} parent=55 // pred_check_branch
        %6550 = sbr.rel (%p6548) target = $region60
      $region59: #{focal_modulation_pallas.1} parent=55 // pred_region
        _
      $region60: #{focal_modulation_pallas.1} parent=55 // pred_fallthru
        _
    $region56: #{focal_modulation_pallas.1} parent=5 // pred_fallthru
      _
    %p6551 = scmp.le.s32.totalorder 2, %s15
    // Predicated region
    $region61: #{focal_modulation_pallas.1} parent=5 // pred_check
      %p6552 = pneg %p6551
    $region62: #{focal_modulation_pallas.1} parent=5 // pred_check_branch
      %6554 = sbr.rel (%p6552) target = $region64
    $region63: #{focal_modulation_pallas.1} parent=5 // pred_region
      %s6555 = ssub.s32 %s15, 2
      // Predicated region
      $region65: #{focal_modulation_pallas.1} parent=63 // pred_check
        %p6556 = pneg %p238
      $region66: #{focal_modulation_pallas.1} parent=63 // pred_check_branch
        %6558 = sbr.rel (%p6556) target = $region68
      $region67: #{focal_modulation_pallas.1} parent=63 // pred_region
        %p6559 = scmp.lt.s32.totalorder %s21, 1
        %s6560 = scalar_select %p6559, %s21, 1
        %s6561 = smul.addr %s6560, 32
        %s6562 = smul.addr %s6561, 8
        %s6563 = scalar_lea.vmem %s9, %s6562
      $region68: #{focal_modulation_pallas.1} parent=63 // pred_fallthru
        _
    $region64: #{focal_modulation_pallas.1} parent=5 // pred_fallthru
      _
  $region6: #{focal_modulation_pallas.1} parent=0 // loop_footer
    %s19 = sadd.s32 1, %s15
  $region7: #{focal_modulation_pallas.1} parent=0 // loop_footer_branch
    %14 = sbr.rel target = $region3
  $region8: #{focal_modulation_pallas.1} parent=0 // loop_exit
    _

</llo_original>
